<compile_context>
chip_gen: v6e
topology: v6e:2x2x1
jax: 0.10.0
libtpu: 0.0.40
codegen_flags: <defaults>
</compile_context>

<pallas_src>
import numpy as np
import jax
import jax.numpy as jnp
from jax import lax
from jax.experimental import pallas as pl
from jax.experimental.pallas import tpu as pltpu


# ----------------------------------------------------------------------------- kernel
def _make_kernel(T, B, idim, C, H, N, M):
    RD = M + 6            # read-head fc width  : [M, 1, 1, 3, 1]
    WR = 3 * M + 6        # write-head fc width : [M, 1, 1, 3, 1, M, M]

    def kernel(inp_ref, hinit_ref, cinit_ref, membias_ref, r0_ref,
               wx_ref, b_ref, wrd_ref, whh_ref, wheads_ref, bheads_ref,
               os_ref, h_ref, c_ref, mem_ref, reads_ref, wst_ref,
               gin_ref):
        # ---- weights: load once, reuse every timestep (a handful of vregs) ----
        w_x = wx_ref[...]          # (idim, 4C)
        bias = b_ref[...]          # (1, 4C)
        w_hh = whh_ref[...]        # (C, 4C)
        w_rd = [wrd_ref[hh] for hh in range(H)]   # each (M, 4C)
        w_heads = wheads_ref[...]  # (C, H*(RD+WR))
        b_heads = bheads_ref[...]  # (1, H*(RD+WR))

        # ---- time-invariant input projection, hoisted out of the recurrence ----
        # gates_in[t] = emb_t @ W_x + (b_ih + b_hh); off the per-step serial chain.
        for t in range(T):
            gin_ref[t] = jnp.dot(inp_ref[t], w_x,
                                 preferred_element_type=jnp.float32) + bias

        def address_pair(o2, w_prev2, memp2, inv_nmem2):
            """Batched content+location addressing.

            Rows 0..B-1 carry the read head's params, rows B..2B-1 the write head's.
            Both use the same (pre-write) memory, so stacking along the sublane/batch
            axis is equivalent to two separate address() calls and halves the serial
            EUP/softmax chain per step.
            """
            k = o2[:, 0:M]
            beta = jax.nn.softplus(o2[:, M:M + 1])
            g = jax.nn.sigmoid(o2[:, M + 1:M + 2])
            s_logits = o2[:, M + 2:M + 5]
            gamma = 1.0 + jax.nn.softplus(o2[:, M + 5:M + 6])
            # softmax over the 3 shift taps (approx reciprocal on the normalizer)
            s_e = jnp.exp(s_logits - jnp.max(s_logits, axis=1, keepdims=True))
            s = s_e * pl.reciprocal(jnp.sum(s_e, axis=1, keepdims=True), approx=True)
            # cosine similarity (eps semantics of F.cosine_similarity with 1e-8 clamp)
            kp = k + 1e-16
            dots = jnp.sum(memp2 * kp[:, None, :], axis=-1)                    # (2B, N)
            inv_nk = lax.rsqrt(jnp.maximum(jnp.sum(kp * kp, axis=-1, keepdims=True),
                                           1e-16))                            # (2B, 1)
            cos = dots * (inv_nmem2 * inv_nk)
            # content weighting: softmax(beta * cos) over N
            logits = beta * cos
            ce = jnp.exp(logits - jnp.max(logits, axis=1, keepdims=True))
            wc = ce * pl.reciprocal(jnp.sum(ce, axis=1, keepdims=True), approx=True)
            # interpolate with previous weighting
            wg = g * wc + (1.0 - g) * w_prev2
            # circular shift: exact lane permutation via slices + concat (no MXU roundtrip)
            w_m1 = jnp.concatenate([wg[:, N - 1:N], wg[:, 0:N - 1]], axis=1)  # wg[(i-1)%N]
            w_p1 = jnp.concatenate([wg[:, 1:N], wg[:, 0:1]], axis=1)          # wg[(i+1)%N]
            ww = s[:, 0:1] * w_m1 + s[:, 1:2] * wg + s[:, 2:3] * w_p1
            # sharpen (tiny clamp is insurance against log(0); never hit here)
            ws = jnp.exp(gamma * jnp.log(jnp.maximum(ww, 1e-30)))
            return ws * pl.reciprocal(jnp.sum(ws, axis=1, keepdims=True) + 1e-16,
                                      approx=True)

        def step(t, carry):
            h, c, mem, reads, wpair = carry

            # ---- LSTM controller: recurrent contribution only (input part precomputed) ----
            gates = gin_ref[t] + jnp.dot(h, w_hh, preferred_element_type=jnp.float32)
            for hh in range(H):
                gates = gates + jnp.dot(reads[hh], w_rd[hh],
                                        preferred_element_type=jnp.float32)
            i_g = jax.nn.sigmoid(gates[:, 0:C])
            f_g = jax.nn.sigmoid(gates[:, C:2 * C])
            g_g = jnp.tanh(gates[:, 2 * C:3 * C])
            o_g = jax.nn.sigmoid(gates[:, 3 * C:4 * C])
            c_new = f_g * c + i_g * g_g
            h_new = o_g * jnp.tanh(c_new)

            # ---- all head fc projections: one fused MXU dot ----
            o_heads = jnp.dot(h_new, w_heads,
                              preferred_element_type=jnp.float32) + b_heads

            new_reads = []
            new_wpair = []
            for hh in range(H):
                base = hh * (RD + WR)
                # shared (pre-write) memory statistics for this head's read+write addressing
                memp = mem + 1e-16
                inv_nmem = lax.rsqrt(jnp.maximum(jnp.sum(memp * memp, axis=-1),
                                                 1e-16))                     # (B, N)
                memp2 = jnp.concatenate([memp, memp], axis=0)                # (2B, N, M)
                inv_nmem2 = jnp.concatenate([inv_nmem, inv_nmem], axis=0)    # (2B, N)
                # stack read / write addressing params along the batch/sublane axis
                o_r = o_heads[:, base:base + RD]
                o_wa = o_heads[:, base + RD:base + 2 * RD]   # write head's first RD cols
                o2 = jnp.concatenate([o_r, o_wa], axis=0)                    # (2B, RD)
                w2 = address_pair(o2, wpair[hh], memp2, inv_nmem2)           # (2B, N)
                w_r = w2[0:B, :]
                w_w = w2[B:2 * B, :]
                # memory.read
                r = jnp.sum(w_r[:, :, None] * mem, axis=1)                   # (B, M)
                # memory.write
                e_gate = jax.nn.sigmoid(
                    o_heads[:, base + RD + M + 6:base + RD + 2 * M + 6])
                add = o_heads[:, base + RD + 2 * M + 6:base + RD + 3 * M + 6]
                mem = (mem * (1.0 - w_w[:, :, None] * e_gate[:, None, :])
                       + w_w[:, :, None] * add[:, None, :])
                new_reads.append(r)
                new_wpair.append(w2)

            # o = cat([controller_outp] + reads, dim=1): one coalesced row store per step
            os_ref[t, :, :] = jnp.concatenate([h_new] + new_reads, axis=1)
            return (h_new, c_new, mem, tuple(new_reads), tuple(new_wpair))

        # ---- reset-path init; state is carried in vregs through the unrolled loop ----
        r0_all = r0_ref[...]
        carry0 = (
            hinit_ref[...],
            cinit_ref[...],
            jnp.broadcast_to(membias_ref[...][None, :, :], (B, N, M)),
            tuple(jnp.broadcast_to(r0_all[hh:hh + 1, :], (B, M)) for hh in range(H)),
            tuple(jnp.zeros((2 * B, N), jnp.float32) for _ in range(H)),
        )
        h_f, c_f, mem_f, reads_f, wpair_f = lax.fori_loop(0, T, step, carry0, unroll=True)

        # ---- single writeback of the final recurrent state ----
        h_ref[...] = h_f
        c_ref[...] = c_f
        mem_ref[...] = mem_f
        for hh in range(H):
            reads_ref[hh] = reads_f[hh]
            wst_ref[2 * hh] = wpair_f[hh][0:B, :]
            wst_ref[2 * hh + 1] = wpair_f[hh][B:2 * B, :]

    return kernel


# ----------------------------------------------------------------------------- wrapper
def decoder_ntm_forward(params, inp, h_init):
    T, B, idim = inp.shape
    C = params['c0'].shape[0]
    H = params['r0'].shape[0]
    N, M = params['mem_bias'].shape
    RD = M + 6
    WR = 3 * M + 6
    HD = C + H * M
    HW = H * (RD + WR)

    c_init = jnp.broadcast_to(params['c0'][None, :], (B, C))

    # ---- pre-transposed / fused weights (plain JAX parameter prep, done once) ----
    W_ih = params['w_ih']                                   # (4C, idim + H*M)
    w_x = W_ih[:, :idim].T                                  # (idim, 4C)  input part
    w_rd = jnp.transpose(W_ih[:, idim:].reshape(4 * C, H, M), (1, 2, 0))   # (H, M, 4C)
    w_hh = params['w_hh'].T                                 # (C, 4C)     recurrent part
    b = (params['b_ih'] + params['b_hh'])[None, :]          # (1, 4C)
    w_heads = jnp.concatenate(
        [jnp.concatenate([params['fc_read_w'][hh].T,
                          params['fc_write_w'][hh].T], axis=1) for hh in range(H)],
        axis=1)                                             # (C, HW)
    b_heads = jnp.concatenate(
        [jnp.concatenate([params['fc_read_b'][hh],
                          params['fc_write_b'][hh]], axis=0) for hh in range(H)],
        axis=0)[None, :]                                    # (1, HW)

    kernel = _make_kernel(T, B, idim, C, H, N, M)

    def full(shape):
        r = len(shape)
        return pl.BlockSpec(tuple(shape), lambda i, _r=r: (0,) * _r)

    in_arrays = (inp, h_init, c_init, params['mem_bias'], params['r0'],
                 w_x, b, w_rd, w_hh, w_heads, b_heads)

    out_shape = (
        jax.ShapeDtypeStruct((T, B, HD), jnp.float32),       # os
        jax.ShapeDtypeStruct((B, C), jnp.float32),           # h
        jax.ShapeDtypeStruct((B, C), jnp.float32),           # c
        jax.ShapeDtypeStruct((B, N, M), jnp.float32),        # memory
        jax.ShapeDtypeStruct((H, B, M), jnp.float32),        # reads
        jax.ShapeDtypeStruct((2 * H, B, N), jnp.float32),    # head weight states
    )

    # TODO(synk): on v7x the batch could be split over the second TensorCore via a leading
    # "parallel" grid axis; on single-TC chips that split only serializes the recurrence,
    # so it is omitted here (would need device-gated dispatch).
    # TODO(synk): if T/B grow beyond toy sizes, tile the T axis with a grid dimension for
    # inp/os instead of keeping full slabs resident (first limit hit is v7x's 64 MiB VMEM).
    os, h, c, mem, reads, wst = pl.pallas_call(
        kernel,
        grid=(1,),   # whole recurrence runs in a single invocation; loop is in-kernel
        in_specs=[full(tuple(a.shape)) for a in in_arrays],
        out_specs=tuple(full(s.shape) for s in out_shape),
        out_shape=out_shape,
        scratch_shapes=[pltpu.VMEM((T, B, 4 * C), jnp.float32)],  # hoisted input gates
        compiler_params=pltpu.CompilerParams(dimension_semantics=("arbitrary",)),
    )(*in_arrays)

    # TODO(synk): the 'ntm_states'-passed-in branch of forward (resuming externally
    # supplied memory / reads / head states) is Python-side state plumbing; this kernel
    # implements the reset-path (fresh memory) semantics and returns the final state.
    return {'output': os, 'hid': (h, c), 'ntm_states': (mem, reads, wst)}


# ----------------------------------------------------------------------------- reference
def reference_forward(params, inp, h_init):
    T, B, idim = inp.shape
    C = params['c0'].shape[0]
    H = params['r0'].shape[0]
    N, M = params['mem_bias'].shape
    HIGH = jax.lax.Precision.HIGHEST

    def address(k, beta, g, s, gamma, w_prev, mem):
        beta = jax.nn.softplus(beta)
        g = jax.nn.sigmoid(g)
        s = jax.nn.softmax(s, axis=1)
        gamma = 1.0 + jax.nn.softplus(gamma)
        memp = mem + 1e-16
        kp = k + 1e-16
        dots = jnp.sum(memp * kp[:, None, :], axis=-1)
        n_mem = jnp.sqrt(jnp.sum(memp * memp, axis=-1))
        n_k = jnp.sqrt(jnp.sum(kp * kp, axis=-1, keepdims=True))
        cos = dots / (jnp.maximum(n_mem, 1e-8) * jnp.maximum(n_k, 1e-8))
        wc = jax.nn.softmax(beta * cos, axis=1)
        wg = g * wc + (1.0 - g) * w_prev
        w_m1 = jnp.roll(wg, 1, axis=1)
        w_p1 = jnp.roll(wg, -1, axis=1)
        ww = s[:, 0:1] * w_m1 + s[:, 1:2] * wg + s[:, 2:3] * w_p1
        ws = jnp.exp(gamma * jnp.log(ww))
        return ws / (jnp.sum(ws, axis=1, keepdims=True) + 1e-16)

    w_ih, w_hh = params['w_ih'], params['w_hh']
    bias = params['b_ih'] + params['b_hh']
    h = h_init
    c = jnp.broadcast_to(params['c0'][None, :], (B, C))
    mem = jnp.broadcast_to(params['mem_bias'][None], (B, N, M))
    reads = [jnp.broadcast_to(params['r0'][hh][None, :], (B, M)) for hh in range(H)]
    wst = [jnp.zeros((B, N), jnp.float32) for _ in range(2 * H)]
    outs = []
    for t in range(T):
        x = jnp.concatenate([inp[t]] + reads, axis=1)
        gates = (jnp.dot(x, w_ih.T, precision=HIGH)
                 + jnp.dot(h, w_hh.T, precision=HIGH) + bias)
        i_g = jax.nn.sigmoid(gates[:, :C])
        f_g = jax.nn.sigmoid(gates[:, C:2 * C])
        g_g = jnp.tanh(gates[:, 2 * C:3 * C])
        o_g = jax.nn.sigmoid(gates[:, 3 * C:])
        c = f_g * c + i_g * g_g
        h = o_g * jnp.tanh(c)
        new_reads = []
        for hh in range(H):
            o_r = jnp.dot(h, params['fc_read_w'][hh].T, precision=HIGH) + params['fc_read_b'][hh]
            k, beta, g, s, gamma = (o_r[:, :M], o_r[:, M:M + 1], o_r[:, M + 1:M + 2],
                                    o_r[:, M + 2:M + 5], o_r[:, M + 5:M + 6])
            w = address(k, beta, g, s, gamma, wst[2 * hh], mem)
            new_reads.append(jnp.sum(w[:, :, None] * mem, axis=1))
            wst[2 * hh] = w
            o_w = jnp.dot(h, params['fc_write_w'][hh].T, precision=HIGH) + params['fc_write_b'][hh]
            k, beta, g, s, gamma = (o_w[:, :M], o_w[:, M:M + 1], o_w[:, M + 1:M + 2],
                                    o_w[:, M + 2:M + 5], o_w[:, M + 5:M + 6])
            e = jax.nn.sigmoid(o_w[:, M + 6:2 * M + 6])
            a = o_w[:, 2 * M + 6:3 * M + 6]
            w = address(k, beta, g, s, gamma, wst[2 * hh + 1], mem)
            mem = mem * (1.0 - w[:, :, None] * e[:, None, :]) + w[:, :, None] * a[:, None, :]
            wst[2 * hh + 1] = w
        reads = new_reads
        outs.append(jnp.concatenate([h] + reads, axis=1))
    return jnp.stack(outs, axis=0), h, c, mem


# ----------------------------------------------------------------------------- params
def init_params(key, idim, C, H, N, M):
    RD, WR = M + 6, 3 * M + 6
    Din = idim + H * M
    ks = jax.random.split(key, 10)
    stdev_lstm = 5.0 / np.sqrt(Din + C)
    stdev_mem = 1.0 / np.sqrt(N + M)
    lin_b = 1.0 / np.sqrt(C)
    return {
        'mem_bias': jax.random.uniform(ks[0], (N, M), jnp.float32, -stdev_mem, stdev_mem),
        'w_ih': jax.random.uniform(ks[1], (4 * C, Din), jnp.float32, -stdev_lstm, stdev_lstm),
        'w_hh': jax.random.uniform(ks[2], (4 * C, C), jnp.float32, -stdev_lstm, stdev_lstm),
        'b_ih': jnp.zeros((4 * C,), jnp.float32),
        'b_hh': jnp.zeros((4 * C,), jnp.float32),
        'fc_read_w': jax.random.uniform(ks[3], (H, RD, C), jnp.float32, -lin_b, lin_b),
        'fc_read_b': jax.random.uniform(ks[4], (H, RD), jnp.float32, -lin_b, lin_b),
        'fc_write_w': jax.random.uniform(ks[5], (H, WR, C), jnp.float32, -lin_b, lin_b),
        'fc_write_b': jax.random.uniform(ks[6], (H, WR), jnp.float32, -lin_b, lin_b),
        'c0': jax.random.normal(ks[7], (C,), jnp.float32) * 0.05,
        'h0': jax.random.normal(ks[8], (C,), jnp.float32) * 0.05,
        'r0': jax.random.normal(ks[9], (H, M), jnp.float32) * 0.02,
    }


if __name__ == "__main__":
    idim, C, H, N, M = 8, 16, 1, 8, 4       # idim, cdim, num_heads, N, M
    T, B = 8, 2                             # seq len, batch
    key = jax.random.PRNGKey(0)
    kp, kx = jax.random.split(key, 2)
    params = init_params(kp, idim, C, H, N, M)
    inp = jax.random.normal(kx, (T, B, idim), jnp.float32)
    # forward's `hid` input (the (1, B, cdim) LSTM h0); c comes from the c0 parameter
    h_init = jnp.broadcast_to(params['h0'][None, :], (B, C))

    out = decoder_ntm_forward(params, inp, h_init)
    jax.block_until_ready(out)

    ref_os, ref_h, ref_c, ref_mem = reference_forward(params, inp, h_init)
    # Tolerance accounts for the approx-reciprocal / rsqrt normalizations used in-kernel
    # (per perf guidance); any structural bug would show up orders of magnitude larger.
    TOL = 5e-3
    assert np.allclose(np.asarray(out['output']), np.asarray(ref_os), atol=TOL, rtol=TOL)
    assert np.allclose(np.asarray(out['hid'][0]), np.asarray(ref_h), atol=TOL, rtol=TOL)
    assert np.allclose(np.asarray(out['hid'][1]), np.asarray(ref_c), atol=TOL, rtol=TOL)
    assert np.allclose(np.asarray(out['ntm_states'][0]), np.asarray(ref_mem), atol=TOL, rtol=TOL)
    print("KERNEL_OK")
</pallas_src>

<mosaic_0001>
module attributes {stable_mosaic.version = 11 : i64} {
  func.func @kernel(%arg0: i32, %arg1: memref<8x2x8xf32, #tpu.memory_space<vmem>>, %arg2: memref<2x16xf32, #tpu.memory_space<vmem>>, %arg3: memref<2x16xf32, #tpu.memory_space<vmem>>, %arg4: memref<8x4xf32, #tpu.memory_space<vmem>>, %arg5: memref<1x4xf32, #tpu.memory_space<vmem>>, %arg6: memref<8x64xf32, #tpu.memory_space<vmem>>, %arg7: memref<1x64xf32, #tpu.memory_space<vmem>>, %arg8: memref<1x4x64xf32, #tpu.memory_space<vmem>>, %arg9: memref<16x64xf32, #tpu.memory_space<vmem>>, %arg10: memref<16x28xf32, #tpu.memory_space<vmem>>, %arg11: memref<1x28xf32, #tpu.memory_space<vmem>>, %arg12: memref<8x2x20xf32, #tpu.memory_space<vmem>>, %arg13: memref<2x16xf32, #tpu.memory_space<vmem>>, %arg14: memref<2x16xf32, #tpu.memory_space<vmem>>, %arg15: memref<2x8x4xf32, #tpu.memory_space<vmem>>, %arg16: memref<1x2x4xf32, #tpu.memory_space<vmem>>, %arg17: memref<2x2x8xf32, #tpu.memory_space<vmem>>, %arg18: memref<8x2x64xf32, #tpu.memory_space<vmem>>) attributes {dimension_semantics = [#tpu.dimension_semantics<arbitrary>], iteration_bounds = array<i64: 1>, scalar_prefetch = 0 : i64, scratch_operands = 1 : i64, tpu.core_type = #tpu.core_type<tc>, window_params = [{pipeline_mode = #tpu.pipeline_mode<synchronous>, transform_indices = @transform_0, window_bounds = array<i64: 8, 2, 8>}, {pipeline_mode = #tpu.pipeline_mode<synchronous>, transform_indices = @transform_1, window_bounds = array<i64: 2, 16>}, {pipeline_mode = #tpu.pipeline_mode<synchronous>, transform_indices = @transform_2, window_bounds = array<i64: 2, 16>}, {pipeline_mode = #tpu.pipeline_mode<synchronous>, transform_indices = @transform_3, window_bounds = array<i64: 8, 4>}, {pipeline_mode = #tpu.pipeline_mode<synchronous>, transform_indices = @transform_4, window_bounds = array<i64: 1, 4>}, {pipeline_mode = #tpu.pipeline_mode<synchronous>, transform_indices = @transform_5, window_bounds = array<i64: 8, 64>}, {pipeline_mode = #tpu.pipeline_mode<synchronous>, transform_indices = @transform_6, window_bounds = array<i64: 1, 64>}, {pipeline_mode = #tpu.pipeline_mode<synchronous>, transform_indices = @transform_7, window_bounds = array<i64: 1, 4, 64>}, {pipeline_mode = #tpu.pipeline_mode<synchronous>, transform_indices = @transform_8, window_bounds = array<i64: 16, 64>}, {pipeline_mode = #tpu.pipeline_mode<synchronous>, transform_indices = @transform_9, window_bounds = array<i64: 16, 28>}, {pipeline_mode = #tpu.pipeline_mode<synchronous>, transform_indices = @transform_10, window_bounds = array<i64: 1, 28>}, {pipeline_mode = #tpu.pipeline_mode<synchronous>, transform_indices = @transform_11, window_bounds = array<i64: 8, 2, 20>}, {pipeline_mode = #tpu.pipeline_mode<synchronous>, transform_indices = @transform_12, window_bounds = array<i64: 2, 16>}, {pipeline_mode = #tpu.pipeline_mode<synchronous>, transform_indices = @transform_13, window_bounds = array<i64: 2, 16>}, {pipeline_mode = #tpu.pipeline_mode<synchronous>, transform_indices = @transform_14, window_bounds = array<i64: 2, 8, 4>}, {pipeline_mode = #tpu.pipeline_mode<synchronous>, transform_indices = @transform_15, window_bounds = array<i64: 1, 2, 4>}, {pipeline_mode = #tpu.pipeline_mode<synchronous>, transform_indices = @transform_16, window_bounds = array<i64: 2, 2, 8>}]} {
    %c0 = arith.constant 0 : index
    %c0_0 = arith.constant 0 : index
    %0 = vector.load %arg6[%c0, %c0_0] : memref<8x64xf32, #tpu.memory_space<vmem>>, vector<8x64xf32>
    %c0_1 = arith.constant 0 : index
    %c0_2 = arith.constant 0 : index
    %1 = vector.load %arg7[%c0_1, %c0_2] : memref<1x64xf32, #tpu.memory_space<vmem>>, vector<1x64xf32>
    %c0_3 = arith.constant 0 : index
    %c0_4 = arith.constant 0 : index
    %2 = vector.load %arg9[%c0_3, %c0_4] : memref<16x64xf32, #tpu.memory_space<vmem>>, vector<16x64xf32>
    %c0_5 = arith.constant 0 : index
    %c0_6 = arith.constant 0 : index
    %c0_7 = arith.constant 0 : index
    %3 = vector.load %arg8[%c0_5, %c0_6, %c0_7] : memref<1x4x64xf32, #tpu.memory_space<vmem>>, vector<1x4x64xf32>
    %4 = vector.shape_cast %3 : vector<1x4x64xf32> to vector<4x64xf32>
    %c0_8 = arith.constant 0 : index
    %c0_9 = arith.constant 0 : index
    %5 = vector.load %arg10[%c0_8, %c0_9] : memref<16x28xf32, #tpu.memory_space<vmem>>, vector<16x28xf32>
    %c0_10 = arith.constant 0 : index
    %c0_11 = arith.constant 0 : index
    %6 = vector.load %arg11[%c0_10, %c0_11] : memref<1x28xf32, #tpu.memory_space<vmem>>, vector<1x28xf32>
    %c0_12 = arith.constant 0 : index
    %c0_13 = arith.constant 0 : index
    %c0_14 = arith.constant 0 : index
    %7 = vector.load %arg1[%c0_12, %c0_13, %c0_14] : memref<8x2x8xf32, #tpu.memory_space<vmem>>, vector<1x2x8xf32>
    %8 = vector.shape_cast %7 : vector<1x2x8xf32> to vector<2x8xf32>
    %cst = arith.constant dense<0.000000e+00> : vector<2x64xf32>
    %9 = tpu.matmul %8, %0, %cst {dimension_numbers = #tpu.dot_dimension_numbers<[1], [0], [0], [1], [0, 0, 1, 1], [], []>} : vector<2x8xf32>, vector<8x64xf32>, vector<2x64xf32> -> vector<2x64xf32>
    %10 = vector.broadcast %1 : vector<1x64xf32> to vector<2x64xf32>
    %11 = arith.addf %9, %10 : vector<2x64xf32>
    %c0_15 = arith.constant 0 : index
    %c0_16 = arith.constant 0 : index
    %c0_17 = arith.constant 0 : index
    %12 = vector.load %arg18[%c0_15, %c0_16, %c0_17] : memref<8x2x64xf32, #tpu.memory_space<vmem>>, vector<1x2x64xf32>
    %13 = vector.shape_cast %12 : vector<1x2x64xf32> to vector<2x64xf32>
    %14 = vector.shape_cast %11 : vector<2x64xf32> to vector<1x2x64xf32>
    tpu.vector_store %arg18[%c0_15, %c0_16, %c0_17], %14 {strides = array<i32>} : memref<8x2x64xf32, #tpu.memory_space<vmem>>, vector<1x2x64xf32>,
    %c1 = arith.constant 1 : index
    %c0_18 = arith.constant 0 : index
    %c0_19 = arith.constant 0 : index
    %15 = vector.load %arg1[%c1, %c0_18, %c0_19] : memref<8x2x8xf32, #tpu.memory_space<vmem>>, vector<1x2x8xf32>
    %16 = vector.shape_cast %15 : vector<1x2x8xf32> to vector<2x8xf32>
    %cst_20 = arith.constant dense<0.000000e+00> : vector<2x64xf32>
    %17 = tpu.matmul %16, %0, %cst_20 {dimension_numbers = #tpu.dot_dimension_numbers<[1], [0], [0], [1], [0, 0, 1, 1], [], []>} : vector<2x8xf32>, vector<8x64xf32>, vector<2x64xf32> -> vector<2x64xf32>
    %18 = vector.broadcast %1 : vector<1x64xf32> to vector<2x64xf32>
    %19 = arith.addf %17, %18 : vector<2x64xf32>
    %c1_21 = arith.constant 1 : index
    %c0_22 = arith.constant 0 : index
    %c0_23 = arith.constant 0 : index
    %20 = vector.load %arg18[%c1_21, %c0_22, %c0_23] : memref<8x2x64xf32, #tpu.memory_space<vmem>>, vector<1x2x64xf32>
    %21 = vector.shape_cast %20 : vector<1x2x64xf32> to vector<2x64xf32>
    %22 = vector.shape_cast %19 : vector<2x64xf32> to vector<1x2x64xf32>
    tpu.vector_store %arg18[%c1_21, %c0_22, %c0_23], %22 {strides = array<i32>} : memref<8x2x64xf32, #tpu.memory_space<vmem>>, vector<1x2x64xf32>,
    %c2 = arith.constant 2 : index
    %c0_24 = arith.constant 0 : index
    %c0_25 = arith.constant 0 : index
    %23 = vector.load %arg1[%c2, %c0_24, %c0_25] : memref<8x2x8xf32, #tpu.memory_space<vmem>>, vector<1x2x8xf32>
    %24 = vector.shape_cast %23 : vector<1x2x8xf32> to vector<2x8xf32>
    %cst_26 = arith.constant dense<0.000000e+00> : vector<2x64xf32>
    %25 = tpu.matmul %24, %0, %cst_26 {dimension_numbers = #tpu.dot_dimension_numbers<[1], [0], [0], [1], [0, 0, 1, 1], [], []>} : vector<2x8xf32>, vector<8x64xf32>, vector<2x64xf32> -> vector<2x64xf32>
    %26 = vector.broadcast %1 : vector<1x64xf32> to vector<2x64xf32>
    %27 = arith.addf %25, %26 : vector<2x64xf32>
    %c2_27 = arith.constant 2 : index
    %c0_28 = arith.constant 0 : index
    %c0_29 = arith.constant 0 : index
    %28 = vector.load %arg18[%c2_27, %c0_28, %c0_29] : memref<8x2x64xf32, #tpu.memory_space<vmem>>, vector<1x2x64xf32>
    %29 = vector.shape_cast %28 : vector<1x2x64xf32> to vector<2x64xf32>
    %30 = vector.shape_cast %27 : vector<2x64xf32> to vector<1x2x64xf32>
    tpu.vector_store %arg18[%c2_27, %c0_28, %c0_29], %30 {strides = array<i32>} : memref<8x2x64xf32, #tpu.memory_space<vmem>>, vector<1x2x64xf32>,
    %c3 = arith.constant 3 : index
    %c0_30 = arith.constant 0 : index
    %c0_31 = arith.constant 0 : index
    %31 = vector.load %arg1[%c3, %c0_30, %c0_31] : memref<8x2x8xf32, #tpu.memory_space<vmem>>, vector<1x2x8xf32>
    %32 = vector.shape_cast %31 : vector<1x2x8xf32> to vector<2x8xf32>
    %cst_32 = arith.constant dense<0.000000e+00> : vector<2x64xf32>
    %33 = tpu.matmul %32, %0, %cst_32 {dimension_numbers = #tpu.dot_dimension_numbers<[1], [0], [0], [1], [0, 0, 1, 1], [], []>} : vector<2x8xf32>, vector<8x64xf32>, vector<2x64xf32> -> vector<2x64xf32>
    %34 = vector.broadcast %1 : vector<1x64xf32> to vector<2x64xf32>
    %35 = arith.addf %33, %34 : vector<2x64xf32>
    %c3_33 = arith.constant 3 : index
    %c0_34 = arith.constant 0 : index
    %c0_35 = arith.constant 0 : index
    %36 = vector.load %arg18[%c3_33, %c0_34, %c0_35] : memref<8x2x64xf32, #tpu.memory_space<vmem>>, vector<1x2x64xf32>
    %37 = vector.shape_cast %36 : vector<1x2x64xf32> to vector<2x64xf32>
    %38 = vector.shape_cast %35 : vector<2x64xf32> to vector<1x2x64xf32>
    tpu.vector_store %arg18[%c3_33, %c0_34, %c0_35], %38 {strides = array<i32>} : memref<8x2x64xf32, #tpu.memory_space<vmem>>, vector<1x2x64xf32>,
    %c4 = arith.constant 4 : index
    %c0_36 = arith.constant 0 : index
    %c0_37 = arith.constant 0 : index
    %39 = vector.load %arg1[%c4, %c0_36, %c0_37] : memref<8x2x8xf32, #tpu.memory_space<vmem>>, vector<1x2x8xf32>
    %40 = vector.shape_cast %39 : vector<1x2x8xf32> to vector<2x8xf32>
    %cst_38 = arith.constant dense<0.000000e+00> : vector<2x64xf32>
    %41 = tpu.matmul %40, %0, %cst_38 {dimension_numbers = #tpu.dot_dimension_numbers<[1], [0], [0], [1], [0, 0, 1, 1], [], []>} : vector<2x8xf32>, vector<8x64xf32>, vector<2x64xf32> -> vector<2x64xf32>
    %42 = vector.broadcast %1 : vector<1x64xf32> to vector<2x64xf32>
    %43 = arith.addf %41, %42 : vector<2x64xf32>
    %c4_39 = arith.constant 4 : index
    %c0_40 = arith.constant 0 : index
    %c0_41 = arith.constant 0 : index
    %44 = vector.load %arg18[%c4_39, %c0_40, %c0_41] : memref<8x2x64xf32, #tpu.memory_space<vmem>>, vector<1x2x64xf32>
    %45 = vector.shape_cast %44 : vector<1x2x64xf32> to vector<2x64xf32>
    %46 = vector.shape_cast %43 : vector<2x64xf32> to vector<1x2x64xf32>
    tpu.vector_store %arg18[%c4_39, %c0_40, %c0_41], %46 {strides = array<i32>} : memref<8x2x64xf32, #tpu.memory_space<vmem>>, vector<1x2x64xf32>,
    %c5 = arith.constant 5 : index
    %c0_42 = arith.constant 0 : index
    %c0_43 = arith.constant 0 : index
    %47 = vector.load %arg1[%c5, %c0_42, %c0_43] : memref<8x2x8xf32, #tpu.memory_space<vmem>>, vector<1x2x8xf32>
    %48 = vector.shape_cast %47 : vector<1x2x8xf32> to vector<2x8xf32>
    %cst_44 = arith.constant dense<0.000000e+00> : vector<2x64xf32>
    %49 = tpu.matmul %48, %0, %cst_44 {dimension_numbers = #tpu.dot_dimension_numbers<[1], [0], [0], [1], [0, 0, 1, 1], [], []>} : vector<2x8xf32>, vector<8x64xf32>, vector<2x64xf32> -> vector<2x64xf32>
    %50 = vector.broadcast %1 : vector<1x64xf32> to vector<2x64xf32>
    %51 = arith.addf %49, %50 : vector<2x64xf32>
    %c5_45 = arith.constant 5 : index
    %c0_46 = arith.constant 0 : index
    %c0_47 = arith.constant 0 : index
    %52 = vector.load %arg18[%c5_45, %c0_46, %c0_47] : memref<8x2x64xf32, #tpu.memory_space<vmem>>, vector<1x2x64xf32>
    %53 = vector.shape_cast %52 : vector<1x2x64xf32> to vector<2x64xf32>
    %54 = vector.shape_cast %51 : vector<2x64xf32> to vector<1x2x64xf32>
    tpu.vector_store %arg18[%c5_45, %c0_46, %c0_47], %54 {strides = array<i32>} : memref<8x2x64xf32, #tpu.memory_space<vmem>>, vector<1x2x64xf32>,
    %c6 = arith.constant 6 : index
    %c0_48 = arith.constant 0 : index
    %c0_49 = arith.constant 0 : index
    %55 = vector.load %arg1[%c6, %c0_48, %c0_49] : memref<8x2x8xf32, #tpu.memory_space<vmem>>, vector<1x2x8xf32>
    %56 = vector.shape_cast %55 : vector<1x2x8xf32> to vector<2x8xf32>
    %cst_50 = arith.constant dense<0.000000e+00> : vector<2x64xf32>
    %57 = tpu.matmul %56, %0, %cst_50 {dimension_numbers = #tpu.dot_dimension_numbers<[1], [0], [0], [1], [0, 0, 1, 1], [], []>} : vector<2x8xf32>, vector<8x64xf32>, vector<2x64xf32> -> vector<2x64xf32>
    %58 = vector.broadcast %1 : vector<1x64xf32> to vector<2x64xf32>
    %59 = arith.addf %57, %58 : vector<2x64xf32>
    %c6_51 = arith.constant 6 : index
    %c0_52 = arith.constant 0 : index
    %c0_53 = arith.constant 0 : index
    %60 = vector.load %arg18[%c6_51, %c0_52, %c0_53] : memref<8x2x64xf32, #tpu.memory_space<vmem>>, vector<1x2x64xf32>
    %61 = vector.shape_cast %60 : vector<1x2x64xf32> to vector<2x64xf32>
    %62 = vector.shape_cast %59 : vector<2x64xf32> to vector<1x2x64xf32>
    tpu.vector_store %arg18[%c6_51, %c0_52, %c0_53], %62 {strides = array<i32>} : memref<8x2x64xf32, #tpu.memory_space<vmem>>, vector<1x2x64xf32>,
    %c7 = arith.constant 7 : index
    %c0_54 = arith.constant 0 : index
    %c0_55 = arith.constant 0 : index
    %63 = vector.load %arg1[%c7, %c0_54, %c0_55] : memref<8x2x8xf32, #tpu.memory_space<vmem>>, vector<1x2x8xf32>
    %64 = vector.shape_cast %63 : vector<1x2x8xf32> to vector<2x8xf32>
    %cst_56 = arith.constant dense<0.000000e+00> : vector<2x64xf32>
    %65 = tpu.matmul %64, %0, %cst_56 {dimension_numbers = #tpu.dot_dimension_numbers<[1], [0], [0], [1], [0, 0, 1, 1], [], []>} : vector<2x8xf32>, vector<8x64xf32>, vector<2x64xf32> -> vector<2x64xf32>
    %66 = vector.broadcast %1 : vector<1x64xf32> to vector<2x64xf32>
    %67 = arith.addf %65, %66 : vector<2x64xf32>
    %c7_57 = arith.constant 7 : index
    %c0_58 = arith.constant 0 : index
    %c0_59 = arith.constant 0 : index
    %68 = vector.load %arg18[%c7_57, %c0_58, %c0_59] : memref<8x2x64xf32, #tpu.memory_space<vmem>>, vector<1x2x64xf32>
    %69 = vector.shape_cast %68 : vector<1x2x64xf32> to vector<2x64xf32>
    %70 = vector.shape_cast %67 : vector<2x64xf32> to vector<1x2x64xf32>
    tpu.vector_store %arg18[%c7_57, %c0_58, %c0_59], %70 {strides = array<i32>} : memref<8x2x64xf32, #tpu.memory_space<vmem>>, vector<1x2x64xf32>,
    %c0_60 = arith.constant 0 : index
    %c0_61 = arith.constant 0 : index
    %71 = vector.load %arg5[%c0_60, %c0_61] : memref<1x4xf32, #tpu.memory_space<vmem>>, vector<1x4xf32>
    %c0_62 = arith.constant 0 : index
    %c0_63 = arith.constant 0 : index
    %72 = vector.load %arg2[%c0_62, %c0_63] : memref<2x16xf32, #tpu.memory_space<vmem>>, vector<2x16xf32>
    %c0_64 = arith.constant 0 : index
    %c0_65 = arith.constant 0 : index
    %73 = vector.load %arg3[%c0_64, %c0_65] : memref<2x16xf32, #tpu.memory_space<vmem>>, vector<2x16xf32>
    %c0_66 = arith.constant 0 : index
    %c0_67 = arith.constant 0 : index
    %74 = vector.load %arg4[%c0_66, %c0_67] : memref<8x4xf32, #tpu.memory_space<vmem>>, vector<8x4xf32>
    %75 = vector.shape_cast %74 : vector<8x4xf32> to vector<1x8x4xf32>
    %76 = vector.shape_cast %75 : vector<1x8x4xf32> to vector<1x8x4xf32>
    %77 = vector.broadcast %76 : vector<1x8x4xf32> to vector<2x8x4xf32>
    %78 = vector.shape_cast %71 : vector<1x4xf32> to vector<1x4xf32>
    %79 = vector.broadcast %78 : vector<1x4xf32> to vector<2x4xf32>
    %cst_68 = arith.constant 0.000000e+00 : f32
    %80 = vector.broadcast %cst_68 : f32 to vector<4x8xf32>
    %c0_i32 = arith.constant 0 : i32
    %81 = arith.index_cast %c0_i32 : i32 to index
    %c0_69 = arith.constant 0 : index
    %c0_70 = arith.constant 0 : index
    %82 = vector.load %arg18[%81, %c0_69, %c0_70] : memref<8x2x64xf32, #tpu.memory_space<vmem>>, vector<1x2x64xf32>
    %83 = vector.shape_cast %82 : vector<1x2x64xf32> to vector<2x64xf32>
    %cst_71 = arith.constant dense<0.000000e+00> : vector<2x64xf32>
    %84 = tpu.matmul %72, %2, %cst_71 {dimension_numbers = #tpu.dot_dimension_numbers<[1], [0], [0], [1], [0, 0, 1, 1], [], []>} : vector<2x16xf32>, vector<16x64xf32>, vector<2x64xf32> -> vector<2x64xf32>
    %85 = arith.addf %83, %84 : vector<2x64xf32>
    %cst_72 = arith.constant dense<0.000000e+00> : vector<2x64xf32>
    %86 = tpu.matmul %79, %4, %cst_72 {dimension_numbers = #tpu.dot_dimension_numbers<[1], [0], [0], [1], [0, 0, 1, 1], [], []>} : vector<2x4xf32>, vector<4x64xf32>, vector<2x64xf32> -> vector<2x64xf32>
    %87 = arith.addf %85, %86 : vector<2x64xf32>
    %88 = vector.extract_strided_slice %87 {offsets = [0, 0], sizes = [2, 16], strides = [1, 1]} : vector<2x64xf32> to vector<2x16xf32>
    %89 = arith.negf %88 : vector<2x16xf32>
    %90 = math.exp %89 : vector<2x16xf32>
    %cst_73 = arith.constant 1.000000e+00 : f32
    %91 = vector.broadcast %cst_73 : f32 to vector<2x16xf32>
    %92 = arith.addf %91, %90 : vector<2x16xf32>
    %93 = arith.divf %91, %92 : vector<2x16xf32>
    %94 = vector.extract_strided_slice %87 {offsets = [0, 16], sizes = [2, 16], strides = [1, 1]} : vector<2x64xf32> to vector<2x16xf32>
    %95 = arith.negf %94 : vector<2x16xf32>
    %96 = math.exp %95 : vector<2x16xf32>
    %cst_74 = arith.constant 1.000000e+00 : f32
    %97 = vector.broadcast %cst_74 : f32 to vector<2x16xf32>
    %98 = arith.addf %97, %96 : vector<2x16xf32>
    %99 = arith.divf %97, %98 : vector<2x16xf32>
    %100 = vector.extract_strided_slice %87 {offsets = [0, 32], sizes = [2, 16], strides = [1, 1]} : vector<2x64xf32> to vector<2x16xf32>
    %101 = math.tanh %100 : vector<2x16xf32>
    %102 = vector.extract_strided_slice %87 {offsets = [0, 48], sizes = [2, 16], strides = [1, 1]} : vector<2x64xf32> to vector<2x16xf32>
    %103 = arith.negf %102 : vector<2x16xf32>
    %104 = math.exp %103 : vector<2x16xf32>
    %cst_75 = arith.constant 1.000000e+00 : f32
    %105 = vector.broadcast %cst_75 : f32 to vector<2x16xf32>
    %106 = arith.addf %105, %104 : vector<2x16xf32>
    %107 = arith.divf %105, %106 : vector<2x16xf32>
    %108 = arith.mulf %99, %73 : vector<2x16xf32>
    %109 = arith.mulf %93, %101 : vector<2x16xf32>
    %110 = arith.addf %108, %109 : vector<2x16xf32>
    %111 = math.tanh %110 : vector<2x16xf32>
    %112 = arith.mulf %107, %111 : vector<2x16xf32>
    %cst_76 = arith.constant dense<0.000000e+00> : vector<2x28xf32>
    %113 = tpu.matmul %112, %5, %cst_76 {dimension_numbers = #tpu.dot_dimension_numbers<[1], [0], [0], [1], [0, 0, 1, 1], [], []>} : vector<2x16xf32>, vector<16x28xf32>, vector<2x28xf32> -> vector<2x28xf32>
    %114 = vector.broadcast %6 : vector<1x28xf32> to vector<2x28xf32>
    %115 = arith.addf %113, %114 : vector<2x28xf32>
    %cst_77 = arith.constant 1.000000e-16 : f32
    %116 = vector.broadcast %cst_77 : f32 to vector<2x8x4xf32>
    %117 = arith.addf %77, %116 : vector<2x8x4xf32>
    %118 = arith.mulf %117, %117 : vector<2x8x4xf32>
    %cst_78 = arith.constant dense<0.000000e+00> : vector<2x8xf32>
    %119 = vector.multi_reduction <add>, %118, %cst_78 [2] : vector<2x8x4xf32> to vector<2x8xf32>
    %cst_79 = arith.constant 1.000000e-16 : f32
    %120 = vector.broadcast %cst_79 : f32 to vector<2x8xf32>
    %121 = arith.maximumf %119, %120 : vector<2x8xf32>
    %122 = math.rsqrt %121 : vector<2x8xf32>
    %123 = tpu.concatenate %117, %117 in 0 : vector<2x8x4xf32>, vector<2x8x4xf32> -> vector<4x8x4xf32>
    %124 = tpu.concatenate %122, %122 in 0 : vector<2x8xf32>, vector<2x8xf32> -> vector<4x8xf32>
    %125 = vector.extract_strided_slice %115 {offsets = [0, 0], sizes = [2, 10], strides = [1, 1]} : vector<2x28xf32> to vector<2x10xf32>
    %126 = vector.extract_strided_slice %115 {offsets = [0, 10], sizes = [2, 10], strides = [1, 1]} : vector<2x28xf32> to vector<2x10xf32>
    %127 = tpu.concatenate %125, %126 in 0 : vector<2x10xf32>, vector<2x10xf32> -> vector<4x10xf32>
    %128 = vector.extract_strided_slice %127 {offsets = [0, 0], sizes = [4, 4], strides = [1, 1]} : vector<4x10xf32> to vector<4x4xf32>
    %129 = vector.extract_strided_slice %127 {offsets = [0, 4], sizes = [4, 1], strides = [1, 1]} : vector<4x10xf32> to vector<4x1xf32>
    %cst_80 = arith.constant 0.000000e+00 : f32
    %130 = vector.broadcast %cst_80 : f32 to vector<4x1xf32>
    %131 = arith.maximumf %129, %130 : vector<4x1xf32>
    %132 = vector.broadcast %cst_80 : f32 to vector<4x1xf32>
    %133 = arith.subf %129, %132 : vector<4x1xf32>
    %134 = arith.cmpf one, %133, %133 : vector<4x1xf32>
    %135 = vector.broadcast %cst_80 : f32 to vector<4x1xf32>
    %136 = arith.addf %129, %135 : vector<4x1xf32>
    %137 = math.absf %133 : vector<4x1xf32>
    %cst_81 = arith.constant 0.000000e+00 : f32
    %138 = vector.broadcast %cst_81 : f32 to vector<4x1xf32>
    %139 = arith.subf %138, %137 : vector<4x1xf32>
    %140 = math.exp %139 : vector<4x1xf32>
    %141 = math.log1p %140 : vector<4x1xf32>
    %142 = arith.addf %131, %141 : vector<4x1xf32>
    %143 = arith.select %134, %136, %142 : vector<4x1xi1>, vector<4x1xf32>
    %144 = vector.extract_strided_slice %127 {offsets = [0, 5], sizes = [4, 1], strides = [1, 1]} : vector<4x10xf32> to vector<4x1xf32>
    %145 = arith.negf %144 : vector<4x1xf32>
    %146 = math.exp %145 : vector<4x1xf32>
    %cst_82 = arith.constant 1.000000e+00 : f32
    %147 = vector.broadcast %cst_82 : f32 to vector<4x1xf32>
    %148 = arith.addf %147, %146 : vector<4x1xf32>
    %149 = arith.divf %147, %148 : vector<4x1xf32>
    %150 = vector.extract_strided_slice %127 {offsets = [0, 6], sizes = [4, 3], strides = [1, 1]} : vector<4x10xf32> to vector<4x3xf32>
    %151 = vector.extract_strided_slice %127 {offsets = [0, 9], sizes = [4, 1], strides = [1, 1]} : vector<4x10xf32> to vector<4x1xf32>
    %cst_83 = arith.constant 0.000000e+00 : f32
    %152 = vector.broadcast %cst_83 : f32 to vector<4x1xf32>
    %153 = arith.maximumf %151, %152 : vector<4x1xf32>
    %154 = vector.broadcast %cst_83 : f32 to vector<4x1xf32>
    %155 = arith.subf %151, %154 : vector<4x1xf32>
    %156 = arith.cmpf one, %155, %155 : vector<4x1xf32>
    %157 = vector.broadcast %cst_83 : f32 to vector<4x1xf32>
    %158 = arith.addf %151, %157 : vector<4x1xf32>
    %159 = math.absf %155 : vector<4x1xf32>
    %cst_84 = arith.constant 0.000000e+00 : f32
    %160 = vector.broadcast %cst_84 : f32 to vector<4x1xf32>
    %161 = arith.subf %160, %159 : vector<4x1xf32>
    %162 = math.exp %161 : vector<4x1xf32>
    %163 = math.log1p %162 : vector<4x1xf32>
    %164 = arith.addf %153, %163 : vector<4x1xf32>
    %165 = arith.select %156, %158, %164 : vector<4x1xi1>, vector<4x1xf32>
    %cst_85 = arith.constant 1.000000e+00 : f32
    %166 = vector.broadcast %cst_85 : f32 to vector<4x1xf32>
    %167 = arith.addf %166, %165 : vector<4x1xf32>
    %cst_86 = arith.constant dense<0xFF800000> : vector<4xf32>
    %168 = vector.multi_reduction <maximumf>, %150, %cst_86 [1] : vector<4x3xf32> to vector<4xf32>
    %169 = vector.shape_cast %168 : vector<4xf32> to vector<4x1xf32>
    %170 = vector.broadcast %169 : vector<4x1xf32> to vector<4x3xf32>
    %171 = arith.subf %150, %170 : vector<4x3xf32>
    %172 = math.exp %171 : vector<4x3xf32>
    %cst_87 = arith.constant dense<0.000000e+00> : vector<4xf32>
    %173 = vector.multi_reduction <add>, %172, %cst_87 [1] : vector<4x3xf32> to vector<4xf32>
    %174 = vector.shape_cast %173 : vector<4xf32> to vector<4x1xf32>
    %175 = tpu.reciprocal %174 {approx = true} : vector<4x1xf32> -> vector<4x1xf32>
    %176 = vector.broadcast %175 : vector<4x1xf32> to vector<4x3xf32>
    %177 = arith.mulf %172, %176 : vector<4x3xf32>
    %cst_88 = arith.constant 1.000000e-16 : f32
    %178 = vector.broadcast %cst_88 : f32 to vector<4x4xf32>
    %179 = arith.addf %128, %178 : vector<4x4xf32>
    %180 = vector.shape_cast %179 : vector<4x4xf32> to vector<4x1x4xf32>
    %181 = vector.broadcast %180 : vector<4x1x4xf32> to vector<4x8x4xf32>
    %182 = arith.mulf %123, %181 : vector<4x8x4xf32>
    %cst_89 = arith.constant dense<0.000000e+00> : vector<4x8xf32>
    %183 = vector.multi_reduction <add>, %182, %cst_89 [2] : vector<4x8x4xf32> to vector<4x8xf32>
    %184 = arith.mulf %179, %179 : vector<4x4xf32>
    %cst_90 = arith.constant dense<0.000000e+00> : vector<4xf32>
    %185 = vector.multi_reduction <add>, %184, %cst_90 [1] : vector<4x4xf32> to vector<4xf32>
    %186 = vector.shape_cast %185 : vector<4xf32> to vector<4x1xf32>
    %cst_91 = arith.constant 1.000000e-16 : f32
    %187 = vector.broadcast %cst_91 : f32 to vector<4x1xf32>
    %188 = arith.maximumf %186, %187 : vector<4x1xf32>
    %189 = math.rsqrt %188 : vector<4x1xf32>
    %190 = vector.broadcast %189 : vector<4x1xf32> to vector<4x8xf32>
    %191 = arith.mulf %124, %190 : vector<4x8xf32>
    %192 = arith.mulf %183, %191 : vector<4x8xf32>
    %193 = vector.broadcast %143 : vector<4x1xf32> to vector<4x8xf32>
    %194 = arith.mulf %193, %192 : vector<4x8xf32>
    %cst_92 = arith.constant dense<0xFF800000> : vector<4xf32>
    %195 = vector.multi_reduction <maximumf>, %194, %cst_92 [1] : vector<4x8xf32> to vector<4xf32>
    %196 = vector.shape_cast %195 : vector<4xf32> to vector<4x1xf32>
    %197 = vector.broadcast %196 : vector<4x1xf32> to vector<4x8xf32>
    %198 = arith.subf %194, %197 : vector<4x8xf32>
    %199 = math.exp %198 : vector<4x8xf32>
    %cst_93 = arith.constant dense<0.000000e+00> : vector<4xf32>
    %200 = vector.multi_reduction <add>, %199, %cst_93 [1] : vector<4x8xf32> to vector<4xf32>
    %201 = vector.shape_cast %200 : vector<4xf32> to vector<4x1xf32>
    %202 = tpu.reciprocal %201 {approx = true} : vector<4x1xf32> -> vector<4x1xf32>
    %203 = vector.broadcast %202 : vector<4x1xf32> to vector<4x8xf32>
    %204 = arith.mulf %199, %203 : vector<4x8xf32>
    %205 = vector.broadcast %149 : vector<4x1xf32> to vector<4x8xf32>
    %206 = arith.mulf %205, %204 : vector<4x8xf32>
    %cst_94 = arith.constant 1.000000e+00 : f32
    %207 = vector.broadcast %cst_94 : f32 to vector<4x1xf32>
    %208 = arith.subf %207, %149 : vector<4x1xf32>
    %209 = vector.broadcast %208 : vector<4x1xf32> to vector<4x8xf32>
    %210 = arith.mulf %209, %80 : vector<4x8xf32>
    %211 = arith.addf %206, %210 : vector<4x8xf32>
    %212 = vector.extract_strided_slice %211 {offsets = [0, 7], sizes = [4, 1], strides = [1, 1]} : vector<4x8xf32> to vector<4x1xf32>
    %213 = vector.extract_strided_slice %211 {offsets = [0, 0], sizes = [4, 7], strides = [1, 1]} : vector<4x8xf32> to vector<4x7xf32>
    %214 = tpu.concatenate %212, %213 in 1 : vector<4x1xf32>, vector<4x7xf32> -> vector<4x8xf32>
    %215 = vector.extract_strided_slice %211 {offsets = [0, 1], sizes = [4, 7], strides = [1, 1]} : vector<4x8xf32> to vector<4x7xf32>
    %216 = vector.extract_strided_slice %211 {offsets = [0, 0], sizes = [4, 1], strides = [1, 1]} : vector<4x8xf32> to vector<4x1xf32>
    %217 = tpu.concatenate %215, %216 in 1 : vector<4x7xf32>, vector<4x1xf32> -> vector<4x8xf32>
    %218 = vector.extract_strided_slice %177 {offsets = [0, 0], sizes = [4, 1], strides = [1, 1]} : vector<4x3xf32> to vector<4x1xf32>
    %219 = vector.broadcast %218 : vector<4x1xf32> to vector<4x8xf32>
    %220 = arith.mulf %219, %214 : vector<4x8xf32>
    %221 = vector.extract_strided_slice %177 {offsets = [0, 1], sizes = [4, 1], strides = [1, 1]} : vector<4x3xf32> to vector<4x1xf32>
    %222 = vector.broadcast %221 : vector<4x1xf32> to vector<4x8xf32>
    %223 = arith.mulf %222, %211 : vector<4x8xf32>
    %224 = arith.addf %220, %223 : vector<4x8xf32>
    %225 = vector.extract_strided_slice %177 {offsets = [0, 2], sizes = [4, 1], strides = [1, 1]} : vector<4x3xf32> to vector<4x1xf32>
    %226 = vector.broadcast %225 : vector<4x1xf32> to vector<4x8xf32>
    %227 = arith.mulf %226, %217 : vector<4x8xf32>
    %228 = arith.addf %224, %227 : vector<4x8xf32>
    %cst_95 = arith.constant 1.000000e-30 : f32
    %229 = vector.broadcast %cst_95 : f32 to vector<4x8xf32>
    %230 = arith.maximumf %228, %229 : vector<4x8xf32>
    %231 = math.log %230 : vector<4x8xf32>
    %232 = vector.broadcast %167 : vector<4x1xf32> to vector<4x8xf32>
    %233 = arith.mulf %232, %231 : vector<4x8xf32>
    %234 = math.exp %233 : vector<4x8xf32>
    %cst_96 = arith.constant dense<0.000000e+00> : vector<4xf32>
    %235 = vector.multi_reduction <add>, %234, %cst_96 [1] : vector<4x8xf32> to vector<4xf32>
    %236 = vector.shape_cast %235 : vector<4xf32> to vector<4x1xf32>
    %cst_97 = arith.constant 1.000000e-16 : f32
    %237 = vector.broadcast %cst_97 : f32 to vector<4x1xf32>
    %238 = arith.addf %236, %237 : vector<4x1xf32>
    %239 = tpu.reciprocal %238 {approx = true} : vector<4x1xf32> -> vector<4x1xf32>
    %240 = vector.broadcast %239 : vector<4x1xf32> to vector<4x8xf32>
    %241 = arith.mulf %234, %240 : vector<4x8xf32>
    %242 = vector.extract_strided_slice %241 {offsets = [0, 0], sizes = [2, 8], strides = [1, 1]} : vector<4x8xf32> to vector<2x8xf32>
    %243 = vector.extract_strided_slice %241 {offsets = [2, 0], sizes = [2, 8], strides = [1, 1]} : vector<4x8xf32> to vector<2x8xf32>
    %244 = vector.shape_cast %242 : vector<2x8xf32> to vector<2x8x1xf32>
    %245 = vector.broadcast %244 : vector<2x8x1xf32> to vector<2x8x4xf32>
    %246 = arith.mulf %245, %77 : vector<2x8x4xf32>
    %cst_98 = arith.constant dense<0.000000e+00> : vector<2x4xf32>
    %247 = vector.multi_reduction <add>, %246, %cst_98 [1] : vector<2x8x4xf32> to vector<2x4xf32>
    %248 = vector.extract_strided_slice %115 {offsets = [0, 20], sizes = [2, 4], strides = [1, 1]} : vector<2x28xf32> to vector<2x4xf32>
    %249 = arith.negf %248 : vector<2x4xf32>
    %250 = math.exp %249 : vector<2x4xf32>
    %cst_99 = arith.constant 1.000000e+00 : f32
    %251 = vector.broadcast %cst_99 : f32 to vector<2x4xf32>
    %252 = arith.addf %251, %250 : vector<2x4xf32>
    %253 = arith.divf %251, %252 : vector<2x4xf32>
    %254 = vector.extract_strided_slice %115 {offsets = [0, 24], sizes = [2, 4], strides = [1, 1]} : vector<2x28xf32> to vector<2x4xf32>
    %255 = vector.shape_cast %243 : vector<2x8xf32> to vector<2x8x1xf32>
    %256 = vector.shape_cast %253 : vector<2x4xf32> to vector<2x1x4xf32>
    %257 = vector.broadcast %255 : vector<2x8x1xf32> to vector<2x8x4xf32>
    %258 = vector.broadcast %256 : vector<2x1x4xf32> to vector<2x8x4xf32>
    %259 = arith.mulf %257, %258 : vector<2x8x4xf32>
    %cst_100 = arith.constant 1.000000e+00 : f32
    %260 = vector.broadcast %cst_100 : f32 to vector<2x8x4xf32>
    %261 = arith.subf %260, %259 : vector<2x8x4xf32>
    %262 = arith.mulf %77, %261 : vector<2x8x4xf32>
    %263 = vector.shape_cast %243 : vector<2x8xf32> to vector<2x8x1xf32>
    %264 = vector.shape_cast %254 : vector<2x4xf32> to vector<2x1x4xf32>
    %265 = vector.broadcast %263 : vector<2x8x1xf32> to vector<2x8x4xf32>
    %266 = vector.broadcast %264 : vector<2x1x4xf32> to vector<2x8x4xf32>
    %267 = arith.mulf %265, %266 : vector<2x8x4xf32>
    %268 = arith.addf %262, %267 : vector<2x8x4xf32>
    %269 = tpu.concatenate %112, %247 in 1 : vector<2x16xf32>, vector<2x4xf32> -> vector<2x20xf32>
    %270 = arith.index_cast %c0_i32 : i32 to index
    %c0_101 = arith.constant 0 : index
    %c0_102 = arith.constant 0 : index
    %271 = vector.load %arg12[%270, %c0_101, %c0_102] : memref<8x2x20xf32, #tpu.memory_space<vmem>>, vector<1x2x20xf32>
    %272 = vector.shape_cast %271 : vector<1x2x20xf32> to vector<2x20xf32>
    %273 = vector.shape_cast %269 : vector<2x20xf32> to vector<1x2x20xf32>
    tpu.vector_store %arg12[%270, %c0_101, %c0_102], %273 {strides = array<i32>} : memref<8x2x20xf32, #tpu.memory_space<vmem>>, vector<1x2x20xf32>,
    %c1_i32 = arith.constant 1 : i32
    %274 = arith.index_cast %c1_i32 : i32 to index
    %c0_103 = arith.constant 0 : index
    %c0_104 = arith.constant 0 : index
    %275 = vector.load %arg18[%274, %c0_103, %c0_104] : memref<8x2x64xf32, #tpu.memory_space<vmem>>, vector<1x2x64xf32>
    %276 = vector.shape_cast %275 : vector<1x2x64xf32> to vector<2x64xf32>
    %cst_105 = arith.constant dense<0.000000e+00> : vector<2x64xf32>
    %277 = tpu.matmul %112, %2, %cst_105 {dimension_numbers = #tpu.dot_dimension_numbers<[1], [0], [0], [1], [0, 0, 1, 1], [], []>} : vector<2x16xf32>, vector<16x64xf32>, vector<2x64xf32> -> vector<2x64xf32>
    %278 = arith.addf %276, %277 : vector<2x64xf32>
    %cst_106 = arith.constant dense<0.000000e+00> : vector<2x64xf32>
    %279 = tpu.matmul %247, %4, %cst_106 {dimension_numbers = #tpu.dot_dimension_numbers<[1], [0], [0], [1], [0, 0, 1, 1], [], []>} : vector<2x4xf32>, vector<4x64xf32>, vector<2x64xf32> -> vector<2x64xf32>
    %280 = arith.addf %278, %279 : vector<2x64xf32>
    %281 = vector.extract_strided_slice %280 {offsets = [0, 0], sizes = [2, 16], strides = [1, 1]} : vector<2x64xf32> to vector<2x16xf32>
    %282 = arith.negf %281 : vector<2x16xf32>
    %283 = math.exp %282 : vector<2x16xf32>
    %cst_107 = arith.constant 1.000000e+00 : f32
    %284 = vector.broadcast %cst_107 : f32 to vector<2x16xf32>
    %285 = arith.addf %284, %283 : vector<2x16xf32>
    %286 = arith.divf %284, %285 : vector<2x16xf32>
    %287 = vector.extract_strided_slice %280 {offsets = [0, 16], sizes = [2, 16], strides = [1, 1]} : vector<2x64xf32> to vector<2x16xf32>
    %288 = arith.negf %287 : vector<2x16xf32>
    %289 = math.exp %288 : vector<2x16xf32>
    %cst_108 = arith.constant 1.000000e+00 : f32
    %290 = vector.broadcast %cst_108 : f32 to vector<2x16xf32>
    %291 = arith.addf %290, %289 : vector<2x16xf32>
    %292 = arith.divf %290, %291 : vector<2x16xf32>
    %293 = vector.extract_strided_slice %280 {offsets = [0, 32], sizes = [2, 16], strides = [1, 1]} : vector<2x64xf32> to vector<2x16xf32>
    %294 = math.tanh %293 : vector<2x16xf32>
    %295 = vector.extract_strided_slice %280 {offsets = [0, 48], sizes = [2, 16], strides = [1, 1]} : vector<2x64xf32> to vector<2x16xf32>
    %296 = arith.negf %295 : vector<2x16xf32>
    %297 = math.exp %296 : vector<2x16xf32>
    %cst_109 = arith.constant 1.000000e+00 : f32
    %298 = vector.broadcast %cst_109 : f32 to vector<2x16xf32>
    %299 = arith.addf %298, %297 : vector<2x16xf32>
    %300 = arith.divf %298, %299 : vector<2x16xf32>
    %301 = arith.mulf %292, %110 : vector<2x16xf32>
    %302 = arith.mulf %286, %294 : vector<2x16xf32>
    %303 = arith.addf %301, %302 : vector<2x16xf32>
    %304 = math.tanh %303 : vector<2x16xf32>
    %305 = arith.mulf %300, %304 : vector<2x16xf32>
    %cst_110 = arith.constant dense<0.000000e+00> : vector<2x28xf32>
    %306 = tpu.matmul %305, %5, %cst_110 {dimension_numbers = #tpu.dot_dimension_numbers<[1], [0], [0], [1], [0, 0, 1, 1], [], []>} : vector<2x16xf32>, vector<16x28xf32>, vector<2x28xf32> -> vector<2x28xf32>
    %307 = vector.broadcast %6 : vector<1x28xf32> to vector<2x28xf32>
    %308 = arith.addf %306, %307 : vector<2x28xf32>
    %cst_111 = arith.constant 1.000000e-16 : f32
    %309 = vector.broadcast %cst_111 : f32 to vector<2x8x4xf32>
    %310 = arith.addf %268, %309 : vector<2x8x4xf32>
    %311 = arith.mulf %310, %310 : vector<2x8x4xf32>
    %cst_112 = arith.constant dense<0.000000e+00> : vector<2x8xf32>
    %312 = vector.multi_reduction <add>, %311, %cst_112 [2] : vector<2x8x4xf32> to vector<2x8xf32>
    %cst_113 = arith.constant 1.000000e-16 : f32
    %313 = vector.broadcast %cst_113 : f32 to vector<2x8xf32>
    %314 = arith.maximumf %312, %313 : vector<2x8xf32>
    %315 = math.rsqrt %314 : vector<2x8xf32>
    %316 = tpu.concatenate %310, %310 in 0 : vector<2x8x4xf32>, vector<2x8x4xf32> -> vector<4x8x4xf32>
    %317 = tpu.concatenate %315, %315 in 0 : vector<2x8xf32>, vector<2x8xf32> -> vector<4x8xf32>
    %318 = vector.extract_strided_slice %308 {offsets = [0, 0], sizes = [2, 10], strides = [1, 1]} : vector<2x28xf32> to vector<2x10xf32>
    %319 = vector.extract_strided_slice %308 {offsets = [0, 10], sizes = [2, 10], strides = [1, 1]} : vector<2x28xf32> to vector<2x10xf32>
    %320 = tpu.concatenate %318, %319 in 0 : vector<2x10xf32>, vector<2x10xf32> -> vector<4x10xf32>
    %321 = vector.extract_strided_slice %320 {offsets = [0, 0], sizes = [4, 4], strides = [1, 1]} : vector<4x10xf32> to vector<4x4xf32>
    %322 = vector.extract_strided_slice %320 {offsets = [0, 4], sizes = [4, 1], strides = [1, 1]} : vector<4x10xf32> to vector<4x1xf32>
    %cst_114 = arith.constant 0.000000e+00 : f32
    %323 = vector.broadcast %cst_114 : f32 to vector<4x1xf32>
    %324 = arith.maximumf %322, %323 : vector<4x1xf32>
    %325 = vector.broadcast %cst_114 : f32 to vector<4x1xf32>
    %326 = arith.subf %322, %325 : vector<4x1xf32>
    %327 = arith.cmpf one, %326, %326 : vector<4x1xf32>
    %328 = vector.broadcast %cst_114 : f32 to vector<4x1xf32>
    %329 = arith.addf %322, %328 : vector<4x1xf32>
    %330 = math.absf %326 : vector<4x1xf32>
    %cst_115 = arith.constant 0.000000e+00 : f32
    %331 = vector.broadcast %cst_115 : f32 to vector<4x1xf32>
    %332 = arith.subf %331, %330 : vector<4x1xf32>
    %333 = math.exp %332 : vector<4x1xf32>
    %334 = math.log1p %333 : vector<4x1xf32>
    %335 = arith.addf %324, %334 : vector<4x1xf32>
    %336 = arith.select %327, %329, %335 : vector<4x1xi1>, vector<4x1xf32>
    %337 = vector.extract_strided_slice %320 {offsets = [0, 5], sizes = [4, 1], strides = [1, 1]} : vector<4x10xf32> to vector<4x1xf32>
    %338 = arith.negf %337 : vector<4x1xf32>
    %339 = math.exp %338 : vector<4x1xf32>
    %cst_116 = arith.constant 1.000000e+00 : f32
    %340 = vector.broadcast %cst_116 : f32 to vector<4x1xf32>
    %341 = arith.addf %340, %339 : vector<4x1xf32>
    %342 = arith.divf %340, %341 : vector<4x1xf32>
    %343 = vector.extract_strided_slice %320 {offsets = [0, 6], sizes = [4, 3], strides = [1, 1]} : vector<4x10xf32> to vector<4x3xf32>
    %344 = vector.extract_strided_slice %320 {offsets = [0, 9], sizes = [4, 1], strides = [1, 1]} : vector<4x10xf32> to vector<4x1xf32>
    %cst_117 = arith.constant 0.000000e+00 : f32
    %345 = vector.broadcast %cst_117 : f32 to vector<4x1xf32>
    %346 = arith.maximumf %344, %345 : vector<4x1xf32>
    %347 = vector.broadcast %cst_117 : f32 to vector<4x1xf32>
    %348 = arith.subf %344, %347 : vector<4x1xf32>
    %349 = arith.cmpf one, %348, %348 : vector<4x1xf32>
    %350 = vector.broadcast %cst_117 : f32 to vector<4x1xf32>
    %351 = arith.addf %344, %350 : vector<4x1xf32>
    %352 = math.absf %348 : vector<4x1xf32>
    %cst_118 = arith.constant 0.000000e+00 : f32
    %353 = vector.broadcast %cst_118 : f32 to vector<4x1xf32>
    %354 = arith.subf %353, %352 : vector<4x1xf32>
    %355 = math.exp %354 : vector<4x1xf32>
    %356 = math.log1p %355 : vector<4x1xf32>
    %357 = arith.addf %346, %356 : vector<4x1xf32>
    %358 = arith.select %349, %351, %357 : vector<4x1xi1>, vector<4x1xf32>
    %cst_119 = arith.constant 1.000000e+00 : f32
    %359 = vector.broadcast %cst_119 : f32 to vector<4x1xf32>
    %360 = arith.addf %359, %358 : vector<4x1xf32>
    %cst_120 = arith.constant dense<0xFF800000> : vector<4xf32>
    %361 = vector.multi_reduction <maximumf>, %343, %cst_120 [1] : vector<4x3xf32> to vector<4xf32>
    %362 = vector.shape_cast %361 : vector<4xf32> to vector<4x1xf32>
    %363 = vector.broadcast %362 : vector<4x1xf32> to vector<4x3xf32>
    %364 = arith.subf %343, %363 : vector<4x3xf32>
    %365 = math.exp %364 : vector<4x3xf32>
    %cst_121 = arith.constant dense<0.000000e+00> : vector<4xf32>
    %366 = vector.multi_reduction <add>, %365, %cst_121 [1] : vector<4x3xf32> to vector<4xf32>
    %367 = vector.shape_cast %366 : vector<4xf32> to vector<4x1xf32>
    %368 = tpu.reciprocal %367 {approx = true} : vector<4x1xf32> -> vector<4x1xf32>
    %369 = vector.broadcast %368 : vector<4x1xf32> to vector<4x3xf32>
    %370 = arith.mulf %365, %369 : vector<4x3xf32>
    %cst_122 = arith.constant 1.000000e-16 : f32
    %371 = vector.broadcast %cst_122 : f32 to vector<4x4xf32>
    %372 = arith.addf %321, %371 : vector<4x4xf32>
    %373 = vector.shape_cast %372 : vector<4x4xf32> to vector<4x1x4xf32>
    %374 = vector.broadcast %373 : vector<4x1x4xf32> to vector<4x8x4xf32>
    %375 = arith.mulf %316, %374 : vector<4x8x4xf32>
    %cst_123 = arith.constant dense<0.000000e+00> : vector<4x8xf32>
    %376 = vector.multi_reduction <add>, %375, %cst_123 [2] : vector<4x8x4xf32> to vector<4x8xf32>
    %377 = arith.mulf %372, %372 : vector<4x4xf32>
    %cst_124 = arith.constant dense<0.000000e+00> : vector<4xf32>
    %378 = vector.multi_reduction <add>, %377, %cst_124 [1] : vector<4x4xf32> to vector<4xf32>
    %379 = vector.shape_cast %378 : vector<4xf32> to vector<4x1xf32>
    %cst_125 = arith.constant 1.000000e-16 : f32
    %380 = vector.broadcast %cst_125 : f32 to vector<4x1xf32>
    %381 = arith.maximumf %379, %380 : vector<4x1xf32>
    %382 = math.rsqrt %381 : vector<4x1xf32>
    %383 = vector.broadcast %382 : vector<4x1xf32> to vector<4x8xf32>
    %384 = arith.mulf %317, %383 : vector<4x8xf32>
    %385 = arith.mulf %376, %384 : vector<4x8xf32>
    %386 = vector.broadcast %336 : vector<4x1xf32> to vector<4x8xf32>
    %387 = arith.mulf %386, %385 : vector<4x8xf32>
    %cst_126 = arith.constant dense<0xFF800000> : vector<4xf32>
    %388 = vector.multi_reduction <maximumf>, %387, %cst_126 [1] : vector<4x8xf32> to vector<4xf32>
    %389 = vector.shape_cast %388 : vector<4xf32> to vector<4x1xf32>
    %390 = vector.broadcast %389 : vector<4x1xf32> to vector<4x8xf32>
    %391 = arith.subf %387, %390 : vector<4x8xf32>
    %392 = math.exp %391 : vector<4x8xf32>
    %cst_127 = arith.constant dense<0.000000e+00> : vector<4xf32>
    %393 = vector.multi_reduction <add>, %392, %cst_127 [1] : vector<4x8xf32> to vector<4xf32>
    %394 = vector.shape_cast %393 : vector<4xf32> to vector<4x1xf32>
    %395 = tpu.reciprocal %394 {approx = true} : vector<4x1xf32> -> vector<4x1xf32>
    %396 = vector.broadcast %395 : vector<4x1xf32> to vector<4x8xf32>
    %397 = arith.mulf %392, %396 : vector<4x8xf32>
    %398 = vector.broadcast %342 : vector<4x1xf32> to vector<4x8xf32>
    %399 = arith.mulf %398, %397 : vector<4x8xf32>
    %cst_128 = arith.constant 1.000000e+00 : f32
    %400 = vector.broadcast %cst_128 : f32 to vector<4x1xf32>
    %401 = arith.subf %400, %342 : vector<4x1xf32>
    %402 = vector.broadcast %401 : vector<4x1xf32> to vector<4x8xf32>
    %403 = arith.mulf %402, %241 : vector<4x8xf32>
    %404 = arith.addf %399, %403 : vector<4x8xf32>
    %405 = vector.extract_strided_slice %404 {offsets = [0, 7], sizes = [4, 1], strides = [1, 1]} : vector<4x8xf32> to vector<4x1xf32>
    %406 = vector.extract_strided_slice %404 {offsets = [0, 0], sizes = [4, 7], strides = [1, 1]} : vector<4x8xf32> to vector<4x7xf32>
    %407 = tpu.concatenate %405, %406 in 1 : vector<4x1xf32>, vector<4x7xf32> -> vector<4x8xf32>
    %408 = vector.extract_strided_slice %404 {offsets = [0, 1], sizes = [4, 7], strides = [1, 1]} : vector<4x8xf32> to vector<4x7xf32>
    %409 = vector.extract_strided_slice %404 {offsets = [0, 0], sizes = [4, 1], strides = [1, 1]} : vector<4x8xf32> to vector<4x1xf32>
    %410 = tpu.concatenate %408, %409 in 1 : vector<4x7xf32>, vector<4x1xf32> -> vector<4x8xf32>
    %411 = vector.extract_strided_slice %370 {offsets = [0, 0], sizes = [4, 1], strides = [1, 1]} : vector<4x3xf32> to vector<4x1xf32>
    %412 = vector.broadcast %411 : vector<4x1xf32> to vector<4x8xf32>
    %413 = arith.mulf %412, %407 : vector<4x8xf32>
    %414 = vector.extract_strided_slice %370 {offsets = [0, 1], sizes = [4, 1], strides = [1, 1]} : vector<4x3xf32> to vector<4x1xf32>
    %415 = vector.broadcast %414 : vector<4x1xf32> to vector<4x8xf32>
    %416 = arith.mulf %415, %404 : vector<4x8xf32>
    %417 = arith.addf %413, %416 : vector<4x8xf32>
    %418 = vector.extract_strided_slice %370 {offsets = [0, 2], sizes = [4, 1], strides = [1, 1]} : vector<4x3xf32> to vector<4x1xf32>
    %419 = vector.broadcast %418 : vector<4x1xf32> to vector<4x8xf32>
    %420 = arith.mulf %419, %410 : vector<4x8xf32>
    %421 = arith.addf %417, %420 : vector<4x8xf32>
    %cst_129 = arith.constant 1.000000e-30 : f32
    %422 = vector.broadcast %cst_129 : f32 to vector<4x8xf32>
    %423 = arith.maximumf %421, %422 : vector<4x8xf32>
    %424 = math.log %423 : vector<4x8xf32>
    %425 = vector.broadcast %360 : vector<4x1xf32> to vector<4x8xf32>
    %426 = arith.mulf %425, %424 : vector<4x8xf32>
    %427 = math.exp %426 : vector<4x8xf32>
    %cst_130 = arith.constant dense<0.000000e+00> : vector<4xf32>
    %428 = vector.multi_reduction <add>, %427, %cst_130 [1] : vector<4x8xf32> to vector<4xf32>
    %429 = vector.shape_cast %428 : vector<4xf32> to vector<4x1xf32>
    %cst_131 = arith.constant 1.000000e-16 : f32
    %430 = vector.broadcast %cst_131 : f32 to vector<4x1xf32>
    %431 = arith.addf %429, %430 : vector<4x1xf32>
    %432 = tpu.reciprocal %431 {approx = true} : vector<4x1xf32> -> vector<4x1xf32>
    %433 = vector.broadcast %432 : vector<4x1xf32> to vector<4x8xf32>
    %434 = arith.mulf %427, %433 : vector<4x8xf32>
    %435 = vector.extract_strided_slice %434 {offsets = [0, 0], sizes = [2, 8], strides = [1, 1]} : vector<4x8xf32> to vector<2x8xf32>
    %436 = vector.extract_strided_slice %434 {offsets = [2, 0], sizes = [2, 8], strides = [1, 1]} : vector<4x8xf32> to vector<2x8xf32>
    %437 = vector.shape_cast %435 : vector<2x8xf32> to vector<2x8x1xf32>
    %438 = vector.broadcast %437 : vector<2x8x1xf32> to vector<2x8x4xf32>
    %439 = arith.mulf %438, %268 : vector<2x8x4xf32>
    %cst_132 = arith.constant dense<0.000000e+00> : vector<2x4xf32>
    %440 = vector.multi_reduction <add>, %439, %cst_132 [1] : vector<2x8x4xf32> to vector<2x4xf32>
    %441 = vector.extract_strided_slice %308 {offsets = [0, 20], sizes = [2, 4], strides = [1, 1]} : vector<2x28xf32> to vector<2x4xf32>
    %442 = arith.negf %441 : vector<2x4xf32>
    %443 = math.exp %442 : vector<2x4xf32>
    %cst_133 = arith.constant 1.000000e+00 : f32
    %444 = vector.broadcast %cst_133 : f32 to vector<2x4xf32>
    %445 = arith.addf %444, %443 : vector<2x4xf32>
    %446 = arith.divf %444, %445 : vector<2x4xf32>
    %447 = vector.extract_strided_slice %308 {offsets = [0, 24], sizes = [2, 4], strides = [1, 1]} : vector<2x28xf32> to vector<2x4xf32>
    %448 = vector.shape_cast %436 : vector<2x8xf32> to vector<2x8x1xf32>
    %449 = vector.shape_cast %446 : vector<2x4xf32> to vector<2x1x4xf32>
    %450 = vector.broadcast %448 : vector<2x8x1xf32> to vector<2x8x4xf32>
    %451 = vector.broadcast %449 : vector<2x1x4xf32> to vector<2x8x4xf32>
    %452 = arith.mulf %450, %451 : vector<2x8x4xf32>
    %cst_134 = arith.constant 1.000000e+00 : f32
    %453 = vector.broadcast %cst_134 : f32 to vector<2x8x4xf32>
    %454 = arith.subf %453, %452 : vector<2x8x4xf32>
    %455 = arith.mulf %268, %454 : vector<2x8x4xf32>
    %456 = vector.shape_cast %436 : vector<2x8xf32> to vector<2x8x1xf32>
    %457 = vector.shape_cast %447 : vector<2x4xf32> to vector<2x1x4xf32>
    %458 = vector.broadcast %456 : vector<2x8x1xf32> to vector<2x8x4xf32>
    %459 = vector.broadcast %457 : vector<2x1x4xf32> to vector<2x8x4xf32>
    %460 = arith.mulf %458, %459 : vector<2x8x4xf32>
    %461 = arith.addf %455, %460 : vector<2x8x4xf32>
    %462 = tpu.concatenate %305, %440 in 1 : vector<2x16xf32>, vector<2x4xf32> -> vector<2x20xf32>
    %463 = arith.index_cast %c1_i32 : i32 to index
    %c0_135 = arith.constant 0 : index
    %c0_136 = arith.constant 0 : index
    %464 = vector.load %arg12[%463, %c0_135, %c0_136] : memref<8x2x20xf32, #tpu.memory_space<vmem>>, vector<1x2x20xf32>
    %465 = vector.shape_cast %464 : vector<1x2x20xf32> to vector<2x20xf32>
    %466 = vector.shape_cast %462 : vector<2x20xf32> to vector<1x2x20xf32>
    tpu.vector_store %arg12[%463, %c0_135, %c0_136], %466 {strides = array<i32>} : memref<8x2x20xf32, #tpu.memory_space<vmem>>, vector<1x2x20xf32>,
    %c2_i32 = arith.constant 2 : i32
    %467 = arith.index_cast %c2_i32 : i32 to index
    %c0_137 = arith.constant 0 : index
    %c0_138 = arith.constant 0 : index
    %468 = vector.load %arg18[%467, %c0_137, %c0_138] : memref<8x2x64xf32, #tpu.memory_space<vmem>>, vector<1x2x64xf32>
    %469 = vector.shape_cast %468 : vector<1x2x64xf32> to vector<2x64xf32>
    %cst_139 = arith.constant dense<0.000000e+00> : vector<2x64xf32>
    %470 = tpu.matmul %305, %2, %cst_139 {dimension_numbers = #tpu.dot_dimension_numbers<[1], [0], [0], [1], [0, 0, 1, 1], [], []>} : vector<2x16xf32>, vector<16x64xf32>, vector<2x64xf32> -> vector<2x64xf32>
    %471 = arith.addf %469, %470 : vector<2x64xf32>
    %cst_140 = arith.constant dense<0.000000e+00> : vector<2x64xf32>
    %472 = tpu.matmul %440, %4, %cst_140 {dimension_numbers = #tpu.dot_dimension_numbers<[1], [0], [0], [1], [0, 0, 1, 1], [], []>} : vector<2x4xf32>, vector<4x64xf32>, vector<2x64xf32> -> vector<2x64xf32>
    %473 = arith.addf %471, %472 : vector<2x64xf32>
    %474 = vector.extract_strided_slice %473 {offsets = [0, 0], sizes = [2, 16], strides = [1, 1]} : vector<2x64xf32> to vector<2x16xf32>
    %475 = arith.negf %474 : vector<2x16xf32>
    %476 = math.exp %475 : vector<2x16xf32>
    %cst_141 = arith.constant 1.000000e+00 : f32
    %477 = vector.broadcast %cst_141 : f32 to vector<2x16xf32>
    %478 = arith.addf %477, %476 : vector<2x16xf32>
    %479 = arith.divf %477, %478 : vector<2x16xf32>
    %480 = vector.extract_strided_slice %473 {offsets = [0, 16], sizes = [2, 16], strides = [1, 1]} : vector<2x64xf32> to vector<2x16xf32>
    %481 = arith.negf %480 : vector<2x16xf32>
    %482 = math.exp %481 : vector<2x16xf32>
    %cst_142 = arith.constant 1.000000e+00 : f32
    %483 = vector.broadcast %cst_142 : f32 to vector<2x16xf32>
    %484 = arith.addf %483, %482 : vector<2x16xf32>
    %485 = arith.divf %483, %484 : vector<2x16xf32>
    %486 = vector.extract_strided_slice %473 {offsets = [0, 32], sizes = [2, 16], strides = [1, 1]} : vector<2x64xf32> to vector<2x16xf32>
    %487 = math.tanh %486 : vector<2x16xf32>
    %488 = vector.extract_strided_slice %473 {offsets = [0, 48], sizes = [2, 16], strides = [1, 1]} : vector<2x64xf32> to vector<2x16xf32>
    %489 = arith.negf %488 : vector<2x16xf32>
    %490 = math.exp %489 : vector<2x16xf32>
    %cst_143 = arith.constant 1.000000e+00 : f32
    %491 = vector.broadcast %cst_143 : f32 to vector<2x16xf32>
    %492 = arith.addf %491, %490 : vector<2x16xf32>
    %493 = arith.divf %491, %492 : vector<2x16xf32>
    %494 = arith.mulf %485, %303 : vector<2x16xf32>
    %495 = arith.mulf %479, %487 : vector<2x16xf32>
    %496 = arith.addf %494, %495 : vector<2x16xf32>
    %497 = math.tanh %496 : vector<2x16xf32>
    %498 = arith.mulf %493, %497 : vector<2x16xf32>
    %cst_144 = arith.constant dense<0.000000e+00> : vector<2x28xf32>
    %499 = tpu.matmul %498, %5, %cst_144 {dimension_numbers = #tpu.dot_dimension_numbers<[1], [0], [0], [1], [0, 0, 1, 1], [], []>} : vector<2x16xf32>, vector<16x28xf32>, vector<2x28xf32> -> vector<2x28xf32>
    %500 = vector.broadcast %6 : vector<1x28xf32> to vector<2x28xf32>
    %501 = arith.addf %499, %500 : vector<2x28xf32>
    %cst_145 = arith.constant 1.000000e-16 : f32
    %502 = vector.broadcast %cst_145 : f32 to vector<2x8x4xf32>
    %503 = arith.addf %461, %502 : vector<2x8x4xf32>
    %504 = arith.mulf %503, %503 : vector<2x8x4xf32>
    %cst_146 = arith.constant dense<0.000000e+00> : vector<2x8xf32>
    %505 = vector.multi_reduction <add>, %504, %cst_146 [2] : vector<2x8x4xf32> to vector<2x8xf32>
    %cst_147 = arith.constant 1.000000e-16 : f32
    %506 = vector.broadcast %cst_147 : f32 to vector<2x8xf32>
    %507 = arith.maximumf %505, %506 : vector<2x8xf32>
    %508 = math.rsqrt %507 : vector<2x8xf32>
    %509 = tpu.concatenate %503, %503 in 0 : vector<2x8x4xf32>, vector<2x8x4xf32> -> vector<4x8x4xf32>
    %510 = tpu.concatenate %508, %508 in 0 : vector<2x8xf32>, vector<2x8xf32> -> vector<4x8xf32>
    %511 = vector.extract_strided_slice %501 {offsets = [0, 0], sizes = [2, 10], strides = [1, 1]} : vector<2x28xf32> to vector<2x10xf32>
    %512 = vector.extract_strided_slice %501 {offsets = [0, 10], sizes = [2, 10], strides = [1, 1]} : vector<2x28xf32> to vector<2x10xf32>
    %513 = tpu.concatenate %511, %512 in 0 : vector<2x10xf32>, vector<2x10xf32> -> vector<4x10xf32>
    %514 = vector.extract_strided_slice %513 {offsets = [0, 0], sizes = [4, 4], strides = [1, 1]} : vector<4x10xf32> to vector<4x4xf32>
    %515 = vector.extract_strided_slice %513 {offsets = [0, 4], sizes = [4, 1], strides = [1, 1]} : vector<4x10xf32> to vector<4x1xf32>
    %cst_148 = arith.constant 0.000000e+00 : f32
    %516 = vector.broadcast %cst_148 : f32 to vector<4x1xf32>
    %517 = arith.maximumf %515, %516 : vector<4x1xf32>
    %518 = vector.broadcast %cst_148 : f32 to vector<4x1xf32>
    %519 = arith.subf %515, %518 : vector<4x1xf32>
    %520 = arith.cmpf one, %519, %519 : vector<4x1xf32>
    %521 = vector.broadcast %cst_148 : f32 to vector<4x1xf32>
    %522 = arith.addf %515, %521 : vector<4x1xf32>
    %523 = math.absf %519 : vector<4x1xf32>
    %cst_149 = arith.constant 0.000000e+00 : f32
    %524 = vector.broadcast %cst_149 : f32 to vector<4x1xf32>
    %525 = arith.subf %524, %523 : vector<4x1xf32>
    %526 = math.exp %525 : vector<4x1xf32>
    %527 = math.log1p %526 : vector<4x1xf32>
    %528 = arith.addf %517, %527 : vector<4x1xf32>
    %529 = arith.select %520, %522, %528 : vector<4x1xi1>, vector<4x1xf32>
    %530 = vector.extract_strided_slice %513 {offsets = [0, 5], sizes = [4, 1], strides = [1, 1]} : vector<4x10xf32> to vector<4x1xf32>
    %531 = arith.negf %530 : vector<4x1xf32>
    %532 = math.exp %531 : vector<4x1xf32>
    %cst_150 = arith.constant 1.000000e+00 : f32
    %533 = vector.broadcast %cst_150 : f32 to vector<4x1xf32>
    %534 = arith.addf %533, %532 : vector<4x1xf32>
    %535 = arith.divf %533, %534 : vector<4x1xf32>
    %536 = vector.extract_strided_slice %513 {offsets = [0, 6], sizes = [4, 3], strides = [1, 1]} : vector<4x10xf32> to vector<4x3xf32>
    %537 = vector.extract_strided_slice %513 {offsets = [0, 9], sizes = [4, 1], strides = [1, 1]} : vector<4x10xf32> to vector<4x1xf32>
    %cst_151 = arith.constant 0.000000e+00 : f32
    %538 = vector.broadcast %cst_151 : f32 to vector<4x1xf32>
    %539 = arith.maximumf %537, %538 : vector<4x1xf32>
    %540 = vector.broadcast %cst_151 : f32 to vector<4x1xf32>
    %541 = arith.subf %537, %540 : vector<4x1xf32>
    %542 = arith.cmpf one, %541, %541 : vector<4x1xf32>
    %543 = vector.broadcast %cst_151 : f32 to vector<4x1xf32>
    %544 = arith.addf %537, %543 : vector<4x1xf32>
    %545 = math.absf %541 : vector<4x1xf32>
    %cst_152 = arith.constant 0.000000e+00 : f32
    %546 = vector.broadcast %cst_152 : f32 to vector<4x1xf32>
    %547 = arith.subf %546, %545 : vector<4x1xf32>
    %548 = math.exp %547 : vector<4x1xf32>
    %549 = math.log1p %548 : vector<4x1xf32>
    %550 = arith.addf %539, %549 : vector<4x1xf32>
    %551 = arith.select %542, %544, %550 : vector<4x1xi1>, vector<4x1xf32>
    %cst_153 = arith.constant 1.000000e+00 : f32
    %552 = vector.broadcast %cst_153 : f32 to vector<4x1xf32>
    %553 = arith.addf %552, %551 : vector<4x1xf32>
    %cst_154 = arith.constant dense<0xFF800000> : vector<4xf32>
    %554 = vector.multi_reduction <maximumf>, %536, %cst_154 [1] : vector<4x3xf32> to vector<4xf32>
    %555 = vector.shape_cast %554 : vector<4xf32> to vector<4x1xf32>
    %556 = vector.broadcast %555 : vector<4x1xf32> to vector<4x3xf32>
    %557 = arith.subf %536, %556 : vector<4x3xf32>
    %558 = math.exp %557 : vector<4x3xf32>
    %cst_155 = arith.constant dense<0.000000e+00> : vector<4xf32>
    %559 = vector.multi_reduction <add>, %558, %cst_155 [1] : vector<4x3xf32> to vector<4xf32>
    %560 = vector.shape_cast %559 : vector<4xf32> to vector<4x1xf32>
    %561 = tpu.reciprocal %560 {approx = true} : vector<4x1xf32> -> vector<4x1xf32>
    %562 = vector.broadcast %561 : vector<4x1xf32> to vector<4x3xf32>
    %563 = arith.mulf %558, %562 : vector<4x3xf32>
    %cst_156 = arith.constant 1.000000e-16 : f32
    %564 = vector.broadcast %cst_156 : f32 to vector<4x4xf32>
    %565 = arith.addf %514, %564 : vector<4x4xf32>
    %566 = vector.shape_cast %565 : vector<4x4xf32> to vector<4x1x4xf32>
    %567 = vector.broadcast %566 : vector<4x1x4xf32> to vector<4x8x4xf32>
    %568 = arith.mulf %509, %567 : vector<4x8x4xf32>
    %cst_157 = arith.constant dense<0.000000e+00> : vector<4x8xf32>
    %569 = vector.multi_reduction <add>, %568, %cst_157 [2] : vector<4x8x4xf32> to vector<4x8xf32>
    %570 = arith.mulf %565, %565 : vector<4x4xf32>
    %cst_158 = arith.constant dense<0.000000e+00> : vector<4xf32>
    %571 = vector.multi_reduction <add>, %570, %cst_158 [1] : vector<4x4xf32> to vector<4xf32>
    %572 = vector.shape_cast %571 : vector<4xf32> to vector<4x1xf32>
    %cst_159 = arith.constant 1.000000e-16 : f32
    %573 = vector.broadcast %cst_159 : f32 to vector<4x1xf32>
    %574 = arith.maximumf %572, %573 : vector<4x1xf32>
    %575 = math.rsqrt %574 : vector<4x1xf32>
    %576 = vector.broadcast %575 : vector<4x1xf32> to vector<4x8xf32>
    %577 = arith.mulf %510, %576 : vector<4x8xf32>
    %578 = arith.mulf %569, %577 : vector<4x8xf32>
    %579 = vector.broadcast %529 : vector<4x1xf32> to vector<4x8xf32>
    %580 = arith.mulf %579, %578 : vector<4x8xf32>
    %cst_160 = arith.constant dense<0xFF800000> : vector<4xf32>
    %581 = vector.multi_reduction <maximumf>, %580, %cst_160 [1] : vector<4x8xf32> to vector<4xf32>
    %582 = vector.shape_cast %581 : vector<4xf32> to vector<4x1xf32>
    %583 = vector.broadcast %582 : vector<4x1xf32> to vector<4x8xf32>
    %584 = arith.subf %580, %583 : vector<4x8xf32>
    %585 = math.exp %584 : vector<4x8xf32>
    %cst_161 = arith.constant dense<0.000000e+00> : vector<4xf32>
    %586 = vector.multi_reduction <add>, %585, %cst_161 [1] : vector<4x8xf32> to vector<4xf32>
    %587 = vector.shape_cast %586 : vector<4xf32> to vector<4x1xf32>
    %588 = tpu.reciprocal %587 {approx = true} : vector<4x1xf32> -> vector<4x1xf32>
    %589 = vector.broadcast %588 : vector<4x1xf32> to vector<4x8xf32>
    %590 = arith.mulf %585, %589 : vector<4x8xf32>
    %591 = vector.broadcast %535 : vector<4x1xf32> to vector<4x8xf32>
    %592 = arith.mulf %591, %590 : vector<4x8xf32>
    %cst_162 = arith.constant 1.000000e+00 : f32
    %593 = vector.broadcast %cst_162 : f32 to vector<4x1xf32>
    %594 = arith.subf %593, %535 : vector<4x1xf32>
    %595 = vector.broadcast %594 : vector<4x1xf32> to vector<4x8xf32>
    %596 = arith.mulf %595, %434 : vector<4x8xf32>
    %597 = arith.addf %592, %596 : vector<4x8xf32>
    %598 = vector.extract_strided_slice %597 {offsets = [0, 7], sizes = [4, 1], strides = [1, 1]} : vector<4x8xf32> to vector<4x1xf32>
    %599 = vector.extract_strided_slice %597 {offsets = [0, 0], sizes = [4, 7], strides = [1, 1]} : vector<4x8xf32> to vector<4x7xf32>
    %600 = tpu.concatenate %598, %599 in 1 : vector<4x1xf32>, vector<4x7xf32> -> vector<4x8xf32>
    %601 = vector.extract_strided_slice %597 {offsets = [0, 1], sizes = [4, 7], strides = [1, 1]} : vector<4x8xf32> to vector<4x7xf32>
    %602 = vector.extract_strided_slice %597 {offsets = [0, 0], sizes = [4, 1], strides = [1, 1]} : vector<4x8xf32> to vector<4x1xf32>
    %603 = tpu.concatenate %601, %602 in 1 : vector<4x7xf32>, vector<4x1xf32> -> vector<4x8xf32>
    %604 = vector.extract_strided_slice %563 {offsets = [0, 0], sizes = [4, 1], strides = [1, 1]} : vector<4x3xf32> to vector<4x1xf32>
    %605 = vector.broadcast %604 : vector<4x1xf32> to vector<4x8xf32>
    %606 = arith.mulf %605, %600 : vector<4x8xf32>
    %607 = vector.extract_strided_slice %563 {offsets = [0, 1], sizes = [4, 1], strides = [1, 1]} : vector<4x3xf32> to vector<4x1xf32>
    %608 = vector.broadcast %607 : vector<4x1xf32> to vector<4x8xf32>
    %609 = arith.mulf %608, %597 : vector<4x8xf32>
    %610 = arith.addf %606, %609 : vector<4x8xf32>
    %611 = vector.extract_strided_slice %563 {offsets = [0, 2], sizes = [4, 1], strides = [1, 1]} : vector<4x3xf32> to vector<4x1xf32>
    %612 = vector.broadcast %611 : vector<4x1xf32> to vector<4x8xf32>
    %613 = arith.mulf %612, %603 : vector<4x8xf32>
    %614 = arith.addf %610, %613 : vector<4x8xf32>
    %cst_163 = arith.constant 1.000000e-30 : f32
    %615 = vector.broadcast %cst_163 : f32 to vector<4x8xf32>
    %616 = arith.maximumf %614, %615 : vector<4x8xf32>
    %617 = math.log %616 : vector<4x8xf32>
    %618 = vector.broadcast %553 : vector<4x1xf32> to vector<4x8xf32>
    %619 = arith.mulf %618, %617 : vector<4x8xf32>
    %620 = math.exp %619 : vector<4x8xf32>
    %cst_164 = arith.constant dense<0.000000e+00> : vector<4xf32>
    %621 = vector.multi_reduction <add>, %620, %cst_164 [1] : vector<4x8xf32> to vector<4xf32>
    %622 = vector.shape_cast %621 : vector<4xf32> to vector<4x1xf32>
    %cst_165 = arith.constant 1.000000e-16 : f32
    %623 = vector.broadcast %cst_165 : f32 to vector<4x1xf32>
    %624 = arith.addf %622, %623 : vector<4x1xf32>
    %625 = tpu.reciprocal %624 {approx = true} : vector<4x1xf32> -> vector<4x1xf32>
    %626 = vector.broadcast %625 : vector<4x1xf32> to vector<4x8xf32>
    %627 = arith.mulf %620, %626 : vector<4x8xf32>
    %628 = vector.extract_strided_slice %627 {offsets = [0, 0], sizes = [2, 8], strides = [1, 1]} : vector<4x8xf32> to vector<2x8xf32>
    %629 = vector.extract_strided_slice %627 {offsets = [2, 0], sizes = [2, 8], strides = [1, 1]} : vector<4x8xf32> to vector<2x8xf32>
    %630 = vector.shape_cast %628 : vector<2x8xf32> to vector<2x8x1xf32>
    %631 = vector.broadcast %630 : vector<2x8x1xf32> to vector<2x8x4xf32>
    %632 = arith.mulf %631, %461 : vector<2x8x4xf32>
    %cst_166 = arith.constant dense<0.000000e+00> : vector<2x4xf32>
    %633 = vector.multi_reduction <add>, %632, %cst_166 [1] : vector<2x8x4xf32> to vector<2x4xf32>
    %634 = vector.extract_strided_slice %501 {offsets = [0, 20], sizes = [2, 4], strides = [1, 1]} : vector<2x28xf32> to vector<2x4xf32>
    %635 = arith.negf %634 : vector<2x4xf32>
    %636 = math.exp %635 : vector<2x4xf32>
    %cst_167 = arith.constant 1.000000e+00 : f32
    %637 = vector.broadcast %cst_167 : f32 to vector<2x4xf32>
    %638 = arith.addf %637, %636 : vector<2x4xf32>
    %639 = arith.divf %637, %638 : vector<2x4xf32>
    %640 = vector.extract_strided_slice %501 {offsets = [0, 24], sizes = [2, 4], strides = [1, 1]} : vector<2x28xf32> to vector<2x4xf32>
    %641 = vector.shape_cast %629 : vector<2x8xf32> to vector<2x8x1xf32>
    %642 = vector.shape_cast %639 : vector<2x4xf32> to vector<2x1x4xf32>
    %643 = vector.broadcast %641 : vector<2x8x1xf32> to vector<2x8x4xf32>
    %644 = vector.broadcast %642 : vector<2x1x4xf32> to vector<2x8x4xf32>
    %645 = arith.mulf %643, %644 : vector<2x8x4xf32>
    %cst_168 = arith.constant 1.000000e+00 : f32
    %646 = vector.broadcast %cst_168 : f32 to vector<2x8x4xf32>
    %647 = arith.subf %646, %645 : vector<2x8x4xf32>
    %648 = arith.mulf %461, %647 : vector<2x8x4xf32>
    %649 = vector.shape_cast %629 : vector<2x8xf32> to vector<2x8x1xf32>
    %650 = vector.shape_cast %640 : vector<2x4xf32> to vector<2x1x4xf32>
    %651 = vector.broadcast %649 : vector<2x8x1xf32> to vector<2x8x4xf32>
    %652 = vector.broadcast %650 : vector<2x1x4xf32> to vector<2x8x4xf32>
    %653 = arith.mulf %651, %652 : vector<2x8x4xf32>
    %654 = arith.addf %648, %653 : vector<2x8x4xf32>
    %655 = tpu.concatenate %498, %633 in 1 : vector<2x16xf32>, vector<2x4xf32> -> vector<2x20xf32>
    %656 = arith.index_cast %c2_i32 : i32 to index
    %c0_169 = arith.constant 0 : index
    %c0_170 = arith.constant 0 : index
    %657 = vector.load %arg12[%656, %c0_169, %c0_170] : memref<8x2x20xf32, #tpu.memory_space<vmem>>, vector<1x2x20xf32>
    %658 = vector.shape_cast %657 : vector<1x2x20xf32> to vector<2x20xf32>
    %659 = vector.shape_cast %655 : vector<2x20xf32> to vector<1x2x20xf32>
    tpu.vector_store %arg12[%656, %c0_169, %c0_170], %659 {strides = array<i32>} : memref<8x2x20xf32, #tpu.memory_space<vmem>>, vector<1x2x20xf32>,
    %c3_i32 = arith.constant 3 : i32
    %660 = arith.index_cast %c3_i32 : i32 to index
    %c0_171 = arith.constant 0 : index
    %c0_172 = arith.constant 0 : index
    %661 = vector.load %arg18[%660, %c0_171, %c0_172] : memref<8x2x64xf32, #tpu.memory_space<vmem>>, vector<1x2x64xf32>
    %662 = vector.shape_cast %661 : vector<1x2x64xf32> to vector<2x64xf32>
    %cst_173 = arith.constant dense<0.000000e+00> : vector<2x64xf32>
    %663 = tpu.matmul %498, %2, %cst_173 {dimension_numbers = #tpu.dot_dimension_numbers<[1], [0], [0], [1], [0, 0, 1, 1], [], []>} : vector<2x16xf32>, vector<16x64xf32>, vector<2x64xf32> -> vector<2x64xf32>
    %664 = arith.addf %662, %663 : vector<2x64xf32>
    %cst_174 = arith.constant dense<0.000000e+00> : vector<2x64xf32>
    %665 = tpu.matmul %633, %4, %cst_174 {dimension_numbers = #tpu.dot_dimension_numbers<[1], [0], [0], [1], [0, 0, 1, 1], [], []>} : vector<2x4xf32>, vector<4x64xf32>, vector<2x64xf32> -> vector<2x64xf32>
    %666 = arith.addf %664, %665 : vector<2x64xf32>
    %667 = vector.extract_strided_slice %666 {offsets = [0, 0], sizes = [2, 16], strides = [1, 1]} : vector<2x64xf32> to vector<2x16xf32>
    %668 = arith.negf %667 : vector<2x16xf32>
    %669 = math.exp %668 : vector<2x16xf32>
    %cst_175 = arith.constant 1.000000e+00 : f32
    %670 = vector.broadcast %cst_175 : f32 to vector<2x16xf32>
    %671 = arith.addf %670, %669 : vector<2x16xf32>
    %672 = arith.divf %670, %671 : vector<2x16xf32>
    %673 = vector.extract_strided_slice %666 {offsets = [0, 16], sizes = [2, 16], strides = [1, 1]} : vector<2x64xf32> to vector<2x16xf32>
    %674 = arith.negf %673 : vector<2x16xf32>
    %675 = math.exp %674 : vector<2x16xf32>
    %cst_176 = arith.constant 1.000000e+00 : f32
    %676 = vector.broadcast %cst_176 : f32 to vector<2x16xf32>
    %677 = arith.addf %676, %675 : vector<2x16xf32>
    %678 = arith.divf %676, %677 : vector<2x16xf32>
    %679 = vector.extract_strided_slice %666 {offsets = [0, 32], sizes = [2, 16], strides = [1, 1]} : vector<2x64xf32> to vector<2x16xf32>
    %680 = math.tanh %679 : vector<2x16xf32>
    %681 = vector.extract_strided_slice %666 {offsets = [0, 48], sizes = [2, 16], strides = [1, 1]} : vector<2x64xf32> to vector<2x16xf32>
    %682 = arith.negf %681 : vector<2x16xf32>
    %683 = math.exp %682 : vector<2x16xf32>
    %cst_177 = arith.constant 1.000000e+00 : f32
    %684 = vector.broadcast %cst_177 : f32 to vector<2x16xf32>
    %685 = arith.addf %684, %683 : vector<2x16xf32>
    %686 = arith.divf %684, %685 : vector<2x16xf32>
    %687 = arith.mulf %678, %496 : vector<2x16xf32>
    %688 = arith.mulf %672, %680 : vector<2x16xf32>
    %689 = arith.addf %687, %688 : vector<2x16xf32>
    %690 = math.tanh %689 : vector<2x16xf32>
    %691 = arith.mulf %686, %690 : vector<2x16xf32>
    %cst_178 = arith.constant dense<0.000000e+00> : vector<2x28xf32>
    %692 = tpu.matmul %691, %5, %cst_178 {dimension_numbers = #tpu.dot_dimension_numbers<[1], [0], [0], [1], [0, 0, 1, 1], [], []>} : vector<2x16xf32>, vector<16x28xf32>, vector<2x28xf32> -> vector<2x28xf32>
    %693 = vector.broadcast %6 : vector<1x28xf32> to vector<2x28xf32>
    %694 = arith.addf %692, %693 : vector<2x28xf32>
    %cst_179 = arith.constant 1.000000e-16 : f32
    %695 = vector.broadcast %cst_179 : f32 to vector<2x8x4xf32>
    %696 = arith.addf %654, %695 : vector<2x8x4xf32>
    %697 = arith.mulf %696, %696 : vector<2x8x4xf32>
    %cst_180 = arith.constant dense<0.000000e+00> : vector<2x8xf32>
    %698 = vector.multi_reduction <add>, %697, %cst_180 [2] : vector<2x8x4xf32> to vector<2x8xf32>
    %cst_181 = arith.constant 1.000000e-16 : f32
    %699 = vector.broadcast %cst_181 : f32 to vector<2x8xf32>
    %700 = arith.maximumf %698, %699 : vector<2x8xf32>
    %701 = math.rsqrt %700 : vector<2x8xf32>
    %702 = tpu.concatenate %696, %696 in 0 : vector<2x8x4xf32>, vector<2x8x4xf32> -> vector<4x8x4xf32>
    %703 = tpu.concatenate %701, %701 in 0 : vector<2x8xf32>, vector<2x8xf32> -> vector<4x8xf32>
    %704 = vector.extract_strided_slice %694 {offsets = [0, 0], sizes = [2, 10], strides = [1, 1]} : vector<2x28xf32> to vector<2x10xf32>
    %705 = vector.extract_strided_slice %694 {offsets = [0, 10], sizes = [2, 10], strides = [1, 1]} : vector<2x28xf32> to vector<2x10xf32>
    %706 = tpu.concatenate %704, %705 in 0 : vector<2x10xf32>, vector<2x10xf32> -> vector<4x10xf32>
    %707 = vector.extract_strided_slice %706 {offsets = [0, 0], sizes = [4, 4], strides = [1, 1]} : vector<4x10xf32> to vector<4x4xf32>
    %708 = vector.extract_strided_slice %706 {offsets = [0, 4], sizes = [4, 1], strides = [1, 1]} : vector<4x10xf32> to vector<4x1xf32>
    %cst_182 = arith.constant 0.000000e+00 : f32
    %709 = vector.broadcast %cst_182 : f32 to vector<4x1xf32>
    %710 = arith.maximumf %708, %709 : vector<4x1xf32>
    %711 = vector.broadcast %cst_182 : f32 to vector<4x1xf32>
    %712 = arith.subf %708, %711 : vector<4x1xf32>
    %713 = arith.cmpf one, %712, %712 : vector<4x1xf32>
    %714 = vector.broadcast %cst_182 : f32 to vector<4x1xf32>
    %715 = arith.addf %708, %714 : vector<4x1xf32>
    %716 = math.absf %712 : vector<4x1xf32>
    %cst_183 = arith.constant 0.000000e+00 : f32
    %717 = vector.broadcast %cst_183 : f32 to vector<4x1xf32>
    %718 = arith.subf %717, %716 : vector<4x1xf32>
    %719 = math.exp %718 : vector<4x1xf32>
    %720 = math.log1p %719 : vector<4x1xf32>
    %721 = arith.addf %710, %720 : vector<4x1xf32>
    %722 = arith.select %713, %715, %721 : vector<4x1xi1>, vector<4x1xf32>
    %723 = vector.extract_strided_slice %706 {offsets = [0, 5], sizes = [4, 1], strides = [1, 1]} : vector<4x10xf32> to vector<4x1xf32>
    %724 = arith.negf %723 : vector<4x1xf32>
    %725 = math.exp %724 : vector<4x1xf32>
    %cst_184 = arith.constant 1.000000e+00 : f32
    %726 = vector.broadcast %cst_184 : f32 to vector<4x1xf32>
    %727 = arith.addf %726, %725 : vector<4x1xf32>
    %728 = arith.divf %726, %727 : vector<4x1xf32>
    %729 = vector.extract_strided_slice %706 {offsets = [0, 6], sizes = [4, 3], strides = [1, 1]} : vector<4x10xf32> to vector<4x3xf32>
    %730 = vector.extract_strided_slice %706 {offsets = [0, 9], sizes = [4, 1], strides = [1, 1]} : vector<4x10xf32> to vector<4x1xf32>
    %cst_185 = arith.constant 0.000000e+00 : f32
    %731 = vector.broadcast %cst_185 : f32 to vector<4x1xf32>
    %732 = arith.maximumf %730, %731 : vector<4x1xf32>
    %733 = vector.broadcast %cst_185 : f32 to vector<4x1xf32>
    %734 = arith.subf %730, %733 : vector<4x1xf32>
    %735 = arith.cmpf one, %734, %734 : vector<4x1xf32>
    %736 = vector.broadcast %cst_185 : f32 to vector<4x1xf32>
    %737 = arith.addf %730, %736 : vector<4x1xf32>
    %738 = math.absf %734 : vector<4x1xf32>
    %cst_186 = arith.constant 0.000000e+00 : f32
    %739 = vector.broadcast %cst_186 : f32 to vector<4x1xf32>
    %740 = arith.subf %739, %738 : vector<4x1xf32>
    %741 = math.exp %740 : vector<4x1xf32>
    %742 = math.log1p %741 : vector<4x1xf32>
    %743 = arith.addf %732, %742 : vector<4x1xf32>
    %744 = arith.select %735, %737, %743 : vector<4x1xi1>, vector<4x1xf32>
    %cst_187 = arith.constant 1.000000e+00 : f32
    %745 = vector.broadcast %cst_187 : f32 to vector<4x1xf32>
    %746 = arith.addf %745, %744 : vector<4x1xf32>
    %cst_188 = arith.constant dense<0xFF800000> : vector<4xf32>
    %747 = vector.multi_reduction <maximumf>, %729, %cst_188 [1] : vector<4x3xf32> to vector<4xf32>
    %748 = vector.shape_cast %747 : vector<4xf32> to vector<4x1xf32>
    %749 = vector.broadcast %748 : vector<4x1xf32> to vector<4x3xf32>
    %750 = arith.subf %729, %749 : vector<4x3xf32>
    %751 = math.exp %750 : vector<4x3xf32>
    %cst_189 = arith.constant dense<0.000000e+00> : vector<4xf32>
    %752 = vector.multi_reduction <add>, %751, %cst_189 [1] : vector<4x3xf32> to vector<4xf32>
    %753 = vector.shape_cast %752 : vector<4xf32> to vector<4x1xf32>
    %754 = tpu.reciprocal %753 {approx = true} : vector<4x1xf32> -> vector<4x1xf32>
    %755 = vector.broadcast %754 : vector<4x1xf32> to vector<4x3xf32>
    %756 = arith.mulf %751, %755 : vector<4x3xf32>
    %cst_190 = arith.constant 1.000000e-16 : f32
    %757 = vector.broadcast %cst_190 : f32 to vector<4x4xf32>
    %758 = arith.addf %707, %757 : vector<4x4xf32>
    %759 = vector.shape_cast %758 : vector<4x4xf32> to vector<4x1x4xf32>
    %760 = vector.broadcast %759 : vector<4x1x4xf32> to vector<4x8x4xf32>
    %761 = arith.mulf %702, %760 : vector<4x8x4xf32>
    %cst_191 = arith.constant dense<0.000000e+00> : vector<4x8xf32>
    %762 = vector.multi_reduction <add>, %761, %cst_191 [2] : vector<4x8x4xf32> to vector<4x8xf32>
    %763 = arith.mulf %758, %758 : vector<4x4xf32>
    %cst_192 = arith.constant dense<0.000000e+00> : vector<4xf32>
    %764 = vector.multi_reduction <add>, %763, %cst_192 [1] : vector<4x4xf32> to vector<4xf32>
    %765 = vector.shape_cast %764 : vector<4xf32> to vector<4x1xf32>
    %cst_193 = arith.constant 1.000000e-16 : f32
    %766 = vector.broadcast %cst_193 : f32 to vector<4x1xf32>
    %767 = arith.maximumf %765, %766 : vector<4x1xf32>
    %768 = math.rsqrt %767 : vector<4x1xf32>
    %769 = vector.broadcast %768 : vector<4x1xf32> to vector<4x8xf32>
    %770 = arith.mulf %703, %769 : vector<4x8xf32>
    %771 = arith.mulf %762, %770 : vector<4x8xf32>
    %772 = vector.broadcast %722 : vector<4x1xf32> to vector<4x8xf32>
    %773 = arith.mulf %772, %771 : vector<4x8xf32>
    %cst_194 = arith.constant dense<0xFF800000> : vector<4xf32>
    %774 = vector.multi_reduction <maximumf>, %773, %cst_194 [1] : vector<4x8xf32> to vector<4xf32>
    %775 = vector.shape_cast %774 : vector<4xf32> to vector<4x1xf32>
    %776 = vector.broadcast %775 : vector<4x1xf32> to vector<4x8xf32>
    %777 = arith.subf %773, %776 : vector<4x8xf32>
    %778 = math.exp %777 : vector<4x8xf32>
    %cst_195 = arith.constant dense<0.000000e+00> : vector<4xf32>
    %779 = vector.multi_reduction <add>, %778, %cst_195 [1] : vector<4x8xf32> to vector<4xf32>
    %780 = vector.shape_cast %779 : vector<4xf32> to vector<4x1xf32>
    %781 = tpu.reciprocal %780 {approx = true} : vector<4x1xf32> -> vector<4x1xf32>
    %782 = vector.broadcast %781 : vector<4x1xf32> to vector<4x8xf32>
    %783 = arith.mulf %778, %782 : vector<4x8xf32>
    %784 = vector.broadcast %728 : vector<4x1xf32> to vector<4x8xf32>
    %785 = arith.mulf %784, %783 : vector<4x8xf32>
    %cst_196 = arith.constant 1.000000e+00 : f32
    %786 = vector.broadcast %cst_196 : f32 to vector<4x1xf32>
    %787 = arith.subf %786, %728 : vector<4x1xf32>
    %788 = vector.broadcast %787 : vector<4x1xf32> to vector<4x8xf32>
    %789 = arith.mulf %788, %627 : vector<4x8xf32>
    %790 = arith.addf %785, %789 : vector<4x8xf32>
    %791 = vector.extract_strided_slice %790 {offsets = [0, 7], sizes = [4, 1], strides = [1, 1]} : vector<4x8xf32> to vector<4x1xf32>
    %792 = vector.extract_strided_slice %790 {offsets = [0, 0], sizes = [4, 7], strides = [1, 1]} : vector<4x8xf32> to vector<4x7xf32>
    %793 = tpu.concatenate %791, %792 in 1 : vector<4x1xf32>, vector<4x7xf32> -> vector<4x8xf32>
    %794 = vector.extract_strided_slice %790 {offsets = [0, 1], sizes = [4, 7], strides = [1, 1]} : vector<4x8xf32> to vector<4x7xf32>
    %795 = vector.extract_strided_slice %790 {offsets = [0, 0], sizes = [4, 1], strides = [1, 1]} : vector<4x8xf32> to vector<4x1xf32>
    %796 = tpu.concatenate %794, %795 in 1 : vector<4x7xf32>, vector<4x1xf32> -> vector<4x8xf32>
    %797 = vector.extract_strided_slice %756 {offsets = [0, 0], sizes = [4, 1], strides = [1, 1]} : vector<4x3xf32> to vector<4x1xf32>
    %798 = vector.broadcast %797 : vector<4x1xf32> to vector<4x8xf32>
    %799 = arith.mulf %798, %793 : vector<4x8xf32>
    %800 = vector.extract_strided_slice %756 {offsets = [0, 1], sizes = [4, 1], strides = [1, 1]} : vector<4x3xf32> to vector<4x1xf32>
    %801 = vector.broadcast %800 : vector<4x1xf32> to vector<4x8xf32>
    %802 = arith.mulf %801, %790 : vector<4x8xf32>
    %803 = arith.addf %799, %802 : vector<4x8xf32>
    %804 = vector.extract_strided_slice %756 {offsets = [0, 2], sizes = [4, 1], strides = [1, 1]} : vector<4x3xf32> to vector<4x1xf32>
    %805 = vector.broadcast %804 : vector<4x1xf32> to vector<4x8xf32>
    %806 = arith.mulf %805, %796 : vector<4x8xf32>
    %807 = arith.addf %803, %806 : vector<4x8xf32>
    %cst_197 = arith.constant 1.000000e-30 : f32
    %808 = vector.broadcast %cst_197 : f32 to vector<4x8xf32>
    %809 = arith.maximumf %807, %808 : vector<4x8xf32>
    %810 = math.log %809 : vector<4x8xf32>
    %811 = vector.broadcast %746 : vector<4x1xf32> to vector<4x8xf32>
    %812 = arith.mulf %811, %810 : vector<4x8xf32>
    %813 = math.exp %812 : vector<4x8xf32>
    %cst_198 = arith.constant dense<0.000000e+00> : vector<4xf32>
    %814 = vector.multi_reduction <add>, %813, %cst_198 [1] : vector<4x8xf32> to vector<4xf32>
    %815 = vector.shape_cast %814 : vector<4xf32> to vector<4x1xf32>
    %cst_199 = arith.constant 1.000000e-16 : f32
    %816 = vector.broadcast %cst_199 : f32 to vector<4x1xf32>
    %817 = arith.addf %815, %816 : vector<4x1xf32>
    %818 = tpu.reciprocal %817 {approx = true} : vector<4x1xf32> -> vector<4x1xf32>
    %819 = vector.broadcast %818 : vector<4x1xf32> to vector<4x8xf32>
    %820 = arith.mulf %813, %819 : vector<4x8xf32>
    %821 = vector.extract_strided_slice %820 {offsets = [0, 0], sizes = [2, 8], strides = [1, 1]} : vector<4x8xf32> to vector<2x8xf32>
    %822 = vector.extract_strided_slice %820 {offsets = [2, 0], sizes = [2, 8], strides = [1, 1]} : vector<4x8xf32> to vector<2x8xf32>
    %823 = vector.shape_cast %821 : vector<2x8xf32> to vector<2x8x1xf32>
    %824 = vector.broadcast %823 : vector<2x8x1xf32> to vector<2x8x4xf32>
    %825 = arith.mulf %824, %654 : vector<2x8x4xf32>
    %cst_200 = arith.constant dense<0.000000e+00> : vector<2x4xf32>
    %826 = vector.multi_reduction <add>, %825, %cst_200 [1] : vector<2x8x4xf32> to vector<2x4xf32>
    %827 = vector.extract_strided_slice %694 {offsets = [0, 20], sizes = [2, 4], strides = [1, 1]} : vector<2x28xf32> to vector<2x4xf32>
    %828 = arith.negf %827 : vector<2x4xf32>
    %829 = math.exp %828 : vector<2x4xf32>
    %cst_201 = arith.constant 1.000000e+00 : f32
    %830 = vector.broadcast %cst_201 : f32 to vector<2x4xf32>
    %831 = arith.addf %830, %829 : vector<2x4xf32>
    %832 = arith.divf %830, %831 : vector<2x4xf32>
    %833 = vector.extract_strided_slice %694 {offsets = [0, 24], sizes = [2, 4], strides = [1, 1]} : vector<2x28xf32> to vector<2x4xf32>
    %834 = vector.shape_cast %822 : vector<2x8xf32> to vector<2x8x1xf32>
    %835 = vector.shape_cast %832 : vector<2x4xf32> to vector<2x1x4xf32>
    %836 = vector.broadcast %834 : vector<2x8x1xf32> to vector<2x8x4xf32>
    %837 = vector.broadcast %835 : vector<2x1x4xf32> to vector<2x8x4xf32>
    %838 = arith.mulf %836, %837 : vector<2x8x4xf32>
    %cst_202 = arith.constant 1.000000e+00 : f32
    %839 = vector.broadcast %cst_202 : f32 to vector<2x8x4xf32>
    %840 = arith.subf %839, %838 : vector<2x8x4xf32>
    %841 = arith.mulf %654, %840 : vector<2x8x4xf32>
    %842 = vector.shape_cast %822 : vector<2x8xf32> to vector<2x8x1xf32>
    %843 = vector.shape_cast %833 : vector<2x4xf32> to vector<2x1x4xf32>
    %844 = vector.broadcast %842 : vector<2x8x1xf32> to vector<2x8x4xf32>
    %845 = vector.broadcast %843 : vector<2x1x4xf32> to vector<2x8x4xf32>
    %846 = arith.mulf %844, %845 : vector<2x8x4xf32>
    %847 = arith.addf %841, %846 : vector<2x8x4xf32>
    %848 = tpu.concatenate %691, %826 in 1 : vector<2x16xf32>, vector<2x4xf32> -> vector<2x20xf32>
    %849 = arith.index_cast %c3_i32 : i32 to index
    %c0_203 = arith.constant 0 : index
    %c0_204 = arith.constant 0 : index
    %850 = vector.load %arg12[%849, %c0_203, %c0_204] : memref<8x2x20xf32, #tpu.memory_space<vmem>>, vector<1x2x20xf32>
    %851 = vector.shape_cast %850 : vector<1x2x20xf32> to vector<2x20xf32>
    %852 = vector.shape_cast %848 : vector<2x20xf32> to vector<1x2x20xf32>
    tpu.vector_store %arg12[%849, %c0_203, %c0_204], %852 {strides = array<i32>} : memref<8x2x20xf32, #tpu.memory_space<vmem>>, vector<1x2x20xf32>,
    %c4_i32 = arith.constant 4 : i32
    %853 = arith.index_cast %c4_i32 : i32 to index
    %c0_205 = arith.constant 0 : index
    %c0_206 = arith.constant 0 : index
    %854 = vector.load %arg18[%853, %c0_205, %c0_206] : memref<8x2x64xf32, #tpu.memory_space<vmem>>, vector<1x2x64xf32>
    %855 = vector.shape_cast %854 : vector<1x2x64xf32> to vector<2x64xf32>
    %cst_207 = arith.constant dense<0.000000e+00> : vector<2x64xf32>
    %856 = tpu.matmul %691, %2, %cst_207 {dimension_numbers = #tpu.dot_dimension_numbers<[1], [0], [0], [1], [0, 0, 1, 1], [], []>} : vector<2x16xf32>, vector<16x64xf32>, vector<2x64xf32> -> vector<2x64xf32>
    %857 = arith.addf %855, %856 : vector<2x64xf32>
    %cst_208 = arith.constant dense<0.000000e+00> : vector<2x64xf32>
    %858 = tpu.matmul %826, %4, %cst_208 {dimension_numbers = #tpu.dot_dimension_numbers<[1], [0], [0], [1], [0, 0, 1, 1], [], []>} : vector<2x4xf32>, vector<4x64xf32>, vector<2x64xf32> -> vector<2x64xf32>
    %859 = arith.addf %857, %858 : vector<2x64xf32>
    %860 = vector.extract_strided_slice %859 {offsets = [0, 0], sizes = [2, 16], strides = [1, 1]} : vector<2x64xf32> to vector<2x16xf32>
    %861 = arith.negf %860 : vector<2x16xf32>
    %862 = math.exp %861 : vector<2x16xf32>
    %cst_209 = arith.constant 1.000000e+00 : f32
    %863 = vector.broadcast %cst_209 : f32 to vector<2x16xf32>
    %864 = arith.addf %863, %862 : vector<2x16xf32>
    %865 = arith.divf %863, %864 : vector<2x16xf32>
    %866 = vector.extract_strided_slice %859 {offsets = [0, 16], sizes = [2, 16], strides = [1, 1]} : vector<2x64xf32> to vector<2x16xf32>
    %867 = arith.negf %866 : vector<2x16xf32>
    %868 = math.exp %867 : vector<2x16xf32>
    %cst_210 = arith.constant 1.000000e+00 : f32
    %869 = vector.broadcast %cst_210 : f32 to vector<2x16xf32>
    %870 = arith.addf %869, %868 : vector<2x16xf32>
    %871 = arith.divf %869, %870 : vector<2x16xf32>
    %872 = vector.extract_strided_slice %859 {offsets = [0, 32], sizes = [2, 16], strides = [1, 1]} : vector<2x64xf32> to vector<2x16xf32>
    %873 = math.tanh %872 : vector<2x16xf32>
    %874 = vector.extract_strided_slice %859 {offsets = [0, 48], sizes = [2, 16], strides = [1, 1]} : vector<2x64xf32> to vector<2x16xf32>
    %875 = arith.negf %874 : vector<2x16xf32>
    %876 = math.exp %875 : vector<2x16xf32>
    %cst_211 = arith.constant 1.000000e+00 : f32
    %877 = vector.broadcast %cst_211 : f32 to vector<2x16xf32>
    %878 = arith.addf %877, %876 : vector<2x16xf32>
    %879 = arith.divf %877, %878 : vector<2x16xf32>
    %880 = arith.mulf %871, %689 : vector<2x16xf32>
    %881 = arith.mulf %865, %873 : vector<2x16xf32>
    %882 = arith.addf %880, %881 : vector<2x16xf32>
    %883 = math.tanh %882 : vector<2x16xf32>
    %884 = arith.mulf %879, %883 : vector<2x16xf32>
    %cst_212 = arith.constant dense<0.000000e+00> : vector<2x28xf32>
    %885 = tpu.matmul %884, %5, %cst_212 {dimension_numbers = #tpu.dot_dimension_numbers<[1], [0], [0], [1], [0, 0, 1, 1], [], []>} : vector<2x16xf32>, vector<16x28xf32>, vector<2x28xf32> -> vector<2x28xf32>
    %886 = vector.broadcast %6 : vector<1x28xf32> to vector<2x28xf32>
    %887 = arith.addf %885, %886 : vector<2x28xf32>
    %cst_213 = arith.constant 1.000000e-16 : f32
    %888 = vector.broadcast %cst_213 : f32 to vector<2x8x4xf32>
    %889 = arith.addf %847, %888 : vector<2x8x4xf32>
    %890 = arith.mulf %889, %889 : vector<2x8x4xf32>
    %cst_214 = arith.constant dense<0.000000e+00> : vector<2x8xf32>
    %891 = vector.multi_reduction <add>, %890, %cst_214 [2] : vector<2x8x4xf32> to vector<2x8xf32>
    %cst_215 = arith.constant 1.000000e-16 : f32
    %892 = vector.broadcast %cst_215 : f32 to vector<2x8xf32>
    %893 = arith.maximumf %891, %892 : vector<2x8xf32>
    %894 = math.rsqrt %893 : vector<2x8xf32>
    %895 = tpu.concatenate %889, %889 in 0 : vector<2x8x4xf32>, vector<2x8x4xf32> -> vector<4x8x4xf32>
    %896 = tpu.concatenate %894, %894 in 0 : vector<2x8xf32>, vector<2x8xf32> -> vector<4x8xf32>
    %897 = vector.extract_strided_slice %887 {offsets = [0, 0], sizes = [2, 10], strides = [1, 1]} : vector<2x28xf32> to vector<2x10xf32>
    %898 = vector.extract_strided_slice %887 {offsets = [0, 10], sizes = [2, 10], strides = [1, 1]} : vector<2x28xf32> to vector<2x10xf32>
    %899 = tpu.concatenate %897, %898 in 0 : vector<2x10xf32>, vector<2x10xf32> -> vector<4x10xf32>
    %900 = vector.extract_strided_slice %899 {offsets = [0, 0], sizes = [4, 4], strides = [1, 1]} : vector<4x10xf32> to vector<4x4xf32>
    %901 = vector.extract_strided_slice %899 {offsets = [0, 4], sizes = [4, 1], strides = [1, 1]} : vector<4x10xf32> to vector<4x1xf32>
    %cst_216 = arith.constant 0.000000e+00 : f32
    %902 = vector.broadcast %cst_216 : f32 to vector<4x1xf32>
    %903 = arith.maximumf %901, %902 : vector<4x1xf32>
    %904 = vector.broadcast %cst_216 : f32 to vector<4x1xf32>
    %905 = arith.subf %901, %904 : vector<4x1xf32>
    %906 = arith.cmpf one, %905, %905 : vector<4x1xf32>
    %907 = vector.broadcast %cst_216 : f32 to vector<4x1xf32>
    %908 = arith.addf %901, %907 : vector<4x1xf32>
    %909 = math.absf %905 : vector<4x1xf32>
    %cst_217 = arith.constant 0.000000e+00 : f32
    %910 = vector.broadcast %cst_217 : f32 to vector<4x1xf32>
    %911 = arith.subf %910, %909 : vector<4x1xf32>
    %912 = math.exp %911 : vector<4x1xf32>
    %913 = math.log1p %912 : vector<4x1xf32>
    %914 = arith.addf %903, %913 : vector<4x1xf32>
    %915 = arith.select %906, %908, %914 : vector<4x1xi1>, vector<4x1xf32>
    %916 = vector.extract_strided_slice %899 {offsets = [0, 5], sizes = [4, 1], strides = [1, 1]} : vector<4x10xf32> to vector<4x1xf32>
    %917 = arith.negf %916 : vector<4x1xf32>
    %918 = math.exp %917 : vector<4x1xf32>
    %cst_218 = arith.constant 1.000000e+00 : f32
    %919 = vector.broadcast %cst_218 : f32 to vector<4x1xf32>
    %920 = arith.addf %919, %918 : vector<4x1xf32>
    %921 = arith.divf %919, %920 : vector<4x1xf32>
    %922 = vector.extract_strided_slice %899 {offsets = [0, 6], sizes = [4, 3], strides = [1, 1]} : vector<4x10xf32> to vector<4x3xf32>
    %923 = vector.extract_strided_slice %899 {offsets = [0, 9], sizes = [4, 1], strides = [1, 1]} : vector<4x10xf32> to vector<4x1xf32>
    %cst_219 = arith.constant 0.000000e+00 : f32
    %924 = vector.broadcast %cst_219 : f32 to vector<4x1xf32>
    %925 = arith.maximumf %923, %924 : vector<4x1xf32>
    %926 = vector.broadcast %cst_219 : f32 to vector<4x1xf32>
    %927 = arith.subf %923, %926 : vector<4x1xf32>
    %928 = arith.cmpf one, %927, %927 : vector<4x1xf32>
    %929 = vector.broadcast %cst_219 : f32 to vector<4x1xf32>
    %930 = arith.addf %923, %929 : vector<4x1xf32>
    %931 = math.absf %927 : vector<4x1xf32>
    %cst_220 = arith.constant 0.000000e+00 : f32
    %932 = vector.broadcast %cst_220 : f32 to vector<4x1xf32>
    %933 = arith.subf %932, %931 : vector<4x1xf32>
    %934 = math.exp %933 : vector<4x1xf32>
    %935 = math.log1p %934 : vector<4x1xf32>
    %936 = arith.addf %925, %935 : vector<4x1xf32>
    %937 = arith.select %928, %930, %936 : vector<4x1xi1>, vector<4x1xf32>
    %cst_221 = arith.constant 1.000000e+00 : f32
    %938 = vector.broadcast %cst_221 : f32 to vector<4x1xf32>
    %939 = arith.addf %938, %937 : vector<4x1xf32>
    %cst_222 = arith.constant dense<0xFF800000> : vector<4xf32>
    %940 = vector.multi_reduction <maximumf>, %922, %cst_222 [1] : vector<4x3xf32> to vector<4xf32>
    %941 = vector.shape_cast %940 : vector<4xf32> to vector<4x1xf32>
    %942 = vector.broadcast %941 : vector<4x1xf32> to vector<4x3xf32>
    %943 = arith.subf %922, %942 : vector<4x3xf32>
    %944 = math.exp %943 : vector<4x3xf32>
    %cst_223 = arith.constant dense<0.000000e+00> : vector<4xf32>
    %945 = vector.multi_reduction <add>, %944, %cst_223 [1] : vector<4x3xf32> to vector<4xf32>
    %946 = vector.shape_cast %945 : vector<4xf32> to vector<4x1xf32>
    %947 = tpu.reciprocal %946 {approx = true} : vector<4x1xf32> -> vector<4x1xf32>
    %948 = vector.broadcast %947 : vector<4x1xf32> to vector<4x3xf32>
    %949 = arith.mulf %944, %948 : vector<4x3xf32>
    %cst_224 = arith.constant 1.000000e-16 : f32
    %950 = vector.broadcast %cst_224 : f32 to vector<4x4xf32>
    %951 = arith.addf %900, %950 : vector<4x4xf32>
    %952 = vector.shape_cast %951 : vector<4x4xf32> to vector<4x1x4xf32>
    %953 = vector.broadcast %952 : vector<4x1x4xf32> to vector<4x8x4xf32>
    %954 = arith.mulf %895, %953 : vector<4x8x4xf32>
    %cst_225 = arith.constant dense<0.000000e+00> : vector<4x8xf32>
    %955 = vector.multi_reduction <add>, %954, %cst_225 [2] : vector<4x8x4xf32> to vector<4x8xf32>
    %956 = arith.mulf %951, %951 : vector<4x4xf32>
    %cst_226 = arith.constant dense<0.000000e+00> : vector<4xf32>
    %957 = vector.multi_reduction <add>, %956, %cst_226 [1] : vector<4x4xf32> to vector<4xf32>
    %958 = vector.shape_cast %957 : vector<4xf32> to vector<4x1xf32>
    %cst_227 = arith.constant 1.000000e-16 : f32
    %959 = vector.broadcast %cst_227 : f32 to vector<4x1xf32>
    %960 = arith.maximumf %958, %959 : vector<4x1xf32>
    %961 = math.rsqrt %960 : vector<4x1xf32>
    %962 = vector.broadcast %961 : vector<4x1xf32> to vector<4x8xf32>
    %963 = arith.mulf %896, %962 : vector<4x8xf32>
    %964 = arith.mulf %955, %963 : vector<4x8xf32>
    %965 = vector.broadcast %915 : vector<4x1xf32> to vector<4x8xf32>
    %966 = arith.mulf %965, %964 : vector<4x8xf32>
    %cst_228 = arith.constant dense<0xFF800000> : vector<4xf32>
    %967 = vector.multi_reduction <maximumf>, %966, %cst_228 [1] : vector<4x8xf32> to vector<4xf32>
    %968 = vector.shape_cast %967 : vector<4xf32> to vector<4x1xf32>
    %969 = vector.broadcast %968 : vector<4x1xf32> to vector<4x8xf32>
    %970 = arith.subf %966, %969 : vector<4x8xf32>
    %971 = math.exp %970 : vector<4x8xf32>
    %cst_229 = arith.constant dense<0.000000e+00> : vector<4xf32>
    %972 = vector.multi_reduction <add>, %971, %cst_229 [1] : vector<4x8xf32> to vector<4xf32>
    %973 = vector.shape_cast %972 : vector<4xf32> to vector<4x1xf32>
    %974 = tpu.reciprocal %973 {approx = true} : vector<4x1xf32> -> vector<4x1xf32>
    %975 = vector.broadcast %974 : vector<4x1xf32> to vector<4x8xf32>
    %976 = arith.mulf %971, %975 : vector<4x8xf32>
    %977 = vector.broadcast %921 : vector<4x1xf32> to vector<4x8xf32>
    %978 = arith.mulf %977, %976 : vector<4x8xf32>
    %cst_230 = arith.constant 1.000000e+00 : f32
    %979 = vector.broadcast %cst_230 : f32 to vector<4x1xf32>
    %980 = arith.subf %979, %921 : vector<4x1xf32>
    %981 = vector.broadcast %980 : vector<4x1xf32> to vector<4x8xf32>
    %982 = arith.mulf %981, %820 : vector<4x8xf32>
    %983 = arith.addf %978, %982 : vector<4x8xf32>
    %984 = vector.extract_strided_slice %983 {offsets = [0, 7], sizes = [4, 1], strides = [1, 1]} : vector<4x8xf32> to vector<4x1xf32>
    %985 = vector.extract_strided_slice %983 {offsets = [0, 0], sizes = [4, 7], strides = [1, 1]} : vector<4x8xf32> to vector<4x7xf32>
    %986 = tpu.concatenate %984, %985 in 1 : vector<4x1xf32>, vector<4x7xf32> -> vector<4x8xf32>
    %987 = vector.extract_strided_slice %983 {offsets = [0, 1], sizes = [4, 7], strides = [1, 1]} : vector<4x8xf32> to vector<4x7xf32>
    %988 = vector.extract_strided_slice %983 {offsets = [0, 0], sizes = [4, 1], strides = [1, 1]} : vector<4x8xf32> to vector<4x1xf32>
    %989 = tpu.concatenate %987, %988 in 1 : vector<4x7xf32>, vector<4x1xf32> -> vector<4x8xf32>
    %990 = vector.extract_strided_slice %949 {offsets = [0, 0], sizes = [4, 1], strides = [1, 1]} : vector<4x3xf32> to vector<4x1xf32>
    %991 = vector.broadcast %990 : vector<4x1xf32> to vector<4x8xf32>
    %992 = arith.mulf %991, %986 : vector<4x8xf32>
    %993 = vector.extract_strided_slice %949 {offsets = [0, 1], sizes = [4, 1], strides = [1, 1]} : vector<4x3xf32> to vector<4x1xf32>
    %994 = vector.broadcast %993 : vector<4x1xf32> to vector<4x8xf32>
    %995 = arith.mulf %994, %983 : vector<4x8xf32>
    %996 = arith.addf %992, %995 : vector<4x8xf32>
    %997 = vector.extract_strided_slice %949 {offsets = [0, 2], sizes = [4, 1], strides = [1, 1]} : vector<4x3xf32> to vector<4x1xf32>
    %998 = vector.broadcast %997 : vector<4x1xf32> to vector<4x8xf32>
    %999 = arith.mulf %998, %989 : vector<4x8xf32>
    %1000 = arith.addf %996, %999 : vector<4x8xf32>
    %cst_231 = arith.constant 1.000000e-30 : f32
    %1001 = vector.broadcast %cst_231 : f32 to vector<4x8xf32>
    %1002 = arith.maximumf %1000, %1001 : vector<4x8xf32>
    %1003 = math.log %1002 : vector<4x8xf32>
    %1004 = vector.broadcast %939 : vector<4x1xf32> to vector<4x8xf32>
    %1005 = arith.mulf %1004, %1003 : vector<4x8xf32>
    %1006 = math.exp %1005 : vector<4x8xf32>
    %cst_232 = arith.constant dense<0.000000e+00> : vector<4xf32>
    %1007 = vector.multi_reduction <add>, %1006, %cst_232 [1] : vector<4x8xf32> to vector<4xf32>
    %1008 = vector.shape_cast %1007 : vector<4xf32> to vector<4x1xf32>
    %cst_233 = arith.constant 1.000000e-16 : f32
    %1009 = vector.broadcast %cst_233 : f32 to vector<4x1xf32>
    %1010 = arith.addf %1008, %1009 : vector<4x1xf32>
    %1011 = tpu.reciprocal %1010 {approx = true} : vector<4x1xf32> -> vector<4x1xf32>
    %1012 = vector.broadcast %1011 : vector<4x1xf32> to vector<4x8xf32>
    %1013 = arith.mulf %1006, %1012 : vector<4x8xf32>
    %1014 = vector.extract_strided_slice %1013 {offsets = [0, 0], sizes = [2, 8], strides = [1, 1]} : vector<4x8xf32> to vector<2x8xf32>
    %1015 = vector.extract_strided_slice %1013 {offsets = [2, 0], sizes = [2, 8], strides = [1, 1]} : vector<4x8xf32> to vector<2x8xf32>
    %1016 = vector.shape_cast %1014 : vector<2x8xf32> to vector<2x8x1xf32>
    %1017 = vector.broadcast %1016 : vector<2x8x1xf32> to vector<2x8x4xf32>
    %1018 = arith.mulf %1017, %847 : vector<2x8x4xf32>
    %cst_234 = arith.constant dense<0.000000e+00> : vector<2x4xf32>
    %1019 = vector.multi_reduction <add>, %1018, %cst_234 [1] : vector<2x8x4xf32> to vector<2x4xf32>
    %1020 = vector.extract_strided_slice %887 {offsets = [0, 20], sizes = [2, 4], strides = [1, 1]} : vector<2x28xf32> to vector<2x4xf32>
    %1021 = arith.negf %1020 : vector<2x4xf32>
    %1022 = math.exp %1021 : vector<2x4xf32>
    %cst_235 = arith.constant 1.000000e+00 : f32
    %1023 = vector.broadcast %cst_235 : f32 to vector<2x4xf32>
    %1024 = arith.addf %1023, %1022 : vector<2x4xf32>
    %1025 = arith.divf %1023, %1024 : vector<2x4xf32>
    %1026 = vector.extract_strided_slice %887 {offsets = [0, 24], sizes = [2, 4], strides = [1, 1]} : vector<2x28xf32> to vector<2x4xf32>
    %1027 = vector.shape_cast %1015 : vector<2x8xf32> to vector<2x8x1xf32>
    %1028 = vector.shape_cast %1025 : vector<2x4xf32> to vector<2x1x4xf32>
    %1029 = vector.broadcast %1027 : vector<2x8x1xf32> to vector<2x8x4xf32>
    %1030 = vector.broadcast %1028 : vector<2x1x4xf32> to vector<2x8x4xf32>
    %1031 = arith.mulf %1029, %1030 : vector<2x8x4xf32>
    %cst_236 = arith.constant 1.000000e+00 : f32
    %1032 = vector.broadcast %cst_236 : f32 to vector<2x8x4xf32>
    %1033 = arith.subf %1032, %1031 : vector<2x8x4xf32>
    %1034 = arith.mulf %847, %1033 : vector<2x8x4xf32>
    %1035 = vector.shape_cast %1015 : vector<2x8xf32> to vector<2x8x1xf32>
    %1036 = vector.shape_cast %1026 : vector<2x4xf32> to vector<2x1x4xf32>
    %1037 = vector.broadcast %1035 : vector<2x8x1xf32> to vector<2x8x4xf32>
    %1038 = vector.broadcast %1036 : vector<2x1x4xf32> to vector<2x8x4xf32>
    %1039 = arith.mulf %1037, %1038 : vector<2x8x4xf32>
    %1040 = arith.addf %1034, %1039 : vector<2x8x4xf32>
    %1041 = tpu.concatenate %884, %1019 in 1 : vector<2x16xf32>, vector<2x4xf32> -> vector<2x20xf32>
    %1042 = arith.index_cast %c4_i32 : i32 to index
    %c0_237 = arith.constant 0 : index
    %c0_238 = arith.constant 0 : index
    %1043 = vector.load %arg12[%1042, %c0_237, %c0_238] : memref<8x2x20xf32, #tpu.memory_space<vmem>>, vector<1x2x20xf32>
    %1044 = vector.shape_cast %1043 : vector<1x2x20xf32> to vector<2x20xf32>
    %1045 = vector.shape_cast %1041 : vector<2x20xf32> to vector<1x2x20xf32>
    tpu.vector_store %arg12[%1042, %c0_237, %c0_238], %1045 {strides = array<i32>} : memref<8x2x20xf32, #tpu.memory_space<vmem>>, vector<1x2x20xf32>,
    %c5_i32 = arith.constant 5 : i32
    %1046 = arith.index_cast %c5_i32 : i32 to index
    %c0_239 = arith.constant 0 : index
    %c0_240 = arith.constant 0 : index
    %1047 = vector.load %arg18[%1046, %c0_239, %c0_240] : memref<8x2x64xf32, #tpu.memory_space<vmem>>, vector<1x2x64xf32>
    %1048 = vector.shape_cast %1047 : vector<1x2x64xf32> to vector<2x64xf32>
    %cst_241 = arith.constant dense<0.000000e+00> : vector<2x64xf32>
    %1049 = tpu.matmul %884, %2, %cst_241 {dimension_numbers = #tpu.dot_dimension_numbers<[1], [0], [0], [1], [0, 0, 1, 1], [], []>} : vector<2x16xf32>, vector<16x64xf32>, vector<2x64xf32> -> vector<2x64xf32>
    %1050 = arith.addf %1048, %1049 : vector<2x64xf32>
    %cst_242 = arith.constant dense<0.000000e+00> : vector<2x64xf32>
    %1051 = tpu.matmul %1019, %4, %cst_242 {dimension_numbers = #tpu.dot_dimension_numbers<[1], [0], [0], [1], [0, 0, 1, 1], [], []>} : vector<2x4xf32>, vector<4x64xf32>, vector<2x64xf32> -> vector<2x64xf32>
    %1052 = arith.addf %1050, %1051 : vector<2x64xf32>
    %1053 = vector.extract_strided_slice %1052 {offsets = [0, 0], sizes = [2, 16], strides = [1, 1]} : vector<2x64xf32> to vector<2x16xf32>
    %1054 = arith.negf %1053 : vector<2x16xf32>
    %1055 = math.exp %1054 : vector<2x16xf32>
    %cst_243 = arith.constant 1.000000e+00 : f32
    %1056 = vector.broadcast %cst_243 : f32 to vector<2x16xf32>
    %1057 = arith.addf %1056, %1055 : vector<2x16xf32>
    %1058 = arith.divf %1056, %1057 : vector<2x16xf32>
    %1059 = vector.extract_strided_slice %1052 {offsets = [0, 16], sizes = [2, 16], strides = [1, 1]} : vector<2x64xf32> to vector<2x16xf32>
    %1060 = arith.negf %1059 : vector<2x16xf32>
    %1061 = math.exp %1060 : vector<2x16xf32>
    %cst_244 = arith.constant 1.000000e+00 : f32
    %1062 = vector.broadcast %cst_244 : f32 to vector<2x16xf32>
    %1063 = arith.addf %1062, %1061 : vector<2x16xf32>
    %1064 = arith.divf %1062, %1063 : vector<2x16xf32>
    %1065 = vector.extract_strided_slice %1052 {offsets = [0, 32], sizes = [2, 16], strides = [1, 1]} : vector<2x64xf32> to vector<2x16xf32>
    %1066 = math.tanh %1065 : vector<2x16xf32>
    %1067 = vector.extract_strided_slice %1052 {offsets = [0, 48], sizes = [2, 16], strides = [1, 1]} : vector<2x64xf32> to vector<2x16xf32>
    %1068 = arith.negf %1067 : vector<2x16xf32>
    %1069 = math.exp %1068 : vector<2x16xf32>
    %cst_245 = arith.constant 1.000000e+00 : f32
    %1070 = vector.broadcast %cst_245 : f32 to vector<2x16xf32>
    %1071 = arith.addf %1070, %1069 : vector<2x16xf32>
    %1072 = arith.divf %1070, %1071 : vector<2x16xf32>
    %1073 = arith.mulf %1064, %882 : vector<2x16xf32>
    %1074 = arith.mulf %1058, %1066 : vector<2x16xf32>
    %1075 = arith.addf %1073, %1074 : vector<2x16xf32>
    %1076 = math.tanh %1075 : vector<2x16xf32>
    %1077 = arith.mulf %1072, %1076 : vector<2x16xf32>
    %cst_246 = arith.constant dense<0.000000e+00> : vector<2x28xf32>
    %1078 = tpu.matmul %1077, %5, %cst_246 {dimension_numbers = #tpu.dot_dimension_numbers<[1], [0], [0], [1], [0, 0, 1, 1], [], []>} : vector<2x16xf32>, vector<16x28xf32>, vector<2x28xf32> -> vector<2x28xf32>
    %1079 = vector.broadcast %6 : vector<1x28xf32> to vector<2x28xf32>
    %1080 = arith.addf %1078, %1079 : vector<2x28xf32>
    %cst_247 = arith.constant 1.000000e-16 : f32
    %1081 = vector.broadcast %cst_247 : f32 to vector<2x8x4xf32>
    %1082 = arith.addf %1040, %1081 : vector<2x8x4xf32>
    %1083 = arith.mulf %1082, %1082 : vector<2x8x4xf32>
    %cst_248 = arith.constant dense<0.000000e+00> : vector<2x8xf32>
    %1084 = vector.multi_reduction <add>, %1083, %cst_248 [2] : vector<2x8x4xf32> to vector<2x8xf32>
    %cst_249 = arith.constant 1.000000e-16 : f32
    %1085 = vector.broadcast %cst_249 : f32 to vector<2x8xf32>
    %1086 = arith.maximumf %1084, %1085 : vector<2x8xf32>
    %1087 = math.rsqrt %1086 : vector<2x8xf32>
    %1088 = tpu.concatenate %1082, %1082 in 0 : vector<2x8x4xf32>, vector<2x8x4xf32> -> vector<4x8x4xf32>
    %1089 = tpu.concatenate %1087, %1087 in 0 : vector<2x8xf32>, vector<2x8xf32> -> vector<4x8xf32>
    %1090 = vector.extract_strided_slice %1080 {offsets = [0, 0], sizes = [2, 10], strides = [1, 1]} : vector<2x28xf32> to vector<2x10xf32>
    %1091 = vector.extract_strided_slice %1080 {offsets = [0, 10], sizes = [2, 10], strides = [1, 1]} : vector<2x28xf32> to vector<2x10xf32>
    %1092 = tpu.concatenate %1090, %1091 in 0 : vector<2x10xf32>, vector<2x10xf32> -> vector<4x10xf32>
    %1093 = vector.extract_strided_slice %1092 {offsets = [0, 0], sizes = [4, 4], strides = [1, 1]} : vector<4x10xf32> to vector<4x4xf32>
    %1094 = vector.extract_strided_slice %1092 {offsets = [0, 4], sizes = [4, 1], strides = [1, 1]} : vector<4x10xf32> to vector<4x1xf32>
    %cst_250 = arith.constant 0.000000e+00 : f32
    %1095 = vector.broadcast %cst_250 : f32 to vector<4x1xf32>
    %1096 = arith.maximumf %1094, %1095 : vector<4x1xf32>
    %1097 = vector.broadcast %cst_250 : f32 to vector<4x1xf32>
    %1098 = arith.subf %1094, %1097 : vector<4x1xf32>
    %1099 = arith.cmpf one, %1098, %1098 : vector<4x1xf32>
    %1100 = vector.broadcast %cst_250 : f32 to vector<4x1xf32>
    %1101 = arith.addf %1094, %1100 : vector<4x1xf32>
    %1102 = math.absf %1098 : vector<4x1xf32>
    %cst_251 = arith.constant 0.000000e+00 : f32
    %1103 = vector.broadcast %cst_251 : f32 to vector<4x1xf32>
    %1104 = arith.subf %1103, %1102 : vector<4x1xf32>
    %1105 = math.exp %1104 : vector<4x1xf32>
    %1106 = math.log1p %1105 : vector<4x1xf32>
    %1107 = arith.addf %1096, %1106 : vector<4x1xf32>
    %1108 = arith.select %1099, %1101, %1107 : vector<4x1xi1>, vector<4x1xf32>
    %1109 = vector.extract_strided_slice %1092 {offsets = [0, 5], sizes = [4, 1], strides = [1, 1]} : vector<4x10xf32> to vector<4x1xf32>
    %1110 = arith.negf %1109 : vector<4x1xf32>
    %1111 = math.exp %1110 : vector<4x1xf32>
    %cst_252 = arith.constant 1.000000e+00 : f32
    %1112 = vector.broadcast %cst_252 : f32 to vector<4x1xf32>
    %1113 = arith.addf %1112, %1111 : vector<4x1xf32>
    %1114 = arith.divf %1112, %1113 : vector<4x1xf32>
    %1115 = vector.extract_strided_slice %1092 {offsets = [0, 6], sizes = [4, 3], strides = [1, 1]} : vector<4x10xf32> to vector<4x3xf32>
    %1116 = vector.extract_strided_slice %1092 {offsets = [0, 9], sizes = [4, 1], strides = [1, 1]} : vector<4x10xf32> to vector<4x1xf32>
    %cst_253 = arith.constant 0.000000e+00 : f32
    %1117 = vector.broadcast %cst_253 : f32 to vector<4x1xf32>
    %1118 = arith.maximumf %1116, %1117 : vector<4x1xf32>
    %1119 = vector.broadcast %cst_253 : f32 to vector<4x1xf32>
    %1120 = arith.subf %1116, %1119 : vector<4x1xf32>
    %1121 = arith.cmpf one, %1120, %1120 : vector<4x1xf32>
    %1122 = vector.broadcast %cst_253 : f32 to vector<4x1xf32>
    %1123 = arith.addf %1116, %1122 : vector<4x1xf32>
    %1124 = math.absf %1120 : vector<4x1xf32>
    %cst_254 = arith.constant 0.000000e+00 : f32
    %1125 = vector.broadcast %cst_254 : f32 to vector<4x1xf32>
    %1126 = arith.subf %1125, %1124 : vector<4x1xf32>
    %1127 = math.exp %1126 : vector<4x1xf32>
    %1128 = math.log1p %1127 : vector<4x1xf32>
    %1129 = arith.addf %1118, %1128 : vector<4x1xf32>
    %1130 = arith.select %1121, %1123, %1129 : vector<4x1xi1>, vector<4x1xf32>
    %cst_255 = arith.constant 1.000000e+00 : f32
    %1131 = vector.broadcast %cst_255 : f32 to vector<4x1xf32>
    %1132 = arith.addf %1131, %1130 : vector<4x1xf32>
    %cst_256 = arith.constant dense<0xFF800000> : vector<4xf32>
    %1133 = vector.multi_reduction <maximumf>, %1115, %cst_256 [1] : vector<4x3xf32> to vector<4xf32>
    %1134 = vector.shape_cast %1133 : vector<4xf32> to vector<4x1xf32>
    %1135 = vector.broadcast %1134 : vector<4x1xf32> to vector<4x3xf32>
    %1136 = arith.subf %1115, %1135 : vector<4x3xf32>
    %1137 = math.exp %1136 : vector<4x3xf32>
    %cst_257 = arith.constant dense<0.000000e+00> : vector<4xf32>
    %1138 = vector.multi_reduction <add>, %1137, %cst_257 [1] : vector<4x3xf32> to vector<4xf32>
    %1139 = vector.shape_cast %1138 : vector<4xf32> to vector<4x1xf32>
    %1140 = tpu.reciprocal %1139 {approx = true} : vector<4x1xf32> -> vector<4x1xf32>
    %1141 = vector.broadcast %1140 : vector<4x1xf32> to vector<4x3xf32>
    %1142 = arith.mulf %1137, %1141 : vector<4x3xf32>
    %cst_258 = arith.constant 1.000000e-16 : f32
    %1143 = vector.broadcast %cst_258 : f32 to vector<4x4xf32>
    %1144 = arith.addf %1093, %1143 : vector<4x4xf32>
    %1145 = vector.shape_cast %1144 : vector<4x4xf32> to vector<4x1x4xf32>
    %1146 = vector.broadcast %1145 : vector<4x1x4xf32> to vector<4x8x4xf32>
    %1147 = arith.mulf %1088, %1146 : vector<4x8x4xf32>
    %cst_259 = arith.constant dense<0.000000e+00> : vector<4x8xf32>
    %1148 = vector.multi_reduction <add>, %1147, %cst_259 [2] : vector<4x8x4xf32> to vector<4x8xf32>
    %1149 = arith.mulf %1144, %1144 : vector<4x4xf32>
    %cst_260 = arith.constant dense<0.000000e+00> : vector<4xf32>
    %1150 = vector.multi_reduction <add>, %1149, %cst_260 [1] : vector<4x4xf32> to vector<4xf32>
    %1151 = vector.shape_cast %1150 : vector<4xf32> to vector<4x1xf32>
    %cst_261 = arith.constant 1.000000e-16 : f32
    %1152 = vector.broadcast %cst_261 : f32 to vector<4x1xf32>
    %1153 = arith.maximumf %1151, %1152 : vector<4x1xf32>
    %1154 = math.rsqrt %1153 : vector<4x1xf32>
    %1155 = vector.broadcast %1154 : vector<4x1xf32> to vector<4x8xf32>
    %1156 = arith.mulf %1089, %1155 : vector<4x8xf32>
    %1157 = arith.mulf %1148, %1156 : vector<4x8xf32>
    %1158 = vector.broadcast %1108 : vector<4x1xf32> to vector<4x8xf32>
    %1159 = arith.mulf %1158, %1157 : vector<4x8xf32>
    %cst_262 = arith.constant dense<0xFF800000> : vector<4xf32>
    %1160 = vector.multi_reduction <maximumf>, %1159, %cst_262 [1] : vector<4x8xf32> to vector<4xf32>
    %1161 = vector.shape_cast %1160 : vector<4xf32> to vector<4x1xf32>
    %1162 = vector.broadcast %1161 : vector<4x1xf32> to vector<4x8xf32>
    %1163 = arith.subf %1159, %1162 : vector<4x8xf32>
    %1164 = math.exp %1163 : vector<4x8xf32>
    %cst_263 = arith.constant dense<0.000000e+00> : vector<4xf32>
    %1165 = vector.multi_reduction <add>, %1164, %cst_263 [1] : vector<4x8xf32> to vector<4xf32>
    %1166 = vector.shape_cast %1165 : vector<4xf32> to vector<4x1xf32>
    %1167 = tpu.reciprocal %1166 {approx = true} : vector<4x1xf32> -> vector<4x1xf32>
    %1168 = vector.broadcast %1167 : vector<4x1xf32> to vector<4x8xf32>
    %1169 = arith.mulf %1164, %1168 : vector<4x8xf32>
    %1170 = vector.broadcast %1114 : vector<4x1xf32> to vector<4x8xf32>
    %1171 = arith.mulf %1170, %1169 : vector<4x8xf32>
    %cst_264 = arith.constant 1.000000e+00 : f32
    %1172 = vector.broadcast %cst_264 : f32 to vector<4x1xf32>
    %1173 = arith.subf %1172, %1114 : vector<4x1xf32>
    %1174 = vector.broadcast %1173 : vector<4x1xf32> to vector<4x8xf32>
    %1175 = arith.mulf %1174, %1013 : vector<4x8xf32>
    %1176 = arith.addf %1171, %1175 : vector<4x8xf32>
    %1177 = vector.extract_strided_slice %1176 {offsets = [0, 7], sizes = [4, 1], strides = [1, 1]} : vector<4x8xf32> to vector<4x1xf32>
    %1178 = vector.extract_strided_slice %1176 {offsets = [0, 0], sizes = [4, 7], strides = [1, 1]} : vector<4x8xf32> to vector<4x7xf32>
    %1179 = tpu.concatenate %1177, %1178 in 1 : vector<4x1xf32>, vector<4x7xf32> -> vector<4x8xf32>
    %1180 = vector.extract_strided_slice %1176 {offsets = [0, 1], sizes = [4, 7], strides = [1, 1]} : vector<4x8xf32> to vector<4x7xf32>
    %1181 = vector.extract_strided_slice %1176 {offsets = [0, 0], sizes = [4, 1], strides = [1, 1]} : vector<4x8xf32> to vector<4x1xf32>
    %1182 = tpu.concatenate %1180, %1181 in 1 : vector<4x7xf32>, vector<4x1xf32> -> vector<4x8xf32>
    %1183 = vector.extract_strided_slice %1142 {offsets = [0, 0], sizes = [4, 1], strides = [1, 1]} : vector<4x3xf32> to vector<4x1xf32>
    %1184 = vector.broadcast %1183 : vector<4x1xf32> to vector<4x8xf32>
    %1185 = arith.mulf %1184, %1179 : vector<4x8xf32>
    %1186 = vector.extract_strided_slice %1142 {offsets = [0, 1], sizes = [4, 1], strides = [1, 1]} : vector<4x3xf32> to vector<4x1xf32>
    %1187 = vector.broadcast %1186 : vector<4x1xf32> to vector<4x8xf32>
    %1188 = arith.mulf %1187, %1176 : vector<4x8xf32>
    %1189 = arith.addf %1185, %1188 : vector<4x8xf32>
    %1190 = vector.extract_strided_slice %1142 {offsets = [0, 2], sizes = [4, 1], strides = [1, 1]} : vector<4x3xf32> to vector<4x1xf32>
    %1191 = vector.broadcast %1190 : vector<4x1xf32> to vector<4x8xf32>
    %1192 = arith.mulf %1191, %1182 : vector<4x8xf32>
    %1193 = arith.addf %1189, %1192 : vector<4x8xf32>
    %cst_265 = arith.constant 1.000000e-30 : f32
    %1194 = vector.broadcast %cst_265 : f32 to vector<4x8xf32>
    %1195 = arith.maximumf %1193, %1194 : vector<4x8xf32>
    %1196 = math.log %1195 : vector<4x8xf32>
    %1197 = vector.broadcast %1132 : vector<4x1xf32> to vector<4x8xf32>
    %1198 = arith.mulf %1197, %1196 : vector<4x8xf32>
    %1199 = math.exp %1198 : vector<4x8xf32>
    %cst_266 = arith.constant dense<0.000000e+00> : vector<4xf32>
    %1200 = vector.multi_reduction <add>, %1199, %cst_266 [1] : vector<4x8xf32> to vector<4xf32>
    %1201 = vector.shape_cast %1200 : vector<4xf32> to vector<4x1xf32>
    %cst_267 = arith.constant 1.000000e-16 : f32
    %1202 = vector.broadcast %cst_267 : f32 to vector<4x1xf32>
    %1203 = arith.addf %1201, %1202 : vector<4x1xf32>
    %1204 = tpu.reciprocal %1203 {approx = true} : vector<4x1xf32> -> vector<4x1xf32>
    %1205 = vector.broadcast %1204 : vector<4x1xf32> to vector<4x8xf32>
    %1206 = arith.mulf %1199, %1205 : vector<4x8xf32>
    %1207 = vector.extract_strided_slice %1206 {offsets = [0, 0], sizes = [2, 8], strides = [1, 1]} : vector<4x8xf32> to vector<2x8xf32>
    %1208 = vector.extract_strided_slice %1206 {offsets = [2, 0], sizes = [2, 8], strides = [1, 1]} : vector<4x8xf32> to vector<2x8xf32>
    %1209 = vector.shape_cast %1207 : vector<2x8xf32> to vector<2x8x1xf32>
    %1210 = vector.broadcast %1209 : vector<2x8x1xf32> to vector<2x8x4xf32>
    %1211 = arith.mulf %1210, %1040 : vector<2x8x4xf32>
    %cst_268 = arith.constant dense<0.000000e+00> : vector<2x4xf32>
    %1212 = vector.multi_reduction <add>, %1211, %cst_268 [1] : vector<2x8x4xf32> to vector<2x4xf32>
    %1213 = vector.extract_strided_slice %1080 {offsets = [0, 20], sizes = [2, 4], strides = [1, 1]} : vector<2x28xf32> to vector<2x4xf32>
    %1214 = arith.negf %1213 : vector<2x4xf32>
    %1215 = math.exp %1214 : vector<2x4xf32>
    %cst_269 = arith.constant 1.000000e+00 : f32
    %1216 = vector.broadcast %cst_269 : f32 to vector<2x4xf32>
    %1217 = arith.addf %1216, %1215 : vector<2x4xf32>
    %1218 = arith.divf %1216, %1217 : vector<2x4xf32>
    %1219 = vector.extract_strided_slice %1080 {offsets = [0, 24], sizes = [2, 4], strides = [1, 1]} : vector<2x28xf32> to vector<2x4xf32>
    %1220 = vector.shape_cast %1208 : vector<2x8xf32> to vector<2x8x1xf32>
    %1221 = vector.shape_cast %1218 : vector<2x4xf32> to vector<2x1x4xf32>
    %1222 = vector.broadcast %1220 : vector<2x8x1xf32> to vector<2x8x4xf32>
    %1223 = vector.broadcast %1221 : vector<2x1x4xf32> to vector<2x8x4xf32>
    %1224 = arith.mulf %1222, %1223 : vector<2x8x4xf32>
    %cst_270 = arith.constant 1.000000e+00 : f32
    %1225 = vector.broadcast %cst_270 : f32 to vector<2x8x4xf32>
    %1226 = arith.subf %1225, %1224 : vector<2x8x4xf32>
    %1227 = arith.mulf %1040, %1226 : vector<2x8x4xf32>
    %1228 = vector.shape_cast %1208 : vector<2x8xf32> to vector<2x8x1xf32>
    %1229 = vector.shape_cast %1219 : vector<2x4xf32> to vector<2x1x4xf32>
    %1230 = vector.broadcast %1228 : vector<2x8x1xf32> to vector<2x8x4xf32>
    %1231 = vector.broadcast %1229 : vector<2x1x4xf32> to vector<2x8x4xf32>
    %1232 = arith.mulf %1230, %1231 : vector<2x8x4xf32>
    %1233 = arith.addf %1227, %1232 : vector<2x8x4xf32>
    %1234 = tpu.concatenate %1077, %1212 in 1 : vector<2x16xf32>, vector<2x4xf32> -> vector<2x20xf32>
    %1235 = arith.index_cast %c5_i32 : i32 to index
    %c0_271 = arith.constant 0 : index
    %c0_272 = arith.constant 0 : index
    %1236 = vector.load %arg12[%1235, %c0_271, %c0_272] : memref<8x2x20xf32, #tpu.memory_space<vmem>>, vector<1x2x20xf32>
    %1237 = vector.shape_cast %1236 : vector<1x2x20xf32> to vector<2x20xf32>
    %1238 = vector.shape_cast %1234 : vector<2x20xf32> to vector<1x2x20xf32>
    tpu.vector_store %arg12[%1235, %c0_271, %c0_272], %1238 {strides = array<i32>} : memref<8x2x20xf32, #tpu.memory_space<vmem>>, vector<1x2x20xf32>,
    %c6_i32 = arith.constant 6 : i32
    %1239 = arith.index_cast %c6_i32 : i32 to index
    %c0_273 = arith.constant 0 : index
    %c0_274 = arith.constant 0 : index
    %1240 = vector.load %arg18[%1239, %c0_273, %c0_274] : memref<8x2x64xf32, #tpu.memory_space<vmem>>, vector<1x2x64xf32>
    %1241 = vector.shape_cast %1240 : vector<1x2x64xf32> to vector<2x64xf32>
    %cst_275 = arith.constant dense<0.000000e+00> : vector<2x64xf32>
    %1242 = tpu.matmul %1077, %2, %cst_275 {dimension_numbers = #tpu.dot_dimension_numbers<[1], [0], [0], [1], [0, 0, 1, 1], [], []>} : vector<2x16xf32>, vector<16x64xf32>, vector<2x64xf32> -> vector<2x64xf32>
    %1243 = arith.addf %1241, %1242 : vector<2x64xf32>
    %cst_276 = arith.constant dense<0.000000e+00> : vector<2x64xf32>
    %1244 = tpu.matmul %1212, %4, %cst_276 {dimension_numbers = #tpu.dot_dimension_numbers<[1], [0], [0], [1], [0, 0, 1, 1], [], []>} : vector<2x4xf32>, vector<4x64xf32>, vector<2x64xf32> -> vector<2x64xf32>
    %1245 = arith.addf %1243, %1244 : vector<2x64xf32>
    %1246 = vector.extract_strided_slice %1245 {offsets = [0, 0], sizes = [2, 16], strides = [1, 1]} : vector<2x64xf32> to vector<2x16xf32>
    %1247 = arith.negf %1246 : vector<2x16xf32>
    %1248 = math.exp %1247 : vector<2x16xf32>
    %cst_277 = arith.constant 1.000000e+00 : f32
    %1249 = vector.broadcast %cst_277 : f32 to vector<2x16xf32>
    %1250 = arith.addf %1249, %1248 : vector<2x16xf32>
    %1251 = arith.divf %1249, %1250 : vector<2x16xf32>
    %1252 = vector.extract_strided_slice %1245 {offsets = [0, 16], sizes = [2, 16], strides = [1, 1]} : vector<2x64xf32> to vector<2x16xf32>
    %1253 = arith.negf %1252 : vector<2x16xf32>
    %1254 = math.exp %1253 : vector<2x16xf32>
    %cst_278 = arith.constant 1.000000e+00 : f32
    %1255 = vector.broadcast %cst_278 : f32 to vector<2x16xf32>
    %1256 = arith.addf %1255, %1254 : vector<2x16xf32>
    %1257 = arith.divf %1255, %1256 : vector<2x16xf32>
    %1258 = vector.extract_strided_slice %1245 {offsets = [0, 32], sizes = [2, 16], strides = [1, 1]} : vector<2x64xf32> to vector<2x16xf32>
    %1259 = math.tanh %1258 : vector<2x16xf32>
    %1260 = vector.extract_strided_slice %1245 {offsets = [0, 48], sizes = [2, 16], strides = [1, 1]} : vector<2x64xf32> to vector<2x16xf32>
    %1261 = arith.negf %1260 : vector<2x16xf32>
    %1262 = math.exp %1261 : vector<2x16xf32>
    %cst_279 = arith.constant 1.000000e+00 : f32
    %1263 = vector.broadcast %cst_279 : f32 to vector<2x16xf32>
    %1264 = arith.addf %1263, %1262 : vector<2x16xf32>
    %1265 = arith.divf %1263, %1264 : vector<2x16xf32>
    %1266 = arith.mulf %1257, %1075 : vector<2x16xf32>
    %1267 = arith.mulf %1251, %1259 : vector<2x16xf32>
    %1268 = arith.addf %1266, %1267 : vector<2x16xf32>
    %1269 = math.tanh %1268 : vector<2x16xf32>
    %1270 = arith.mulf %1265, %1269 : vector<2x16xf32>
    %cst_280 = arith.constant dense<0.000000e+00> : vector<2x28xf32>
    %1271 = tpu.matmul %1270, %5, %cst_280 {dimension_numbers = #tpu.dot_dimension_numbers<[1], [0], [0], [1], [0, 0, 1, 1], [], []>} : vector<2x16xf32>, vector<16x28xf32>, vector<2x28xf32> -> vector<2x28xf32>
    %1272 = vector.broadcast %6 : vector<1x28xf32> to vector<2x28xf32>
    %1273 = arith.addf %1271, %1272 : vector<2x28xf32>
    %cst_281 = arith.constant 1.000000e-16 : f32
    %1274 = vector.broadcast %cst_281 : f32 to vector<2x8x4xf32>
    %1275 = arith.addf %1233, %1274 : vector<2x8x4xf32>
    %1276 = arith.mulf %1275, %1275 : vector<2x8x4xf32>
    %cst_282 = arith.constant dense<0.000000e+00> : vector<2x8xf32>
    %1277 = vector.multi_reduction <add>, %1276, %cst_282 [2] : vector<2x8x4xf32> to vector<2x8xf32>
    %cst_283 = arith.constant 1.000000e-16 : f32
    %1278 = vector.broadcast %cst_283 : f32 to vector<2x8xf32>
    %1279 = arith.maximumf %1277, %1278 : vector<2x8xf32>
    %1280 = math.rsqrt %1279 : vector<2x8xf32>
    %1281 = tpu.concatenate %1275, %1275 in 0 : vector<2x8x4xf32>, vector<2x8x4xf32> -> vector<4x8x4xf32>
    %1282 = tpu.concatenate %1280, %1280 in 0 : vector<2x8xf32>, vector<2x8xf32> -> vector<4x8xf32>
    %1283 = vector.extract_strided_slice %1273 {offsets = [0, 0], sizes = [2, 10], strides = [1, 1]} : vector<2x28xf32> to vector<2x10xf32>
    %1284 = vector.extract_strided_slice %1273 {offsets = [0, 10], sizes = [2, 10], strides = [1, 1]} : vector<2x28xf32> to vector<2x10xf32>
    %1285 = tpu.concatenate %1283, %1284 in 0 : vector<2x10xf32>, vector<2x10xf32> -> vector<4x10xf32>
    %1286 = vector.extract_strided_slice %1285 {offsets = [0, 0], sizes = [4, 4], strides = [1, 1]} : vector<4x10xf32> to vector<4x4xf32>
    %1287 = vector.extract_strided_slice %1285 {offsets = [0, 4], sizes = [4, 1], strides = [1, 1]} : vector<4x10xf32> to vector<4x1xf32>
    %cst_284 = arith.constant 0.000000e+00 : f32
    %1288 = vector.broadcast %cst_284 : f32 to vector<4x1xf32>
    %1289 = arith.maximumf %1287, %1288 : vector<4x1xf32>
    %1290 = vector.broadcast %cst_284 : f32 to vector<4x1xf32>
    %1291 = arith.subf %1287, %1290 : vector<4x1xf32>
    %1292 = arith.cmpf one, %1291, %1291 : vector<4x1xf32>
    %1293 = vector.broadcast %cst_284 : f32 to vector<4x1xf32>
    %1294 = arith.addf %1287, %1293 : vector<4x1xf32>
    %1295 = math.absf %1291 : vector<4x1xf32>
    %cst_285 = arith.constant 0.000000e+00 : f32
    %1296 = vector.broadcast %cst_285 : f32 to vector<4x1xf32>
    %1297 = arith.subf %1296, %1295 : vector<4x1xf32>
    %1298 = math.exp %1297 : vector<4x1xf32>
    %1299 = math.log1p %1298 : vector<4x1xf32>
    %1300 = arith.addf %1289, %1299 : vector<4x1xf32>
    %1301 = arith.select %1292, %1294, %1300 : vector<4x1xi1>, vector<4x1xf32>
    %1302 = vector.extract_strided_slice %1285 {offsets = [0, 5], sizes = [4, 1], strides = [1, 1]} : vector<4x10xf32> to vector<4x1xf32>
    %1303 = arith.negf %1302 : vector<4x1xf32>
    %1304 = math.exp %1303 : vector<4x1xf32>
    %cst_286 = arith.constant 1.000000e+00 : f32
    %1305 = vector.broadcast %cst_286 : f32 to vector<4x1xf32>
    %1306 = arith.addf %1305, %1304 : vector<4x1xf32>
    %1307 = arith.divf %1305, %1306 : vector<4x1xf32>
    %1308 = vector.extract_strided_slice %1285 {offsets = [0, 6], sizes = [4, 3], strides = [1, 1]} : vector<4x10xf32> to vector<4x3xf32>
    %1309 = vector.extract_strided_slice %1285 {offsets = [0, 9], sizes = [4, 1], strides = [1, 1]} : vector<4x10xf32> to vector<4x1xf32>
    %cst_287 = arith.constant 0.000000e+00 : f32
    %1310 = vector.broadcast %cst_287 : f32 to vector<4x1xf32>
    %1311 = arith.maximumf %1309, %1310 : vector<4x1xf32>
    %1312 = vector.broadcast %cst_287 : f32 to vector<4x1xf32>
    %1313 = arith.subf %1309, %1312 : vector<4x1xf32>
    %1314 = arith.cmpf one, %1313, %1313 : vector<4x1xf32>
    %1315 = vector.broadcast %cst_287 : f32 to vector<4x1xf32>
    %1316 = arith.addf %1309, %1315 : vector<4x1xf32>
    %1317 = math.absf %1313 : vector<4x1xf32>
    %cst_288 = arith.constant 0.000000e+00 : f32
    %1318 = vector.broadcast %cst_288 : f32 to vector<4x1xf32>
    %1319 = arith.subf %1318, %1317 : vector<4x1xf32>
    %1320 = math.exp %1319 : vector<4x1xf32>
    %1321 = math.log1p %1320 : vector<4x1xf32>
    %1322 = arith.addf %1311, %1321 : vector<4x1xf32>
    %1323 = arith.select %1314, %1316, %1322 : vector<4x1xi1>, vector<4x1xf32>
    %cst_289 = arith.constant 1.000000e+00 : f32
    %1324 = vector.broadcast %cst_289 : f32 to vector<4x1xf32>
    %1325 = arith.addf %1324, %1323 : vector<4x1xf32>
    %cst_290 = arith.constant dense<0xFF800000> : vector<4xf32>
    %1326 = vector.multi_reduction <maximumf>, %1308, %cst_290 [1] : vector<4x3xf32> to vector<4xf32>
    %1327 = vector.shape_cast %1326 : vector<4xf32> to vector<4x1xf32>
    %1328 = vector.broadcast %1327 : vector<4x1xf32> to vector<4x3xf32>
    %1329 = arith.subf %1308, %1328 : vector<4x3xf32>
    %1330 = math.exp %1329 : vector<4x3xf32>
    %cst_291 = arith.constant dense<0.000000e+00> : vector<4xf32>
    %1331 = vector.multi_reduction <add>, %1330, %cst_291 [1] : vector<4x3xf32> to vector<4xf32>
    %1332 = vector.shape_cast %1331 : vector<4xf32> to vector<4x1xf32>
    %1333 = tpu.reciprocal %1332 {approx = true} : vector<4x1xf32> -> vector<4x1xf32>
    %1334 = vector.broadcast %1333 : vector<4x1xf32> to vector<4x3xf32>
    %1335 = arith.mulf %1330, %1334 : vector<4x3xf32>
    %cst_292 = arith.constant 1.000000e-16 : f32
    %1336 = vector.broadcast %cst_292 : f32 to vector<4x4xf32>
    %1337 = arith.addf %1286, %1336 : vector<4x4xf32>
    %1338 = vector.shape_cast %1337 : vector<4x4xf32> to vector<4x1x4xf32>
    %1339 = vector.broadcast %1338 : vector<4x1x4xf32> to vector<4x8x4xf32>
    %1340 = arith.mulf %1281, %1339 : vector<4x8x4xf32>
    %cst_293 = arith.constant dense<0.000000e+00> : vector<4x8xf32>
    %1341 = vector.multi_reduction <add>, %1340, %cst_293 [2] : vector<4x8x4xf32> to vector<4x8xf32>
    %1342 = arith.mulf %1337, %1337 : vector<4x4xf32>
    %cst_294 = arith.constant dense<0.000000e+00> : vector<4xf32>
    %1343 = vector.multi_reduction <add>, %1342, %cst_294 [1] : vector<4x4xf32> to vector<4xf32>
    %1344 = vector.shape_cast %1343 : vector<4xf32> to vector<4x1xf32>
    %cst_295 = arith.constant 1.000000e-16 : f32
    %1345 = vector.broadcast %cst_295 : f32 to vector<4x1xf32>
    %1346 = arith.maximumf %1344, %1345 : vector<4x1xf32>
    %1347 = math.rsqrt %1346 : vector<4x1xf32>
    %1348 = vector.broadcast %1347 : vector<4x1xf32> to vector<4x8xf32>
    %1349 = arith.mulf %1282, %1348 : vector<4x8xf32>
    %1350 = arith.mulf %1341, %1349 : vector<4x8xf32>
    %1351 = vector.broadcast %1301 : vector<4x1xf32> to vector<4x8xf32>
    %1352 = arith.mulf %1351, %1350 : vector<4x8xf32>
    %cst_296 = arith.constant dense<0xFF800000> : vector<4xf32>
    %1353 = vector.multi_reduction <maximumf>, %1352, %cst_296 [1] : vector<4x8xf32> to vector<4xf32>
    %1354 = vector.shape_cast %1353 : vector<4xf32> to vector<4x1xf32>
    %1355 = vector.broadcast %1354 : vector<4x1xf32> to vector<4x8xf32>
    %1356 = arith.subf %1352, %1355 : vector<4x8xf32>
    %1357 = math.exp %1356 : vector<4x8xf32>
    %cst_297 = arith.constant dense<0.000000e+00> : vector<4xf32>
    %1358 = vector.multi_reduction <add>, %1357, %cst_297 [1] : vector<4x8xf32> to vector<4xf32>
    %1359 = vector.shape_cast %1358 : vector<4xf32> to vector<4x1xf32>
    %1360 = tpu.reciprocal %1359 {approx = true} : vector<4x1xf32> -> vector<4x1xf32>
    %1361 = vector.broadcast %1360 : vector<4x1xf32> to vector<4x8xf32>
    %1362 = arith.mulf %1357, %1361 : vector<4x8xf32>
    %1363 = vector.broadcast %1307 : vector<4x1xf32> to vector<4x8xf32>
    %1364 = arith.mulf %1363, %1362 : vector<4x8xf32>
    %cst_298 = arith.constant 1.000000e+00 : f32
    %1365 = vector.broadcast %cst_298 : f32 to vector<4x1xf32>
    %1366 = arith.subf %1365, %1307 : vector<4x1xf32>
    %1367 = vector.broadcast %1366 : vector<4x1xf32> to vector<4x8xf32>
    %1368 = arith.mulf %1367, %1206 : vector<4x8xf32>
    %1369 = arith.addf %1364, %1368 : vector<4x8xf32>
    %1370 = vector.extract_strided_slice %1369 {offsets = [0, 7], sizes = [4, 1], strides = [1, 1]} : vector<4x8xf32> to vector<4x1xf32>
    %1371 = vector.extract_strided_slice %1369 {offsets = [0, 0], sizes = [4, 7], strides = [1, 1]} : vector<4x8xf32> to vector<4x7xf32>
    %1372 = tpu.concatenate %1370, %1371 in 1 : vector<4x1xf32>, vector<4x7xf32> -> vector<4x8xf32>
    %1373 = vector.extract_strided_slice %1369 {offsets = [0, 1], sizes = [4, 7], strides = [1, 1]} : vector<4x8xf32> to vector<4x7xf32>
    %1374 = vector.extract_strided_slice %1369 {offsets = [0, 0], sizes = [4, 1], strides = [1, 1]} : vector<4x8xf32> to vector<4x1xf32>
    %1375 = tpu.concatenate %1373, %1374 in 1 : vector<4x7xf32>, vector<4x1xf32> -> vector<4x8xf32>
    %1376 = vector.extract_strided_slice %1335 {offsets = [0, 0], sizes = [4, 1], strides = [1, 1]} : vector<4x3xf32> to vector<4x1xf32>
    %1377 = vector.broadcast %1376 : vector<4x1xf32> to vector<4x8xf32>
    %1378 = arith.mulf %1377, %1372 : vector<4x8xf32>
    %1379 = vector.extract_strided_slice %1335 {offsets = [0, 1], sizes = [4, 1], strides = [1, 1]} : vector<4x3xf32> to vector<4x1xf32>
    %1380 = vector.broadcast %1379 : vector<4x1xf32> to vector<4x8xf32>
    %1381 = arith.mulf %1380, %1369 : vector<4x8xf32>
    %1382 = arith.addf %1378, %1381 : vector<4x8xf32>
    %1383 = vector.extract_strided_slice %1335 {offsets = [0, 2], sizes = [4, 1], strides = [1, 1]} : vector<4x3xf32> to vector<4x1xf32>
    %1384 = vector.broadcast %1383 : vector<4x1xf32> to vector<4x8xf32>
    %1385 = arith.mulf %1384, %1375 : vector<4x8xf32>
    %1386 = arith.addf %1382, %1385 : vector<4x8xf32>
    %cst_299 = arith.constant 1.000000e-30 : f32
    %1387 = vector.broadcast %cst_299 : f32 to vector<4x8xf32>
    %1388 = arith.maximumf %1386, %1387 : vector<4x8xf32>
    %1389 = math.log %1388 : vector<4x8xf32>
    %1390 = vector.broadcast %1325 : vector<4x1xf32> to vector<4x8xf32>
    %1391 = arith.mulf %1390, %1389 : vector<4x8xf32>
    %1392 = math.exp %1391 : vector<4x8xf32>
    %cst_300 = arith.constant dense<0.000000e+00> : vector<4xf32>
    %1393 = vector.multi_reduction <add>, %1392, %cst_300 [1] : vector<4x8xf32> to vector<4xf32>
    %1394 = vector.shape_cast %1393 : vector<4xf32> to vector<4x1xf32>
    %cst_301 = arith.constant 1.000000e-16 : f32
    %1395 = vector.broadcast %cst_301 : f32 to vector<4x1xf32>
    %1396 = arith.addf %1394, %1395 : vector<4x1xf32>
    %1397 = tpu.reciprocal %1396 {approx = true} : vector<4x1xf32> -> vector<4x1xf32>
    %1398 = vector.broadcast %1397 : vector<4x1xf32> to vector<4x8xf32>
    %1399 = arith.mulf %1392, %1398 : vector<4x8xf32>
    %1400 = vector.extract_strided_slice %1399 {offsets = [0, 0], sizes = [2, 8], strides = [1, 1]} : vector<4x8xf32> to vector<2x8xf32>
    %1401 = vector.extract_strided_slice %1399 {offsets = [2, 0], sizes = [2, 8], strides = [1, 1]} : vector<4x8xf32> to vector<2x8xf32>
    %1402 = vector.shape_cast %1400 : vector<2x8xf32> to vector<2x8x1xf32>
    %1403 = vector.broadcast %1402 : vector<2x8x1xf32> to vector<2x8x4xf32>
    %1404 = arith.mulf %1403, %1233 : vector<2x8x4xf32>
    %cst_302 = arith.constant dense<0.000000e+00> : vector<2x4xf32>
    %1405 = vector.multi_reduction <add>, %1404, %cst_302 [1] : vector<2x8x4xf32> to vector<2x4xf32>
    %1406 = vector.extract_strided_slice %1273 {offsets = [0, 20], sizes = [2, 4], strides = [1, 1]} : vector<2x28xf32> to vector<2x4xf32>
    %1407 = arith.negf %1406 : vector<2x4xf32>
    %1408 = math.exp %1407 : vector<2x4xf32>
    %cst_303 = arith.constant 1.000000e+00 : f32
    %1409 = vector.broadcast %cst_303 : f32 to vector<2x4xf32>
    %1410 = arith.addf %1409, %1408 : vector<2x4xf32>
    %1411 = arith.divf %1409, %1410 : vector<2x4xf32>
    %1412 = vector.extract_strided_slice %1273 {offsets = [0, 24], sizes = [2, 4], strides = [1, 1]} : vector<2x28xf32> to vector<2x4xf32>
    %1413 = vector.shape_cast %1401 : vector<2x8xf32> to vector<2x8x1xf32>
    %1414 = vector.shape_cast %1411 : vector<2x4xf32> to vector<2x1x4xf32>
    %1415 = vector.broadcast %1413 : vector<2x8x1xf32> to vector<2x8x4xf32>
    %1416 = vector.broadcast %1414 : vector<2x1x4xf32> to vector<2x8x4xf32>
    %1417 = arith.mulf %1415, %1416 : vector<2x8x4xf32>
    %cst_304 = arith.constant 1.000000e+00 : f32
    %1418 = vector.broadcast %cst_304 : f32 to vector<2x8x4xf32>
    %1419 = arith.subf %1418, %1417 : vector<2x8x4xf32>
    %1420 = arith.mulf %1233, %1419 : vector<2x8x4xf32>
    %1421 = vector.shape_cast %1401 : vector<2x8xf32> to vector<2x8x1xf32>
    %1422 = vector.shape_cast %1412 : vector<2x4xf32> to vector<2x1x4xf32>
    %1423 = vector.broadcast %1421 : vector<2x8x1xf32> to vector<2x8x4xf32>
    %1424 = vector.broadcast %1422 : vector<2x1x4xf32> to vector<2x8x4xf32>
    %1425 = arith.mulf %1423, %1424 : vector<2x8x4xf32>
    %1426 = arith.addf %1420, %1425 : vector<2x8x4xf32>
    %1427 = tpu.concatenate %1270, %1405 in 1 : vector<2x16xf32>, vector<2x4xf32> -> vector<2x20xf32>
    %1428 = arith.index_cast %c6_i32 : i32 to index
    %c0_305 = arith.constant 0 : index
    %c0_306 = arith.constant 0 : index
    %1429 = vector.load %arg12[%1428, %c0_305, %c0_306] : memref<8x2x20xf32, #tpu.memory_space<vmem>>, vector<1x2x20xf32>
    %1430 = vector.shape_cast %1429 : vector<1x2x20xf32> to vector<2x20xf32>
    %1431 = vector.shape_cast %1427 : vector<2x20xf32> to vector<1x2x20xf32>
    tpu.vector_store %arg12[%1428, %c0_305, %c0_306], %1431 {strides = array<i32>} : memref<8x2x20xf32, #tpu.memory_space<vmem>>, vector<1x2x20xf32>,
    %c7_i32 = arith.constant 7 : i32
    %1432 = arith.index_cast %c7_i32 : i32 to index
    %c0_307 = arith.constant 0 : index
    %c0_308 = arith.constant 0 : index
    %1433 = vector.load %arg18[%1432, %c0_307, %c0_308] : memref<8x2x64xf32, #tpu.memory_space<vmem>>, vector<1x2x64xf32>
    %1434 = vector.shape_cast %1433 : vector<1x2x64xf32> to vector<2x64xf32>
    %cst_309 = arith.constant dense<0.000000e+00> : vector<2x64xf32>
    %1435 = tpu.matmul %1270, %2, %cst_309 {dimension_numbers = #tpu.dot_dimension_numbers<[1], [0], [0], [1], [0, 0, 1, 1], [], []>} : vector<2x16xf32>, vector<16x64xf32>, vector<2x64xf32> -> vector<2x64xf32>
    %1436 = arith.addf %1434, %1435 : vector<2x64xf32>
    %cst_310 = arith.constant dense<0.000000e+00> : vector<2x64xf32>
    %1437 = tpu.matmul %1405, %4, %cst_310 {dimension_numbers = #tpu.dot_dimension_numbers<[1], [0], [0], [1], [0, 0, 1, 1], [], []>} : vector<2x4xf32>, vector<4x64xf32>, vector<2x64xf32> -> vector<2x64xf32>
    %1438 = arith.addf %1436, %1437 : vector<2x64xf32>
    %1439 = vector.extract_strided_slice %1438 {offsets = [0, 0], sizes = [2, 16], strides = [1, 1]} : vector<2x64xf32> to vector<2x16xf32>
    %1440 = arith.negf %1439 : vector<2x16xf32>
    %1441 = math.exp %1440 : vector<2x16xf32>
    %cst_311 = arith.constant 1.000000e+00 : f32
    %1442 = vector.broadcast %cst_311 : f32 to vector<2x16xf32>
    %1443 = arith.addf %1442, %1441 : vector<2x16xf32>
    %1444 = arith.divf %1442, %1443 : vector<2x16xf32>
    %1445 = vector.extract_strided_slice %1438 {offsets = [0, 16], sizes = [2, 16], strides = [1, 1]} : vector<2x64xf32> to vector<2x16xf32>
    %1446 = arith.negf %1445 : vector<2x16xf32>
    %1447 = math.exp %1446 : vector<2x16xf32>
    %cst_312 = arith.constant 1.000000e+00 : f32
    %1448 = vector.broadcast %cst_312 : f32 to vector<2x16xf32>
    %1449 = arith.addf %1448, %1447 : vector<2x16xf32>
    %1450 = arith.divf %1448, %1449 : vector<2x16xf32>
    %1451 = vector.extract_strided_slice %1438 {offsets = [0, 32], sizes = [2, 16], strides = [1, 1]} : vector<2x64xf32> to vector<2x16xf32>
    %1452 = math.tanh %1451 : vector<2x16xf32>
    %1453 = vector.extract_strided_slice %1438 {offsets = [0, 48], sizes = [2, 16], strides = [1, 1]} : vector<2x64xf32> to vector<2x16xf32>
    %1454 = arith.negf %1453 : vector<2x16xf32>
    %1455 = math.exp %1454 : vector<2x16xf32>
    %cst_313 = arith.constant 1.000000e+00 : f32
    %1456 = vector.broadcast %cst_313 : f32 to vector<2x16xf32>
    %1457 = arith.addf %1456, %1455 : vector<2x16xf32>
    %1458 = arith.divf %1456, %1457 : vector<2x16xf32>
    %1459 = arith.mulf %1450, %1268 : vector<2x16xf32>
    %1460 = arith.mulf %1444, %1452 : vector<2x16xf32>
    %1461 = arith.addf %1459, %1460 : vector<2x16xf32>
    %1462 = math.tanh %1461 : vector<2x16xf32>
    %1463 = arith.mulf %1458, %1462 : vector<2x16xf32>
    %cst_314 = arith.constant dense<0.000000e+00> : vector<2x28xf32>
    %1464 = tpu.matmul %1463, %5, %cst_314 {dimension_numbers = #tpu.dot_dimension_numbers<[1], [0], [0], [1], [0, 0, 1, 1], [], []>} : vector<2x16xf32>, vector<16x28xf32>, vector<2x28xf32> -> vector<2x28xf32>
    %1465 = vector.broadcast %6 : vector<1x28xf32> to vector<2x28xf32>
    %1466 = arith.addf %1464, %1465 : vector<2x28xf32>
    %cst_315 = arith.constant 1.000000e-16 : f32
    %1467 = vector.broadcast %cst_315 : f32 to vector<2x8x4xf32>
    %1468 = arith.addf %1426, %1467 : vector<2x8x4xf32>
    %1469 = arith.mulf %1468, %1468 : vector<2x8x4xf32>
    %cst_316 = arith.constant dense<0.000000e+00> : vector<2x8xf32>
    %1470 = vector.multi_reduction <add>, %1469, %cst_316 [2] : vector<2x8x4xf32> to vector<2x8xf32>
    %cst_317 = arith.constant 1.000000e-16 : f32
    %1471 = vector.broadcast %cst_317 : f32 to vector<2x8xf32>
    %1472 = arith.maximumf %1470, %1471 : vector<2x8xf32>
    %1473 = math.rsqrt %1472 : vector<2x8xf32>
    %1474 = tpu.concatenate %1468, %1468 in 0 : vector<2x8x4xf32>, vector<2x8x4xf32> -> vector<4x8x4xf32>
    %1475 = tpu.concatenate %1473, %1473 in 0 : vector<2x8xf32>, vector<2x8xf32> -> vector<4x8xf32>
    %1476 = vector.extract_strided_slice %1466 {offsets = [0, 0], sizes = [2, 10], strides = [1, 1]} : vector<2x28xf32> to vector<2x10xf32>
    %1477 = vector.extract_strided_slice %1466 {offsets = [0, 10], sizes = [2, 10], strides = [1, 1]} : vector<2x28xf32> to vector<2x10xf32>
    %1478 = tpu.concatenate %1476, %1477 in 0 : vector<2x10xf32>, vector<2x10xf32> -> vector<4x10xf32>
    %1479 = vector.extract_strided_slice %1478 {offsets = [0, 0], sizes = [4, 4], strides = [1, 1]} : vector<4x10xf32> to vector<4x4xf32>
    %1480 = vector.extract_strided_slice %1478 {offsets = [0, 4], sizes = [4, 1], strides = [1, 1]} : vector<4x10xf32> to vector<4x1xf32>
    %cst_318 = arith.constant 0.000000e+00 : f32
    %1481 = vector.broadcast %cst_318 : f32 to vector<4x1xf32>
    %1482 = arith.maximumf %1480, %1481 : vector<4x1xf32>
    %1483 = vector.broadcast %cst_318 : f32 to vector<4x1xf32>
    %1484 = arith.subf %1480, %1483 : vector<4x1xf32>
    %1485 = arith.cmpf one, %1484, %1484 : vector<4x1xf32>
    %1486 = vector.broadcast %cst_318 : f32 to vector<4x1xf32>
    %1487 = arith.addf %1480, %1486 : vector<4x1xf32>
    %1488 = math.absf %1484 : vector<4x1xf32>
    %cst_319 = arith.constant 0.000000e+00 : f32
    %1489 = vector.broadcast %cst_319 : f32 to vector<4x1xf32>
    %1490 = arith.subf %1489, %1488 : vector<4x1xf32>
    %1491 = math.exp %1490 : vector<4x1xf32>
    %1492 = math.log1p %1491 : vector<4x1xf32>
    %1493 = arith.addf %1482, %1492 : vector<4x1xf32>
    %1494 = arith.select %1485, %1487, %1493 : vector<4x1xi1>, vector<4x1xf32>
    %1495 = vector.extract_strided_slice %1478 {offsets = [0, 5], sizes = [4, 1], strides = [1, 1]} : vector<4x10xf32> to vector<4x1xf32>
    %1496 = arith.negf %1495 : vector<4x1xf32>
    %1497 = math.exp %1496 : vector<4x1xf32>
    %cst_320 = arith.constant 1.000000e+00 : f32
    %1498 = vector.broadcast %cst_320 : f32 to vector<4x1xf32>
    %1499 = arith.addf %1498, %1497 : vector<4x1xf32>
    %1500 = arith.divf %1498, %1499 : vector<4x1xf32>
    %1501 = vector.extract_strided_slice %1478 {offsets = [0, 6], sizes = [4, 3], strides = [1, 1]} : vector<4x10xf32> to vector<4x3xf32>
    %1502 = vector.extract_strided_slice %1478 {offsets = [0, 9], sizes = [4, 1], strides = [1, 1]} : vector<4x10xf32> to vector<4x1xf32>
    %cst_321 = arith.constant 0.000000e+00 : f32
    %1503 = vector.broadcast %cst_321 : f32 to vector<4x1xf32>
    %1504 = arith.maximumf %1502, %1503 : vector<4x1xf32>
    %1505 = vector.broadcast %cst_321 : f32 to vector<4x1xf32>
    %1506 = arith.subf %1502, %1505 : vector<4x1xf32>
    %1507 = arith.cmpf one, %1506, %1506 : vector<4x1xf32>
    %1508 = vector.broadcast %cst_321 : f32 to vector<4x1xf32>
    %1509 = arith.addf %1502, %1508 : vector<4x1xf32>
    %1510 = math.absf %1506 : vector<4x1xf32>
    %cst_322 = arith.constant 0.000000e+00 : f32
    %1511 = vector.broadcast %cst_322 : f32 to vector<4x1xf32>
    %1512 = arith.subf %1511, %1510 : vector<4x1xf32>
    %1513 = math.exp %1512 : vector<4x1xf32>
    %1514 = math.log1p %1513 : vector<4x1xf32>
    %1515 = arith.addf %1504, %1514 : vector<4x1xf32>
    %1516 = arith.select %1507, %1509, %1515 : vector<4x1xi1>, vector<4x1xf32>
    %cst_323 = arith.constant 1.000000e+00 : f32
    %1517 = vector.broadcast %cst_323 : f32 to vector<4x1xf32>
    %1518 = arith.addf %1517, %1516 : vector<4x1xf32>
    %cst_324 = arith.constant dense<0xFF800000> : vector<4xf32>
    %1519 = vector.multi_reduction <maximumf>, %1501, %cst_324 [1] : vector<4x3xf32> to vector<4xf32>
    %1520 = vector.shape_cast %1519 : vector<4xf32> to vector<4x1xf32>
    %1521 = vector.broadcast %1520 : vector<4x1xf32> to vector<4x3xf32>
    %1522 = arith.subf %1501, %1521 : vector<4x3xf32>
    %1523 = math.exp %1522 : vector<4x3xf32>
    %cst_325 = arith.constant dense<0.000000e+00> : vector<4xf32>
    %1524 = vector.multi_reduction <add>, %1523, %cst_325 [1] : vector<4x3xf32> to vector<4xf32>
    %1525 = vector.shape_cast %1524 : vector<4xf32> to vector<4x1xf32>
    %1526 = tpu.reciprocal %1525 {approx = true} : vector<4x1xf32> -> vector<4x1xf32>
    %1527 = vector.broadcast %1526 : vector<4x1xf32> to vector<4x3xf32>
    %1528 = arith.mulf %1523, %1527 : vector<4x3xf32>
    %cst_326 = arith.constant 1.000000e-16 : f32
    %1529 = vector.broadcast %cst_326 : f32 to vector<4x4xf32>
    %1530 = arith.addf %1479, %1529 : vector<4x4xf32>
    %1531 = vector.shape_cast %1530 : vector<4x4xf32> to vector<4x1x4xf32>
    %1532 = vector.broadcast %1531 : vector<4x1x4xf32> to vector<4x8x4xf32>
    %1533 = arith.mulf %1474, %1532 : vector<4x8x4xf32>
    %cst_327 = arith.constant dense<0.000000e+00> : vector<4x8xf32>
    %1534 = vector.multi_reduction <add>, %1533, %cst_327 [2] : vector<4x8x4xf32> to vector<4x8xf32>
    %1535 = arith.mulf %1530, %1530 : vector<4x4xf32>
    %cst_328 = arith.constant dense<0.000000e+00> : vector<4xf32>
    %1536 = vector.multi_reduction <add>, %1535, %cst_328 [1] : vector<4x4xf32> to vector<4xf32>
    %1537 = vector.shape_cast %1536 : vector<4xf32> to vector<4x1xf32>
    %cst_329 = arith.constant 1.000000e-16 : f32
    %1538 = vector.broadcast %cst_329 : f32 to vector<4x1xf32>
    %1539 = arith.maximumf %1537, %1538 : vector<4x1xf32>
    %1540 = math.rsqrt %1539 : vector<4x1xf32>
    %1541 = vector.broadcast %1540 : vector<4x1xf32> to vector<4x8xf32>
    %1542 = arith.mulf %1475, %1541 : vector<4x8xf32>
    %1543 = arith.mulf %1534, %1542 : vector<4x8xf32>
    %1544 = vector.broadcast %1494 : vector<4x1xf32> to vector<4x8xf32>
    %1545 = arith.mulf %1544, %1543 : vector<4x8xf32>
    %cst_330 = arith.constant dense<0xFF800000> : vector<4xf32>
    %1546 = vector.multi_reduction <maximumf>, %1545, %cst_330 [1] : vector<4x8xf32> to vector<4xf32>
    %1547 = vector.shape_cast %1546 : vector<4xf32> to vector<4x1xf32>
    %1548 = vector.broadcast %1547 : vector<4x1xf32> to vector<4x8xf32>
    %1549 = arith.subf %1545, %1548 : vector<4x8xf32>
    %1550 = math.exp %1549 : vector<4x8xf32>
    %cst_331 = arith.constant dense<0.000000e+00> : vector<4xf32>
    %1551 = vector.multi_reduction <add>, %1550, %cst_331 [1] : vector<4x8xf32> to vector<4xf32>
    %1552 = vector.shape_cast %1551 : vector<4xf32> to vector<4x1xf32>
    %1553 = tpu.reciprocal %1552 {approx = true} : vector<4x1xf32> -> vector<4x1xf32>
    %1554 = vector.broadcast %1553 : vector<4x1xf32> to vector<4x8xf32>
    %1555 = arith.mulf %1550, %1554 : vector<4x8xf32>
    %1556 = vector.broadcast %1500 : vector<4x1xf32> to vector<4x8xf32>
    %1557 = arith.mulf %1556, %1555 : vector<4x8xf32>
    %cst_332 = arith.constant 1.000000e+00 : f32
    %1558 = vector.broadcast %cst_332 : f32 to vector<4x1xf32>
    %1559 = arith.subf %1558, %1500 : vector<4x1xf32>
    %1560 = vector.broadcast %1559 : vector<4x1xf32> to vector<4x8xf32>
    %1561 = arith.mulf %1560, %1399 : vector<4x8xf32>
    %1562 = arith.addf %1557, %1561 : vector<4x8xf32>
    %1563 = vector.extract_strided_slice %1562 {offsets = [0, 7], sizes = [4, 1], strides = [1, 1]} : vector<4x8xf32> to vector<4x1xf32>
    %1564 = vector.extract_strided_slice %1562 {offsets = [0, 0], sizes = [4, 7], strides = [1, 1]} : vector<4x8xf32> to vector<4x7xf32>
    %1565 = tpu.concatenate %1563, %1564 in 1 : vector<4x1xf32>, vector<4x7xf32> -> vector<4x8xf32>
    %1566 = vector.extract_strided_slice %1562 {offsets = [0, 1], sizes = [4, 7], strides = [1, 1]} : vector<4x8xf32> to vector<4x7xf32>
    %1567 = vector.extract_strided_slice %1562 {offsets = [0, 0], sizes = [4, 1], strides = [1, 1]} : vector<4x8xf32> to vector<4x1xf32>
    %1568 = tpu.concatenate %1566, %1567 in 1 : vector<4x7xf32>, vector<4x1xf32> -> vector<4x8xf32>
    %1569 = vector.extract_strided_slice %1528 {offsets = [0, 0], sizes = [4, 1], strides = [1, 1]} : vector<4x3xf32> to vector<4x1xf32>
    %1570 = vector.broadcast %1569 : vector<4x1xf32> to vector<4x8xf32>
    %1571 = arith.mulf %1570, %1565 : vector<4x8xf32>
    %1572 = vector.extract_strided_slice %1528 {offsets = [0, 1], sizes = [4, 1], strides = [1, 1]} : vector<4x3xf32> to vector<4x1xf32>
    %1573 = vector.broadcast %1572 : vector<4x1xf32> to vector<4x8xf32>
    %1574 = arith.mulf %1573, %1562 : vector<4x8xf32>
    %1575 = arith.addf %1571, %1574 : vector<4x8xf32>
    %1576 = vector.extract_strided_slice %1528 {offsets = [0, 2], sizes = [4, 1], strides = [1, 1]} : vector<4x3xf32> to vector<4x1xf32>
    %1577 = vector.broadcast %1576 : vector<4x1xf32> to vector<4x8xf32>
    %1578 = arith.mulf %1577, %1568 : vector<4x8xf32>
    %1579 = arith.addf %1575, %1578 : vector<4x8xf32>
    %cst_333 = arith.constant 1.000000e-30 : f32
    %1580 = vector.broadcast %cst_333 : f32 to vector<4x8xf32>
    %1581 = arith.maximumf %1579, %1580 : vector<4x8xf32>
    %1582 = math.log %1581 : vector<4x8xf32>
    %1583 = vector.broadcast %1518 : vector<4x1xf32> to vector<4x8xf32>
    %1584 = arith.mulf %1583, %1582 : vector<4x8xf32>
    %1585 = math.exp %1584 : vector<4x8xf32>
    %cst_334 = arith.constant dense<0.000000e+00> : vector<4xf32>
    %1586 = vector.multi_reduction <add>, %1585, %cst_334 [1] : vector<4x8xf32> to vector<4xf32>
    %1587 = vector.shape_cast %1586 : vector<4xf32> to vector<4x1xf32>
    %cst_335 = arith.constant 1.000000e-16 : f32
    %1588 = vector.broadcast %cst_335 : f32 to vector<4x1xf32>
    %1589 = arith.addf %1587, %1588 : vector<4x1xf32>
    %1590 = tpu.reciprocal %1589 {approx = true} : vector<4x1xf32> -> vector<4x1xf32>
    %1591 = vector.broadcast %1590 : vector<4x1xf32> to vector<4x8xf32>
    %1592 = arith.mulf %1585, %1591 : vector<4x8xf32>
    %1593 = vector.extract_strided_slice %1592 {offsets = [0, 0], sizes = [2, 8], strides = [1, 1]} : vector<4x8xf32> to vector<2x8xf32>
    %1594 = vector.extract_strided_slice %1592 {offsets = [2, 0], sizes = [2, 8], strides = [1, 1]} : vector<4x8xf32> to vector<2x8xf32>
    %1595 = vector.shape_cast %1593 : vector<2x8xf32> to vector<2x8x1xf32>
    %1596 = vector.broadcast %1595 : vector<2x8x1xf32> to vector<2x8x4xf32>
    %1597 = arith.mulf %1596, %1426 : vector<2x8x4xf32>
    %cst_336 = arith.constant dense<0.000000e+00> : vector<2x4xf32>
    %1598 = vector.multi_reduction <add>, %1597, %cst_336 [1] : vector<2x8x4xf32> to vector<2x4xf32>
    %1599 = vector.extract_strided_slice %1466 {offsets = [0, 20], sizes = [2, 4], strides = [1, 1]} : vector<2x28xf32> to vector<2x4xf32>
    %1600 = arith.negf %1599 : vector<2x4xf32>
    %1601 = math.exp %1600 : vector<2x4xf32>
    %cst_337 = arith.constant 1.000000e+00 : f32
    %1602 = vector.broadcast %cst_337 : f32 to vector<2x4xf32>
    %1603 = arith.addf %1602, %1601 : vector<2x4xf32>
    %1604 = arith.divf %1602, %1603 : vector<2x4xf32>
    %1605 = vector.extract_strided_slice %1466 {offsets = [0, 24], sizes = [2, 4], strides = [1, 1]} : vector<2x28xf32> to vector<2x4xf32>
    %1606 = vector.shape_cast %1594 : vector<2x8xf32> to vector<2x8x1xf32>
    %1607 = vector.shape_cast %1604 : vector<2x4xf32> to vector<2x1x4xf32>
    %1608 = vector.broadcast %1606 : vector<2x8x1xf32> to vector<2x8x4xf32>
    %1609 = vector.broadcast %1607 : vector<2x1x4xf32> to vector<2x8x4xf32>
    %1610 = arith.mulf %1608, %1609 : vector<2x8x4xf32>
    %cst_338 = arith.constant 1.000000e+00 : f32
    %1611 = vector.broadcast %cst_338 : f32 to vector<2x8x4xf32>
    %1612 = arith.subf %1611, %1610 : vector<2x8x4xf32>
    %1613 = arith.mulf %1426, %1612 : vector<2x8x4xf32>
    %1614 = vector.shape_cast %1594 : vector<2x8xf32> to vector<2x8x1xf32>
    %1615 = vector.shape_cast %1605 : vector<2x4xf32> to vector<2x1x4xf32>
    %1616 = vector.broadcast %1614 : vector<2x8x1xf32> to vector<2x8x4xf32>
    %1617 = vector.broadcast %1615 : vector<2x1x4xf32> to vector<2x8x4xf32>
    %1618 = arith.mulf %1616, %1617 : vector<2x8x4xf32>
    %1619 = arith.addf %1613, %1618 : vector<2x8x4xf32>
    %1620 = tpu.concatenate %1463, %1598 in 1 : vector<2x16xf32>, vector<2x4xf32> -> vector<2x20xf32>
    %1621 = arith.index_cast %c7_i32 : i32 to index
    %c0_339 = arith.constant 0 : index
    %c0_340 = arith.constant 0 : index
    %1622 = vector.load %arg12[%1621, %c0_339, %c0_340] : memref<8x2x20xf32, #tpu.memory_space<vmem>>, vector<1x2x20xf32>
    %1623 = vector.shape_cast %1622 : vector<1x2x20xf32> to vector<2x20xf32>
    %1624 = vector.shape_cast %1620 : vector<2x20xf32> to vector<1x2x20xf32>
    tpu.vector_store %arg12[%1621, %c0_339, %c0_340], %1624 {strides = array<i32>} : memref<8x2x20xf32, #tpu.memory_space<vmem>>, vector<1x2x20xf32>,
    %c8_i32 = arith.constant 8 : i32
    %c0_341 = arith.constant 0 : index
    %c0_342 = arith.constant 0 : index
    %1625 = vector.load %arg13[%c0_341, %c0_342] : memref<2x16xf32, #tpu.memory_space<vmem>>, vector<2x16xf32>
    tpu.vector_store %arg13[%c0_341, %c0_342], %1463 {strides = array<i32>} : memref<2x16xf32, #tpu.memory_space<vmem>>, vector<2x16xf32>,
    %c0_343 = arith.constant 0 : index
    %c0_344 = arith.constant 0 : index
    %1626 = vector.load %arg14[%c0_343, %c0_344] : memref<2x16xf32, #tpu.memory_space<vmem>>, vector<2x16xf32>
    tpu.vector_store %arg14[%c0_343, %c0_344], %1461 {strides = array<i32>} : memref<2x16xf32, #tpu.memory_space<vmem>>, vector<2x16xf32>,
    %c0_345 = arith.constant 0 : index
    %c0_346 = arith.constant 0 : index
    %c0_347 = arith.constant 0 : index
    %1627 = vector.load %arg15[%c0_345, %c0_346, %c0_347] : memref<2x8x4xf32, #tpu.memory_space<vmem>>, vector<2x8x4xf32>
    tpu.vector_store %arg15[%c0_345, %c0_346, %c0_347], %1619 {strides = array<i32>} : memref<2x8x4xf32, #tpu.memory_space<vmem>>, vector<2x8x4xf32>,
    %c0_348 = arith.constant 0 : index
    %c0_349 = arith.constant 0 : index
    %c0_350 = arith.constant 0 : index
    %1628 = vector.load %arg16[%c0_348, %c0_349, %c0_350] : memref<1x2x4xf32, #tpu.memory_space<vmem>>, vector<1x2x4xf32>
    %1629 = vector.shape_cast %1628 : vector<1x2x4xf32> to vector<2x4xf32>
    %1630 = vector.shape_cast %1598 : vector<2x4xf32> to vector<1x2x4xf32>
    tpu.vector_store %arg16[%c0_348, %c0_349, %c0_350], %1630 {strides = array<i32>} : memref<1x2x4xf32, #tpu.memory_space<vmem>>, vector<1x2x4xf32>,
    %1631 = vector.extract_strided_slice %1592 {offsets = [0, 0], sizes = [2, 8], strides = [1, 1]} : vector<4x8xf32> to vector<2x8xf32>
    %c0_351 = arith.constant 0 : index
    %c0_352 = arith.constant 0 : index
    %c0_353 = arith.constant 0 : index
    %1632 = vector.load %arg17[%c0_351, %c0_352, %c0_353] : memref<2x2x8xf32, #tpu.memory_space<vmem>>, vector<1x2x8xf32>
    %1633 = vector.shape_cast %1632 : vector<1x2x8xf32> to vector<2x8xf32>
    %1634 = vector.shape_cast %1631 : vector<2x8xf32> to vector<1x2x8xf32>
    tpu.vector_store %arg17[%c0_351, %c0_352, %c0_353], %1634 {strides = array<i32>} : memref<2x2x8xf32, #tpu.memory_space<vmem>>, vector<1x2x8xf32>,
    %1635 = vector.extract_strided_slice %1592 {offsets = [2, 0], sizes = [2, 8], strides = [1, 1]} : vector<4x8xf32> to vector<2x8xf32>
    %c1_354 = arith.constant 1 : index
    %c0_355 = arith.constant 0 : index
    %c0_356 = arith.constant 0 : index
    %1636 = vector.load %arg17[%c1_354, %c0_355, %c0_356] : memref<2x2x8xf32, #tpu.memory_space<vmem>>, vector<1x2x8xf32>
    %1637 = vector.shape_cast %1636 : vector<1x2x8xf32> to vector<2x8xf32>
    %1638 = vector.shape_cast %1635 : vector<2x8xf32> to vector<1x2x8xf32>
    tpu.vector_store %arg17[%c1_354, %c0_355, %c0_356], %1638 {strides = array<i32>} : memref<2x2x8xf32, #tpu.memory_space<vmem>>, vector<1x2x8xf32>,
    return
  }
  func.func @transform_0(%arg0: i32) -> (i32, i32, i32) {
    %c0_i32 = arith.constant 0 : i32
    %c0_i32_0 = arith.constant 0 : i32
    %c0_i32_1 = arith.constant 0 : i32
    %c0_i32_2 = arith.constant 0 : i32
    return %c0_i32, %c0_i32_0, %c0_i32_1 : i32, i32, i32
  }
  func.func @transform_1(%arg0: i32) -> (i32, i32) {
    %c0_i32 = arith.constant 0 : i32
    %c0_i32_0 = arith.constant 0 : i32
    %c0_i32_1 = arith.constant 0 : i32
    return %c0_i32, %c0_i32_0 : i32, i32
  }
  func.func @transform_2(%arg0: i32) -> (i32, i32) {
    %c0_i32 = arith.constant 0 : i32
    %c0_i32_0 = arith.constant 0 : i32
    %c0_i32_1 = arith.constant 0 : i32
    return %c0_i32, %c0_i32_0 : i32, i32
  }
  func.func @transform_3(%arg0: i32) -> (i32, i32) {
    %c0_i32 = arith.constant 0 : i32
    %c0_i32_0 = arith.constant 0 : i32
    %c0_i32_1 = arith.constant 0 : i32
    return %c0_i32, %c0_i32_0 : i32, i32
  }
  func.func @transform_4(%arg0: i32) -> (i32, i32) {
    %c0_i32 = arith.constant 0 : i32
    %c0_i32_0 = arith.constant 0 : i32
    %c0_i32_1 = arith.constant 0 : i32
    return %c0_i32, %c0_i32_0 : i32, i32
  }
  func.func @transform_5(%arg0: i32) -> (i32, i32) {
    %c0_i32 = arith.constant 0 : i32
    %c0_i32_0 = arith.constant 0 : i32
    %c0_i32_1 = arith.constant 0 : i32
    return %c0_i32, %c0_i32_0 : i32, i32
  }
  func.func @transform_6(%arg0: i32) -> (i32, i32) {
    %c0_i32 = arith.constant 0 : i32
    %c0_i32_0 = arith.constant 0 : i32
    %c0_i32_1 = arith.constant 0 : i32
    return %c0_i32, %c0_i32_0 : i32, i32
  }
  func.func @transform_7(%arg0: i32) -> (i32, i32, i32) {
    %c0_i32 = arith.constant 0 : i32
    %c0_i32_0 = arith.constant 0 : i32
    %c0_i32_1 = arith.constant 0 : i32
    %c0_i32_2 = arith.constant 0 : i32
    return %c0_i32, %c0_i32_0, %c0_i32_1 : i32, i32, i32
  }
  func.func @transform_8(%arg0: i32) -> (i32, i32) {
    %c0_i32 = arith.constant 0 : i32
    %c0_i32_0 = arith.constant 0 : i32
    %c0_i32_1 = arith.constant 0 : i32
    return %c0_i32, %c0_i32_0 : i32, i32
  }
  func.func @transform_9(%arg0: i32) -> (i32, i32) {
    %c0_i32 = arith.constant 0 : i32
    %c0_i32_0 = arith.constant 0 : i32
    %c0_i32_1 = arith.constant 0 : i32
    return %c0_i32, %c0_i32_0 : i32, i32
  }
  func.func @transform_10(%arg0: i32) -> (i32, i32) {
    %c0_i32 = arith.constant 0 : i32
    %c0_i32_0 = arith.constant 0 : i32
    %c0_i32_1 = arith.constant 0 : i32
    return %c0_i32, %c0_i32_0 : i32, i32
  }
  func.func @transform_11(%arg0: i32) -> (i32, i32, i32) {
    %c0_i32 = arith.constant 0 : i32
    %c0_i32_0 = arith.constant 0 : i32
    %c0_i32_1 = arith.constant 0 : i32
    %c0_i32_2 = arith.constant 0 : i32
    return %c0_i32, %c0_i32_0, %c0_i32_1 : i32, i32, i32
  }
  func.func @transform_12(%arg0: i32) -> (i32, i32) {
    %c0_i32 = arith.constant 0 : i32
    %c0_i32_0 = arith.constant 0 : i32
    %c0_i32_1 = arith.constant 0 : i32
    return %c0_i32, %c0_i32_0 : i32, i32
  }
  func.func @transform_13(%arg0: i32) -> (i32, i32) {
    %c0_i32 = arith.constant 0 : i32
    %c0_i32_0 = arith.constant 0 : i32
    %c0_i32_1 = arith.constant 0 : i32
    return %c0_i32, %c0_i32_0 : i32, i32
  }
  func.func @transform_14(%arg0: i32) -> (i32, i32, i32) {
    %c0_i32 = arith.constant 0 : i32
    %c0_i32_0 = arith.constant 0 : i32
    %c0_i32_1 = arith.constant 0 : i32
    %c0_i32_2 = arith.constant 0 : i32
    return %c0_i32, %c0_i32_0, %c0_i32_1 : i32, i32, i32
  }
  func.func @transform_15(%arg0: i32) -> (i32, i32, i32) {
    %c0_i32 = arith.constant 0 : i32
    %c0_i32_0 = arith.constant 0 : i32
    %c0_i32_1 = arith.constant 0 : i32
    %c0_i32_2 = arith.constant 0 : i32
    return %c0_i32, %c0_i32_0, %c0_i32_1 : i32, i32, i32
  }
  func.func @transform_16(%arg0: i32) -> (i32, i32, i32) {
    %c0_i32 = arith.constant 0 : i32
    %c0_i32_0 = arith.constant 0 : i32
    %c0_i32_1 = arith.constant 0 : i32
    %c0_i32_2 = arith.constant 0 : i32
    return %c0_i32, %c0_i32_0, %c0_i32_1 : i32, i32, i32
  }
}

</mosaic_0001>

<llo_original>
// kernel: tpu_custom_call.1
$region0: #{tpu_custom_call.1}
  #allocation0 [shape = 'u32[]', space=smem, size = 0x4, offset = 0x4, fixed_abs, tag = 'smem constant byte address 0x4 - core index']
  #allocation1 [shape = 'u32[144,128]{1,0:T(1,128)}', space=vmem, size = 0x12000, scoped, tag = 'internal scratch']
  #allocation2 [shape = 'f32[8,2,64]{2,1,0:T(2,128)}', space=vmem, size = 0x2000, scoped, tag = 'scratch operand']
  %s0 = inlined_call_operand.hbm [shape: f32[8,2,8], index: 0, kind: input, shape index: {}]
  %s1 = inlined_call_operand.vmem [shape: f32[2,16], index: 1, kind: input, shape index: {}]
  %s2 = inlined_call_operand.hbm [shape: f32[2,16], index: 2, kind: input, shape index: {}]
  %s3 = inlined_call_operand.vmem [shape: f32[8,4], index: 3, kind: input, shape index: {}]
  %s4 = inlined_call_operand.hbm [shape: f32[1,4], index: 4, kind: input, shape index: {}]
  %s5 = inlined_call_operand.vmem [shape: f32[8,64], index: 5, kind: input, shape index: {}]
  %s6 = inlined_call_operand.hbm [shape: f32[1,64], index: 6, kind: input, shape index: {}]
  %s7 = inlined_call_operand.hbm [shape: f32[1,4,64], index: 7, kind: input, shape index: {}]
  %s8 = inlined_call_operand.vmem [shape: f32[16,64], index: 8, kind: input, shape index: {}]
  %s9 = inlined_call_operand.hbm [shape: f32[16,28], index: 9, kind: input, shape index: {}]
  %s10 = inlined_call_operand.vmem [shape: f32[1,28], index: 10, kind: input, shape index: {}]
  %s11 = inlined_call_operand.hbm [shape: f32[8,2,20], index: 11, kind: output, shape index: {0}]
  %s12 = inlined_call_operand.hbm [shape: f32[2,16], index: 12, kind: output, shape index: {1}]
  %s13 = inlined_call_operand.hbm [shape: f32[2,16], index: 13, kind: output, shape index: {2}]
  %s14 = inlined_call_operand.vmem [shape: f32[2,8,4], index: 14, kind: output, shape index: {3}]
  %s15 = inlined_call_operand.hbm [shape: f32[1,2,4], index: 15, kind: output, shape index: {4}]
  %s16 = inlined_call_operand.hbm [shape: f32[2,2,8], index: 16, kind: output, shape index: {5}]
  %17 = xla_tuple %s11, %s12, %s13, %s14, %s15, %s16
  %s18 = sld [smem:[#allocation0]]
  $region118: #{tpu_custom_call.1} parent=0
    _
  %s20 = ssub.s32 1, %s18
  %s21 = scalar_select 0, %s20, %s18
  $region1: #{tpu_custom_call.1} parent=0
    #allocation3 [shape = 'u8[8192]{0}', space=vmem, size = 0x2000, scoped, tag = 'input window, operand 0, single buffered']
    #allocation4 [shape = 's32[1]{0}', space=sflag, size = 0x4, scoped, tag = 'scoped memory for tpu_custom_call.1']
    #allocation5 [shape = 's32[1]{0}', space=sflag, size = 0x4, scoped, tag = 'scoped memory for tpu_custom_call.1']
    #allocation6 [shape = 'u8[1024]{0}', space=vmem, size = 0x400, scoped, tag = 'input window, operand 2, single buffered']
    #allocation7 [shape = 's32[1]{0}', space=sflag, size = 0x4, scoped, tag = 'scoped memory for tpu_custom_call.1']
    #allocation8 [shape = 'u8[512]{0}', space=vmem, size = 0x400, scoped, tag = 'input window, operand 4, single buffered']
    #allocation9 [shape = 'u8[512]{0}', space=vmem, size = 0x400, scoped, tag = 'input window, operand 6, single buffered']
    #allocation10 [shape = 's32[1]{0}', space=sflag, size = 0x4, scoped, tag = 'scoped memory for tpu_custom_call.1']
    #allocation11 [shape = 'u8[2048]{0}', space=vmem, size = 0x800, scoped, tag = 'input window, operand 7, single buffered']
    #allocation12 [shape = 'u8[8192]{0}', space=vmem, size = 0x2000, scoped, tag = 'input window, operand 9, single buffered']
    #allocation13 [shape = 's32[1]{0}', space=sflag, size = 0x4, scoped, tag = 'scoped memory for tpu_custom_call.1']
    #allocation14 [shape = 'u8[8192]{0}', space=vmem, size = 0x2000, scoped, tag = 'output window, operand 0, single buffered']
    #allocation15 [shape = 'u8[1024]{0}', space=vmem, size = 0x400, scoped, tag = 'output window, operand 1, single buffered']
    #allocation16 [shape = 's32[1]{0}', space=sflag, size = 0x4, scoped, tag = 'scoped memory for tpu_custom_call.1']
    #allocation17 [shape = 'u8[1024]{0}', space=vmem, size = 0x400, scoped, tag = 'output window, operand 2, single buffered']
    #allocation18 [shape = 'u8[1024]{0}', space=vmem, size = 0x400, scoped, tag = 'output window, operand 4, single buffered']
    #allocation19 [shape = 's32[1]{0}', space=sflag, size = 0x4, scoped, tag = 'scoped memory for tpu_custom_call.1']
    #allocation20 [shape = 'u8[2048]{0}', space=vmem, size = 0x800, scoped, tag = 'output window, operand 5, single buffered']
    %22 = vsyncpa [#allocation4], 0
    %23 = vsyncpa [#allocation7], 0
    %24 = vsyncpa [#allocation10], 0
    %25 = vsyncpa [#allocation13], 0
    %26 = vsyncpa [#allocation5], 0
    %27 = vsyncpa [#allocation16], 0
    %28 = vsyncpa [#allocation19], 0
    // Predicated region
    $region2: #{tpu_custom_call.1} parent=1 // pred_check
      _
    $region3: #{tpu_custom_call.1} parent=1 // pred_check_branch
      %30 = sbr.rel (0) target = $region5
    $region4: #{tpu_custom_call.1} parent=1 // pred_region
      %s32 = ssub.s32 256, 256
      %33 = vsyncadd [#allocation4], %s32
      %s34 = sshll.u32 [#allocation3], 4
      %s35 = int_to_ptr.vmem [resolvable:$true] %s34
      %40 = dma.hbm_to_vmem [thread:$0]  %s0, 256, %s35, [#allocation4], 32, 32, 2
    $region5: #{tpu_custom_call.1} parent=1 // pred_fallthru
      _
    // Predicated region
    $region6: #{tpu_custom_call.1} parent=1 // pred_check
      _
    $region7: #{tpu_custom_call.1} parent=1 // pred_check_branch
      %42 = sbr.rel (0) target = $region9
    $region8: #{tpu_custom_call.1} parent=1 // pred_region
      _
    $region9: #{tpu_custom_call.1} parent=1 // pred_fallthru
      _
    // Predicated region
    $region10: #{tpu_custom_call.1} parent=1 // pred_check
      _
    $region11: #{tpu_custom_call.1} parent=1 // pred_check_branch
      %44 = sbr.rel (0) target = $region13
    $region12: #{tpu_custom_call.1} parent=1 // pred_region
      %s46 = ssub.s32 32, 32
      %47 = vsyncadd [#allocation7], %s46
      %s49 = sshll.u32 [#allocation6], 4
      %s50 = int_to_ptr.vmem [resolvable:$true] %s49
      %52 = dma.hbm_to_vmem [thread:$0]  %s2, 32, %s50, [#allocation7]
    $region13: #{tpu_custom_call.1} parent=1 // pred_fallthru
      _
    // Predicated region
    $region14: #{tpu_custom_call.1} parent=1 // pred_check
      _
    $region15: #{tpu_custom_call.1} parent=1 // pred_check_branch
      %54 = sbr.rel (0) target = $region17
    $region16: #{tpu_custom_call.1} parent=1 // pred_region
      _
    $region17: #{tpu_custom_call.1} parent=1 // pred_fallthru
      _
    // Predicated region
    $region18: #{tpu_custom_call.1} parent=1 // pred_check
      _
    $region19: #{tpu_custom_call.1} parent=1 // pred_check_branch
      %56 = sbr.rel (0) target = $region21
    $region20: #{tpu_custom_call.1} parent=1 // pred_region
      %s58 = ssub.s32 16, 16
      %59 = vsyncadd [#allocation7], %s58
      %s61 = sshll.u32 [#allocation8], 4
      %s62 = int_to_ptr.vmem [resolvable:$true] %s61
      %64 = dma.hbm_to_vmem [thread:$0]  %s4, 16, %s62, [#allocation7]
    $region21: #{tpu_custom_call.1} parent=1 // pred_fallthru
      _
    // Predicated region
    $region22: #{tpu_custom_call.1} parent=1 // pred_check
      _
    $region23: #{tpu_custom_call.1} parent=1 // pred_check_branch
      %66 = sbr.rel (0) target = $region25
    $region24: #{tpu_custom_call.1} parent=1 // pred_region
      _
    $region25: #{tpu_custom_call.1} parent=1 // pred_fallthru
      _
    // Predicated region
    $region26: #{tpu_custom_call.1} parent=1 // pred_check
      _
    $region27: #{tpu_custom_call.1} parent=1 // pred_check_branch
      %68 = sbr.rel (0) target = $region29
    $region28: #{tpu_custom_call.1} parent=1 // pred_region
      %s70 = ssub.s32 16, 16
      %71 = vsyncadd [#allocation10], %s70
      %s73 = sshll.u32 [#allocation9], 4
      %s74 = int_to_ptr.vmem [resolvable:$true] %s73
      %76 = dma.hbm_to_vmem [thread:$0]  %s6, 16, %s74, [#allocation10]
    $region29: #{tpu_custom_call.1} parent=1 // pred_fallthru
      _
    // Predicated region
    $region30: #{tpu_custom_call.1} parent=1 // pred_check
      _
    $region31: #{tpu_custom_call.1} parent=1 // pred_check_branch
      %78 = sbr.rel (0) target = $region33
    $region32: #{tpu_custom_call.1} parent=1 // pred_region
      %s80 = ssub.s32 64, 64
      %81 = vsyncadd [#allocation10], %s80
      %s83 = sshll.u32 [#allocation11], 4
      %s84 = int_to_ptr.vmem [resolvable:$true] %s83
      %86 = dma.hbm_to_vmem [thread:$0]  %s7, 64, %s84, [#allocation10]
    $region33: #{tpu_custom_call.1} parent=1 // pred_fallthru
      _
    // Predicated region
    $region34: #{tpu_custom_call.1} parent=1 // pred_check
      _
    $region35: #{tpu_custom_call.1} parent=1 // pred_check_branch
      %88 = sbr.rel (0) target = $region37
    $region36: #{tpu_custom_call.1} parent=1 // pred_region
      _
    $region37: #{tpu_custom_call.1} parent=1 // pred_fallthru
      _
    // Predicated region
    $region38: #{tpu_custom_call.1} parent=1 // pred_check
      _
    $region39: #{tpu_custom_call.1} parent=1 // pred_check_branch
      %90 = sbr.rel (0) target = $region41
    $region40: #{tpu_custom_call.1} parent=1 // pred_region
      %s92 = ssub.s32 256, 256
      %93 = vsyncadd [#allocation13], %s92
      %s94 = sshll.u32 [#allocation12], 4
      %s95 = int_to_ptr.vmem [resolvable:$true] %s94
      %100 = dma.hbm_to_vmem [thread:$0]  %s9, 256, %s95, [#allocation13], 128, 128, 8
    $region41: #{tpu_custom_call.1} parent=1 // pred_fallthru
      _
    // Predicated region
    $region42: #{tpu_custom_call.1} parent=1 // pred_check
      _
    $region43: #{tpu_custom_call.1} parent=1 // pred_check_branch
      %102 = sbr.rel (0) target = $region45
    $region44: #{tpu_custom_call.1} parent=1 // pred_region
      _
    $region45: #{tpu_custom_call.1} parent=1 // pred_fallthru
      _
    // Predicated region
    $region46: #{tpu_custom_call.1} parent=1 // pred_check
      _
    $region47: #{tpu_custom_call.1} parent=1 // pred_check_branch
      %104 = sbr.rel (0) target = $region49
    $region48: #{tpu_custom_call.1} parent=1 // pred_region
      %105 = dma.done [#allocation4], 256
    $region49: #{tpu_custom_call.1} parent=1 // pred_fallthru
      _
    // Predicated region
    $region50: #{tpu_custom_call.1} parent=1 // pred_check
      _
    $region51: #{tpu_custom_call.1} parent=1 // pred_check_branch
      %107 = sbr.rel (0) target = $region53
    $region52: #{tpu_custom_call.1} parent=1 // pred_region
      %108 = dma.done [#allocation7], 32
    $region53: #{tpu_custom_call.1} parent=1 // pred_fallthru
      _
    // Predicated region
    $region54: #{tpu_custom_call.1} parent=1 // pred_check
      _
    $region55: #{tpu_custom_call.1} parent=1 // pred_check_branch
      %110 = sbr.rel (0) target = $region57
    $region56: #{tpu_custom_call.1} parent=1 // pred_region
      %111 = dma.done [#allocation7], 16
    $region57: #{tpu_custom_call.1} parent=1 // pred_fallthru
      _
    // Predicated region
    $region58: #{tpu_custom_call.1} parent=1 // pred_check
      _
    $region59: #{tpu_custom_call.1} parent=1 // pred_check_branch
      %113 = sbr.rel (0) target = $region61
    $region60: #{tpu_custom_call.1} parent=1 // pred_region
      %114 = dma.done [#allocation10], 16
    $region61: #{tpu_custom_call.1} parent=1 // pred_fallthru
      _
    // Predicated region
    $region62: #{tpu_custom_call.1} parent=1 // pred_check
      _
    $region63: #{tpu_custom_call.1} parent=1 // pred_check_branch
      %116 = sbr.rel (0) target = $region65
    $region64: #{tpu_custom_call.1} parent=1 // pred_region
      %117 = dma.done [#allocation10], 64
    $region65: #{tpu_custom_call.1} parent=1 // pred_fallthru
      _
    // Predicated region
    $region66: #{tpu_custom_call.1} parent=1 // pred_check
      _
    $region67: #{tpu_custom_call.1} parent=1 // pred_check_branch
      %119 = sbr.rel (0) target = $region69
    $region68: #{tpu_custom_call.1} parent=1 // pred_region
      %120 = dma.done [#allocation13], 256
    $region69: #{tpu_custom_call.1} parent=1 // pred_fallthru
      _
    %v121 = vld [vmem:[%s5] sm:$0xff]
    %v122 = vld [vmem:[#allocation9] sm:$0x1]
    %v123 = vld [vmem:[%s8] sm:$0xff]
    %v124 = vld [vmem:[%s8 + $0x8] sm:$0xff]
    %v125 = vld [vmem:[#allocation11] sm:$0xf]
    %v126 = vld [vmem:[#allocation12] sm:$0xff]
    %v127 = vld [vmem:[#allocation12 + $0x8] sm:$0xff]
    %v128 = vld [vmem:[%s10] sm:$0x1]
    %v129 = vld [vmem:[#allocation3] sm:$0x3]
    %v131 = vlaneseq
    %v132 = vshrl.u32 %v131, 7
    %v133 = vsub.s32 0, %v132
    %v134 = vrot.slane %v122, %v133
    %vm136 = vcmask 64512
    %v138 = vsel %vm136, %v129, 0
    %140 = vmatprep.subr.mxu0 0.0
    %141 = vmatpush1.msra.mxu0 0.0
    %142 = vmatprep.subr.mxu0 0.0
    %143 = vmatpush1.msra.mxu0 0.0
    %144 = vmatprep.subr.mxu0 0.0
    %145 = vmatpush1.msra.mxu0 0.0
    %146 = vmatprep.subr.mxu0 0.0
    %147 = vmatpush1.msra.mxu0 0.0
    %148 = vmatprep.subr.mxu0 0.0
    %149 = vmatpush1.msra.mxu0 0.0
    %150 = vmatprep.subr.mxu0 0.0
    %151 = vmatpush1.msra.mxu0 0.0
    %152 = vmatprep.subr.mxu0 0.0
    %153 = vmatpush1.msra.mxu0 0.0
    %154 = vmatprep.subr.mxu0 0.0
    %155 = vmatpush1.msra.mxu0 0.0
    %156 = vmatprep.subr.mxu0 0.0
    %157 = vmatpush1.msra.mxu0 0.0
    %158 = vmatprep.subr.mxu0 0.0
    %159 = vmatpush1.msra.mxu0 0.0
    %160 = vmatprep.subr.mxu0 0.0
    %161 = vmatpush1.msra.mxu0 0.0
    %162 = vmatprep.subr.mxu0 0.0
    %163 = vmatpush1.msra.mxu0 0.0
    %164 = vmatprep.subr.mxu0 0.0
    %165 = vmatpush1.msra.mxu0 0.0
    %166 = vmatprep.subr.mxu0 0.0
    %167 = vmatpush1.msra.mxu0 0.0
    %168 = vmatprep.subr.mxu0 0.0
    %169 = vmatpush1.msra.mxu0 0.0
    %170 = vmatprep.subr.mxu0 0.0
    %171 = vmatpush1.msra.mxu0 %v121
    %172 = vmatprep.subr.mxu0 0.0
    %173 = vmatpush2.msra.mxu0 0.0
    %174 = vmatprep.subr.mxu0 0.0
    %175 = vmatpush2.msra.mxu0 0.0
    %176 = vmatprep.subr.mxu0 0.0
    %177 = vmatpush2.msra.mxu0 0.0
    %178 = vmatprep.subr.mxu0 0.0
    %179 = vmatpush2.msra.mxu0 0.0
    %180 = vmatprep.subr.mxu0 0.0
    %181 = vmatpush2.msra.mxu0 0.0
    %182 = vmatprep.subr.mxu0 0.0
    %183 = vmatpush2.msra.mxu0 0.0
    %184 = vmatprep.subr.mxu0 0.0
    %185 = vmatpush2.msra.mxu0 0.0
    %186 = vmatprep.subr.mxu0 0.0
    %187 = vmatpush2.msra.mxu0 0.0
    %188 = vmatprep.subr.mxu0 0.0
    %189 = vmatpush2.msra.mxu0 0.0
    %190 = vmatprep.subr.mxu0 0.0
    %191 = vmatpush2.msra.mxu0 0.0
    %192 = vmatprep.subr.mxu0 0.0
    %193 = vmatpush2.msra.mxu0 0.0
    %194 = vmatprep.subr.mxu0 0.0
    %195 = vmatpush2.msra.mxu0 0.0
    %196 = vmatprep.subr.mxu0 0.0
    %197 = vmatpush2.msra.mxu0 0.0
    %198 = vmatprep.subr.mxu0 0.0
    %199 = vmatpush2.msra.mxu0 0.0
    %200 = vmatprep.subr.mxu0 0.0
    %201 = vmatpush2.msra.mxu0 0.0
    %202 = vmatprep.subr.mxu0 0.0
    %203 = vmatpush2.msra.mxu0 0.0
    %204 = vmatprep.mubr.f32.mxu0 0.0
    %205 = vmatmul.mubr.f32.gmra.mxu0 %v138
    %v206 = vpop.f32.mrf.mxu0
    %v207 = vadd.f32 %v134, %v206
    %v208 = vpop.f32.mrf.mxu0
    %209 = vdwg.mxu0
    %vm210 = vcmask 517120
    %211 = vst.msk [vmem:[#allocation2] sm:$0x3] %vm210, %v207
    %s212 = scalar_lea.vmem [#allocation3], 2
    %v213 = vld [vmem:[%s212] sm:$0x3]
    %v215 = vsel %vm136, %v213, 0
    %217 = vmatprep.subr.mxu0 0.0
    %218 = vmatpush1.msra.mxu0 0.0
    %219 = vmatprep.subr.mxu0 0.0
    %220 = vmatpush1.msra.mxu0 0.0
    %221 = vmatprep.subr.mxu0 0.0
    %222 = vmatpush1.msra.mxu0 0.0
    %223 = vmatprep.subr.mxu0 0.0
    %224 = vmatpush1.msra.mxu0 0.0
    %225 = vmatprep.subr.mxu0 0.0
    %226 = vmatpush1.msra.mxu0 0.0
    %227 = vmatprep.subr.mxu0 0.0
    %228 = vmatpush1.msra.mxu0 0.0
    %229 = vmatprep.subr.mxu0 0.0
    %230 = vmatpush1.msra.mxu0 0.0
    %231 = vmatprep.subr.mxu0 0.0
    %232 = vmatpush1.msra.mxu0 0.0
    %233 = vmatprep.subr.mxu0 0.0
    %234 = vmatpush1.msra.mxu0 0.0
    %235 = vmatprep.subr.mxu0 0.0
    %236 = vmatpush1.msra.mxu0 0.0
    %237 = vmatprep.subr.mxu0 0.0
    %238 = vmatpush1.msra.mxu0 0.0
    %239 = vmatprep.subr.mxu0 0.0
    %240 = vmatpush1.msra.mxu0 0.0
    %241 = vmatprep.subr.mxu0 0.0
    %242 = vmatpush1.msra.mxu0 0.0
    %243 = vmatprep.subr.mxu0 0.0
    %244 = vmatpush1.msra.mxu0 0.0
    %245 = vmatprep.subr.mxu0 0.0
    %246 = vmatpush1.msra.mxu0 0.0
    %247 = vmatprep.subr.mxu0 0.0
    %248 = vmatpush1.msra.mxu0 %v121
    %249 = vmatprep.subr.mxu0 0.0
    %250 = vmatpush2.msra.mxu0 0.0
    %251 = vmatprep.subr.mxu0 0.0
    %252 = vmatpush2.msra.mxu0 0.0
    %253 = vmatprep.subr.mxu0 0.0
    %254 = vmatpush2.msra.mxu0 0.0
    %255 = vmatprep.subr.mxu0 0.0
    %256 = vmatpush2.msra.mxu0 0.0
    %257 = vmatprep.subr.mxu0 0.0
    %258 = vmatpush2.msra.mxu0 0.0
    %259 = vmatprep.subr.mxu0 0.0
    %260 = vmatpush2.msra.mxu0 0.0
    %261 = vmatprep.subr.mxu0 0.0
    %262 = vmatpush2.msra.mxu0 0.0
    %263 = vmatprep.subr.mxu0 0.0
    %264 = vmatpush2.msra.mxu0 0.0
    %265 = vmatprep.subr.mxu0 0.0
    %266 = vmatpush2.msra.mxu0 0.0
    %267 = vmatprep.subr.mxu0 0.0
    %268 = vmatpush2.msra.mxu0 0.0
    %269 = vmatprep.subr.mxu0 0.0
    %270 = vmatpush2.msra.mxu0 0.0
    %271 = vmatprep.subr.mxu0 0.0
    %272 = vmatpush2.msra.mxu0 0.0
    %273 = vmatprep.subr.mxu0 0.0
    %274 = vmatpush2.msra.mxu0 0.0
    %275 = vmatprep.subr.mxu0 0.0
    %276 = vmatpush2.msra.mxu0 0.0
    %277 = vmatprep.subr.mxu0 0.0
    %278 = vmatpush2.msra.mxu0 0.0
    %279 = vmatprep.subr.mxu0 0.0
    %280 = vmatpush2.msra.mxu0 0.0
    %281 = vmatprep.mubr.f32.mxu0 0.0
    %282 = vmatmul.mubr.f32.gmra.mxu0 %v215
    %v283 = vpop.f32.mrf.mxu0
    %v284 = vadd.f32 %v134, %v283
    %v285 = vpop.f32.mrf.mxu0
    %286 = vdwg.mxu0
    %s287 = scalar_lea.vmem [#allocation2], 2
    %288 = vst.msk [vmem:[%s287] sm:$0x3] %vm210, %v284
    %s289 = scalar_lea.vmem [#allocation3], 4
    %v290 = vld [vmem:[%s289] sm:$0x3]
    %v292 = vsel %vm136, %v290, 0
    %294 = vmatprep.subr.mxu0 0.0
    %295 = vmatpush1.msra.mxu0 0.0
    %296 = vmatprep.subr.mxu0 0.0
    %297 = vmatpush1.msra.mxu0 0.0
    %298 = vmatprep.subr.mxu0 0.0
    %299 = vmatpush1.msra.mxu0 0.0
    %300 = vmatprep.subr.mxu0 0.0
    %301 = vmatpush1.msra.mxu0 0.0
    %302 = vmatprep.subr.mxu0 0.0
    %303 = vmatpush1.msra.mxu0 0.0
    %304 = vmatprep.subr.mxu0 0.0
    %305 = vmatpush1.msra.mxu0 0.0
    %306 = vmatprep.subr.mxu0 0.0
    %307 = vmatpush1.msra.mxu0 0.0
    %308 = vmatprep.subr.mxu0 0.0
    %309 = vmatpush1.msra.mxu0 0.0
    %310 = vmatprep.subr.mxu0 0.0
    %311 = vmatpush1.msra.mxu0 0.0
    %312 = vmatprep.subr.mxu0 0.0
    %313 = vmatpush1.msra.mxu0 0.0
    %314 = vmatprep.subr.mxu0 0.0
    %315 = vmatpush1.msra.mxu0 0.0
    %316 = vmatprep.subr.mxu0 0.0
    %317 = vmatpush1.msra.mxu0 0.0
    %318 = vmatprep.subr.mxu0 0.0
    %319 = vmatpush1.msra.mxu0 0.0
    %320 = vmatprep.subr.mxu0 0.0
    %321 = vmatpush1.msra.mxu0 0.0
    %322 = vmatprep.subr.mxu0 0.0
    %323 = vmatpush1.msra.mxu0 0.0
    %324 = vmatprep.subr.mxu0 0.0
    %325 = vmatpush1.msra.mxu0 %v121
    %326 = vmatprep.subr.mxu0 0.0
    %327 = vmatpush2.msra.mxu0 0.0
    %328 = vmatprep.subr.mxu0 0.0
    %329 = vmatpush2.msra.mxu0 0.0
    %330 = vmatprep.subr.mxu0 0.0
    %331 = vmatpush2.msra.mxu0 0.0
    %332 = vmatprep.subr.mxu0 0.0
    %333 = vmatpush2.msra.mxu0 0.0
    %334 = vmatprep.subr.mxu0 0.0
    %335 = vmatpush2.msra.mxu0 0.0
    %336 = vmatprep.subr.mxu0 0.0
    %337 = vmatpush2.msra.mxu0 0.0
    %338 = vmatprep.subr.mxu0 0.0
    %339 = vmatpush2.msra.mxu0 0.0
    %340 = vmatprep.subr.mxu0 0.0
    %341 = vmatpush2.msra.mxu0 0.0
    %342 = vmatprep.subr.mxu0 0.0
    %343 = vmatpush2.msra.mxu0 0.0
    %344 = vmatprep.subr.mxu0 0.0
    %345 = vmatpush2.msra.mxu0 0.0
    %346 = vmatprep.subr.mxu0 0.0
    %347 = vmatpush2.msra.mxu0 0.0
    %348 = vmatprep.subr.mxu0 0.0
    %349 = vmatpush2.msra.mxu0 0.0
    %350 = vmatprep.subr.mxu0 0.0
    %351 = vmatpush2.msra.mxu0 0.0
    %352 = vmatprep.subr.mxu0 0.0
    %353 = vmatpush2.msra.mxu0 0.0
    %354 = vmatprep.subr.mxu0 0.0
    %355 = vmatpush2.msra.mxu0 0.0
    %356 = vmatprep.subr.mxu0 0.0
    %357 = vmatpush2.msra.mxu0 0.0
    %358 = vmatprep.mubr.f32.mxu0 0.0
    %359 = vmatmul.mubr.f32.gmra.mxu0 %v292
    %v360 = vpop.f32.mrf.mxu0
    %v361 = vadd.f32 %v134, %v360
    %v362 = vpop.f32.mrf.mxu0
    %363 = vdwg.mxu0
    %s364 = scalar_lea.vmem [#allocation2], 4
    %365 = vst.msk [vmem:[%s364] sm:$0x3] %vm210, %v361
    %s366 = scalar_lea.vmem [#allocation3], 6
    %v367 = vld [vmem:[%s366] sm:$0x3]
    %v369 = vsel %vm136, %v367, 0
    %371 = vmatprep.subr.mxu0 0.0
    %372 = vmatpush1.msra.mxu0 0.0
    %373 = vmatprep.subr.mxu0 0.0
    %374 = vmatpush1.msra.mxu0 0.0
    %375 = vmatprep.subr.mxu0 0.0
    %376 = vmatpush1.msra.mxu0 0.0
    %377 = vmatprep.subr.mxu0 0.0
    %378 = vmatpush1.msra.mxu0 0.0
    %379 = vmatprep.subr.mxu0 0.0
    %380 = vmatpush1.msra.mxu0 0.0
    %381 = vmatprep.subr.mxu0 0.0
    %382 = vmatpush1.msra.mxu0 0.0
    %383 = vmatprep.subr.mxu0 0.0
    %384 = vmatpush1.msra.mxu0 0.0
    %385 = vmatprep.subr.mxu0 0.0
    %386 = vmatpush1.msra.mxu0 0.0
    %387 = vmatprep.subr.mxu0 0.0
    %388 = vmatpush1.msra.mxu0 0.0
    %389 = vmatprep.subr.mxu0 0.0
    %390 = vmatpush1.msra.mxu0 0.0
    %391 = vmatprep.subr.mxu0 0.0
    %392 = vmatpush1.msra.mxu0 0.0
    %393 = vmatprep.subr.mxu0 0.0
    %394 = vmatpush1.msra.mxu0 0.0
    %395 = vmatprep.subr.mxu0 0.0
    %396 = vmatpush1.msra.mxu0 0.0
    %397 = vmatprep.subr.mxu0 0.0
    %398 = vmatpush1.msra.mxu0 0.0
    %399 = vmatprep.subr.mxu0 0.0
    %400 = vmatpush1.msra.mxu0 0.0
    %401 = vmatprep.subr.mxu0 0.0
    %402 = vmatpush1.msra.mxu0 %v121
    %403 = vmatprep.subr.mxu0 0.0
    %404 = vmatpush2.msra.mxu0 0.0
    %405 = vmatprep.subr.mxu0 0.0
    %406 = vmatpush2.msra.mxu0 0.0
    %407 = vmatprep.subr.mxu0 0.0
    %408 = vmatpush2.msra.mxu0 0.0
    %409 = vmatprep.subr.mxu0 0.0
    %410 = vmatpush2.msra.mxu0 0.0
    %411 = vmatprep.subr.mxu0 0.0
    %412 = vmatpush2.msra.mxu0 0.0
    %413 = vmatprep.subr.mxu0 0.0
    %414 = vmatpush2.msra.mxu0 0.0
    %415 = vmatprep.subr.mxu0 0.0
    %416 = vmatpush2.msra.mxu0 0.0
    %417 = vmatprep.subr.mxu0 0.0
    %418 = vmatpush2.msra.mxu0 0.0
    %419 = vmatprep.subr.mxu0 0.0
    %420 = vmatpush2.msra.mxu0 0.0
    %421 = vmatprep.subr.mxu0 0.0
    %422 = vmatpush2.msra.mxu0 0.0
    %423 = vmatprep.subr.mxu0 0.0
    %424 = vmatpush2.msra.mxu0 0.0
    %425 = vmatprep.subr.mxu0 0.0
    %426 = vmatpush2.msra.mxu0 0.0
    %427 = vmatprep.subr.mxu0 0.0
    %428 = vmatpush2.msra.mxu0 0.0
    %429 = vmatprep.subr.mxu0 0.0
    %430 = vmatpush2.msra.mxu0 0.0
    %431 = vmatprep.subr.mxu0 0.0
    %432 = vmatpush2.msra.mxu0 0.0
    %433 = vmatprep.subr.mxu0 0.0
    %434 = vmatpush2.msra.mxu0 0.0
    %435 = vmatprep.mubr.f32.mxu0 0.0
    %436 = vmatmul.mubr.f32.gmra.mxu0 %v369
    %v437 = vpop.f32.mrf.mxu0
    %v438 = vadd.f32 %v134, %v437
    %v439 = vpop.f32.mrf.mxu0
    %440 = vdwg.mxu0
    %s441 = scalar_lea.vmem [#allocation2], 6
    %442 = vst.msk [vmem:[%s441] sm:$0x3] %vm210, %v438
    %s443 = scalar_lea.vmem [#allocation3], 8
    %v444 = vld [vmem:[%s443] sm:$0x3]
    %v446 = vsel %vm136, %v444, 0
    %448 = vmatprep.subr.mxu0 0.0
    %449 = vmatpush1.msra.mxu0 0.0
    %450 = vmatprep.subr.mxu0 0.0
    %451 = vmatpush1.msra.mxu0 0.0
    %452 = vmatprep.subr.mxu0 0.0
    %453 = vmatpush1.msra.mxu0 0.0
    %454 = vmatprep.subr.mxu0 0.0
    %455 = vmatpush1.msra.mxu0 0.0
    %456 = vmatprep.subr.mxu0 0.0
    %457 = vmatpush1.msra.mxu0 0.0
    %458 = vmatprep.subr.mxu0 0.0
    %459 = vmatpush1.msra.mxu0 0.0
    %460 = vmatprep.subr.mxu0 0.0
    %461 = vmatpush1.msra.mxu0 0.0
    %462 = vmatprep.subr.mxu0 0.0
    %463 = vmatpush1.msra.mxu0 0.0
    %464 = vmatprep.subr.mxu0 0.0
    %465 = vmatpush1.msra.mxu0 0.0
    %466 = vmatprep.subr.mxu0 0.0
    %467 = vmatpush1.msra.mxu0 0.0
    %468 = vmatprep.subr.mxu0 0.0
    %469 = vmatpush1.msra.mxu0 0.0
    %470 = vmatprep.subr.mxu0 0.0
    %471 = vmatpush1.msra.mxu0 0.0
    %472 = vmatprep.subr.mxu0 0.0
    %473 = vmatpush1.msra.mxu0 0.0
    %474 = vmatprep.subr.mxu0 0.0
    %475 = vmatpush1.msra.mxu0 0.0
    %476 = vmatprep.subr.mxu0 0.0
    %477 = vmatpush1.msra.mxu0 0.0
    %478 = vmatprep.subr.mxu0 0.0
    %479 = vmatpush1.msra.mxu0 %v121
    %480 = vmatprep.subr.mxu0 0.0
    %481 = vmatpush2.msra.mxu0 0.0
    %482 = vmatprep.subr.mxu0 0.0
    %483 = vmatpush2.msra.mxu0 0.0
    %484 = vmatprep.subr.mxu0 0.0
    %485 = vmatpush2.msra.mxu0 0.0
    %486 = vmatprep.subr.mxu0 0.0
    %487 = vmatpush2.msra.mxu0 0.0
    %488 = vmatprep.subr.mxu0 0.0
    %489 = vmatpush2.msra.mxu0 0.0
    %490 = vmatprep.subr.mxu0 0.0
    %491 = vmatpush2.msra.mxu0 0.0
    %492 = vmatprep.subr.mxu0 0.0
    %493 = vmatpush2.msra.mxu0 0.0
    %494 = vmatprep.subr.mxu0 0.0
    %495 = vmatpush2.msra.mxu0 0.0
    %496 = vmatprep.subr.mxu0 0.0
    %497 = vmatpush2.msra.mxu0 0.0
    %498 = vmatprep.subr.mxu0 0.0
    %499 = vmatpush2.msra.mxu0 0.0
    %500 = vmatprep.subr.mxu0 0.0
    %501 = vmatpush2.msra.mxu0 0.0
    %502 = vmatprep.subr.mxu0 0.0
    %503 = vmatpush2.msra.mxu0 0.0
    %504 = vmatprep.subr.mxu0 0.0
    %505 = vmatpush2.msra.mxu0 0.0
    %506 = vmatprep.subr.mxu0 0.0
    %507 = vmatpush2.msra.mxu0 0.0
    %508 = vmatprep.subr.mxu0 0.0
    %509 = vmatpush2.msra.mxu0 0.0
    %510 = vmatprep.subr.mxu0 0.0
    %511 = vmatpush2.msra.mxu0 0.0
    %512 = vmatprep.mubr.f32.mxu0 0.0
    %513 = vmatmul.mubr.f32.gmra.mxu0 %v446
    %v514 = vpop.f32.mrf.mxu0
    %v515 = vadd.f32 %v134, %v514
    %v516 = vpop.f32.mrf.mxu0
    %517 = vdwg.mxu0
    %s518 = scalar_lea.vmem [#allocation2], 8
    %519 = vst.msk [vmem:[%s518] sm:$0x3] %vm210, %v515
    %s520 = scalar_lea.vmem [#allocation3], 10
    %v521 = vld [vmem:[%s520] sm:$0x3]
    %v523 = vsel %vm136, %v521, 0
    %525 = vmatprep.subr.mxu0 0.0
    %526 = vmatpush1.msra.mxu0 0.0
    %527 = vmatprep.subr.mxu0 0.0
    %528 = vmatpush1.msra.mxu0 0.0
    %529 = vmatprep.subr.mxu0 0.0
    %530 = vmatpush1.msra.mxu0 0.0
    %531 = vmatprep.subr.mxu0 0.0
    %532 = vmatpush1.msra.mxu0 0.0
    %533 = vmatprep.subr.mxu0 0.0
    %534 = vmatpush1.msra.mxu0 0.0
    %535 = vmatprep.subr.mxu0 0.0
    %536 = vmatpush1.msra.mxu0 0.0
    %537 = vmatprep.subr.mxu0 0.0
    %538 = vmatpush1.msra.mxu0 0.0
    %539 = vmatprep.subr.mxu0 0.0
    %540 = vmatpush1.msra.mxu0 0.0
    %541 = vmatprep.subr.mxu0 0.0
    %542 = vmatpush1.msra.mxu0 0.0
    %543 = vmatprep.subr.mxu0 0.0
    %544 = vmatpush1.msra.mxu0 0.0
    %545 = vmatprep.subr.mxu0 0.0
    %546 = vmatpush1.msra.mxu0 0.0
    %547 = vmatprep.subr.mxu0 0.0
    %548 = vmatpush1.msra.mxu0 0.0
    %549 = vmatprep.subr.mxu0 0.0
    %550 = vmatpush1.msra.mxu0 0.0
    %551 = vmatprep.subr.mxu0 0.0
    %552 = vmatpush1.msra.mxu0 0.0
    %553 = vmatprep.subr.mxu0 0.0
    %554 = vmatpush1.msra.mxu0 0.0
    %555 = vmatprep.subr.mxu0 0.0
    %556 = vmatpush1.msra.mxu0 %v121
    %557 = vmatprep.subr.mxu0 0.0
    %558 = vmatpush2.msra.mxu0 0.0
    %559 = vmatprep.subr.mxu0 0.0
    %560 = vmatpush2.msra.mxu0 0.0
    %561 = vmatprep.subr.mxu0 0.0
    %562 = vmatpush2.msra.mxu0 0.0
    %563 = vmatprep.subr.mxu0 0.0
    %564 = vmatpush2.msra.mxu0 0.0
    %565 = vmatprep.subr.mxu0 0.0
    %566 = vmatpush2.msra.mxu0 0.0
    %567 = vmatprep.subr.mxu0 0.0
    %568 = vmatpush2.msra.mxu0 0.0
    %569 = vmatprep.subr.mxu0 0.0
    %570 = vmatpush2.msra.mxu0 0.0
    %571 = vmatprep.subr.mxu0 0.0
    %572 = vmatpush2.msra.mxu0 0.0
    %573 = vmatprep.subr.mxu0 0.0
    %574 = vmatpush2.msra.mxu0 0.0
    %575 = vmatprep.subr.mxu0 0.0
    %576 = vmatpush2.msra.mxu0 0.0
    %577 = vmatprep.subr.mxu0 0.0
    %578 = vmatpush2.msra.mxu0 0.0
    %579 = vmatprep.subr.mxu0 0.0
    %580 = vmatpush2.msra.mxu0 0.0
    %581 = vmatprep.subr.mxu0 0.0
    %582 = vmatpush2.msra.mxu0 0.0
    %583 = vmatprep.subr.mxu0 0.0
    %584 = vmatpush2.msra.mxu0 0.0
    %585 = vmatprep.subr.mxu0 0.0
    %586 = vmatpush2.msra.mxu0 0.0
    %587 = vmatprep.subr.mxu0 0.0
    %588 = vmatpush2.msra.mxu0 0.0
    %589 = vmatprep.mubr.f32.mxu0 0.0
    %590 = vmatmul.mubr.f32.gmra.mxu0 %v523
    %v591 = vpop.f32.mrf.mxu0
    %v592 = vadd.f32 %v134, %v591
    %v593 = vpop.f32.mrf.mxu0
    %594 = vdwg.mxu0
    %s595 = scalar_lea.vmem [#allocation2], 10
    %596 = vst.msk [vmem:[%s595] sm:$0x3] %vm210, %v592
    %s597 = scalar_lea.vmem [#allocation3], 12
    %v598 = vld [vmem:[%s597] sm:$0x3]
    %v600 = vsel %vm136, %v598, 0
    %602 = vmatprep.subr.mxu0 0.0
    %603 = vmatpush1.msra.mxu0 0.0
    %604 = vmatprep.subr.mxu0 0.0
    %605 = vmatpush1.msra.mxu0 0.0
    %606 = vmatprep.subr.mxu0 0.0
    %607 = vmatpush1.msra.mxu0 0.0
    %608 = vmatprep.subr.mxu0 0.0
    %609 = vmatpush1.msra.mxu0 0.0
    %610 = vmatprep.subr.mxu0 0.0
    %611 = vmatpush1.msra.mxu0 0.0
    %612 = vmatprep.subr.mxu0 0.0
    %613 = vmatpush1.msra.mxu0 0.0
    %614 = vmatprep.subr.mxu0 0.0
    %615 = vmatpush1.msra.mxu0 0.0
    %616 = vmatprep.subr.mxu0 0.0
    %617 = vmatpush1.msra.mxu0 0.0
    %618 = vmatprep.subr.mxu0 0.0
    %619 = vmatpush1.msra.mxu0 0.0
    %620 = vmatprep.subr.mxu0 0.0
    %621 = vmatpush1.msra.mxu0 0.0
    %622 = vmatprep.subr.mxu0 0.0
    %623 = vmatpush1.msra.mxu0 0.0
    %624 = vmatprep.subr.mxu0 0.0
    %625 = vmatpush1.msra.mxu0 0.0
    %626 = vmatprep.subr.mxu0 0.0
    %627 = vmatpush1.msra.mxu0 0.0
    %628 = vmatprep.subr.mxu0 0.0
    %629 = vmatpush1.msra.mxu0 0.0
    %630 = vmatprep.subr.mxu0 0.0
    %631 = vmatpush1.msra.mxu0 0.0
    %632 = vmatprep.subr.mxu0 0.0
    %633 = vmatpush1.msra.mxu0 %v121
    %634 = vmatprep.subr.mxu0 0.0
    %635 = vmatpush2.msra.mxu0 0.0
    %636 = vmatprep.subr.mxu0 0.0
    %637 = vmatpush2.msra.mxu0 0.0
    %638 = vmatprep.subr.mxu0 0.0
    %639 = vmatpush2.msra.mxu0 0.0
    %640 = vmatprep.subr.mxu0 0.0
    %641 = vmatpush2.msra.mxu0 0.0
    %642 = vmatprep.subr.mxu0 0.0
    %643 = vmatpush2.msra.mxu0 0.0
    %644 = vmatprep.subr.mxu0 0.0
    %645 = vmatpush2.msra.mxu0 0.0
    %646 = vmatprep.subr.mxu0 0.0
    %647 = vmatpush2.msra.mxu0 0.0
    %648 = vmatprep.subr.mxu0 0.0
    %649 = vmatpush2.msra.mxu0 0.0
    %650 = vmatprep.subr.mxu0 0.0
    %651 = vmatpush2.msra.mxu0 0.0
    %652 = vmatprep.subr.mxu0 0.0
    %653 = vmatpush2.msra.mxu0 0.0
    %654 = vmatprep.subr.mxu0 0.0
    %655 = vmatpush2.msra.mxu0 0.0
    %656 = vmatprep.subr.mxu0 0.0
    %657 = vmatpush2.msra.mxu0 0.0
    %658 = vmatprep.subr.mxu0 0.0
    %659 = vmatpush2.msra.mxu0 0.0
    %660 = vmatprep.subr.mxu0 0.0
    %661 = vmatpush2.msra.mxu0 0.0
    %662 = vmatprep.subr.mxu0 0.0
    %663 = vmatpush2.msra.mxu0 0.0
    %664 = vmatprep.subr.mxu0 0.0
    %665 = vmatpush2.msra.mxu0 0.0
    %666 = vmatprep.mubr.f32.mxu0 0.0
    %667 = vmatmul.mubr.f32.gmra.mxu0 %v600
    %v668 = vpop.f32.mrf.mxu0
    %v669 = vadd.f32 %v134, %v668
    %v670 = vpop.f32.mrf.mxu0
    %671 = vdwg.mxu0
    %s672 = scalar_lea.vmem [#allocation2], 12
    %673 = vst.msk [vmem:[%s672] sm:$0x3] %vm210, %v669
    %s674 = scalar_lea.vmem [#allocation3], 14
    %v675 = vld [vmem:[%s674] sm:$0x3]
    %v677 = vsel %vm136, %v675, 0
    %679 = vmatprep.subr.mxu0 0.0
    %680 = vmatpush1.msra.mxu0 0.0
    %681 = vmatprep.subr.mxu0 0.0
    %682 = vmatpush1.msra.mxu0 0.0
    %683 = vmatprep.subr.mxu0 0.0
    %684 = vmatpush1.msra.mxu0 0.0
    %685 = vmatprep.subr.mxu0 0.0
    %686 = vmatpush1.msra.mxu0 0.0
    %687 = vmatprep.subr.mxu0 0.0
    %688 = vmatpush1.msra.mxu0 0.0
    %689 = vmatprep.subr.mxu0 0.0
    %690 = vmatpush1.msra.mxu0 0.0
    %691 = vmatprep.subr.mxu0 0.0
    %692 = vmatpush1.msra.mxu0 0.0
    %693 = vmatprep.subr.mxu0 0.0
    %694 = vmatpush1.msra.mxu0 0.0
    %695 = vmatprep.subr.mxu0 0.0
    %696 = vmatpush1.msra.mxu0 0.0
    %697 = vmatprep.subr.mxu0 0.0
    %698 = vmatpush1.msra.mxu0 0.0
    %699 = vmatprep.subr.mxu0 0.0
    %700 = vmatpush1.msra.mxu0 0.0
    %701 = vmatprep.subr.mxu0 0.0
    %702 = vmatpush1.msra.mxu0 0.0
    %703 = vmatprep.subr.mxu0 0.0
    %704 = vmatpush1.msra.mxu0 0.0
    %705 = vmatprep.subr.mxu0 0.0
    %706 = vmatpush1.msra.mxu0 0.0
    %707 = vmatprep.subr.mxu0 0.0
    %708 = vmatpush1.msra.mxu0 0.0
    %709 = vmatprep.subr.mxu0 0.0
    %710 = vmatpush1.msra.mxu0 %v121
    %711 = vmatprep.subr.mxu0 0.0
    %712 = vmatpush2.msra.mxu0 0.0
    %713 = vmatprep.subr.mxu0 0.0
    %714 = vmatpush2.msra.mxu0 0.0
    %715 = vmatprep.subr.mxu0 0.0
    %716 = vmatpush2.msra.mxu0 0.0
    %717 = vmatprep.subr.mxu0 0.0
    %718 = vmatpush2.msra.mxu0 0.0
    %719 = vmatprep.subr.mxu0 0.0
    %720 = vmatpush2.msra.mxu0 0.0
    %721 = vmatprep.subr.mxu0 0.0
    %722 = vmatpush2.msra.mxu0 0.0
    %723 = vmatprep.subr.mxu0 0.0
    %724 = vmatpush2.msra.mxu0 0.0
    %725 = vmatprep.subr.mxu0 0.0
    %726 = vmatpush2.msra.mxu0 0.0
    %727 = vmatprep.subr.mxu0 0.0
    %728 = vmatpush2.msra.mxu0 0.0
    %729 = vmatprep.subr.mxu0 0.0
    %730 = vmatpush2.msra.mxu0 0.0
    %731 = vmatprep.subr.mxu0 0.0
    %732 = vmatpush2.msra.mxu0 0.0
    %733 = vmatprep.subr.mxu0 0.0
    %734 = vmatpush2.msra.mxu0 0.0
    %735 = vmatprep.subr.mxu0 0.0
    %736 = vmatpush2.msra.mxu0 0.0
    %737 = vmatprep.subr.mxu0 0.0
    %738 = vmatpush2.msra.mxu0 0.0
    %739 = vmatprep.subr.mxu0 0.0
    %740 = vmatpush2.msra.mxu0 0.0
    %741 = vmatprep.subr.mxu0 0.0
    %742 = vmatpush2.msra.mxu0 0.0
    %743 = vmatprep.mubr.f32.mxu0 0.0
    %744 = vmatmul.mubr.f32.gmra.mxu0 %v677
    %v745 = vpop.f32.mrf.mxu0
    %v746 = vadd.f32 %v134, %v745
    %v747 = vpop.f32.mrf.mxu0
    %748 = vdwg.mxu0
    %s749 = scalar_lea.vmem [#allocation2], 14
    %750 = vst.msk [vmem:[%s749] sm:$0x3] %vm210, %v746
    %v751 = vld [vmem:[#allocation8] sm:$0x1]
    %v752 = vld [vmem:[%s1] sm:$0x3]
    %v753 = vld [vmem:[#allocation6] sm:$0x3]
    %v754 = vld [vmem:[%s3] sm:$0xff]
    %v756 = vlaneseq
    %v757 = vshrl.u32 %v756, 7
    %v758 = vsub.s32 0, %v757
    %v759 = vrot.slane %v751, %v758
    %v760 = vld [vmem:[#allocation2] sm:$0x3]
    %vm761 = vcmask 130048
    %v763 = vsel %vm761, %v752, 0
    %765 = vmatprep.subr.mxu0 0.0
    %766 = vmatpush1.msra.mxu0 0.0
    %767 = vmatprep.subr.mxu0 0.0
    %768 = vmatpush1.msra.mxu0 0.0
    %769 = vmatprep.subr.mxu0 0.0
    %770 = vmatpush1.msra.mxu0 0.0
    %771 = vmatprep.subr.mxu0 0.0
    %772 = vmatpush1.msra.mxu0 0.0
    %773 = vmatprep.subr.mxu0 0.0
    %774 = vmatpush1.msra.mxu0 0.0
    %775 = vmatprep.subr.mxu0 0.0
    %776 = vmatpush1.msra.mxu0 0.0
    %777 = vmatprep.subr.mxu0 0.0
    %778 = vmatpush1.msra.mxu0 0.0
    %779 = vmatprep.subr.mxu0 0.0
    %780 = vmatpush1.msra.mxu0 0.0
    %781 = vmatprep.subr.mxu0 0.0
    %782 = vmatpush1.msra.mxu0 0.0
    %783 = vmatprep.subr.mxu0 0.0
    %784 = vmatpush1.msra.mxu0 0.0
    %785 = vmatprep.subr.mxu0 0.0
    %786 = vmatpush1.msra.mxu0 0.0
    %787 = vmatprep.subr.mxu0 0.0
    %788 = vmatpush1.msra.mxu0 0.0
    %789 = vmatprep.subr.mxu0 0.0
    %790 = vmatpush1.msra.mxu0 0.0
    %791 = vmatprep.subr.mxu0 0.0
    %792 = vmatpush1.msra.mxu0 0.0
    %793 = vmatprep.subr.mxu0 0.0
    %794 = vmatpush1.msra.mxu0 %v124
    %795 = vmatprep.subr.mxu0 0.0
    %796 = vmatpush1.msra.mxu0 %v123
    %797 = vmatprep.subr.mxu0 0.0
    %798 = vmatpush2.msra.mxu0 0.0
    %799 = vmatprep.subr.mxu0 0.0
    %800 = vmatpush2.msra.mxu0 0.0
    %801 = vmatprep.subr.mxu0 0.0
    %802 = vmatpush2.msra.mxu0 0.0
    %803 = vmatprep.subr.mxu0 0.0
    %804 = vmatpush2.msra.mxu0 0.0
    %805 = vmatprep.subr.mxu0 0.0
    %806 = vmatpush2.msra.mxu0 0.0
    %807 = vmatprep.subr.mxu0 0.0
    %808 = vmatpush2.msra.mxu0 0.0
    %809 = vmatprep.subr.mxu0 0.0
    %810 = vmatpush2.msra.mxu0 0.0
    %811 = vmatprep.subr.mxu0 0.0
    %812 = vmatpush2.msra.mxu0 0.0
    %813 = vmatprep.subr.mxu0 0.0
    %814 = vmatpush2.msra.mxu0 0.0
    %815 = vmatprep.subr.mxu0 0.0
    %816 = vmatpush2.msra.mxu0 0.0
    %817 = vmatprep.subr.mxu0 0.0
    %818 = vmatpush2.msra.mxu0 0.0
    %819 = vmatprep.subr.mxu0 0.0
    %820 = vmatpush2.msra.mxu0 0.0
    %821 = vmatprep.subr.mxu0 0.0
    %822 = vmatpush2.msra.mxu0 0.0
    %823 = vmatprep.subr.mxu0 0.0
    %824 = vmatpush2.msra.mxu0 0.0
    %825 = vmatprep.subr.mxu0 0.0
    %826 = vmatpush2.msra.mxu0 0.0
    %827 = vmatprep.subr.mxu0 0.0
    %828 = vmatpush2.msra.mxu0 0.0
    %829 = vmatprep.mubr.f32.mxu0 0.0
    %830 = vmatmul.mubr.f32.gmra.mxu0 %v763
    %v831 = vpop.f32.mrf.mxu0
    %v832 = vadd.f32 0.0, %v831
    %v833 = vpop.f32.mrf.mxu0
    %834 = vdwg.mxu0
    %v835 = vadd.f32 %v760, %v832
    %vm836 = vcmask 31744
    %v837 = vsel %vm836, %v759, 0
    %vm839 = vcmask 1043456
    %v841 = vsel %vm839, %v125, 0
    %843 = vmatprep.subr.mxu0 0.0
    %844 = vmatpush1.msra.mxu0 0.0
    %845 = vmatprep.subr.mxu0 0.0
    %846 = vmatpush1.msra.mxu0 0.0
    %847 = vmatprep.subr.mxu0 0.0
    %848 = vmatpush1.msra.mxu0 0.0
    %849 = vmatprep.subr.mxu0 0.0
    %850 = vmatpush1.msra.mxu0 0.0
    %851 = vmatprep.subr.mxu0 0.0
    %852 = vmatpush1.msra.mxu0 0.0
    %853 = vmatprep.subr.mxu0 0.0
    %854 = vmatpush1.msra.mxu0 0.0
    %855 = vmatprep.subr.mxu0 0.0
    %856 = vmatpush1.msra.mxu0 0.0
    %857 = vmatprep.subr.mxu0 0.0
    %858 = vmatpush1.msra.mxu0 0.0
    %859 = vmatprep.subr.mxu0 0.0
    %860 = vmatpush1.msra.mxu0 0.0
    %861 = vmatprep.subr.mxu0 0.0
    %862 = vmatpush1.msra.mxu0 0.0
    %863 = vmatprep.subr.mxu0 0.0
    %864 = vmatpush1.msra.mxu0 0.0
    %865 = vmatprep.subr.mxu0 0.0
    %866 = vmatpush1.msra.mxu0 0.0
    %867 = vmatprep.subr.mxu0 0.0
    %868 = vmatpush1.msra.mxu0 0.0
    %869 = vmatprep.subr.mxu0 0.0
    %870 = vmatpush1.msra.mxu0 0.0
    %871 = vmatprep.subr.mxu0 0.0
    %872 = vmatpush1.msra.mxu0 0.0
    %873 = vmatprep.subr.mxu0 0.0
    %874 = vmatpush1.msra.mxu0 %v841
    %875 = vmatprep.subr.mxu0 0.0
    %876 = vmatpush2.msra.mxu0 0.0
    %877 = vmatprep.subr.mxu0 0.0
    %878 = vmatpush2.msra.mxu0 0.0
    %879 = vmatprep.subr.mxu0 0.0
    %880 = vmatpush2.msra.mxu0 0.0
    %881 = vmatprep.subr.mxu0 0.0
    %882 = vmatpush2.msra.mxu0 0.0
    %883 = vmatprep.subr.mxu0 0.0
    %884 = vmatpush2.msra.mxu0 0.0
    %885 = vmatprep.subr.mxu0 0.0
    %886 = vmatpush2.msra.mxu0 0.0
    %887 = vmatprep.subr.mxu0 0.0
    %888 = vmatpush2.msra.mxu0 0.0
    %889 = vmatprep.subr.mxu0 0.0
    %890 = vmatpush2.msra.mxu0 0.0
    %891 = vmatprep.subr.mxu0 0.0
    %892 = vmatpush2.msra.mxu0 0.0
    %893 = vmatprep.subr.mxu0 0.0
    %894 = vmatpush2.msra.mxu0 0.0
    %895 = vmatprep.subr.mxu0 0.0
    %896 = vmatpush2.msra.mxu0 0.0
    %897 = vmatprep.subr.mxu0 0.0
    %898 = vmatpush2.msra.mxu0 0.0
    %899 = vmatprep.subr.mxu0 0.0
    %900 = vmatpush2.msra.mxu0 0.0
    %901 = vmatprep.subr.mxu0 0.0
    %902 = vmatpush2.msra.mxu0 0.0
    %903 = vmatprep.subr.mxu0 0.0
    %904 = vmatpush2.msra.mxu0 0.0
    %905 = vmatprep.subr.mxu0 0.0
    %906 = vmatpush2.msra.mxu0 0.0
    %907 = vmatprep.mubr.f32.mxu0 0.0
    %908 = vmatmul.mubr.f32.gmra.mxu0 %v837
    %v909 = vpop.f32.mrf.mxu0
    %v910 = vadd.f32 0.0, %v909
    %v911 = vpop.f32.mrf.mxu0
    %912 = vdwg.mxu0
    %v913 = vadd.f32 %v835, %v910
    %v914 = vxor.u32 %v913, 2147483648
    %v915 = vmul.f32 %v914, 1.442695
    %v916 = vpow.pop %v915
    %v917 = vadd.f32 %v916, 1.0
    %v918 = vrcp.pop %v917
    %v919 = vmul.f32 1.0, %v918
    %v920 = vtanh.pop %v913
    %922 = vrot.lane.b32.xlu0 %v753, 16
    %v923 = vpop.permute.xlu0 %922
    %v925 = vmul.f32 %v919, %v923
    %927 = vrot.lane.b32.xlu0 %v920, 96
    %v928 = vpop.permute.xlu0 %927
    %v930 = vmul.f32 %v919, %v928
    %932 = vrot.lane.b32.xlu0 %v930, 16
    %v933 = vpop.permute.xlu0 %932
    %v935 = vadd.f32 %v925, %v933
    %v936 = vtanh.pop %v935
    %938 = vrot.lane.b32.xlu0 %v936, 32
    %v939 = vpop.permute.xlu0 %938
    %v941 = vmul.f32 %v919, %v939
    %v943 = vlaneseq
    %v944 = vshrl.u32 %v943, 7
    %v945 = vsub.s32 0, %v944
    %v946 = vrot.slane %v128, %v945
    %949 = vrot.lane.b32.xlu0 %v941, 80
    %v950 = vpop.permute.xlu0 %949
    %v951 = vsel %vm761, %v950, 0
    %953 = vmatprep.subr.mxu0 0.0
    %954 = vmatpush1.msra.mxu0 0.0
    %955 = vmatprep.subr.mxu0 0.0
    %956 = vmatpush1.msra.mxu0 0.0
    %957 = vmatprep.subr.mxu0 0.0
    %958 = vmatpush1.msra.mxu0 0.0
    %959 = vmatprep.subr.mxu0 0.0
    %960 = vmatpush1.msra.mxu0 0.0
    %961 = vmatprep.subr.mxu0 0.0
    %962 = vmatpush1.msra.mxu0 0.0
    %963 = vmatprep.subr.mxu0 0.0
    %964 = vmatpush1.msra.mxu0 0.0
    %965 = vmatprep.subr.mxu0 0.0
    %966 = vmatpush1.msra.mxu0 0.0
    %967 = vmatprep.subr.mxu0 0.0
    %968 = vmatpush1.msra.mxu0 0.0
    %969 = vmatprep.subr.mxu0 0.0
    %970 = vmatpush1.msra.mxu0 0.0
    %971 = vmatprep.subr.mxu0 0.0
    %972 = vmatpush1.msra.mxu0 0.0
    %973 = vmatprep.subr.mxu0 0.0
    %974 = vmatpush1.msra.mxu0 0.0
    %975 = vmatprep.subr.mxu0 0.0
    %976 = vmatpush1.msra.mxu0 0.0
    %977 = vmatprep.subr.mxu0 0.0
    %978 = vmatpush1.msra.mxu0 0.0
    %979 = vmatprep.subr.mxu0 0.0
    %980 = vmatpush1.msra.mxu0 0.0
    %981 = vmatprep.subr.mxu0 0.0
    %982 = vmatpush1.msra.mxu0 %v127
    %983 = vmatprep.subr.mxu0 0.0
    %984 = vmatpush1.msra.mxu0 %v126
    %985 = vmatprep.subr.mxu0 0.0
    %986 = vmatpush2.msra.mxu0 0.0
    %987 = vmatprep.subr.mxu0 0.0
    %988 = vmatpush2.msra.mxu0 0.0
    %989 = vmatprep.subr.mxu0 0.0
    %990 = vmatpush2.msra.mxu0 0.0
    %991 = vmatprep.subr.mxu0 0.0
    %992 = vmatpush2.msra.mxu0 0.0
    %993 = vmatprep.subr.mxu0 0.0
    %994 = vmatpush2.msra.mxu0 0.0
    %995 = vmatprep.subr.mxu0 0.0
    %996 = vmatpush2.msra.mxu0 0.0
    %997 = vmatprep.subr.mxu0 0.0
    %998 = vmatpush2.msra.mxu0 0.0
    %999 = vmatprep.subr.mxu0 0.0
    %1000 = vmatpush2.msra.mxu0 0.0
    %1001 = vmatprep.subr.mxu0 0.0
    %1002 = vmatpush2.msra.mxu0 0.0
    %1003 = vmatprep.subr.mxu0 0.0
    %1004 = vmatpush2.msra.mxu0 0.0
    %1005 = vmatprep.subr.mxu0 0.0
    %1006 = vmatpush2.msra.mxu0 0.0
    %1007 = vmatprep.subr.mxu0 0.0
    %1008 = vmatpush2.msra.mxu0 0.0
    %1009 = vmatprep.subr.mxu0 0.0
    %1010 = vmatpush2.msra.mxu0 0.0
    %1011 = vmatprep.subr.mxu0 0.0
    %1012 = vmatpush2.msra.mxu0 0.0
    %1013 = vmatprep.subr.mxu0 0.0
    %1014 = vmatpush2.msra.mxu0 0.0
    %1015 = vmatprep.subr.mxu0 0.0
    %1016 = vmatpush2.msra.mxu0 0.0
    %1017 = vmatprep.mubr.f32.mxu0 0.0
    %1018 = vmatmul.mubr.f32.gmra.mxu0 %v951
    %v1019 = vpop.f32.mrf.mxu0
    %v1020 = vadd.f32 %v946, %v1019
    %v1021 = vpop.f32.mrf.mxu0
    %1022 = vdwg.mxu0
    %v1023 = vadd.f32 %v754, 1e-16
    %v1024 = vmul.f32 %v1023, %v1023
    %v1025 = vsel %vm836, %v1024, 0.0
    %1026 = vadd.xlane.f32.xlu0 %v1025
    %v1027 = vpop.xlane.xlu0 %1026
    %v1028 = vmax.f32 %v1027, 1e-16
    %v1029 = vrsqrt.pop %v1028
    %v1031 = vlaneseq
    %v1032 = vand.u32 %v1031, 127
    %v1033 = vlaneseq
    %v1034 = vshrl.u32 %v1033, 7
    %v1035 = vsub.s32 %v1032, %v1034
    %v1036 = vrot.slane %v1029, %v1035
    %vm1037 = vcmask 1041409
    %vm1039 = vcmask 1043459
    %vm1040 = vcmask 1041408
    %v1041 = vsel %vm1040, %v1036, %v1036
    %v1043 = vrot.slane %v1020, 6
    %1044 = vrot.lane.b32.xlu0 %v1043, 118
    %v1045 = vpop.permute.xlu0 %1044
    %v1047 = vsel %vm1040, %v1020, %v1045
    %v1048 = vmax.f32 %v1047, 0.0
    %vm1049 = vcmp.ne.f32.partialorder %v1047, %v1047
    %v1050 = vadd.f32 %v1047, 0.0
    %v1051 = vand.u32 2147483647, %v1047
    %v1052 = vsub.f32 0.0, %v1051
    %v1053 = vmul.f32 %v1052, 1.442695
    %v1054 = vpow.pop %v1053
    %v1055 = vadd.f32 %v1054, 1.0
    %v1056 = vlog2.pop %v1055
    %v1057 = vmul.f32 %v1056, 0.6931472
    %v1058 = vmul.f32 -0.5, %v1054
    %v1059 = vadd.f32 %v1058, 1.0
    %v1060 = vmul.f32 %v1059, %v1054
    %v1061 = vand.u32 2147483647, %v1054
    %vm1062 = vcmp.lt.f32.partialorder %v1061, 0.0004427343
    %v1063 = vsel %vm1062, %v1060, %v1057
    %v1064 = vadd.f32 %v1048, %v1063
    %v1065 = vsel %vm1049, %v1050, %v1064
    %v1066 = vxor.u32 %v1047, 2147483648
    %v1067 = vmul.f32 %v1066, 1.442695
    %v1068 = vpow.pop %v1067
    %v1069 = vadd.f32 %v1068, 1.0
    %v1070 = vrcp.pop %v1069
    %v1071 = vmul.f32 1.0, %v1070
    %v1072 = vadd.f32 %v1065, 1.0
    %vm1073 = vcmask 68656
    %v1074 = vsel %vm1073, %v1047, -inf
    %1075 = vmax.xlane.f32.xlu0 %v1074
    %v1076 = vpop.xlane.xlu0 %1075
    %v1077 = vsub.f32 %v1047, %v1076
    %v1078 = vmul.f32 %v1077, 1.442695
    %v1079 = vpow.pop %v1078
    %1081 = vrot.lane.b32.xlu0 %v1079, 122
    %v1082 = vpop.permute.xlu0 %1081
    %vm1084 = vcmask 19456
    %v1085 = vsel %vm1084, %v1082, 0.0
    %1086 = vadd.xlane.f32.xlu0 %v1085
    %v1087 = vpop.xlane.xlu0 %1086
    %v1088 = vrcp.pop %v1087
    %v1089 = vmul.f32 %v1079, %v1088
    %v1090 = vadd.f32 %v1047, 1e-16
    %v1093 = vunpack.c.l.s4 1966171168
    %v1094 = vunpack.c.0.s8 %v1093
    %v1095 = vlaneseq
    %v1096 = vshrl.u32 %v1095, 7
    %v1097 = vsub.s32 %v1094, %v1096
    %v1098 = vrot.slane %v1090, %v1097
    %v1099 = vcombine.high %v1098, %v1098
    %v1101 = vunpack.c.l.s4 1966171168
    %v1102 = vunpack.c.0.s8 %v1101
    %v1103 = vlaneseq
    %v1104 = vshrl.u32 %v1103, 7
    %v1105 = vsub.s32 %v1102, %v1104
    %v1106 = vrot.slane %v1098, %v1105
    %v1108 = vunpack.c.l.s4 1966171168
    %v1109 = vunpack.c.0.s8 %v1108
    %v1110 = vlaneseq
    %v1111 = vshrl.u32 %v1110, 7
    %v1112 = vsub.s32 %v1109, %v1111
    %v1113 = vrot.slane %v1099, %v1112
    %v1114 = vcombine.high %v1106, %v1106
    %v1115 = vcombine.high %v1113, %v1113
    %v1116 = vlaneseq
    %v1117 = vshrl.u32 %v1116, 7
    %v1118 = vsub.s32 0, %v1117
    %v1119 = vrot.slane %v1106, %v1118
    %v1120 = vlaneseq
    %v1121 = vshrl.u32 %v1120, 7
    %v1122 = vsub.s32 0, %v1121
    %v1123 = vrot.slane %v1113, %v1122
    %v1124 = vlaneseq
    %v1125 = vshrl.u32 %v1124, 7
    %v1126 = vsub.s32 0, %v1125
    %v1127 = vrot.slane %v1114, %v1126
    %v1128 = vlaneseq
    %v1129 = vshrl.u32 %v1128, 7
    %v1130 = vsub.s32 0, %v1129
    %v1131 = vrot.slane %v1115, %v1130
    %v1136 = vmul.f32 %v1023, %v1119
    %v1137 = vmul.f32 %v1023, %v1123
    %v1138 = vmul.f32 %v1023, %v1127
    %v1139 = vmul.f32 %v1023, %v1131
    %v1140 = vsel %vm836, %v1136, 0.0
    %1141 = vadd.xlane.f32.xlu0 %v1140
    %v1142 = vpop.xlane.xlu0 %1141
    %v1143 = vsel %vm836, %v1137, 0.0
    %1144 = vadd.xlane.f32.xlu0 %v1143
    %v1145 = vpop.xlane.xlu0 %1144
    %v1146 = vsel %vm836, %v1138, 0.0
    %1147 = vadd.xlane.f32.xlu0 %v1146
    %v1148 = vpop.xlane.xlu0 %1147
    %v1149 = vsel %vm836, %v1139, 0.0
    %1150 = vadd.xlane.f32.xlu0 %v1149
    %v1151 = vpop.xlane.xlu0 %1150
    %v1152 = vmul.f32 %v1090, %v1090
    %vm1153 = vcmask 27648
    %v1154 = vsel %vm1153, %v1152, 0.0
    %1155 = vadd.xlane.f32.xlu0 %v1154
    %v1156 = vpop.xlane.xlu0 %1155
    %v1157 = vmax.f32 %v1156, 1e-16
    %v1158 = vrsqrt.pop %v1157
    %v1159 = vmul.f32 %v1041, %v1158
    %v1161 = vlaneseq
    %v1162 = vshrl.u32 %v1161, 7
    %v1163 = vsub.s32 0, %v1162
    %v1164 = vrot.slane %v1159, %v1163
    %1166 = vbcast.lane.b32.xlu0 %v1164, 256
    %v1167 = vpop.permute.xlu0 %1166
    %v1168 = vlaneseq
    %v1169 = vshrl.u32 %v1168, 7
    %v1170 = vsub.s32 1, %v1169
    %v1171 = vrot.slane %v1159, %v1170
    %1173 = vbcast.lane.b32.xlu0 %v1171, 256
    %v1174 = vpop.permute.xlu0 %1173
    %v1175 = vlaneseq
    %v1176 = vshrl.u32 %v1175, 7
    %v1177 = vsub.s32 2, %v1176
    %v1178 = vrot.slane %v1159, %v1177
    %1180 = vbcast.lane.b32.xlu0 %v1178, 256
    %v1181 = vpop.permute.xlu0 %1180
    %v1182 = vlaneseq
    %v1183 = vshrl.u32 %v1182, 7
    %v1184 = vsub.s32 3, %v1183
    %v1185 = vrot.slane %v1159, %v1184
    %1187 = vbcast.lane.b32.xlu0 %v1185, 256
    %v1188 = vpop.permute.xlu0 %1187
    %v1193 = vmul.f32 %v1142, %v1167
    %v1194 = vmul.f32 %v1145, %v1174
    %v1195 = vmul.f32 %v1148, %v1181
    %v1196 = vmul.f32 %v1151, %v1188
    %1198 = vset.pattern.permute.xlu0 4
    %1199 = vperm.xlu0 %1198, %v1065
    %v1200 = vpop.permute.xlu0 %1199
    %1206 = vset.pattern.permute.xlu0 0
    %1207 = vperm.xlu0 %1206, %v1193
    %v1208 = vpop.permute.xlu0 %1207
    %1209 = vset.pattern.permute.xlu0 0
    %1210 = vperm.xlu0 %1209, %v1194
    %v1211 = vpop.permute.xlu0 %1210
    %1212 = vset.pattern.permute.xlu0 0
    %1213 = vperm.xlu0 %1212, %v1195
    %v1214 = vpop.permute.xlu0 %1213
    %1215 = vset.pattern.permute.xlu0 0
    %1216 = vperm.xlu0 %1215, %v1196
    %v1217 = vpop.permute.xlu0 %1216
    %v1218 = vlaneseq
    %v1219 = vshrl.u32 %v1218, 7
    %v1220 = vsub.s32 %v1032, %v1219
    %v1221 = vrot.slane %v1208, %v1220
    %v1222 = vlaneseq
    %v1223 = vshrl.u32 %v1222, 7
    %v1224 = vsub.s32 %v1032, %v1223
    %v1225 = vrot.slane %v1211, %v1224
    %v1226 = vlaneseq
    %v1227 = vshrl.u32 %v1226, 7
    %v1228 = vsub.s32 %v1032, %v1227
    %v1229 = vrot.slane %v1214, %v1228
    %v1230 = vlaneseq
    %v1231 = vshrl.u32 %v1230, 7
    %v1232 = vsub.s32 %v1032, %v1231
    %v1233 = vrot.slane %v1217, %v1232
    %v1234 = vsel %vm1037, %v1225, %v1221
    %vm1235 = vcmask 1042434
    %v1236 = vsel %vm1235, %v1229, %v1234
    %v1237 = vsel %vm1039, %v1233, %v1236
    %v1239 = vmul.f32 %v1200, %v1237
    %vm1240 = vcmask 60416
    %v1241 = vsel %vm1240, %v1239, -inf
    %1242 = vmax.xlane.f32.xlu0 %v1241
    %v1243 = vpop.xlane.xlu0 %1242
    %v1244 = vsub.f32 %v1239, %v1243
    %v1245 = vmul.f32 %v1244, 1.442695
    %v1246 = vpow.pop %v1245
    %v1247 = vsel %vm1240, %v1246, 0.0
    %1248 = vadd.xlane.f32.xlu0 %v1247
    %v1249 = vpop.xlane.xlu0 %1248
    %v1250 = vrcp.pop %v1249
    %v1251 = vmul.f32 %v1246, %v1250
    %1253 = vset.pattern.permute.xlu0 5
    %1254 = vperm.xlu0 %1253, %v1071
    %v1255 = vpop.permute.xlu0 %1254
    %v1257 = vmul.f32 %v1255, %v1251
    %v1258 = vsub.f32 1.0, %v1071
    %1260 = vset.pattern.permute.xlu0 5
    %1261 = vperm.xlu0 %1260, %v1258
    %v1262 = vpop.permute.xlu0 %1261
    %v1264 = vmul.f32 %v1262, 0.0
    %v1265 = vadd.f32 %v1257, %v1264
    %1267 = vrot.lane.b32.xlu0 %v1265, 121
    %v1268 = vpop.permute.xlu0 %1267
    %1270 = vrot.lane.b32.xlu0 %v1265, 1
    %v1271 = vpop.permute.xlu0 %1270
    %vm1273 = vcmask 7168
    %v1274 = vsel %vm1273, %v1268, %v1271
    %1275 = vrot.lane.b32.xlu0 %v1265, 127
    %v1276 = vpop.permute.xlu0 %1275
    %1278 = vrot.lane.b32.xlu0 %v1265, 7
    %v1279 = vpop.permute.xlu0 %1278
    %vm1281 = vcmask 56320
    %v1282 = vsel %vm1281, %v1276, %v1279
    %1284 = vset.pattern.permute.xlu0 6
    %1285 = vperm.xlu0 %1284, %v1089
    %v1286 = vpop.permute.xlu0 %1285
    %v1288 = vmul.f32 %v1286, %v1274
    %1289 = vset.pattern.permute.xlu0 7
    %1290 = vperm.xlu0 %1289, %v1089
    %v1291 = vpop.permute.xlu0 %1290
    %v1293 = vmul.f32 %v1291, %v1265
    %v1294 = vadd.f32 %v1288, %v1293
    %1295 = vset.pattern.permute.xlu0 8
    %1296 = vperm.xlu0 %1295, %v1089
    %v1297 = vpop.permute.xlu0 %1296
    %v1299 = vmul.f32 %v1297, %v1282
    %v1300 = vadd.f32 %v1294, %v1299
    %v1301 = vmax.f32 %v1300, 1e-30
    %v1302 = vlog2.pop %v1301
    %v1303 = vmul.f32 %v1302, 0.6931472
    %1305 = vset.pattern.permute.xlu0 9
    %1306 = vperm.xlu0 %1305, %v1072
    %v1307 = vpop.permute.xlu0 %1306
    %v1309 = vmul.f32 %v1307, %v1303
    %v1310 = vmul.f32 %v1309, 1.442695
    %v1311 = vpow.pop %v1310
    %v1312 = vsel %vm1240, %v1311, 0.0
    %1313 = vadd.xlane.f32.xlu0 %v1312
    %v1314 = vpop.xlane.xlu0 %1313
    %v1315 = vadd.f32 %v1314, 1e-16
    %v1316 = vrcp.pop %v1315
    %v1317 = vmul.f32 %v1311, %v1316
    %v1318 = vlaneseq
    %v1319 = vshrl.u32 %v1318, 7
    %v1320 = vsub.s32 0, %v1319
    %v1321 = vrot.slane %v1317, %v1320
    %1323 = vbcast.lane.b32.xlu0 %v1321, 256
    %v1324 = vpop.permute.xlu0 %1323
    %v1325 = vlaneseq
    %v1326 = vshrl.u32 %v1325, 7
    %v1327 = vsub.s32 1, %v1326
    %v1328 = vrot.slane %v1317, %v1327
    %1330 = vbcast.lane.b32.xlu0 %v1328, 256
    %v1331 = vpop.permute.xlu0 %1330
    %v1332 = vmul.f32 %v1324, %v754
    %v1333 = vmul.f32 %v1331, %v754
    %v1334 = vsel %vm836, %v1332, 0.0
    %v1335 = vrot.slane %v1334, 4
    %v1336 = vadd.f32 %v1334, %v1335
    %v1337 = vrot.slane %v1336, 2
    %v1338 = vadd.f32 %v1336, %v1337
    %v1339 = vrot.slane %v1338, 1
    %v1340 = vadd.f32 %v1338, %v1339
    %v1341 = vsel %vm836, %v1333, 0.0
    %v1342 = vrot.slane %v1341, 4
    %v1343 = vadd.f32 %v1341, %v1342
    %v1344 = vrot.slane %v1343, 2
    %v1345 = vadd.f32 %v1343, %v1344
    %v1346 = vrot.slane %v1345, 1
    %v1347 = vadd.f32 %v1345, %v1346
    %v1348 = vxor.u32 %v1020, 2147483648
    %v1349 = vmul.f32 %v1348, 1.442695
    %v1350 = vpow.pop %v1349
    %v1351 = vadd.f32 %v1350, 1.0
    %v1352 = vrcp.pop %v1351
    %v1353 = vmul.f32 1.0, %v1352
    %v1354 = vlaneseq
    %v1355 = vshrl.u32 %v1354, 7
    %v1356 = vsub.s32 2, %v1355
    %v1357 = vrot.slane %v1317, %v1356
    %1359 = vbcast.lane.b32.xlu0 %v1357, 256
    %v1360 = vpop.permute.xlu0 %1359
    %v1361 = vlaneseq
    %v1362 = vshrl.u32 %v1361, 7
    %v1363 = vsub.s32 3, %v1362
    %v1364 = vrot.slane %v1317, %v1363
    %1366 = vbcast.lane.b32.xlu0 %v1364, 256
    %v1367 = vpop.permute.xlu0 %1366
    %v1370 = vunpack.c.l.s4 1966171168
    %v1371 = vunpack.c.0.s8 %v1370
    %v1372 = vlaneseq
    %v1373 = vshrl.u32 %v1372, 7
    %v1374 = vsub.s32 %v1371, %v1373
    %v1375 = vrot.slane %v1353, %v1374
    %v1376 = vcombine.high %v1375, %v1375
    %v1378 = vunpack.c.l.s4 1966171168
    %v1379 = vunpack.c.0.s8 %v1378
    %v1380 = vlaneseq
    %v1381 = vshrl.u32 %v1380, 7
    %v1382 = vsub.s32 %v1379, %v1381
    %v1383 = vrot.slane %v1375, %v1382
    %v1385 = vunpack.c.l.s4 1966171168
    %v1386 = vunpack.c.0.s8 %v1385
    %v1387 = vlaneseq
    %v1388 = vshrl.u32 %v1387, 7
    %v1389 = vsub.s32 %v1386, %v1388
    %v1390 = vrot.slane %v1376, %v1389
    %v1391 = vlaneseq
    %v1392 = vshrl.u32 %v1391, 7
    %v1393 = vsub.s32 0, %v1392
    %v1394 = vrot.slane %v1383, %v1393
    %v1395 = vlaneseq
    %v1396 = vshrl.u32 %v1395, 7
    %v1397 = vsub.s32 0, %v1396
    %v1398 = vrot.slane %v1390, %v1397
    %v1401 = vmul.f32 %v1360, %v1394
    %v1402 = vmul.f32 %v1367, %v1398
    %v1403 = vsub.f32 1.0, %v1401
    %v1404 = vsub.f32 1.0, %v1402
    %1407 = vrot.lane.b32.xlu0 %v1403, 108
    %v1408 = vpop.permute.xlu0 %1407
    %1409 = vrot.lane.b32.xlu0 %v1404, 108
    %v1410 = vpop.permute.xlu0 %1409
    %v1413 = vmul.f32 %v754, %v1408
    %v1414 = vmul.f32 %v754, %v1410
    %v1416 = vunpack.c.l.s4 1966171168
    %v1417 = vunpack.c.0.s8 %v1416
    %v1418 = vlaneseq
    %v1419 = vshrl.u32 %v1418, 7
    %v1420 = vsub.s32 %v1417, %v1419
    %v1421 = vrot.slane %v1020, %v1420
    %v1422 = vcombine.high %v1421, %v1421
    %v1424 = vunpack.c.l.s4 1966171168
    %v1425 = vunpack.c.0.s8 %v1424
    %v1426 = vlaneseq
    %v1427 = vshrl.u32 %v1426, 7
    %v1428 = vsub.s32 %v1425, %v1427
    %v1429 = vrot.slane %v1421, %v1428
    %v1431 = vunpack.c.l.s4 1966171168
    %v1432 = vunpack.c.0.s8 %v1431
    %v1433 = vlaneseq
    %v1434 = vshrl.u32 %v1433, 7
    %v1435 = vsub.s32 %v1432, %v1434
    %v1436 = vrot.slane %v1422, %v1435
    %v1437 = vlaneseq
    %v1438 = vshrl.u32 %v1437, 7
    %v1439 = vsub.s32 0, %v1438
    %v1440 = vrot.slane %v1429, %v1439
    %v1441 = vlaneseq
    %v1442 = vshrl.u32 %v1441, 7
    %v1443 = vsub.s32 0, %v1442
    %v1444 = vrot.slane %v1436, %v1443
    %v1447 = vmul.f32 %v1360, %v1440
    %v1448 = vmul.f32 %v1367, %v1444
    %1451 = vrot.lane.b32.xlu0 %v1447, 104
    %v1452 = vpop.permute.xlu0 %1451
    %1453 = vrot.lane.b32.xlu0 %v1448, 104
    %v1454 = vpop.permute.xlu0 %1453
    %v1457 = vadd.f32 %v1413, %v1452
    %v1458 = vadd.f32 %v1414, %v1454
    %v1462 = vsel %vm1037, %v1347, %v1340
    %1463 = vrot.lane.b32.xlu0 %v1462, 16
    %v1464 = vpop.permute.xlu0 %1463
    %v1466 = vsel %vm761, %v950, %v1464
    %vm1467 = vcmask 156672
    %1468 = vst.msk [vmem:[#allocation14] sm:$0x3] %vm1467, %v1466
    %v1469 = vld [vmem:[%s287] sm:$0x3]
    %1470 = vmatprep.subr.mxu0 0.0
    %1471 = vmatpush1.msra.mxu0 0.0
    %1472 = vmatprep.subr.mxu0 0.0
    %1473 = vmatpush1.msra.mxu0 0.0
    %1474 = vmatprep.subr.mxu0 0.0
    %1475 = vmatpush1.msra.mxu0 0.0
    %1476 = vmatprep.subr.mxu0 0.0
    %1477 = vmatpush1.msra.mxu0 0.0
    %1478 = vmatprep.subr.mxu0 0.0
    %1479 = vmatpush1.msra.mxu0 0.0
    %1480 = vmatprep.subr.mxu0 0.0
    %1481 = vmatpush1.msra.mxu0 0.0
    %1482 = vmatprep.subr.mxu0 0.0
    %1483 = vmatpush1.msra.mxu0 0.0
    %1484 = vmatprep.subr.mxu0 0.0
    %1485 = vmatpush1.msra.mxu0 0.0
    %1486 = vmatprep.subr.mxu0 0.0
    %1487 = vmatpush1.msra.mxu0 0.0
    %1488 = vmatprep.subr.mxu0 0.0
    %1489 = vmatpush1.msra.mxu0 0.0
    %1490 = vmatprep.subr.mxu0 0.0
    %1491 = vmatpush1.msra.mxu0 0.0
    %1492 = vmatprep.subr.mxu0 0.0
    %1493 = vmatpush1.msra.mxu0 0.0
    %1494 = vmatprep.subr.mxu0 0.0
    %1495 = vmatpush1.msra.mxu0 0.0
    %1496 = vmatprep.subr.mxu0 0.0
    %1497 = vmatpush1.msra.mxu0 0.0
    %1498 = vmatprep.subr.mxu0 0.0
    %1499 = vmatpush1.msra.mxu0 %v124
    %1500 = vmatprep.subr.mxu0 0.0
    %1501 = vmatpush1.msra.mxu0 %v123
    %1502 = vmatprep.subr.mxu0 0.0
    %1503 = vmatpush2.msra.mxu0 0.0
    %1504 = vmatprep.subr.mxu0 0.0
    %1505 = vmatpush2.msra.mxu0 0.0
    %1506 = vmatprep.subr.mxu0 0.0
    %1507 = vmatpush2.msra.mxu0 0.0
    %1508 = vmatprep.subr.mxu0 0.0
    %1509 = vmatpush2.msra.mxu0 0.0
    %1510 = vmatprep.subr.mxu0 0.0
    %1511 = vmatpush2.msra.mxu0 0.0
    %1512 = vmatprep.subr.mxu0 0.0
    %1513 = vmatpush2.msra.mxu0 0.0
    %1514 = vmatprep.subr.mxu0 0.0
    %1515 = vmatpush2.msra.mxu0 0.0
    %1516 = vmatprep.subr.mxu0 0.0
    %1517 = vmatpush2.msra.mxu0 0.0
    %1518 = vmatprep.subr.mxu0 0.0
    %1519 = vmatpush2.msra.mxu0 0.0
    %1520 = vmatprep.subr.mxu0 0.0
    %1521 = vmatpush2.msra.mxu0 0.0
    %1522 = vmatprep.subr.mxu0 0.0
    %1523 = vmatpush2.msra.mxu0 0.0
    %1524 = vmatprep.subr.mxu0 0.0
    %1525 = vmatpush2.msra.mxu0 0.0
    %1526 = vmatprep.subr.mxu0 0.0
    %1527 = vmatpush2.msra.mxu0 0.0
    %1528 = vmatprep.subr.mxu0 0.0
    %1529 = vmatpush2.msra.mxu0 0.0
    %1530 = vmatprep.subr.mxu0 0.0
    %1531 = vmatpush2.msra.mxu0 0.0
    %1532 = vmatprep.subr.mxu0 0.0
    %1533 = vmatpush2.msra.mxu0 0.0
    %1534 = vmatprep.mubr.f32.mxu0 0.0
    %1535 = vmatmul.mubr.f32.gmra.mxu0 %v951
    %v1536 = vpop.f32.mrf.mxu0
    %v1537 = vadd.f32 0.0, %v1536
    %v1538 = vpop.f32.mrf.mxu0
    %1539 = vdwg.mxu0
    %v1540 = vadd.f32 %v1469, %v1537
    %v1541 = vsel %vm836, %v1462, 0
    %1543 = vmatprep.subr.mxu0 0.0
    %1544 = vmatpush1.msra.mxu0 0.0
    %1545 = vmatprep.subr.mxu0 0.0
    %1546 = vmatpush1.msra.mxu0 0.0
    %1547 = vmatprep.subr.mxu0 0.0
    %1548 = vmatpush1.msra.mxu0 0.0
    %1549 = vmatprep.subr.mxu0 0.0
    %1550 = vmatpush1.msra.mxu0 0.0
    %1551 = vmatprep.subr.mxu0 0.0
    %1552 = vmatpush1.msra.mxu0 0.0
    %1553 = vmatprep.subr.mxu0 0.0
    %1554 = vmatpush1.msra.mxu0 0.0
    %1555 = vmatprep.subr.mxu0 0.0
    %1556 = vmatpush1.msra.mxu0 0.0
    %1557 = vmatprep.subr.mxu0 0.0
    %1558 = vmatpush1.msra.mxu0 0.0
    %1559 = vmatprep.subr.mxu0 0.0
    %1560 = vmatpush1.msra.mxu0 0.0
    %1561 = vmatprep.subr.mxu0 0.0
    %1562 = vmatpush1.msra.mxu0 0.0
    %1563 = vmatprep.subr.mxu0 0.0
    %1564 = vmatpush1.msra.mxu0 0.0
    %1565 = vmatprep.subr.mxu0 0.0
    %1566 = vmatpush1.msra.mxu0 0.0
    %1567 = vmatprep.subr.mxu0 0.0
    %1568 = vmatpush1.msra.mxu0 0.0
    %1569 = vmatprep.subr.mxu0 0.0
    %1570 = vmatpush1.msra.mxu0 0.0
    %1571 = vmatprep.subr.mxu0 0.0
    %1572 = vmatpush1.msra.mxu0 0.0
    %1573 = vmatprep.subr.mxu0 0.0
    %1574 = vmatpush1.msra.mxu0 %v841
    %1575 = vmatprep.subr.mxu0 0.0
    %1576 = vmatpush2.msra.mxu0 0.0
    %1577 = vmatprep.subr.mxu0 0.0
    %1578 = vmatpush2.msra.mxu0 0.0
    %1579 = vmatprep.subr.mxu0 0.0
    %1580 = vmatpush2.msra.mxu0 0.0
    %1581 = vmatprep.subr.mxu0 0.0
    %1582 = vmatpush2.msra.mxu0 0.0
    %1583 = vmatprep.subr.mxu0 0.0
    %1584 = vmatpush2.msra.mxu0 0.0
    %1585 = vmatprep.subr.mxu0 0.0
    %1586 = vmatpush2.msra.mxu0 0.0
    %1587 = vmatprep.subr.mxu0 0.0
    %1588 = vmatpush2.msra.mxu0 0.0
    %1589 = vmatprep.subr.mxu0 0.0
    %1590 = vmatpush2.msra.mxu0 0.0
    %1591 = vmatprep.subr.mxu0 0.0
    %1592 = vmatpush2.msra.mxu0 0.0
    %1593 = vmatprep.subr.mxu0 0.0
    %1594 = vmatpush2.msra.mxu0 0.0
    %1595 = vmatprep.subr.mxu0 0.0
    %1596 = vmatpush2.msra.mxu0 0.0
    %1597 = vmatprep.subr.mxu0 0.0
    %1598 = vmatpush2.msra.mxu0 0.0
    %1599 = vmatprep.subr.mxu0 0.0
    %1600 = vmatpush2.msra.mxu0 0.0
    %1601 = vmatprep.subr.mxu0 0.0
    %1602 = vmatpush2.msra.mxu0 0.0
    %1603 = vmatprep.subr.mxu0 0.0
    %1604 = vmatpush2.msra.mxu0 0.0
    %1605 = vmatprep.subr.mxu0 0.0
    %1606 = vmatpush2.msra.mxu0 0.0
    %1607 = vmatprep.mubr.f32.mxu0 0.0
    %1608 = vmatmul.mubr.f32.gmra.mxu0 %v1541
    %v1609 = vpop.f32.mrf.mxu0
    %v1610 = vadd.f32 0.0, %v1609
    %v1611 = vpop.f32.mrf.mxu0
    %1612 = vdwg.mxu0
    %v1613 = vadd.f32 %v1540, %v1610
    %v1614 = vxor.u32 %v1613, 2147483648
    %v1615 = vmul.f32 %v1614, 1.442695
    %v1616 = vpow.pop %v1615
    %v1617 = vadd.f32 %v1616, 1.0
    %v1618 = vrcp.pop %v1617
    %v1619 = vmul.f32 1.0, %v1618
    %v1620 = vtanh.pop %v1613
    %v1621 = vmul.f32 %v1619, %v935
    %1623 = vrot.lane.b32.xlu0 %v1620, 96
    %v1624 = vpop.permute.xlu0 %1623
    %v1626 = vmul.f32 %v1619, %v1624
    %1628 = vrot.lane.b32.xlu0 %v1626, 16
    %v1629 = vpop.permute.xlu0 %1628
    %v1631 = vadd.f32 %v1621, %v1629
    %v1632 = vtanh.pop %v1631
    %1634 = vrot.lane.b32.xlu0 %v1632, 32
    %v1635 = vpop.permute.xlu0 %1634
    %v1637 = vmul.f32 %v1619, %v1635
    %1639 = vrot.lane.b32.xlu0 %v1637, 80
    %v1640 = vpop.permute.xlu0 %1639
    %v1641 = vsel %vm761, %v1640, 0
    %1643 = vmatprep.subr.mxu0 0.0
    %1644 = vmatpush1.msra.mxu0 0.0
    %1645 = vmatprep.subr.mxu0 0.0
    %1646 = vmatpush1.msra.mxu0 0.0
    %1647 = vmatprep.subr.mxu0 0.0
    %1648 = vmatpush1.msra.mxu0 0.0
    %1649 = vmatprep.subr.mxu0 0.0
    %1650 = vmatpush1.msra.mxu0 0.0
    %1651 = vmatprep.subr.mxu0 0.0
    %1652 = vmatpush1.msra.mxu0 0.0
    %1653 = vmatprep.subr.mxu0 0.0
    %1654 = vmatpush1.msra.mxu0 0.0
    %1655 = vmatprep.subr.mxu0 0.0
    %1656 = vmatpush1.msra.mxu0 0.0
    %1657 = vmatprep.subr.mxu0 0.0
    %1658 = vmatpush1.msra.mxu0 0.0
    %1659 = vmatprep.subr.mxu0 0.0
    %1660 = vmatpush1.msra.mxu0 0.0
    %1661 = vmatprep.subr.mxu0 0.0
    %1662 = vmatpush1.msra.mxu0 0.0
    %1663 = vmatprep.subr.mxu0 0.0
    %1664 = vmatpush1.msra.mxu0 0.0
    %1665 = vmatprep.subr.mxu0 0.0
    %1666 = vmatpush1.msra.mxu0 0.0
    %1667 = vmatprep.subr.mxu0 0.0
    %1668 = vmatpush1.msra.mxu0 0.0
    %1669 = vmatprep.subr.mxu0 0.0
    %1670 = vmatpush1.msra.mxu0 0.0
    %1671 = vmatprep.subr.mxu0 0.0
    %1672 = vmatpush1.msra.mxu0 %v127
    %1673 = vmatprep.subr.mxu0 0.0
    %1674 = vmatpush1.msra.mxu0 %v126
    %1675 = vmatprep.subr.mxu0 0.0
    %1676 = vmatpush2.msra.mxu0 0.0
    %1677 = vmatprep.subr.mxu0 0.0
    %1678 = vmatpush2.msra.mxu0 0.0
    %1679 = vmatprep.subr.mxu0 0.0
    %1680 = vmatpush2.msra.mxu0 0.0
    %1681 = vmatprep.subr.mxu0 0.0
    %1682 = vmatpush2.msra.mxu0 0.0
    %1683 = vmatprep.subr.mxu0 0.0
    %1684 = vmatpush2.msra.mxu0 0.0
    %1685 = vmatprep.subr.mxu0 0.0
    %1686 = vmatpush2.msra.mxu0 0.0
    %1687 = vmatprep.subr.mxu0 0.0
    %1688 = vmatpush2.msra.mxu0 0.0
    %1689 = vmatprep.subr.mxu0 0.0
    %1690 = vmatpush2.msra.mxu0 0.0
    %1691 = vmatprep.subr.mxu0 0.0
    %1692 = vmatpush2.msra.mxu0 0.0
    %1693 = vmatprep.subr.mxu0 0.0
    %1694 = vmatpush2.msra.mxu0 0.0
    %1695 = vmatprep.subr.mxu0 0.0
    %1696 = vmatpush2.msra.mxu0 0.0
    %1697 = vmatprep.subr.mxu0 0.0
    %1698 = vmatpush2.msra.mxu0 0.0
    %1699 = vmatprep.subr.mxu0 0.0
    %1700 = vmatpush2.msra.mxu0 0.0
    %1701 = vmatprep.subr.mxu0 0.0
    %1702 = vmatpush2.msra.mxu0 0.0
    %1703 = vmatprep.subr.mxu0 0.0
    %1704 = vmatpush2.msra.mxu0 0.0
    %1705 = vmatprep.subr.mxu0 0.0
    %1706 = vmatpush2.msra.mxu0 0.0
    %1707 = vmatprep.mubr.f32.mxu0 0.0
    %1708 = vmatmul.mubr.f32.gmra.mxu0 %v1641
    %v1709 = vpop.f32.mrf.mxu0
    %v1710 = vadd.f32 %v946, %v1709
    %v1711 = vpop.f32.mrf.mxu0
    %1712 = vdwg.mxu0
    %v1713 = vadd.f32 %v1457, 1e-16
    %v1714 = vadd.f32 %v1458, 1e-16
    %v1715 = vmul.f32 %v1713, %v1713
    %v1716 = vmul.f32 %v1714, %v1714
    %v1717 = vsel %vm836, %v1715, 0.0
    %1718 = vadd.xlane.f32.xlu0 %v1717
    %v1719 = vpop.xlane.xlu0 %1718
    %v1720 = vsel %vm836, %v1716, 0.0
    %1721 = vadd.xlane.f32.xlu0 %v1720
    %v1722 = vpop.xlane.xlu0 %1721
    %v1723 = vmax.f32 %v1719, 1e-16
    %v1724 = vmax.f32 %v1722, 1e-16
    %v1725 = vrsqrt.pop %v1723
    %v1726 = vrsqrt.pop %v1724
    %v1729 = vlaneseq
    %v1730 = vshrl.u32 %v1729, 7
    %v1731 = vsub.s32 %v1032, %v1730
    %v1732 = vrot.slane %v1725, %v1731
    %v1733 = vlaneseq
    %v1734 = vshrl.u32 %v1733, 7
    %v1735 = vsub.s32 %v1032, %v1734
    %v1736 = vrot.slane %v1726, %v1735
    %v1737 = vsel %vm1037, %v1736, %v1732
    %v1739 = vsel %vm1039, %v1736, %v1732
    %v1741 = vsel %vm1040, %v1737, %v1739
    %v1743 = vrot.slane %v1710, 6
    %1744 = vrot.lane.b32.xlu0 %v1743, 118
    %v1745 = vpop.permute.xlu0 %1744
    %v1747 = vsel %vm1040, %v1710, %v1745
    %v1748 = vmax.f32 %v1747, 0.0
    %vm1749 = vcmp.ne.f32.partialorder %v1747, %v1747
    %v1750 = vadd.f32 %v1747, 0.0
    %v1751 = vand.u32 2147483647, %v1747
    %v1752 = vsub.f32 0.0, %v1751
    %v1753 = vmul.f32 %v1752, 1.442695
    %v1754 = vpow.pop %v1753
    %v1755 = vadd.f32 %v1754, 1.0
    %v1756 = vlog2.pop %v1755
    %v1757 = vmul.f32 %v1756, 0.6931472
    %v1758 = vmul.f32 -0.5, %v1754
    %v1759 = vadd.f32 %v1758, 1.0
    %v1760 = vmul.f32 %v1759, %v1754
    %v1761 = vand.u32 2147483647, %v1754
    %vm1762 = vcmp.lt.f32.partialorder %v1761, 0.0004427343
    %v1763 = vsel %vm1762, %v1760, %v1757
    %v1764 = vadd.f32 %v1748, %v1763
    %v1765 = vsel %vm1749, %v1750, %v1764
    %v1766 = vxor.u32 %v1747, 2147483648
    %v1767 = vmul.f32 %v1766, 1.442695
    %v1768 = vpow.pop %v1767
    %v1769 = vadd.f32 %v1768, 1.0
    %v1770 = vrcp.pop %v1769
    %v1771 = vmul.f32 1.0, %v1770
    %v1772 = vadd.f32 %v1765, 1.0
    %v1773 = vsel %vm1073, %v1747, -inf
    %1774 = vmax.xlane.f32.xlu0 %v1773
    %v1775 = vpop.xlane.xlu0 %1774
    %v1776 = vsub.f32 %v1747, %v1775
    %v1777 = vmul.f32 %v1776, 1.442695
    %v1778 = vpow.pop %v1777
    %1780 = vrot.lane.b32.xlu0 %v1778, 122
    %v1781 = vpop.permute.xlu0 %1780
    %v1783 = vsel %vm1084, %v1781, 0.0
    %1784 = vadd.xlane.f32.xlu0 %v1783
    %v1785 = vpop.xlane.xlu0 %1784
    %v1786 = vrcp.pop %v1785
    %v1787 = vmul.f32 %v1778, %v1786
    %v1788 = vadd.f32 %v1747, 1e-16
    %v1791 = vunpack.c.l.s4 1966171168
    %v1792 = vunpack.c.0.s8 %v1791
    %v1793 = vlaneseq
    %v1794 = vshrl.u32 %v1793, 7
    %v1795 = vsub.s32 %v1792, %v1794
    %v1796 = vrot.slane %v1788, %v1795
    %v1797 = vcombine.high %v1796, %v1796
    %v1799 = vunpack.c.l.s4 1966171168
    %v1800 = vunpack.c.0.s8 %v1799
    %v1801 = vlaneseq
    %v1802 = vshrl.u32 %v1801, 7
    %v1803 = vsub.s32 %v1800, %v1802
    %v1804 = vrot.slane %v1796, %v1803
    %v1806 = vunpack.c.l.s4 1966171168
    %v1807 = vunpack.c.0.s8 %v1806
    %v1808 = vlaneseq
    %v1809 = vshrl.u32 %v1808, 7
    %v1810 = vsub.s32 %v1807, %v1809
    %v1811 = vrot.slane %v1797, %v1810
    %v1812 = vcombine.high %v1804, %v1804
    %v1813 = vcombine.high %v1811, %v1811
    %v1814 = vlaneseq
    %v1815 = vshrl.u32 %v1814, 7
    %v1816 = vsub.s32 0, %v1815
    %v1817 = vrot.slane %v1804, %v1816
    %v1818 = vlaneseq
    %v1819 = vshrl.u32 %v1818, 7
    %v1820 = vsub.s32 0, %v1819
    %v1821 = vrot.slane %v1811, %v1820
    %v1822 = vlaneseq
    %v1823 = vshrl.u32 %v1822, 7
    %v1824 = vsub.s32 0, %v1823
    %v1825 = vrot.slane %v1812, %v1824
    %v1826 = vlaneseq
    %v1827 = vshrl.u32 %v1826, 7
    %v1828 = vsub.s32 0, %v1827
    %v1829 = vrot.slane %v1813, %v1828
    %v1834 = vmul.f32 %v1713, %v1817
    %v1835 = vmul.f32 %v1714, %v1821
    %v1836 = vmul.f32 %v1713, %v1825
    %v1837 = vmul.f32 %v1714, %v1829
    %v1838 = vsel %vm836, %v1834, 0.0
    %1839 = vadd.xlane.f32.xlu0 %v1838
    %v1840 = vpop.xlane.xlu0 %1839
    %v1841 = vsel %vm836, %v1835, 0.0
    %1842 = vadd.xlane.f32.xlu0 %v1841
    %v1843 = vpop.xlane.xlu0 %1842
    %v1844 = vsel %vm836, %v1836, 0.0
    %1845 = vadd.xlane.f32.xlu0 %v1844
    %v1846 = vpop.xlane.xlu0 %1845
    %v1847 = vsel %vm836, %v1837, 0.0
    %1848 = vadd.xlane.f32.xlu0 %v1847
    %v1849 = vpop.xlane.xlu0 %1848
    %v1850 = vmul.f32 %v1788, %v1788
    %v1851 = vsel %vm1153, %v1850, 0.0
    %1852 = vadd.xlane.f32.xlu0 %v1851
    %v1853 = vpop.xlane.xlu0 %1852
    %v1854 = vmax.f32 %v1853, 1e-16
    %v1855 = vrsqrt.pop %v1854
    %v1856 = vmul.f32 %v1741, %v1855
    %v1858 = vlaneseq
    %v1859 = vshrl.u32 %v1858, 7
    %v1860 = vsub.s32 0, %v1859
    %v1861 = vrot.slane %v1856, %v1860
    %1863 = vbcast.lane.b32.xlu0 %v1861, 256
    %v1864 = vpop.permute.xlu0 %1863
    %v1865 = vlaneseq
    %v1866 = vshrl.u32 %v1865, 7
    %v1867 = vsub.s32 1, %v1866
    %v1868 = vrot.slane %v1856, %v1867
    %1870 = vbcast.lane.b32.xlu0 %v1868, 256
    %v1871 = vpop.permute.xlu0 %1870
    %v1872 = vlaneseq
    %v1873 = vshrl.u32 %v1872, 7
    %v1874 = vsub.s32 2, %v1873
    %v1875 = vrot.slane %v1856, %v1874
    %1877 = vbcast.lane.b32.xlu0 %v1875, 256
    %v1878 = vpop.permute.xlu0 %1877
    %v1879 = vlaneseq
    %v1880 = vshrl.u32 %v1879, 7
    %v1881 = vsub.s32 3, %v1880
    %v1882 = vrot.slane %v1856, %v1881
    %1884 = vbcast.lane.b32.xlu0 %v1882, 256
    %v1885 = vpop.permute.xlu0 %1884
    %v1890 = vmul.f32 %v1840, %v1864
    %v1891 = vmul.f32 %v1843, %v1871
    %v1892 = vmul.f32 %v1846, %v1878
    %v1893 = vmul.f32 %v1849, %v1885
    %1895 = vset.pattern.permute.xlu0 4
    %1896 = vperm.xlu0 %1895, %v1765
    %v1897 = vpop.permute.xlu0 %1896
    %1903 = vset.pattern.permute.xlu0 0
    %1904 = vperm.xlu0 %1903, %v1890
    %v1905 = vpop.permute.xlu0 %1904
    %1906 = vset.pattern.permute.xlu0 0
    %1907 = vperm.xlu0 %1906, %v1891
    %v1908 = vpop.permute.xlu0 %1907
    %1909 = vset.pattern.permute.xlu0 0
    %1910 = vperm.xlu0 %1909, %v1892
    %v1911 = vpop.permute.xlu0 %1910
    %1912 = vset.pattern.permute.xlu0 0
    %1913 = vperm.xlu0 %1912, %v1893
    %v1914 = vpop.permute.xlu0 %1913
    %v1915 = vlaneseq
    %v1916 = vshrl.u32 %v1915, 7
    %v1917 = vsub.s32 %v1032, %v1916
    %v1918 = vrot.slane %v1905, %v1917
    %v1919 = vlaneseq
    %v1920 = vshrl.u32 %v1919, 7
    %v1921 = vsub.s32 %v1032, %v1920
    %v1922 = vrot.slane %v1908, %v1921
    %v1923 = vlaneseq
    %v1924 = vshrl.u32 %v1923, 7
    %v1925 = vsub.s32 %v1032, %v1924
    %v1926 = vrot.slane %v1911, %v1925
    %v1927 = vlaneseq
    %v1928 = vshrl.u32 %v1927, 7
    %v1929 = vsub.s32 %v1032, %v1928
    %v1930 = vrot.slane %v1914, %v1929
    %v1931 = vsel %vm1037, %v1922, %v1918
    %v1932 = vsel %vm1235, %v1926, %v1931
    %v1933 = vsel %vm1039, %v1930, %v1932
    %v1935 = vmul.f32 %v1897, %v1933
    %v1936 = vsel %vm1240, %v1935, -inf
    %1937 = vmax.xlane.f32.xlu0 %v1936
    %v1938 = vpop.xlane.xlu0 %1937
    %v1939 = vsub.f32 %v1935, %v1938
    %v1940 = vmul.f32 %v1939, 1.442695
    %v1941 = vpow.pop %v1940
    %v1942 = vsel %vm1240, %v1941, 0.0
    %1943 = vadd.xlane.f32.xlu0 %v1942
    %v1944 = vpop.xlane.xlu0 %1943
    %v1945 = vrcp.pop %v1944
    %v1946 = vmul.f32 %v1941, %v1945
    %1948 = vset.pattern.permute.xlu0 5
    %1949 = vperm.xlu0 %1948, %v1771
    %v1950 = vpop.permute.xlu0 %1949
    %v1952 = vmul.f32 %v1950, %v1946
    %v1953 = vsub.f32 1.0, %v1771
    %1955 = vset.pattern.permute.xlu0 5
    %1956 = vperm.xlu0 %1955, %v1953
    %v1957 = vpop.permute.xlu0 %1956
    %v1959 = vmul.f32 %v1957, %v1317
    %v1960 = vadd.f32 %v1952, %v1959
    %1962 = vrot.lane.b32.xlu0 %v1960, 121
    %v1963 = vpop.permute.xlu0 %1962
    %1965 = vrot.lane.b32.xlu0 %v1960, 1
    %v1966 = vpop.permute.xlu0 %1965
    %v1968 = vsel %vm1273, %v1963, %v1966
    %1969 = vrot.lane.b32.xlu0 %v1960, 127
    %v1970 = vpop.permute.xlu0 %1969
    %1972 = vrot.lane.b32.xlu0 %v1960, 7
    %v1973 = vpop.permute.xlu0 %1972
    %v1975 = vsel %vm1281, %v1970, %v1973
    %1977 = vset.pattern.permute.xlu0 6
    %1978 = vperm.xlu0 %1977, %v1787
    %v1979 = vpop.permute.xlu0 %1978
    %v1981 = vmul.f32 %v1979, %v1968
    %1982 = vset.pattern.permute.xlu0 7
    %1983 = vperm.xlu0 %1982, %v1787
    %v1984 = vpop.permute.xlu0 %1983
    %v1986 = vmul.f32 %v1984, %v1960
    %v1987 = vadd.f32 %v1981, %v1986
    %1988 = vset.pattern.permute.xlu0 8
    %1989 = vperm.xlu0 %1988, %v1787
    %v1990 = vpop.permute.xlu0 %1989
    %v1992 = vmul.f32 %v1990, %v1975
    %v1993 = vadd.f32 %v1987, %v1992
    %v1994 = vmax.f32 %v1993, 1e-30
    %v1995 = vlog2.pop %v1994
    %v1996 = vmul.f32 %v1995, 0.6931472
    %1998 = vset.pattern.permute.xlu0 9
    %1999 = vperm.xlu0 %1998, %v1772
    %v2000 = vpop.permute.xlu0 %1999
    %v2002 = vmul.f32 %v2000, %v1996
    %v2003 = vmul.f32 %v2002, 1.442695
    %v2004 = vpow.pop %v2003
    %v2005 = vsel %vm1240, %v2004, 0.0
    %2006 = vadd.xlane.f32.xlu0 %v2005
    %v2007 = vpop.xlane.xlu0 %2006
    %v2008 = vadd.f32 %v2007, 1e-16
    %v2009 = vrcp.pop %v2008
    %v2010 = vmul.f32 %v2004, %v2009
    %v2011 = vlaneseq
    %v2012 = vshrl.u32 %v2011, 7
    %v2013 = vsub.s32 0, %v2012
    %v2014 = vrot.slane %v2010, %v2013
    %2016 = vbcast.lane.b32.xlu0 %v2014, 256
    %v2017 = vpop.permute.xlu0 %2016
    %v2018 = vlaneseq
    %v2019 = vshrl.u32 %v2018, 7
    %v2020 = vsub.s32 1, %v2019
    %v2021 = vrot.slane %v2010, %v2020
    %2023 = vbcast.lane.b32.xlu0 %v2021, 256
    %v2024 = vpop.permute.xlu0 %2023
    %v2025 = vmul.f32 %v2017, %v1457
    %v2026 = vmul.f32 %v2024, %v1458
    %v2027 = vsel %vm836, %v2025, 0.0
    %v2028 = vrot.slane %v2027, 4
    %v2029 = vadd.f32 %v2027, %v2028
    %v2030 = vrot.slane %v2029, 2
    %v2031 = vadd.f32 %v2029, %v2030
    %v2032 = vrot.slane %v2031, 1
    %v2033 = vadd.f32 %v2031, %v2032
    %v2034 = vsel %vm836, %v2026, 0.0
    %v2035 = vrot.slane %v2034, 4
    %v2036 = vadd.f32 %v2034, %v2035
    %v2037 = vrot.slane %v2036, 2
    %v2038 = vadd.f32 %v2036, %v2037
    %v2039 = vrot.slane %v2038, 1
    %v2040 = vadd.f32 %v2038, %v2039
    %v2041 = vxor.u32 %v1710, 2147483648
    %v2042 = vmul.f32 %v2041, 1.442695
    %v2043 = vpow.pop %v2042
    %v2044 = vadd.f32 %v2043, 1.0
    %v2045 = vrcp.pop %v2044
    %v2046 = vmul.f32 1.0, %v2045
    %v2047 = vlaneseq
    %v2048 = vshrl.u32 %v2047, 7
    %v2049 = vsub.s32 2, %v2048
    %v2050 = vrot.slane %v2010, %v2049
    %2052 = vbcast.lane.b32.xlu0 %v2050, 256
    %v2053 = vpop.permute.xlu0 %2052
    %v2054 = vlaneseq
    %v2055 = vshrl.u32 %v2054, 7
    %v2056 = vsub.s32 3, %v2055
    %v2057 = vrot.slane %v2010, %v2056
    %2059 = vbcast.lane.b32.xlu0 %v2057, 256
    %v2060 = vpop.permute.xlu0 %2059
    %v2063 = vunpack.c.l.s4 1966171168
    %v2064 = vunpack.c.0.s8 %v2063
    %v2065 = vlaneseq
    %v2066 = vshrl.u32 %v2065, 7
    %v2067 = vsub.s32 %v2064, %v2066
    %v2068 = vrot.slane %v2046, %v2067
    %v2069 = vcombine.high %v2068, %v2068
    %v2071 = vunpack.c.l.s4 1966171168
    %v2072 = vunpack.c.0.s8 %v2071
    %v2073 = vlaneseq
    %v2074 = vshrl.u32 %v2073, 7
    %v2075 = vsub.s32 %v2072, %v2074
    %v2076 = vrot.slane %v2068, %v2075
    %v2078 = vunpack.c.l.s4 1966171168
    %v2079 = vunpack.c.0.s8 %v2078
    %v2080 = vlaneseq
    %v2081 = vshrl.u32 %v2080, 7
    %v2082 = vsub.s32 %v2079, %v2081
    %v2083 = vrot.slane %v2069, %v2082
    %v2084 = vlaneseq
    %v2085 = vshrl.u32 %v2084, 7
    %v2086 = vsub.s32 0, %v2085
    %v2087 = vrot.slane %v2076, %v2086
    %v2088 = vlaneseq
    %v2089 = vshrl.u32 %v2088, 7
    %v2090 = vsub.s32 0, %v2089
    %v2091 = vrot.slane %v2083, %v2090
    %v2094 = vmul.f32 %v2053, %v2087
    %v2095 = vmul.f32 %v2060, %v2091
    %v2096 = vsub.f32 1.0, %v2094
    %v2097 = vsub.f32 1.0, %v2095
    %2100 = vrot.lane.b32.xlu0 %v2096, 108
    %v2101 = vpop.permute.xlu0 %2100
    %2102 = vrot.lane.b32.xlu0 %v2097, 108
    %v2103 = vpop.permute.xlu0 %2102
    %v2106 = vmul.f32 %v1457, %v2101
    %v2107 = vmul.f32 %v1458, %v2103
    %v2109 = vunpack.c.l.s4 1966171168
    %v2110 = vunpack.c.0.s8 %v2109
    %v2111 = vlaneseq
    %v2112 = vshrl.u32 %v2111, 7
    %v2113 = vsub.s32 %v2110, %v2112
    %v2114 = vrot.slane %v1710, %v2113
    %v2115 = vcombine.high %v2114, %v2114
    %v2117 = vunpack.c.l.s4 1966171168
    %v2118 = vunpack.c.0.s8 %v2117
    %v2119 = vlaneseq
    %v2120 = vshrl.u32 %v2119, 7
    %v2121 = vsub.s32 %v2118, %v2120
    %v2122 = vrot.slane %v2114, %v2121
    %v2124 = vunpack.c.l.s4 1966171168
    %v2125 = vunpack.c.0.s8 %v2124
    %v2126 = vlaneseq
    %v2127 = vshrl.u32 %v2126, 7
    %v2128 = vsub.s32 %v2125, %v2127
    %v2129 = vrot.slane %v2115, %v2128
    %v2130 = vlaneseq
    %v2131 = vshrl.u32 %v2130, 7
    %v2132 = vsub.s32 0, %v2131
    %v2133 = vrot.slane %v2122, %v2132
    %v2134 = vlaneseq
    %v2135 = vshrl.u32 %v2134, 7
    %v2136 = vsub.s32 0, %v2135
    %v2137 = vrot.slane %v2129, %v2136
    %v2140 = vmul.f32 %v2053, %v2133
    %v2141 = vmul.f32 %v2060, %v2137
    %2144 = vrot.lane.b32.xlu0 %v2140, 104
    %v2145 = vpop.permute.xlu0 %2144
    %2146 = vrot.lane.b32.xlu0 %v2141, 104
    %v2147 = vpop.permute.xlu0 %2146
    %v2150 = vadd.f32 %v2106, %v2145
    %v2151 = vadd.f32 %v2107, %v2147
    %v2155 = vsel %vm1037, %v2040, %v2033
    %2156 = vrot.lane.b32.xlu0 %v2155, 16
    %v2157 = vpop.permute.xlu0 %2156
    %v2159 = vsel %vm761, %v1640, %v2157
    %s2160 = scalar_lea.vmem [#allocation14], 2
    %2161 = vst.msk [vmem:[%s2160] sm:$0x3] %vm1467, %v2159
    %v2162 = vld [vmem:[%s364] sm:$0x3]
    %2163 = vmatprep.subr.mxu0 0.0
    %2164 = vmatpush1.msra.mxu0 0.0
    %2165 = vmatprep.subr.mxu0 0.0
    %2166 = vmatpush1.msra.mxu0 0.0
    %2167 = vmatprep.subr.mxu0 0.0
    %2168 = vmatpush1.msra.mxu0 0.0
    %2169 = vmatprep.subr.mxu0 0.0
    %2170 = vmatpush1.msra.mxu0 0.0
    %2171 = vmatprep.subr.mxu0 0.0
    %2172 = vmatpush1.msra.mxu0 0.0
    %2173 = vmatprep.subr.mxu0 0.0
    %2174 = vmatpush1.msra.mxu0 0.0
    %2175 = vmatprep.subr.mxu0 0.0
    %2176 = vmatpush1.msra.mxu0 0.0
    %2177 = vmatprep.subr.mxu0 0.0
    %2178 = vmatpush1.msra.mxu0 0.0
    %2179 = vmatprep.subr.mxu0 0.0
    %2180 = vmatpush1.msra.mxu0 0.0
    %2181 = vmatprep.subr.mxu0 0.0
    %2182 = vmatpush1.msra.mxu0 0.0
    %2183 = vmatprep.subr.mxu0 0.0
    %2184 = vmatpush1.msra.mxu0 0.0
    %2185 = vmatprep.subr.mxu0 0.0
    %2186 = vmatpush1.msra.mxu0 0.0
    %2187 = vmatprep.subr.mxu0 0.0
    %2188 = vmatpush1.msra.mxu0 0.0
    %2189 = vmatprep.subr.mxu0 0.0
    %2190 = vmatpush1.msra.mxu0 0.0
    %2191 = vmatprep.subr.mxu0 0.0
    %2192 = vmatpush1.msra.mxu0 %v124
    %2193 = vmatprep.subr.mxu0 0.0
    %2194 = vmatpush1.msra.mxu0 %v123
    %2195 = vmatprep.subr.mxu0 0.0
    %2196 = vmatpush2.msra.mxu0 0.0
    %2197 = vmatprep.subr.mxu0 0.0
    %2198 = vmatpush2.msra.mxu0 0.0
    %2199 = vmatprep.subr.mxu0 0.0
    %2200 = vmatpush2.msra.mxu0 0.0
    %2201 = vmatprep.subr.mxu0 0.0
    %2202 = vmatpush2.msra.mxu0 0.0
    %2203 = vmatprep.subr.mxu0 0.0
    %2204 = vmatpush2.msra.mxu0 0.0
    %2205 = vmatprep.subr.mxu0 0.0
    %2206 = vmatpush2.msra.mxu0 0.0
    %2207 = vmatprep.subr.mxu0 0.0
    %2208 = vmatpush2.msra.mxu0 0.0
    %2209 = vmatprep.subr.mxu0 0.0
    %2210 = vmatpush2.msra.mxu0 0.0
    %2211 = vmatprep.subr.mxu0 0.0
    %2212 = vmatpush2.msra.mxu0 0.0
    %2213 = vmatprep.subr.mxu0 0.0
    %2214 = vmatpush2.msra.mxu0 0.0
    %2215 = vmatprep.subr.mxu0 0.0
    %2216 = vmatpush2.msra.mxu0 0.0
    %2217 = vmatprep.subr.mxu0 0.0
    %2218 = vmatpush2.msra.mxu0 0.0
    %2219 = vmatprep.subr.mxu0 0.0
    %2220 = vmatpush2.msra.mxu0 0.0
    %2221 = vmatprep.subr.mxu0 0.0
    %2222 = vmatpush2.msra.mxu0 0.0
    %2223 = vmatprep.subr.mxu0 0.0
    %2224 = vmatpush2.msra.mxu0 0.0
    %2225 = vmatprep.subr.mxu0 0.0
    %2226 = vmatpush2.msra.mxu0 0.0
    %2227 = vmatprep.mubr.f32.mxu0 0.0
    %2228 = vmatmul.mubr.f32.gmra.mxu0 %v1641
    %v2229 = vpop.f32.mrf.mxu0
    %v2230 = vadd.f32 0.0, %v2229
    %v2231 = vpop.f32.mrf.mxu0
    %2232 = vdwg.mxu0
    %v2233 = vadd.f32 %v2162, %v2230
    %v2234 = vsel %vm836, %v2155, 0
    %2236 = vmatprep.subr.mxu0 0.0
    %2237 = vmatpush1.msra.mxu0 0.0
    %2238 = vmatprep.subr.mxu0 0.0
    %2239 = vmatpush1.msra.mxu0 0.0
    %2240 = vmatprep.subr.mxu0 0.0
    %2241 = vmatpush1.msra.mxu0 0.0
    %2242 = vmatprep.subr.mxu0 0.0
    %2243 = vmatpush1.msra.mxu0 0.0
    %2244 = vmatprep.subr.mxu0 0.0
    %2245 = vmatpush1.msra.mxu0 0.0
    %2246 = vmatprep.subr.mxu0 0.0
    %2247 = vmatpush1.msra.mxu0 0.0
    %2248 = vmatprep.subr.mxu0 0.0
    %2249 = vmatpush1.msra.mxu0 0.0
    %2250 = vmatprep.subr.mxu0 0.0
    %2251 = vmatpush1.msra.mxu0 0.0
    %2252 = vmatprep.subr.mxu0 0.0
    %2253 = vmatpush1.msra.mxu0 0.0
    %2254 = vmatprep.subr.mxu0 0.0
    %2255 = vmatpush1.msra.mxu0 0.0
    %2256 = vmatprep.subr.mxu0 0.0
    %2257 = vmatpush1.msra.mxu0 0.0
    %2258 = vmatprep.subr.mxu0 0.0
    %2259 = vmatpush1.msra.mxu0 0.0
    %2260 = vmatprep.subr.mxu0 0.0
    %2261 = vmatpush1.msra.mxu0 0.0
    %2262 = vmatprep.subr.mxu0 0.0
    %2263 = vmatpush1.msra.mxu0 0.0
    %2264 = vmatprep.subr.mxu0 0.0
    %2265 = vmatpush1.msra.mxu0 0.0
    %2266 = vmatprep.subr.mxu0 0.0
    %2267 = vmatpush1.msra.mxu0 %v841
    %2268 = vmatprep.subr.mxu0 0.0
    %2269 = vmatpush2.msra.mxu0 0.0
    %2270 = vmatprep.subr.mxu0 0.0
    %2271 = vmatpush2.msra.mxu0 0.0
    %2272 = vmatprep.subr.mxu0 0.0
    %2273 = vmatpush2.msra.mxu0 0.0
    %2274 = vmatprep.subr.mxu0 0.0
    %2275 = vmatpush2.msra.mxu0 0.0
    %2276 = vmatprep.subr.mxu0 0.0
    %2277 = vmatpush2.msra.mxu0 0.0
    %2278 = vmatprep.subr.mxu0 0.0
    %2279 = vmatpush2.msra.mxu0 0.0
    %2280 = vmatprep.subr.mxu0 0.0
    %2281 = vmatpush2.msra.mxu0 0.0
    %2282 = vmatprep.subr.mxu0 0.0
    %2283 = vmatpush2.msra.mxu0 0.0
    %2284 = vmatprep.subr.mxu0 0.0
    %2285 = vmatpush2.msra.mxu0 0.0
    %2286 = vmatprep.subr.mxu0 0.0
    %2287 = vmatpush2.msra.mxu0 0.0
    %2288 = vmatprep.subr.mxu0 0.0
    %2289 = vmatpush2.msra.mxu0 0.0
    %2290 = vmatprep.subr.mxu0 0.0
    %2291 = vmatpush2.msra.mxu0 0.0
    %2292 = vmatprep.subr.mxu0 0.0
    %2293 = vmatpush2.msra.mxu0 0.0
    %2294 = vmatprep.subr.mxu0 0.0
    %2295 = vmatpush2.msra.mxu0 0.0
    %2296 = vmatprep.subr.mxu0 0.0
    %2297 = vmatpush2.msra.mxu0 0.0
    %2298 = vmatprep.subr.mxu0 0.0
    %2299 = vmatpush2.msra.mxu0 0.0
    %2300 = vmatprep.mubr.f32.mxu0 0.0
    %2301 = vmatmul.mubr.f32.gmra.mxu0 %v2234
    %v2302 = vpop.f32.mrf.mxu0
    %v2303 = vadd.f32 0.0, %v2302
    %v2304 = vpop.f32.mrf.mxu0
    %2305 = vdwg.mxu0
    %v2306 = vadd.f32 %v2233, %v2303
    %v2307 = vxor.u32 %v2306, 2147483648
    %v2308 = vmul.f32 %v2307, 1.442695
    %v2309 = vpow.pop %v2308
    %v2310 = vadd.f32 %v2309, 1.0
    %v2311 = vrcp.pop %v2310
    %v2312 = vmul.f32 1.0, %v2311
    %v2313 = vtanh.pop %v2306
    %v2314 = vmul.f32 %v2312, %v1631
    %2316 = vrot.lane.b32.xlu0 %v2313, 96
    %v2317 = vpop.permute.xlu0 %2316
    %v2319 = vmul.f32 %v2312, %v2317
    %2321 = vrot.lane.b32.xlu0 %v2319, 16
    %v2322 = vpop.permute.xlu0 %2321
    %v2324 = vadd.f32 %v2314, %v2322
    %v2325 = vtanh.pop %v2324
    %2327 = vrot.lane.b32.xlu0 %v2325, 32
    %v2328 = vpop.permute.xlu0 %2327
    %v2330 = vmul.f32 %v2312, %v2328
    %2332 = vrot.lane.b32.xlu0 %v2330, 80
    %v2333 = vpop.permute.xlu0 %2332
    %v2334 = vsel %vm761, %v2333, 0
    %2336 = vmatprep.subr.mxu0 0.0
    %2337 = vmatpush1.msra.mxu0 0.0
    %2338 = vmatprep.subr.mxu0 0.0
    %2339 = vmatpush1.msra.mxu0 0.0
    %2340 = vmatprep.subr.mxu0 0.0
    %2341 = vmatpush1.msra.mxu0 0.0
    %2342 = vmatprep.subr.mxu0 0.0
    %2343 = vmatpush1.msra.mxu0 0.0
    %2344 = vmatprep.subr.mxu0 0.0
    %2345 = vmatpush1.msra.mxu0 0.0
    %2346 = vmatprep.subr.mxu0 0.0
    %2347 = vmatpush1.msra.mxu0 0.0
    %2348 = vmatprep.subr.mxu0 0.0
    %2349 = vmatpush1.msra.mxu0 0.0
    %2350 = vmatprep.subr.mxu0 0.0
    %2351 = vmatpush1.msra.mxu0 0.0
    %2352 = vmatprep.subr.mxu0 0.0
    %2353 = vmatpush1.msra.mxu0 0.0
    %2354 = vmatprep.subr.mxu0 0.0
    %2355 = vmatpush1.msra.mxu0 0.0
    %2356 = vmatprep.subr.mxu0 0.0
    %2357 = vmatpush1.msra.mxu0 0.0
    %2358 = vmatprep.subr.mxu0 0.0
    %2359 = vmatpush1.msra.mxu0 0.0
    %2360 = vmatprep.subr.mxu0 0.0
    %2361 = vmatpush1.msra.mxu0 0.0
    %2362 = vmatprep.subr.mxu0 0.0
    %2363 = vmatpush1.msra.mxu0 0.0
    %2364 = vmatprep.subr.mxu0 0.0
    %2365 = vmatpush1.msra.mxu0 %v127
    %2366 = vmatprep.subr.mxu0 0.0
    %2367 = vmatpush1.msra.mxu0 %v126
    %2368 = vmatprep.subr.mxu0 0.0
    %2369 = vmatpush2.msra.mxu0 0.0
    %2370 = vmatprep.subr.mxu0 0.0
    %2371 = vmatpush2.msra.mxu0 0.0
    %2372 = vmatprep.subr.mxu0 0.0
    %2373 = vmatpush2.msra.mxu0 0.0
    %2374 = vmatprep.subr.mxu0 0.0
    %2375 = vmatpush2.msra.mxu0 0.0
    %2376 = vmatprep.subr.mxu0 0.0
    %2377 = vmatpush2.msra.mxu0 0.0
    %2378 = vmatprep.subr.mxu0 0.0
    %2379 = vmatpush2.msra.mxu0 0.0
    %2380 = vmatprep.subr.mxu0 0.0
    %2381 = vmatpush2.msra.mxu0 0.0
    %2382 = vmatprep.subr.mxu0 0.0
    %2383 = vmatpush2.msra.mxu0 0.0
    %2384 = vmatprep.subr.mxu0 0.0
    %2385 = vmatpush2.msra.mxu0 0.0
    %2386 = vmatprep.subr.mxu0 0.0
    %2387 = vmatpush2.msra.mxu0 0.0
    %2388 = vmatprep.subr.mxu0 0.0
    %2389 = vmatpush2.msra.mxu0 0.0
    %2390 = vmatprep.subr.mxu0 0.0
    %2391 = vmatpush2.msra.mxu0 0.0
    %2392 = vmatprep.subr.mxu0 0.0
    %2393 = vmatpush2.msra.mxu0 0.0
    %2394 = vmatprep.subr.mxu0 0.0
    %2395 = vmatpush2.msra.mxu0 0.0
    %2396 = vmatprep.subr.mxu0 0.0
    %2397 = vmatpush2.msra.mxu0 0.0
    %2398 = vmatprep.subr.mxu0 0.0
    %2399 = vmatpush2.msra.mxu0 0.0
    %2400 = vmatprep.mubr.f32.mxu0 0.0
    %2401 = vmatmul.mubr.f32.gmra.mxu0 %v2334
    %v2402 = vpop.f32.mrf.mxu0
    %v2403 = vadd.f32 %v946, %v2402
    %v2404 = vpop.f32.mrf.mxu0
    %2405 = vdwg.mxu0
    %v2406 = vadd.f32 %v2150, 1e-16
    %v2407 = vadd.f32 %v2151, 1e-16
    %v2408 = vmul.f32 %v2406, %v2406
    %v2409 = vmul.f32 %v2407, %v2407
    %v2410 = vsel %vm836, %v2408, 0.0
    %2411 = vadd.xlane.f32.xlu0 %v2410
    %v2412 = vpop.xlane.xlu0 %2411
    %v2413 = vsel %vm836, %v2409, 0.0
    %2414 = vadd.xlane.f32.xlu0 %v2413
    %v2415 = vpop.xlane.xlu0 %2414
    %v2416 = vmax.f32 %v2412, 1e-16
    %v2417 = vmax.f32 %v2415, 1e-16
    %v2418 = vrsqrt.pop %v2416
    %v2419 = vrsqrt.pop %v2417
    %v2422 = vlaneseq
    %v2423 = vshrl.u32 %v2422, 7
    %v2424 = vsub.s32 %v1032, %v2423
    %v2425 = vrot.slane %v2418, %v2424
    %v2426 = vlaneseq
    %v2427 = vshrl.u32 %v2426, 7
    %v2428 = vsub.s32 %v1032, %v2427
    %v2429 = vrot.slane %v2419, %v2428
    %v2430 = vsel %vm1037, %v2429, %v2425
    %v2432 = vsel %vm1039, %v2429, %v2425
    %v2434 = vsel %vm1040, %v2430, %v2432
    %v2436 = vrot.slane %v2403, 6
    %2437 = vrot.lane.b32.xlu0 %v2436, 118
    %v2438 = vpop.permute.xlu0 %2437
    %v2440 = vsel %vm1040, %v2403, %v2438
    %v2441 = vmax.f32 %v2440, 0.0
    %vm2442 = vcmp.ne.f32.partialorder %v2440, %v2440
    %v2443 = vadd.f32 %v2440, 0.0
    %v2444 = vand.u32 2147483647, %v2440
    %v2445 = vsub.f32 0.0, %v2444
    %v2446 = vmul.f32 %v2445, 1.442695
    %v2447 = vpow.pop %v2446
    %v2448 = vadd.f32 %v2447, 1.0
    %v2449 = vlog2.pop %v2448
    %v2450 = vmul.f32 %v2449, 0.6931472
    %v2451 = vmul.f32 -0.5, %v2447
    %v2452 = vadd.f32 %v2451, 1.0
    %v2453 = vmul.f32 %v2452, %v2447
    %v2454 = vand.u32 2147483647, %v2447
    %vm2455 = vcmp.lt.f32.partialorder %v2454, 0.0004427343
    %v2456 = vsel %vm2455, %v2453, %v2450
    %v2457 = vadd.f32 %v2441, %v2456
    %v2458 = vsel %vm2442, %v2443, %v2457
    %v2459 = vxor.u32 %v2440, 2147483648
    %v2460 = vmul.f32 %v2459, 1.442695
    %v2461 = vpow.pop %v2460
    %v2462 = vadd.f32 %v2461, 1.0
    %v2463 = vrcp.pop %v2462
    %v2464 = vmul.f32 1.0, %v2463
    %v2465 = vadd.f32 %v2458, 1.0
    %v2466 = vsel %vm1073, %v2440, -inf
    %2467 = vmax.xlane.f32.xlu0 %v2466
    %v2468 = vpop.xlane.xlu0 %2467
    %v2469 = vsub.f32 %v2440, %v2468
    %v2470 = vmul.f32 %v2469, 1.442695
    %v2471 = vpow.pop %v2470
    %2473 = vrot.lane.b32.xlu0 %v2471, 122
    %v2474 = vpop.permute.xlu0 %2473
    %v2476 = vsel %vm1084, %v2474, 0.0
    %2477 = vadd.xlane.f32.xlu0 %v2476
    %v2478 = vpop.xlane.xlu0 %2477
    %v2479 = vrcp.pop %v2478
    %v2480 = vmul.f32 %v2471, %v2479
    %v2481 = vadd.f32 %v2440, 1e-16
    %v2484 = vunpack.c.l.s4 1966171168
    %v2485 = vunpack.c.0.s8 %v2484
    %v2486 = vlaneseq
    %v2487 = vshrl.u32 %v2486, 7
    %v2488 = vsub.s32 %v2485, %v2487
    %v2489 = vrot.slane %v2481, %v2488
    %v2490 = vcombine.high %v2489, %v2489
    %v2492 = vunpack.c.l.s4 1966171168
    %v2493 = vunpack.c.0.s8 %v2492
    %v2494 = vlaneseq
    %v2495 = vshrl.u32 %v2494, 7
    %v2496 = vsub.s32 %v2493, %v2495
    %v2497 = vrot.slane %v2489, %v2496
    %v2499 = vunpack.c.l.s4 1966171168
    %v2500 = vunpack.c.0.s8 %v2499
    %v2501 = vlaneseq
    %v2502 = vshrl.u32 %v2501, 7
    %v2503 = vsub.s32 %v2500, %v2502
    %v2504 = vrot.slane %v2490, %v2503
    %v2505 = vcombine.high %v2497, %v2497
    %v2506 = vcombine.high %v2504, %v2504
    %v2507 = vlaneseq
    %v2508 = vshrl.u32 %v2507, 7
    %v2509 = vsub.s32 0, %v2508
    %v2510 = vrot.slane %v2497, %v2509
    %v2511 = vlaneseq
    %v2512 = vshrl.u32 %v2511, 7
    %v2513 = vsub.s32 0, %v2512
    %v2514 = vrot.slane %v2504, %v2513
    %v2515 = vlaneseq
    %v2516 = vshrl.u32 %v2515, 7
    %v2517 = vsub.s32 0, %v2516
    %v2518 = vrot.slane %v2505, %v2517
    %v2519 = vlaneseq
    %v2520 = vshrl.u32 %v2519, 7
    %v2521 = vsub.s32 0, %v2520
    %v2522 = vrot.slane %v2506, %v2521
    %v2527 = vmul.f32 %v2406, %v2510
    %v2528 = vmul.f32 %v2407, %v2514
    %v2529 = vmul.f32 %v2406, %v2518
    %v2530 = vmul.f32 %v2407, %v2522
    %v2531 = vsel %vm836, %v2527, 0.0
    %2532 = vadd.xlane.f32.xlu0 %v2531
    %v2533 = vpop.xlane.xlu0 %2532
    %v2534 = vsel %vm836, %v2528, 0.0
    %2535 = vadd.xlane.f32.xlu0 %v2534
    %v2536 = vpop.xlane.xlu0 %2535
    %v2537 = vsel %vm836, %v2529, 0.0
    %2538 = vadd.xlane.f32.xlu0 %v2537
    %v2539 = vpop.xlane.xlu0 %2538
    %v2540 = vsel %vm836, %v2530, 0.0
    %2541 = vadd.xlane.f32.xlu0 %v2540
    %v2542 = vpop.xlane.xlu0 %2541
    %v2543 = vmul.f32 %v2481, %v2481
    %v2544 = vsel %vm1153, %v2543, 0.0
    %2545 = vadd.xlane.f32.xlu0 %v2544
    %v2546 = vpop.xlane.xlu0 %2545
    %v2547 = vmax.f32 %v2546, 1e-16
    %v2548 = vrsqrt.pop %v2547
    %v2549 = vmul.f32 %v2434, %v2548
    %v2551 = vlaneseq
    %v2552 = vshrl.u32 %v2551, 7
    %v2553 = vsub.s32 0, %v2552
    %v2554 = vrot.slane %v2549, %v2553
    %2556 = vbcast.lane.b32.xlu0 %v2554, 256
    %v2557 = vpop.permute.xlu0 %2556
    %v2558 = vlaneseq
    %v2559 = vshrl.u32 %v2558, 7
    %v2560 = vsub.s32 1, %v2559
    %v2561 = vrot.slane %v2549, %v2560
    %2563 = vbcast.lane.b32.xlu0 %v2561, 256
    %v2564 = vpop.permute.xlu0 %2563
    %v2565 = vlaneseq
    %v2566 = vshrl.u32 %v2565, 7
    %v2567 = vsub.s32 2, %v2566
    %v2568 = vrot.slane %v2549, %v2567
    %2570 = vbcast.lane.b32.xlu0 %v2568, 256
    %v2571 = vpop.permute.xlu0 %2570
    %v2572 = vlaneseq
    %v2573 = vshrl.u32 %v2572, 7
    %v2574 = vsub.s32 3, %v2573
    %v2575 = vrot.slane %v2549, %v2574
    %2577 = vbcast.lane.b32.xlu0 %v2575, 256
    %v2578 = vpop.permute.xlu0 %2577
    %v2583 = vmul.f32 %v2533, %v2557
    %v2584 = vmul.f32 %v2536, %v2564
    %v2585 = vmul.f32 %v2539, %v2571
    %v2586 = vmul.f32 %v2542, %v2578
    %2588 = vset.pattern.permute.xlu0 4
    %2589 = vperm.xlu0 %2588, %v2458
    %v2590 = vpop.permute.xlu0 %2589
    %2596 = vset.pattern.permute.xlu0 0
    %2597 = vperm.xlu0 %2596, %v2583
    %v2598 = vpop.permute.xlu0 %2597
    %2599 = vset.pattern.permute.xlu0 0
    %2600 = vperm.xlu0 %2599, %v2584
    %v2601 = vpop.permute.xlu0 %2600
    %2602 = vset.pattern.permute.xlu0 0
    %2603 = vperm.xlu0 %2602, %v2585
    %v2604 = vpop.permute.xlu0 %2603
    %2605 = vset.pattern.permute.xlu0 0
    %2606 = vperm.xlu0 %2605, %v2586
    %v2607 = vpop.permute.xlu0 %2606
    %v2608 = vlaneseq
    %v2609 = vshrl.u32 %v2608, 7
    %v2610 = vsub.s32 %v1032, %v2609
    %v2611 = vrot.slane %v2598, %v2610
    %v2612 = vlaneseq
    %v2613 = vshrl.u32 %v2612, 7
    %v2614 = vsub.s32 %v1032, %v2613
    %v2615 = vrot.slane %v2601, %v2614
    %v2616 = vlaneseq
    %v2617 = vshrl.u32 %v2616, 7
    %v2618 = vsub.s32 %v1032, %v2617
    %v2619 = vrot.slane %v2604, %v2618
    %v2620 = vlaneseq
    %v2621 = vshrl.u32 %v2620, 7
    %v2622 = vsub.s32 %v1032, %v2621
    %v2623 = vrot.slane %v2607, %v2622
    %v2624 = vsel %vm1037, %v2615, %v2611
    %v2625 = vsel %vm1235, %v2619, %v2624
    %v2626 = vsel %vm1039, %v2623, %v2625
    %v2628 = vmul.f32 %v2590, %v2626
    %v2629 = vsel %vm1240, %v2628, -inf
    %2630 = vmax.xlane.f32.xlu0 %v2629
    %v2631 = vpop.xlane.xlu0 %2630
    %v2632 = vsub.f32 %v2628, %v2631
    %v2633 = vmul.f32 %v2632, 1.442695
    %v2634 = vpow.pop %v2633
    %v2635 = vsel %vm1240, %v2634, 0.0
    %2636 = vadd.xlane.f32.xlu0 %v2635
    %v2637 = vpop.xlane.xlu0 %2636
    %v2638 = vrcp.pop %v2637
    %v2639 = vmul.f32 %v2634, %v2638
    %2641 = vset.pattern.permute.xlu0 5
    %2642 = vperm.xlu0 %2641, %v2464
    %v2643 = vpop.permute.xlu0 %2642
    %v2645 = vmul.f32 %v2643, %v2639
    %v2646 = vsub.f32 1.0, %v2464
    %2648 = vset.pattern.permute.xlu0 5
    %2649 = vperm.xlu0 %2648, %v2646
    %v2650 = vpop.permute.xlu0 %2649
    %v2652 = vmul.f32 %v2650, %v2010
    %v2653 = vadd.f32 %v2645, %v2652
    %2655 = vrot.lane.b32.xlu0 %v2653, 121
    %v2656 = vpop.permute.xlu0 %2655
    %2658 = vrot.lane.b32.xlu0 %v2653, 1
    %v2659 = vpop.permute.xlu0 %2658
    %v2661 = vsel %vm1273, %v2656, %v2659
    %2662 = vrot.lane.b32.xlu0 %v2653, 127
    %v2663 = vpop.permute.xlu0 %2662
    %2665 = vrot.lane.b32.xlu0 %v2653, 7
    %v2666 = vpop.permute.xlu0 %2665
    %v2668 = vsel %vm1281, %v2663, %v2666
    %2670 = vset.pattern.permute.xlu0 6
    %2671 = vperm.xlu0 %2670, %v2480
    %v2672 = vpop.permute.xlu0 %2671
    %v2674 = vmul.f32 %v2672, %v2661
    %2675 = vset.pattern.permute.xlu0 7
    %2676 = vperm.xlu0 %2675, %v2480
    %v2677 = vpop.permute.xlu0 %2676
    %v2679 = vmul.f32 %v2677, %v2653
    %v2680 = vadd.f32 %v2674, %v2679
    %2681 = vset.pattern.permute.xlu0 8
    %2682 = vperm.xlu0 %2681, %v2480
    %v2683 = vpop.permute.xlu0 %2682
    %v2685 = vmul.f32 %v2683, %v2668
    %v2686 = vadd.f32 %v2680, %v2685
    %v2687 = vmax.f32 %v2686, 1e-30
    %v2688 = vlog2.pop %v2687
    %v2689 = vmul.f32 %v2688, 0.6931472
    %2691 = vset.pattern.permute.xlu0 9
    %2692 = vperm.xlu0 %2691, %v2465
    %v2693 = vpop.permute.xlu0 %2692
    %v2695 = vmul.f32 %v2693, %v2689
    %v2696 = vmul.f32 %v2695, 1.442695
    %v2697 = vpow.pop %v2696
    %v2698 = vsel %vm1240, %v2697, 0.0
    %2699 = vadd.xlane.f32.xlu0 %v2698
    %v2700 = vpop.xlane.xlu0 %2699
    %v2701 = vadd.f32 %v2700, 1e-16
    %v2702 = vrcp.pop %v2701
    %v2703 = vmul.f32 %v2697, %v2702
    %v2704 = vlaneseq
    %v2705 = vshrl.u32 %v2704, 7
    %v2706 = vsub.s32 0, %v2705
    %v2707 = vrot.slane %v2703, %v2706
    %2709 = vbcast.lane.b32.xlu0 %v2707, 256
    %v2710 = vpop.permute.xlu0 %2709
    %v2711 = vlaneseq
    %v2712 = vshrl.u32 %v2711, 7
    %v2713 = vsub.s32 1, %v2712
    %v2714 = vrot.slane %v2703, %v2713
    %2716 = vbcast.lane.b32.xlu0 %v2714, 256
    %v2717 = vpop.permute.xlu0 %2716
    %v2718 = vmul.f32 %v2710, %v2150
    %v2719 = vmul.f32 %v2717, %v2151
    %v2720 = vsel %vm836, %v2718, 0.0
    %v2721 = vrot.slane %v2720, 4
    %v2722 = vadd.f32 %v2720, %v2721
    %v2723 = vrot.slane %v2722, 2
    %v2724 = vadd.f32 %v2722, %v2723
    %v2725 = vrot.slane %v2724, 1
    %v2726 = vadd.f32 %v2724, %v2725
    %v2727 = vsel %vm836, %v2719, 0.0
    %v2728 = vrot.slane %v2727, 4
    %v2729 = vadd.f32 %v2727, %v2728
    %v2730 = vrot.slane %v2729, 2
    %v2731 = vadd.f32 %v2729, %v2730
    %v2732 = vrot.slane %v2731, 1
    %v2733 = vadd.f32 %v2731, %v2732
    %v2734 = vxor.u32 %v2403, 2147483648
    %v2735 = vmul.f32 %v2734, 1.442695
    %v2736 = vpow.pop %v2735
    %v2737 = vadd.f32 %v2736, 1.0
    %v2738 = vrcp.pop %v2737
    %v2739 = vmul.f32 1.0, %v2738
    %v2740 = vlaneseq
    %v2741 = vshrl.u32 %v2740, 7
    %v2742 = vsub.s32 2, %v2741
    %v2743 = vrot.slane %v2703, %v2742
    %2745 = vbcast.lane.b32.xlu0 %v2743, 256
    %v2746 = vpop.permute.xlu0 %2745
    %v2747 = vlaneseq
    %v2748 = vshrl.u32 %v2747, 7
    %v2749 = vsub.s32 3, %v2748
    %v2750 = vrot.slane %v2703, %v2749
    %2752 = vbcast.lane.b32.xlu0 %v2750, 256
    %v2753 = vpop.permute.xlu0 %2752
    %v2756 = vunpack.c.l.s4 1966171168
    %v2757 = vunpack.c.0.s8 %v2756
    %v2758 = vlaneseq
    %v2759 = vshrl.u32 %v2758, 7
    %v2760 = vsub.s32 %v2757, %v2759
    %v2761 = vrot.slane %v2739, %v2760
    %v2762 = vcombine.high %v2761, %v2761
    %v2764 = vunpack.c.l.s4 1966171168
    %v2765 = vunpack.c.0.s8 %v2764
    %v2766 = vlaneseq
    %v2767 = vshrl.u32 %v2766, 7
    %v2768 = vsub.s32 %v2765, %v2767
    %v2769 = vrot.slane %v2761, %v2768
    %v2771 = vunpack.c.l.s4 1966171168
    %v2772 = vunpack.c.0.s8 %v2771
    %v2773 = vlaneseq
    %v2774 = vshrl.u32 %v2773, 7
    %v2775 = vsub.s32 %v2772, %v2774
    %v2776 = vrot.slane %v2762, %v2775
    %v2777 = vlaneseq
    %v2778 = vshrl.u32 %v2777, 7
    %v2779 = vsub.s32 0, %v2778
    %v2780 = vrot.slane %v2769, %v2779
    %v2781 = vlaneseq
    %v2782 = vshrl.u32 %v2781, 7
    %v2783 = vsub.s32 0, %v2782
    %v2784 = vrot.slane %v2776, %v2783
    %v2787 = vmul.f32 %v2746, %v2780
    %v2788 = vmul.f32 %v2753, %v2784
    %v2789 = vsub.f32 1.0, %v2787
    %v2790 = vsub.f32 1.0, %v2788
    %2793 = vrot.lane.b32.xlu0 %v2789, 108
    %v2794 = vpop.permute.xlu0 %2793
    %2795 = vrot.lane.b32.xlu0 %v2790, 108
    %v2796 = vpop.permute.xlu0 %2795
    %v2799 = vmul.f32 %v2150, %v2794
    %v2800 = vmul.f32 %v2151, %v2796
    %v2802 = vunpack.c.l.s4 1966171168
    %v2803 = vunpack.c.0.s8 %v2802
    %v2804 = vlaneseq
    %v2805 = vshrl.u32 %v2804, 7
    %v2806 = vsub.s32 %v2803, %v2805
    %v2807 = vrot.slane %v2403, %v2806
    %v2808 = vcombine.high %v2807, %v2807
    %v2810 = vunpack.c.l.s4 1966171168
    %v2811 = vunpack.c.0.s8 %v2810
    %v2812 = vlaneseq
    %v2813 = vshrl.u32 %v2812, 7
    %v2814 = vsub.s32 %v2811, %v2813
    %v2815 = vrot.slane %v2807, %v2814
    %v2817 = vunpack.c.l.s4 1966171168
    %v2818 = vunpack.c.0.s8 %v2817
    %v2819 = vlaneseq
    %v2820 = vshrl.u32 %v2819, 7
    %v2821 = vsub.s32 %v2818, %v2820
    %v2822 = vrot.slane %v2808, %v2821
    %v2823 = vlaneseq
    %v2824 = vshrl.u32 %v2823, 7
    %v2825 = vsub.s32 0, %v2824
    %v2826 = vrot.slane %v2815, %v2825
    %v2827 = vlaneseq
    %v2828 = vshrl.u32 %v2827, 7
    %v2829 = vsub.s32 0, %v2828
    %v2830 = vrot.slane %v2822, %v2829
    %v2833 = vmul.f32 %v2746, %v2826
    %v2834 = vmul.f32 %v2753, %v2830
    %2837 = vrot.lane.b32.xlu0 %v2833, 104
    %v2838 = vpop.permute.xlu0 %2837
    %2839 = vrot.lane.b32.xlu0 %v2834, 104
    %v2840 = vpop.permute.xlu0 %2839
    %v2843 = vadd.f32 %v2799, %v2838
    %v2844 = vadd.f32 %v2800, %v2840
    %v2848 = vsel %vm1037, %v2733, %v2726
    %2849 = vrot.lane.b32.xlu0 %v2848, 16
    %v2850 = vpop.permute.xlu0 %2849
    %v2852 = vsel %vm761, %v2333, %v2850
    %s2853 = scalar_lea.vmem [#allocation14], 4
    %2854 = vst.msk [vmem:[%s2853] sm:$0x3] %vm1467, %v2852
    %v2855 = vld [vmem:[%s441] sm:$0x3]
    %2856 = vmatprep.subr.mxu0 0.0
    %2857 = vmatpush1.msra.mxu0 0.0
    %2858 = vmatprep.subr.mxu0 0.0
    %2859 = vmatpush1.msra.mxu0 0.0
    %2860 = vmatprep.subr.mxu0 0.0
    %2861 = vmatpush1.msra.mxu0 0.0
    %2862 = vmatprep.subr.mxu0 0.0
    %2863 = vmatpush1.msra.mxu0 0.0
    %2864 = vmatprep.subr.mxu0 0.0
    %2865 = vmatpush1.msra.mxu0 0.0
    %2866 = vmatprep.subr.mxu0 0.0
    %2867 = vmatpush1.msra.mxu0 0.0
    %2868 = vmatprep.subr.mxu0 0.0
    %2869 = vmatpush1.msra.mxu0 0.0
    %2870 = vmatprep.subr.mxu0 0.0
    %2871 = vmatpush1.msra.mxu0 0.0
    %2872 = vmatprep.subr.mxu0 0.0
    %2873 = vmatpush1.msra.mxu0 0.0
    %2874 = vmatprep.subr.mxu0 0.0
    %2875 = vmatpush1.msra.mxu0 0.0
    %2876 = vmatprep.subr.mxu0 0.0
    %2877 = vmatpush1.msra.mxu0 0.0
    %2878 = vmatprep.subr.mxu0 0.0
    %2879 = vmatpush1.msra.mxu0 0.0
    %2880 = vmatprep.subr.mxu0 0.0
    %2881 = vmatpush1.msra.mxu0 0.0
    %2882 = vmatprep.subr.mxu0 0.0
    %2883 = vmatpush1.msra.mxu0 0.0
    %2884 = vmatprep.subr.mxu0 0.0
    %2885 = vmatpush1.msra.mxu0 %v124
    %2886 = vmatprep.subr.mxu0 0.0
    %2887 = vmatpush1.msra.mxu0 %v123
    %2888 = vmatprep.subr.mxu0 0.0
    %2889 = vmatpush2.msra.mxu0 0.0
    %2890 = vmatprep.subr.mxu0 0.0
    %2891 = vmatpush2.msra.mxu0 0.0
    %2892 = vmatprep.subr.mxu0 0.0
    %2893 = vmatpush2.msra.mxu0 0.0
    %2894 = vmatprep.subr.mxu0 0.0
    %2895 = vmatpush2.msra.mxu0 0.0
    %2896 = vmatprep.subr.mxu0 0.0
    %2897 = vmatpush2.msra.mxu0 0.0
    %2898 = vmatprep.subr.mxu0 0.0
    %2899 = vmatpush2.msra.mxu0 0.0
    %2900 = vmatprep.subr.mxu0 0.0
    %2901 = vmatpush2.msra.mxu0 0.0
    %2902 = vmatprep.subr.mxu0 0.0
    %2903 = vmatpush2.msra.mxu0 0.0
    %2904 = vmatprep.subr.mxu0 0.0
    %2905 = vmatpush2.msra.mxu0 0.0
    %2906 = vmatprep.subr.mxu0 0.0
    %2907 = vmatpush2.msra.mxu0 0.0
    %2908 = vmatprep.subr.mxu0 0.0
    %2909 = vmatpush2.msra.mxu0 0.0
    %2910 = vmatprep.subr.mxu0 0.0
    %2911 = vmatpush2.msra.mxu0 0.0
    %2912 = vmatprep.subr.mxu0 0.0
    %2913 = vmatpush2.msra.mxu0 0.0
    %2914 = vmatprep.subr.mxu0 0.0
    %2915 = vmatpush2.msra.mxu0 0.0
    %2916 = vmatprep.subr.mxu0 0.0
    %2917 = vmatpush2.msra.mxu0 0.0
    %2918 = vmatprep.subr.mxu0 0.0
    %2919 = vmatpush2.msra.mxu0 0.0
    %2920 = vmatprep.mubr.f32.mxu0 0.0
    %2921 = vmatmul.mubr.f32.gmra.mxu0 %v2334
    %v2922 = vpop.f32.mrf.mxu0
    %v2923 = vadd.f32 0.0, %v2922
    %v2924 = vpop.f32.mrf.mxu0
    %2925 = vdwg.mxu0
    %v2926 = vadd.f32 %v2855, %v2923
    %v2927 = vsel %vm836, %v2848, 0
    %2929 = vmatprep.subr.mxu0 0.0
    %2930 = vmatpush1.msra.mxu0 0.0
    %2931 = vmatprep.subr.mxu0 0.0
    %2932 = vmatpush1.msra.mxu0 0.0
    %2933 = vmatprep.subr.mxu0 0.0
    %2934 = vmatpush1.msra.mxu0 0.0
    %2935 = vmatprep.subr.mxu0 0.0
    %2936 = vmatpush1.msra.mxu0 0.0
    %2937 = vmatprep.subr.mxu0 0.0
    %2938 = vmatpush1.msra.mxu0 0.0
    %2939 = vmatprep.subr.mxu0 0.0
    %2940 = vmatpush1.msra.mxu0 0.0
    %2941 = vmatprep.subr.mxu0 0.0
    %2942 = vmatpush1.msra.mxu0 0.0
    %2943 = vmatprep.subr.mxu0 0.0
    %2944 = vmatpush1.msra.mxu0 0.0
    %2945 = vmatprep.subr.mxu0 0.0
    %2946 = vmatpush1.msra.mxu0 0.0
    %2947 = vmatprep.subr.mxu0 0.0
    %2948 = vmatpush1.msra.mxu0 0.0
    %2949 = vmatprep.subr.mxu0 0.0
    %2950 = vmatpush1.msra.mxu0 0.0
    %2951 = vmatprep.subr.mxu0 0.0
    %2952 = vmatpush1.msra.mxu0 0.0
    %2953 = vmatprep.subr.mxu0 0.0
    %2954 = vmatpush1.msra.mxu0 0.0
    %2955 = vmatprep.subr.mxu0 0.0
    %2956 = vmatpush1.msra.mxu0 0.0
    %2957 = vmatprep.subr.mxu0 0.0
    %2958 = vmatpush1.msra.mxu0 0.0
    %2959 = vmatprep.subr.mxu0 0.0
    %2960 = vmatpush1.msra.mxu0 %v841
    %2961 = vmatprep.subr.mxu0 0.0
    %2962 = vmatpush2.msra.mxu0 0.0
    %2963 = vmatprep.subr.mxu0 0.0
    %2964 = vmatpush2.msra.mxu0 0.0
    %2965 = vmatprep.subr.mxu0 0.0
    %2966 = vmatpush2.msra.mxu0 0.0
    %2967 = vmatprep.subr.mxu0 0.0
    %2968 = vmatpush2.msra.mxu0 0.0
    %2969 = vmatprep.subr.mxu0 0.0
    %2970 = vmatpush2.msra.mxu0 0.0
    %2971 = vmatprep.subr.mxu0 0.0
    %2972 = vmatpush2.msra.mxu0 0.0
    %2973 = vmatprep.subr.mxu0 0.0
    %2974 = vmatpush2.msra.mxu0 0.0
    %2975 = vmatprep.subr.mxu0 0.0
    %2976 = vmatpush2.msra.mxu0 0.0
    %2977 = vmatprep.subr.mxu0 0.0
    %2978 = vmatpush2.msra.mxu0 0.0
    %2979 = vmatprep.subr.mxu0 0.0
    %2980 = vmatpush2.msra.mxu0 0.0
    %2981 = vmatprep.subr.mxu0 0.0
    %2982 = vmatpush2.msra.mxu0 0.0
    %2983 = vmatprep.subr.mxu0 0.0
    %2984 = vmatpush2.msra.mxu0 0.0
    %2985 = vmatprep.subr.mxu0 0.0
    %2986 = vmatpush2.msra.mxu0 0.0
    %2987 = vmatprep.subr.mxu0 0.0
    %2988 = vmatpush2.msra.mxu0 0.0
    %2989 = vmatprep.subr.mxu0 0.0
    %2990 = vmatpush2.msra.mxu0 0.0
    %2991 = vmatprep.subr.mxu0 0.0
    %2992 = vmatpush2.msra.mxu0 0.0
    %2993 = vmatprep.mubr.f32.mxu0 0.0
    %2994 = vmatmul.mubr.f32.gmra.mxu0 %v2927
    %v2995 = vpop.f32.mrf.mxu0
    %v2996 = vadd.f32 0.0, %v2995
    %v2997 = vpop.f32.mrf.mxu0
    %2998 = vdwg.mxu0
    %v2999 = vadd.f32 %v2926, %v2996
    %v3000 = vxor.u32 %v2999, 2147483648
    %v3001 = vmul.f32 %v3000, 1.442695
    %v3002 = vpow.pop %v3001
    %v3003 = vadd.f32 %v3002, 1.0
    %v3004 = vrcp.pop %v3003
    %v3005 = vmul.f32 1.0, %v3004
    %v3006 = vtanh.pop %v2999
    %v3007 = vmul.f32 %v3005, %v2324
    %3009 = vrot.lane.b32.xlu0 %v3006, 96
    %v3010 = vpop.permute.xlu0 %3009
    %v3012 = vmul.f32 %v3005, %v3010
    %3014 = vrot.lane.b32.xlu0 %v3012, 16
    %v3015 = vpop.permute.xlu0 %3014
    %v3017 = vadd.f32 %v3007, %v3015
    %v3018 = vtanh.pop %v3017
    %3020 = vrot.lane.b32.xlu0 %v3018, 32
    %v3021 = vpop.permute.xlu0 %3020
    %v3023 = vmul.f32 %v3005, %v3021
    %3025 = vrot.lane.b32.xlu0 %v3023, 80
    %v3026 = vpop.permute.xlu0 %3025
    %v3027 = vsel %vm761, %v3026, 0
    %3029 = vmatprep.subr.mxu0 0.0
    %3030 = vmatpush1.msra.mxu0 0.0
    %3031 = vmatprep.subr.mxu0 0.0
    %3032 = vmatpush1.msra.mxu0 0.0
    %3033 = vmatprep.subr.mxu0 0.0
    %3034 = vmatpush1.msra.mxu0 0.0
    %3035 = vmatprep.subr.mxu0 0.0
    %3036 = vmatpush1.msra.mxu0 0.0
    %3037 = vmatprep.subr.mxu0 0.0
    %3038 = vmatpush1.msra.mxu0 0.0
    %3039 = vmatprep.subr.mxu0 0.0
    %3040 = vmatpush1.msra.mxu0 0.0
    %3041 = vmatprep.subr.mxu0 0.0
    %3042 = vmatpush1.msra.mxu0 0.0
    %3043 = vmatprep.subr.mxu0 0.0
    %3044 = vmatpush1.msra.mxu0 0.0
    %3045 = vmatprep.subr.mxu0 0.0
    %3046 = vmatpush1.msra.mxu0 0.0
    %3047 = vmatprep.subr.mxu0 0.0
    %3048 = vmatpush1.msra.mxu0 0.0
    %3049 = vmatprep.subr.mxu0 0.0
    %3050 = vmatpush1.msra.mxu0 0.0
    %3051 = vmatprep.subr.mxu0 0.0
    %3052 = vmatpush1.msra.mxu0 0.0
    %3053 = vmatprep.subr.mxu0 0.0
    %3054 = vmatpush1.msra.mxu0 0.0
    %3055 = vmatprep.subr.mxu0 0.0
    %3056 = vmatpush1.msra.mxu0 0.0
    %3057 = vmatprep.subr.mxu0 0.0
    %3058 = vmatpush1.msra.mxu0 %v127
    %3059 = vmatprep.subr.mxu0 0.0
    %3060 = vmatpush1.msra.mxu0 %v126
    %3061 = vmatprep.subr.mxu0 0.0
    %3062 = vmatpush2.msra.mxu0 0.0
    %3063 = vmatprep.subr.mxu0 0.0
    %3064 = vmatpush2.msra.mxu0 0.0
    %3065 = vmatprep.subr.mxu0 0.0
    %3066 = vmatpush2.msra.mxu0 0.0
    %3067 = vmatprep.subr.mxu0 0.0
    %3068 = vmatpush2.msra.mxu0 0.0
    %3069 = vmatprep.subr.mxu0 0.0
    %3070 = vmatpush2.msra.mxu0 0.0
    %3071 = vmatprep.subr.mxu0 0.0
    %3072 = vmatpush2.msra.mxu0 0.0
    %3073 = vmatprep.subr.mxu0 0.0
    %3074 = vmatpush2.msra.mxu0 0.0
    %3075 = vmatprep.subr.mxu0 0.0
    %3076 = vmatpush2.msra.mxu0 0.0
    %3077 = vmatprep.subr.mxu0 0.0
    %3078 = vmatpush2.msra.mxu0 0.0
    %3079 = vmatprep.subr.mxu0 0.0
    %3080 = vmatpush2.msra.mxu0 0.0
    %3081 = vmatprep.subr.mxu0 0.0
    %3082 = vmatpush2.msra.mxu0 0.0
    %3083 = vmatprep.subr.mxu0 0.0
    %3084 = vmatpush2.msra.mxu0 0.0
    %3085 = vmatprep.subr.mxu0 0.0
    %3086 = vmatpush2.msra.mxu0 0.0
    %3087 = vmatprep.subr.mxu0 0.0
    %3088 = vmatpush2.msra.mxu0 0.0
    %3089 = vmatprep.subr.mxu0 0.0
    %3090 = vmatpush2.msra.mxu0 0.0
    %3091 = vmatprep.subr.mxu0 0.0
    %3092 = vmatpush2.msra.mxu0 0.0
    %3093 = vmatprep.mubr.f32.mxu0 0.0
    %3094 = vmatmul.mubr.f32.gmra.mxu0 %v3027
    %v3095 = vpop.f32.mrf.mxu0
    %v3096 = vadd.f32 %v946, %v3095
    %v3097 = vpop.f32.mrf.mxu0
    %3098 = vdwg.mxu0
    %v3099 = vadd.f32 %v2843, 1e-16
    %v3100 = vadd.f32 %v2844, 1e-16
    %v3101 = vmul.f32 %v3099, %v3099
    %v3102 = vmul.f32 %v3100, %v3100
    %v3103 = vsel %vm836, %v3101, 0.0
    %3104 = vadd.xlane.f32.xlu0 %v3103
    %v3105 = vpop.xlane.xlu0 %3104
    %v3106 = vsel %vm836, %v3102, 0.0
    %3107 = vadd.xlane.f32.xlu0 %v3106
    %v3108 = vpop.xlane.xlu0 %3107
    %v3109 = vmax.f32 %v3105, 1e-16
    %v3110 = vmax.f32 %v3108, 1e-16
    %v3111 = vrsqrt.pop %v3109
    %v3112 = vrsqrt.pop %v3110
    %v3115 = vlaneseq
    %v3116 = vshrl.u32 %v3115, 7
    %v3117 = vsub.s32 %v1032, %v3116
    %v3118 = vrot.slane %v3111, %v3117
    %v3119 = vlaneseq
    %v3120 = vshrl.u32 %v3119, 7
    %v3121 = vsub.s32 %v1032, %v3120
    %v3122 = vrot.slane %v3112, %v3121
    %v3123 = vsel %vm1037, %v3122, %v3118
    %v3125 = vsel %vm1039, %v3122, %v3118
    %v3127 = vsel %vm1040, %v3123, %v3125
    %v3129 = vrot.slane %v3096, 6
    %3130 = vrot.lane.b32.xlu0 %v3129, 118
    %v3131 = vpop.permute.xlu0 %3130
    %v3133 = vsel %vm1040, %v3096, %v3131
    %v3134 = vmax.f32 %v3133, 0.0
    %vm3135 = vcmp.ne.f32.partialorder %v3133, %v3133
    %v3136 = vadd.f32 %v3133, 0.0
    %v3137 = vand.u32 2147483647, %v3133
    %v3138 = vsub.f32 0.0, %v3137
    %v3139 = vmul.f32 %v3138, 1.442695
    %v3140 = vpow.pop %v3139
    %v3141 = vadd.f32 %v3140, 1.0
    %v3142 = vlog2.pop %v3141
    %v3143 = vmul.f32 %v3142, 0.6931472
    %v3144 = vmul.f32 -0.5, %v3140
    %v3145 = vadd.f32 %v3144, 1.0
    %v3146 = vmul.f32 %v3145, %v3140
    %v3147 = vand.u32 2147483647, %v3140
    %vm3148 = vcmp.lt.f32.partialorder %v3147, 0.0004427343
    %v3149 = vsel %vm3148, %v3146, %v3143
    %v3150 = vadd.f32 %v3134, %v3149
    %v3151 = vsel %vm3135, %v3136, %v3150
    %v3152 = vxor.u32 %v3133, 2147483648
    %v3153 = vmul.f32 %v3152, 1.442695
    %v3154 = vpow.pop %v3153
    %v3155 = vadd.f32 %v3154, 1.0
    %v3156 = vrcp.pop %v3155
    %v3157 = vmul.f32 1.0, %v3156
    %v3158 = vadd.f32 %v3151, 1.0
    %v3159 = vsel %vm1073, %v3133, -inf
    %3160 = vmax.xlane.f32.xlu0 %v3159
    %v3161 = vpop.xlane.xlu0 %3160
    %v3162 = vsub.f32 %v3133, %v3161
    %v3163 = vmul.f32 %v3162, 1.442695
    %v3164 = vpow.pop %v3163
    %3166 = vrot.lane.b32.xlu0 %v3164, 122
    %v3167 = vpop.permute.xlu0 %3166
    %v3169 = vsel %vm1084, %v3167, 0.0
    %3170 = vadd.xlane.f32.xlu0 %v3169
    %v3171 = vpop.xlane.xlu0 %3170
    %v3172 = vrcp.pop %v3171
    %v3173 = vmul.f32 %v3164, %v3172
    %v3174 = vadd.f32 %v3133, 1e-16
    %v3177 = vunpack.c.l.s4 1966171168
    %v3178 = vunpack.c.0.s8 %v3177
    %v3179 = vlaneseq
    %v3180 = vshrl.u32 %v3179, 7
    %v3181 = vsub.s32 %v3178, %v3180
    %v3182 = vrot.slane %v3174, %v3181
    %v3183 = vcombine.high %v3182, %v3182
    %v3185 = vunpack.c.l.s4 1966171168
    %v3186 = vunpack.c.0.s8 %v3185
    %v3187 = vlaneseq
    %v3188 = vshrl.u32 %v3187, 7
    %v3189 = vsub.s32 %v3186, %v3188
    %v3190 = vrot.slane %v3182, %v3189
    %v3192 = vunpack.c.l.s4 1966171168
    %v3193 = vunpack.c.0.s8 %v3192
    %v3194 = vlaneseq
    %v3195 = vshrl.u32 %v3194, 7
    %v3196 = vsub.s32 %v3193, %v3195
    %v3197 = vrot.slane %v3183, %v3196
    %v3198 = vcombine.high %v3190, %v3190
    %v3199 = vcombine.high %v3197, %v3197
    %v3200 = vlaneseq
    %v3201 = vshrl.u32 %v3200, 7
    %v3202 = vsub.s32 0, %v3201
    %v3203 = vrot.slane %v3190, %v3202
    %v3204 = vlaneseq
    %v3205 = vshrl.u32 %v3204, 7
    %v3206 = vsub.s32 0, %v3205
    %v3207 = vrot.slane %v3197, %v3206
    %v3208 = vlaneseq
    %v3209 = vshrl.u32 %v3208, 7
    %v3210 = vsub.s32 0, %v3209
    %v3211 = vrot.slane %v3198, %v3210
    %v3212 = vlaneseq
    %v3213 = vshrl.u32 %v3212, 7
    %v3214 = vsub.s32 0, %v3213
    %v3215 = vrot.slane %v3199, %v3214
    %v3220 = vmul.f32 %v3099, %v3203
    %v3221 = vmul.f32 %v3100, %v3207
    %v3222 = vmul.f32 %v3099, %v3211
    %v3223 = vmul.f32 %v3100, %v3215
    %v3224 = vsel %vm836, %v3220, 0.0
    %3225 = vadd.xlane.f32.xlu0 %v3224
    %v3226 = vpop.xlane.xlu0 %3225
    %v3227 = vsel %vm836, %v3221, 0.0
    %3228 = vadd.xlane.f32.xlu0 %v3227
    %v3229 = vpop.xlane.xlu0 %3228
    %v3230 = vsel %vm836, %v3222, 0.0
    %3231 = vadd.xlane.f32.xlu0 %v3230
    %v3232 = vpop.xlane.xlu0 %3231
    %v3233 = vsel %vm836, %v3223, 0.0
    %3234 = vadd.xlane.f32.xlu0 %v3233
    %v3235 = vpop.xlane.xlu0 %3234
    %v3236 = vmul.f32 %v3174, %v3174
    %v3237 = vsel %vm1153, %v3236, 0.0
    %3238 = vadd.xlane.f32.xlu0 %v3237
    %v3239 = vpop.xlane.xlu0 %3238
    %v3240 = vmax.f32 %v3239, 1e-16
    %v3241 = vrsqrt.pop %v3240
    %v3242 = vmul.f32 %v3127, %v3241
    %v3244 = vlaneseq
    %v3245 = vshrl.u32 %v3244, 7
    %v3246 = vsub.s32 0, %v3245
    %v3247 = vrot.slane %v3242, %v3246
    %3249 = vbcast.lane.b32.xlu0 %v3247, 256
    %v3250 = vpop.permute.xlu0 %3249
    %v3251 = vlaneseq
    %v3252 = vshrl.u32 %v3251, 7
    %v3253 = vsub.s32 1, %v3252
    %v3254 = vrot.slane %v3242, %v3253
    %3256 = vbcast.lane.b32.xlu0 %v3254, 256
    %v3257 = vpop.permute.xlu0 %3256
    %v3258 = vlaneseq
    %v3259 = vshrl.u32 %v3258, 7
    %v3260 = vsub.s32 2, %v3259
    %v3261 = vrot.slane %v3242, %v3260
    %3263 = vbcast.lane.b32.xlu0 %v3261, 256
    %v3264 = vpop.permute.xlu0 %3263
    %v3265 = vlaneseq
    %v3266 = vshrl.u32 %v3265, 7
    %v3267 = vsub.s32 3, %v3266
    %v3268 = vrot.slane %v3242, %v3267
    %3270 = vbcast.lane.b32.xlu0 %v3268, 256
    %v3271 = vpop.permute.xlu0 %3270
    %v3276 = vmul.f32 %v3226, %v3250
    %v3277 = vmul.f32 %v3229, %v3257
    %v3278 = vmul.f32 %v3232, %v3264
    %v3279 = vmul.f32 %v3235, %v3271
    %3281 = vset.pattern.permute.xlu0 4
    %3282 = vperm.xlu0 %3281, %v3151
    %v3283 = vpop.permute.xlu0 %3282
    %3289 = vset.pattern.permute.xlu0 0
    %3290 = vperm.xlu0 %3289, %v3276
    %v3291 = vpop.permute.xlu0 %3290
    %3292 = vset.pattern.permute.xlu0 0
    %3293 = vperm.xlu0 %3292, %v3277
    %v3294 = vpop.permute.xlu0 %3293
    %3295 = vset.pattern.permute.xlu0 0
    %3296 = vperm.xlu0 %3295, %v3278
    %v3297 = vpop.permute.xlu0 %3296
    %3298 = vset.pattern.permute.xlu0 0
    %3299 = vperm.xlu0 %3298, %v3279
    %v3300 = vpop.permute.xlu0 %3299
    %v3301 = vlaneseq
    %v3302 = vshrl.u32 %v3301, 7
    %v3303 = vsub.s32 %v1032, %v3302
    %v3304 = vrot.slane %v3291, %v3303
    %v3305 = vlaneseq
    %v3306 = vshrl.u32 %v3305, 7
    %v3307 = vsub.s32 %v1032, %v3306
    %v3308 = vrot.slane %v3294, %v3307
    %v3309 = vlaneseq
    %v3310 = vshrl.u32 %v3309, 7
    %v3311 = vsub.s32 %v1032, %v3310
    %v3312 = vrot.slane %v3297, %v3311
    %v3313 = vlaneseq
    %v3314 = vshrl.u32 %v3313, 7
    %v3315 = vsub.s32 %v1032, %v3314
    %v3316 = vrot.slane %v3300, %v3315
    %v3317 = vsel %vm1037, %v3308, %v3304
    %v3318 = vsel %vm1235, %v3312, %v3317
    %v3319 = vsel %vm1039, %v3316, %v3318
    %v3321 = vmul.f32 %v3283, %v3319
    %v3322 = vsel %vm1240, %v3321, -inf
    %3323 = vmax.xlane.f32.xlu0 %v3322
    %v3324 = vpop.xlane.xlu0 %3323
    %v3325 = vsub.f32 %v3321, %v3324
    %v3326 = vmul.f32 %v3325, 1.442695
    %v3327 = vpow.pop %v3326
    %v3328 = vsel %vm1240, %v3327, 0.0
    %3329 = vadd.xlane.f32.xlu0 %v3328
    %v3330 = vpop.xlane.xlu0 %3329
    %v3331 = vrcp.pop %v3330
    %v3332 = vmul.f32 %v3327, %v3331
    %3334 = vset.pattern.permute.xlu0 5
    %3335 = vperm.xlu0 %3334, %v3157
    %v3336 = vpop.permute.xlu0 %3335
    %v3338 = vmul.f32 %v3336, %v3332
    %v3339 = vsub.f32 1.0, %v3157
    %3341 = vset.pattern.permute.xlu0 5
    %3342 = vperm.xlu0 %3341, %v3339
    %v3343 = vpop.permute.xlu0 %3342
    %v3345 = vmul.f32 %v3343, %v2703
    %v3346 = vadd.f32 %v3338, %v3345
    %3348 = vrot.lane.b32.xlu0 %v3346, 121
    %v3349 = vpop.permute.xlu0 %3348
    %3351 = vrot.lane.b32.xlu0 %v3346, 1
    %v3352 = vpop.permute.xlu0 %3351
    %v3354 = vsel %vm1273, %v3349, %v3352
    %3355 = vrot.lane.b32.xlu0 %v3346, 127
    %v3356 = vpop.permute.xlu0 %3355
    %3358 = vrot.lane.b32.xlu0 %v3346, 7
    %v3359 = vpop.permute.xlu0 %3358
    %v3361 = vsel %vm1281, %v3356, %v3359
    %3363 = vset.pattern.permute.xlu0 6
    %3364 = vperm.xlu0 %3363, %v3173
    %v3365 = vpop.permute.xlu0 %3364
    %v3367 = vmul.f32 %v3365, %v3354
    %3368 = vset.pattern.permute.xlu0 7
    %3369 = vperm.xlu0 %3368, %v3173
    %v3370 = vpop.permute.xlu0 %3369
    %v3372 = vmul.f32 %v3370, %v3346
    %v3373 = vadd.f32 %v3367, %v3372
    %3374 = vset.pattern.permute.xlu0 8
    %3375 = vperm.xlu0 %3374, %v3173
    %v3376 = vpop.permute.xlu0 %3375
    %v3378 = vmul.f32 %v3376, %v3361
    %v3379 = vadd.f32 %v3373, %v3378
    %v3380 = vmax.f32 %v3379, 1e-30
    %v3381 = vlog2.pop %v3380
    %v3382 = vmul.f32 %v3381, 0.6931472
    %3384 = vset.pattern.permute.xlu0 9
    %3385 = vperm.xlu0 %3384, %v3158
    %v3386 = vpop.permute.xlu0 %3385
    %v3388 = vmul.f32 %v3386, %v3382
    %v3389 = vmul.f32 %v3388, 1.442695
    %v3390 = vpow.pop %v3389
    %v3391 = vsel %vm1240, %v3390, 0.0
    %3392 = vadd.xlane.f32.xlu0 %v3391
    %v3393 = vpop.xlane.xlu0 %3392
    %v3394 = vadd.f32 %v3393, 1e-16
    %v3395 = vrcp.pop %v3394
    %v3396 = vmul.f32 %v3390, %v3395
    %v3397 = vlaneseq
    %v3398 = vshrl.u32 %v3397, 7
    %v3399 = vsub.s32 0, %v3398
    %v3400 = vrot.slane %v3396, %v3399
    %3402 = vbcast.lane.b32.xlu0 %v3400, 256
    %v3403 = vpop.permute.xlu0 %3402
    %v3404 = vlaneseq
    %v3405 = vshrl.u32 %v3404, 7
    %v3406 = vsub.s32 1, %v3405
    %v3407 = vrot.slane %v3396, %v3406
    %3409 = vbcast.lane.b32.xlu0 %v3407, 256
    %v3410 = vpop.permute.xlu0 %3409
    %v3411 = vmul.f32 %v3403, %v2843
    %v3412 = vmul.f32 %v3410, %v2844
    %v3413 = vsel %vm836, %v3411, 0.0
    %v3414 = vrot.slane %v3413, 4
    %v3415 = vadd.f32 %v3413, %v3414
    %v3416 = vrot.slane %v3415, 2
    %v3417 = vadd.f32 %v3415, %v3416
    %v3418 = vrot.slane %v3417, 1
    %v3419 = vadd.f32 %v3417, %v3418
    %v3420 = vsel %vm836, %v3412, 0.0
    %v3421 = vrot.slane %v3420, 4
    %v3422 = vadd.f32 %v3420, %v3421
    %v3423 = vrot.slane %v3422, 2
    %v3424 = vadd.f32 %v3422, %v3423
    %v3425 = vrot.slane %v3424, 1
    %v3426 = vadd.f32 %v3424, %v3425
    %v3427 = vxor.u32 %v3096, 2147483648
    %v3428 = vmul.f32 %v3427, 1.442695
    %v3429 = vpow.pop %v3428
    %v3430 = vadd.f32 %v3429, 1.0
    %v3431 = vrcp.pop %v3430
    %v3432 = vmul.f32 1.0, %v3431
    %v3433 = vlaneseq
    %v3434 = vshrl.u32 %v3433, 7
    %v3435 = vsub.s32 2, %v3434
    %v3436 = vrot.slane %v3396, %v3435
    %3438 = vbcast.lane.b32.xlu0 %v3436, 256
    %v3439 = vpop.permute.xlu0 %3438
    %v3440 = vlaneseq
    %v3441 = vshrl.u32 %v3440, 7
    %v3442 = vsub.s32 3, %v3441
    %v3443 = vrot.slane %v3396, %v3442
    %3445 = vbcast.lane.b32.xlu0 %v3443, 256
    %v3446 = vpop.permute.xlu0 %3445
    %v3449 = vunpack.c.l.s4 1966171168
    %v3450 = vunpack.c.0.s8 %v3449
    %v3451 = vlaneseq
    %v3452 = vshrl.u32 %v3451, 7
    %v3453 = vsub.s32 %v3450, %v3452
    %v3454 = vrot.slane %v3432, %v3453
    %v3455 = vcombine.high %v3454, %v3454
    %v3457 = vunpack.c.l.s4 1966171168
    %v3458 = vunpack.c.0.s8 %v3457
    %v3459 = vlaneseq
    %v3460 = vshrl.u32 %v3459, 7
    %v3461 = vsub.s32 %v3458, %v3460
    %v3462 = vrot.slane %v3454, %v3461
    %v3464 = vunpack.c.l.s4 1966171168
    %v3465 = vunpack.c.0.s8 %v3464
    %v3466 = vlaneseq
    %v3467 = vshrl.u32 %v3466, 7
    %v3468 = vsub.s32 %v3465, %v3467
    %v3469 = vrot.slane %v3455, %v3468
    %v3470 = vlaneseq
    %v3471 = vshrl.u32 %v3470, 7
    %v3472 = vsub.s32 0, %v3471
    %v3473 = vrot.slane %v3462, %v3472
    %v3474 = vlaneseq
    %v3475 = vshrl.u32 %v3474, 7
    %v3476 = vsub.s32 0, %v3475
    %v3477 = vrot.slane %v3469, %v3476
    %v3480 = vmul.f32 %v3439, %v3473
    %v3481 = vmul.f32 %v3446, %v3477
    %v3482 = vsub.f32 1.0, %v3480
    %v3483 = vsub.f32 1.0, %v3481
    %3486 = vrot.lane.b32.xlu0 %v3482, 108
    %v3487 = vpop.permute.xlu0 %3486
    %3488 = vrot.lane.b32.xlu0 %v3483, 108
    %v3489 = vpop.permute.xlu0 %3488
    %v3492 = vmul.f32 %v2843, %v3487
    %v3493 = vmul.f32 %v2844, %v3489
    %v3495 = vunpack.c.l.s4 1966171168
    %v3496 = vunpack.c.0.s8 %v3495
    %v3497 = vlaneseq
    %v3498 = vshrl.u32 %v3497, 7
    %v3499 = vsub.s32 %v3496, %v3498
    %v3500 = vrot.slane %v3096, %v3499
    %v3501 = vcombine.high %v3500, %v3500
    %v3503 = vunpack.c.l.s4 1966171168
    %v3504 = vunpack.c.0.s8 %v3503
    %v3505 = vlaneseq
    %v3506 = vshrl.u32 %v3505, 7
    %v3507 = vsub.s32 %v3504, %v3506
    %v3508 = vrot.slane %v3500, %v3507
    %v3510 = vunpack.c.l.s4 1966171168
    %v3511 = vunpack.c.0.s8 %v3510
    %v3512 = vlaneseq
    %v3513 = vshrl.u32 %v3512, 7
    %v3514 = vsub.s32 %v3511, %v3513
    %v3515 = vrot.slane %v3501, %v3514
    %v3516 = vlaneseq
    %v3517 = vshrl.u32 %v3516, 7
    %v3518 = vsub.s32 0, %v3517
    %v3519 = vrot.slane %v3508, %v3518
    %v3520 = vlaneseq
    %v3521 = vshrl.u32 %v3520, 7
    %v3522 = vsub.s32 0, %v3521
    %v3523 = vrot.slane %v3515, %v3522
    %v3526 = vmul.f32 %v3439, %v3519
    %v3527 = vmul.f32 %v3446, %v3523
    %3530 = vrot.lane.b32.xlu0 %v3526, 104
    %v3531 = vpop.permute.xlu0 %3530
    %3532 = vrot.lane.b32.xlu0 %v3527, 104
    %v3533 = vpop.permute.xlu0 %3532
    %v3536 = vadd.f32 %v3492, %v3531
    %v3537 = vadd.f32 %v3493, %v3533
    %v3541 = vsel %vm1037, %v3426, %v3419
    %3542 = vrot.lane.b32.xlu0 %v3541, 16
    %v3543 = vpop.permute.xlu0 %3542
    %v3545 = vsel %vm761, %v3026, %v3543
    %s3546 = scalar_lea.vmem [#allocation14], 6
    %3547 = vst.msk [vmem:[%s3546] sm:$0x3] %vm1467, %v3545
    %v3548 = vld [vmem:[%s518] sm:$0x3]
    %3549 = vmatprep.subr.mxu0 0.0
    %3550 = vmatpush1.msra.mxu0 0.0
    %3551 = vmatprep.subr.mxu0 0.0
    %3552 = vmatpush1.msra.mxu0 0.0
    %3553 = vmatprep.subr.mxu0 0.0
    %3554 = vmatpush1.msra.mxu0 0.0
    %3555 = vmatprep.subr.mxu0 0.0
    %3556 = vmatpush1.msra.mxu0 0.0
    %3557 = vmatprep.subr.mxu0 0.0
    %3558 = vmatpush1.msra.mxu0 0.0
    %3559 = vmatprep.subr.mxu0 0.0
    %3560 = vmatpush1.msra.mxu0 0.0
    %3561 = vmatprep.subr.mxu0 0.0
    %3562 = vmatpush1.msra.mxu0 0.0
    %3563 = vmatprep.subr.mxu0 0.0
    %3564 = vmatpush1.msra.mxu0 0.0
    %3565 = vmatprep.subr.mxu0 0.0
    %3566 = vmatpush1.msra.mxu0 0.0
    %3567 = vmatprep.subr.mxu0 0.0
    %3568 = vmatpush1.msra.mxu0 0.0
    %3569 = vmatprep.subr.mxu0 0.0
    %3570 = vmatpush1.msra.mxu0 0.0
    %3571 = vmatprep.subr.mxu0 0.0
    %3572 = vmatpush1.msra.mxu0 0.0
    %3573 = vmatprep.subr.mxu0 0.0
    %3574 = vmatpush1.msra.mxu0 0.0
    %3575 = vmatprep.subr.mxu0 0.0
    %3576 = vmatpush1.msra.mxu0 0.0
    %3577 = vmatprep.subr.mxu0 0.0
    %3578 = vmatpush1.msra.mxu0 %v124
    %3579 = vmatprep.subr.mxu0 0.0
    %3580 = vmatpush1.msra.mxu0 %v123
    %3581 = vmatprep.subr.mxu0 0.0
    %3582 = vmatpush2.msra.mxu0 0.0
    %3583 = vmatprep.subr.mxu0 0.0
    %3584 = vmatpush2.msra.mxu0 0.0
    %3585 = vmatprep.subr.mxu0 0.0
    %3586 = vmatpush2.msra.mxu0 0.0
    %3587 = vmatprep.subr.mxu0 0.0
    %3588 = vmatpush2.msra.mxu0 0.0
    %3589 = vmatprep.subr.mxu0 0.0
    %3590 = vmatpush2.msra.mxu0 0.0
    %3591 = vmatprep.subr.mxu0 0.0
    %3592 = vmatpush2.msra.mxu0 0.0
    %3593 = vmatprep.subr.mxu0 0.0
    %3594 = vmatpush2.msra.mxu0 0.0
    %3595 = vmatprep.subr.mxu0 0.0
    %3596 = vmatpush2.msra.mxu0 0.0
    %3597 = vmatprep.subr.mxu0 0.0
    %3598 = vmatpush2.msra.mxu0 0.0
    %3599 = vmatprep.subr.mxu0 0.0
    %3600 = vmatpush2.msra.mxu0 0.0
    %3601 = vmatprep.subr.mxu0 0.0
    %3602 = vmatpush2.msra.mxu0 0.0
    %3603 = vmatprep.subr.mxu0 0.0
    %3604 = vmatpush2.msra.mxu0 0.0
    %3605 = vmatprep.subr.mxu0 0.0
    %3606 = vmatpush2.msra.mxu0 0.0
    %3607 = vmatprep.subr.mxu0 0.0
    %3608 = vmatpush2.msra.mxu0 0.0
    %3609 = vmatprep.subr.mxu0 0.0
    %3610 = vmatpush2.msra.mxu0 0.0
    %3611 = vmatprep.subr.mxu0 0.0
    %3612 = vmatpush2.msra.mxu0 0.0
    %3613 = vmatprep.mubr.f32.mxu0 0.0
    %3614 = vmatmul.mubr.f32.gmra.mxu0 %v3027
    %v3615 = vpop.f32.mrf.mxu0
    %v3616 = vadd.f32 0.0, %v3615
    %v3617 = vpop.f32.mrf.mxu0
    %3618 = vdwg.mxu0
    %v3619 = vadd.f32 %v3548, %v3616
    %v3620 = vsel %vm836, %v3541, 0
    %3622 = vmatprep.subr.mxu0 0.0
    %3623 = vmatpush1.msra.mxu0 0.0
    %3624 = vmatprep.subr.mxu0 0.0
    %3625 = vmatpush1.msra.mxu0 0.0
    %3626 = vmatprep.subr.mxu0 0.0
    %3627 = vmatpush1.msra.mxu0 0.0
    %3628 = vmatprep.subr.mxu0 0.0
    %3629 = vmatpush1.msra.mxu0 0.0
    %3630 = vmatprep.subr.mxu0 0.0
    %3631 = vmatpush1.msra.mxu0 0.0
    %3632 = vmatprep.subr.mxu0 0.0
    %3633 = vmatpush1.msra.mxu0 0.0
    %3634 = vmatprep.subr.mxu0 0.0
    %3635 = vmatpush1.msra.mxu0 0.0
    %3636 = vmatprep.subr.mxu0 0.0
    %3637 = vmatpush1.msra.mxu0 0.0
    %3638 = vmatprep.subr.mxu0 0.0
    %3639 = vmatpush1.msra.mxu0 0.0
    %3640 = vmatprep.subr.mxu0 0.0
    %3641 = vmatpush1.msra.mxu0 0.0
    %3642 = vmatprep.subr.mxu0 0.0
    %3643 = vmatpush1.msra.mxu0 0.0
    %3644 = vmatprep.subr.mxu0 0.0
    %3645 = vmatpush1.msra.mxu0 0.0
    %3646 = vmatprep.subr.mxu0 0.0
    %3647 = vmatpush1.msra.mxu0 0.0
    %3648 = vmatprep.subr.mxu0 0.0
    %3649 = vmatpush1.msra.mxu0 0.0
    %3650 = vmatprep.subr.mxu0 0.0
    %3651 = vmatpush1.msra.mxu0 0.0
    %3652 = vmatprep.subr.mxu0 0.0
    %3653 = vmatpush1.msra.mxu0 %v841
    %3654 = vmatprep.subr.mxu0 0.0
    %3655 = vmatpush2.msra.mxu0 0.0
    %3656 = vmatprep.subr.mxu0 0.0
    %3657 = vmatpush2.msra.mxu0 0.0
    %3658 = vmatprep.subr.mxu0 0.0
    %3659 = vmatpush2.msra.mxu0 0.0
    %3660 = vmatprep.subr.mxu0 0.0
    %3661 = vmatpush2.msra.mxu0 0.0
    %3662 = vmatprep.subr.mxu0 0.0
    %3663 = vmatpush2.msra.mxu0 0.0
    %3664 = vmatprep.subr.mxu0 0.0
    %3665 = vmatpush2.msra.mxu0 0.0
    %3666 = vmatprep.subr.mxu0 0.0
    %3667 = vmatpush2.msra.mxu0 0.0
    %3668 = vmatprep.subr.mxu0 0.0
    %3669 = vmatpush2.msra.mxu0 0.0
    %3670 = vmatprep.subr.mxu0 0.0
    %3671 = vmatpush2.msra.mxu0 0.0
    %3672 = vmatprep.subr.mxu0 0.0
    %3673 = vmatpush2.msra.mxu0 0.0
    %3674 = vmatprep.subr.mxu0 0.0
    %3675 = vmatpush2.msra.mxu0 0.0
    %3676 = vmatprep.subr.mxu0 0.0
    %3677 = vmatpush2.msra.mxu0 0.0
    %3678 = vmatprep.subr.mxu0 0.0
    %3679 = vmatpush2.msra.mxu0 0.0
    %3680 = vmatprep.subr.mxu0 0.0
    %3681 = vmatpush2.msra.mxu0 0.0
    %3682 = vmatprep.subr.mxu0 0.0
    %3683 = vmatpush2.msra.mxu0 0.0
    %3684 = vmatprep.subr.mxu0 0.0
    %3685 = vmatpush2.msra.mxu0 0.0
    %3686 = vmatprep.mubr.f32.mxu0 0.0
    %3687 = vmatmul.mubr.f32.gmra.mxu0 %v3620
    %v3688 = vpop.f32.mrf.mxu0
    %v3689 = vadd.f32 0.0, %v3688
    %v3690 = vpop.f32.mrf.mxu0
    %3691 = vdwg.mxu0
    %v3692 = vadd.f32 %v3619, %v3689
    %v3693 = vxor.u32 %v3692, 2147483648
    %v3694 = vmul.f32 %v3693, 1.442695
    %v3695 = vpow.pop %v3694
    %v3696 = vadd.f32 %v3695, 1.0
    %v3697 = vrcp.pop %v3696
    %v3698 = vmul.f32 1.0, %v3697
    %v3699 = vtanh.pop %v3692
    %v3700 = vmul.f32 %v3698, %v3017
    %3702 = vrot.lane.b32.xlu0 %v3699, 96
    %v3703 = vpop.permute.xlu0 %3702
    %v3705 = vmul.f32 %v3698, %v3703
    %3707 = vrot.lane.b32.xlu0 %v3705, 16
    %v3708 = vpop.permute.xlu0 %3707
    %v3710 = vadd.f32 %v3700, %v3708
    %v3711 = vtanh.pop %v3710
    %3713 = vrot.lane.b32.xlu0 %v3711, 32
    %v3714 = vpop.permute.xlu0 %3713
    %v3716 = vmul.f32 %v3698, %v3714
    %3718 = vrot.lane.b32.xlu0 %v3716, 80
    %v3719 = vpop.permute.xlu0 %3718
    %v3720 = vsel %vm761, %v3719, 0
    %3722 = vmatprep.subr.mxu0 0.0
    %3723 = vmatpush1.msra.mxu0 0.0
    %3724 = vmatprep.subr.mxu0 0.0
    %3725 = vmatpush1.msra.mxu0 0.0
    %3726 = vmatprep.subr.mxu0 0.0
    %3727 = vmatpush1.msra.mxu0 0.0
    %3728 = vmatprep.subr.mxu0 0.0
    %3729 = vmatpush1.msra.mxu0 0.0
    %3730 = vmatprep.subr.mxu0 0.0
    %3731 = vmatpush1.msra.mxu0 0.0
    %3732 = vmatprep.subr.mxu0 0.0
    %3733 = vmatpush1.msra.mxu0 0.0
    %3734 = vmatprep.subr.mxu0 0.0
    %3735 = vmatpush1.msra.mxu0 0.0
    %3736 = vmatprep.subr.mxu0 0.0
    %3737 = vmatpush1.msra.mxu0 0.0
    %3738 = vmatprep.subr.mxu0 0.0
    %3739 = vmatpush1.msra.mxu0 0.0
    %3740 = vmatprep.subr.mxu0 0.0
    %3741 = vmatpush1.msra.mxu0 0.0
    %3742 = vmatprep.subr.mxu0 0.0
    %3743 = vmatpush1.msra.mxu0 0.0
    %3744 = vmatprep.subr.mxu0 0.0
    %3745 = vmatpush1.msra.mxu0 0.0
    %3746 = vmatprep.subr.mxu0 0.0
    %3747 = vmatpush1.msra.mxu0 0.0
    %3748 = vmatprep.subr.mxu0 0.0
    %3749 = vmatpush1.msra.mxu0 0.0
    %3750 = vmatprep.subr.mxu0 0.0
    %3751 = vmatpush1.msra.mxu0 %v127
    %3752 = vmatprep.subr.mxu0 0.0
    %3753 = vmatpush1.msra.mxu0 %v126
    %3754 = vmatprep.subr.mxu0 0.0
    %3755 = vmatpush2.msra.mxu0 0.0
    %3756 = vmatprep.subr.mxu0 0.0
    %3757 = vmatpush2.msra.mxu0 0.0
    %3758 = vmatprep.subr.mxu0 0.0
    %3759 = vmatpush2.msra.mxu0 0.0
    %3760 = vmatprep.subr.mxu0 0.0
    %3761 = vmatpush2.msra.mxu0 0.0
    %3762 = vmatprep.subr.mxu0 0.0
    %3763 = vmatpush2.msra.mxu0 0.0
    %3764 = vmatprep.subr.mxu0 0.0
    %3765 = vmatpush2.msra.mxu0 0.0
    %3766 = vmatprep.subr.mxu0 0.0
    %3767 = vmatpush2.msra.mxu0 0.0
    %3768 = vmatprep.subr.mxu0 0.0
    %3769 = vmatpush2.msra.mxu0 0.0
    %3770 = vmatprep.subr.mxu0 0.0
    %3771 = vmatpush2.msra.mxu0 0.0
    %3772 = vmatprep.subr.mxu0 0.0
    %3773 = vmatpush2.msra.mxu0 0.0
    %3774 = vmatprep.subr.mxu0 0.0
    %3775 = vmatpush2.msra.mxu0 0.0
    %3776 = vmatprep.subr.mxu0 0.0
    %3777 = vmatpush2.msra.mxu0 0.0
    %3778 = vmatprep.subr.mxu0 0.0
    %3779 = vmatpush2.msra.mxu0 0.0
    %3780 = vmatprep.subr.mxu0 0.0
    %3781 = vmatpush2.msra.mxu0 0.0
    %3782 = vmatprep.subr.mxu0 0.0
    %3783 = vmatpush2.msra.mxu0 0.0
    %3784 = vmatprep.subr.mxu0 0.0
    %3785 = vmatpush2.msra.mxu0 0.0
    %3786 = vmatprep.mubr.f32.mxu0 0.0
    %3787 = vmatmul.mubr.f32.gmra.mxu0 %v3720
    %v3788 = vpop.f32.mrf.mxu0
    %v3789 = vadd.f32 %v946, %v3788
    %v3790 = vpop.f32.mrf.mxu0
    %3791 = vdwg.mxu0
    %v3792 = vadd.f32 %v3536, 1e-16
    %v3793 = vadd.f32 %v3537, 1e-16
    %v3794 = vmul.f32 %v3792, %v3792
    %v3795 = vmul.f32 %v3793, %v3793
    %v3796 = vsel %vm836, %v3794, 0.0
    %3797 = vadd.xlane.f32.xlu0 %v3796
    %v3798 = vpop.xlane.xlu0 %3797
    %v3799 = vsel %vm836, %v3795, 0.0
    %3800 = vadd.xlane.f32.xlu0 %v3799
    %v3801 = vpop.xlane.xlu0 %3800
    %v3802 = vmax.f32 %v3798, 1e-16
    %v3803 = vmax.f32 %v3801, 1e-16
    %v3804 = vrsqrt.pop %v3802
    %v3805 = vrsqrt.pop %v3803
    %v3808 = vlaneseq
    %v3809 = vshrl.u32 %v3808, 7
    %v3810 = vsub.s32 %v1032, %v3809
    %v3811 = vrot.slane %v3804, %v3810
    %v3812 = vlaneseq
    %v3813 = vshrl.u32 %v3812, 7
    %v3814 = vsub.s32 %v1032, %v3813
    %v3815 = vrot.slane %v3805, %v3814
    %v3816 = vsel %vm1037, %v3815, %v3811
    %v3818 = vsel %vm1039, %v3815, %v3811
    %v3820 = vsel %vm1040, %v3816, %v3818
    %v3822 = vrot.slane %v3789, 6
    %3823 = vrot.lane.b32.xlu0 %v3822, 118
    %v3824 = vpop.permute.xlu0 %3823
    %v3826 = vsel %vm1040, %v3789, %v3824
    %v3827 = vmax.f32 %v3826, 0.0
    %vm3828 = vcmp.ne.f32.partialorder %v3826, %v3826
    %v3829 = vadd.f32 %v3826, 0.0
    %v3830 = vand.u32 2147483647, %v3826
    %v3831 = vsub.f32 0.0, %v3830
    %v3832 = vmul.f32 %v3831, 1.442695
    %v3833 = vpow.pop %v3832
    %v3834 = vadd.f32 %v3833, 1.0
    %v3835 = vlog2.pop %v3834
    %v3836 = vmul.f32 %v3835, 0.6931472
    %v3837 = vmul.f32 -0.5, %v3833
    %v3838 = vadd.f32 %v3837, 1.0
    %v3839 = vmul.f32 %v3838, %v3833
    %v3840 = vand.u32 2147483647, %v3833
    %vm3841 = vcmp.lt.f32.partialorder %v3840, 0.0004427343
    %v3842 = vsel %vm3841, %v3839, %v3836
    %v3843 = vadd.f32 %v3827, %v3842
    %v3844 = vsel %vm3828, %v3829, %v3843
    %v3845 = vxor.u32 %v3826, 2147483648
    %v3846 = vmul.f32 %v3845, 1.442695
    %v3847 = vpow.pop %v3846
    %v3848 = vadd.f32 %v3847, 1.0
    %v3849 = vrcp.pop %v3848
    %v3850 = vmul.f32 1.0, %v3849
    %v3851 = vadd.f32 %v3844, 1.0
    %v3852 = vsel %vm1073, %v3826, -inf
    %3853 = vmax.xlane.f32.xlu0 %v3852
    %v3854 = vpop.xlane.xlu0 %3853
    %v3855 = vsub.f32 %v3826, %v3854
    %v3856 = vmul.f32 %v3855, 1.442695
    %v3857 = vpow.pop %v3856
    %3859 = vrot.lane.b32.xlu0 %v3857, 122
    %v3860 = vpop.permute.xlu0 %3859
    %v3862 = vsel %vm1084, %v3860, 0.0
    %3863 = vadd.xlane.f32.xlu0 %v3862
    %v3864 = vpop.xlane.xlu0 %3863
    %v3865 = vrcp.pop %v3864
    %v3866 = vmul.f32 %v3857, %v3865
    %v3867 = vadd.f32 %v3826, 1e-16
    %v3870 = vunpack.c.l.s4 1966171168
    %v3871 = vunpack.c.0.s8 %v3870
    %v3872 = vlaneseq
    %v3873 = vshrl.u32 %v3872, 7
    %v3874 = vsub.s32 %v3871, %v3873
    %v3875 = vrot.slane %v3867, %v3874
    %v3876 = vcombine.high %v3875, %v3875
    %v3878 = vunpack.c.l.s4 1966171168
    %v3879 = vunpack.c.0.s8 %v3878
    %v3880 = vlaneseq
    %v3881 = vshrl.u32 %v3880, 7
    %v3882 = vsub.s32 %v3879, %v3881
    %v3883 = vrot.slane %v3875, %v3882
    %v3885 = vunpack.c.l.s4 1966171168
    %v3886 = vunpack.c.0.s8 %v3885
    %v3887 = vlaneseq
    %v3888 = vshrl.u32 %v3887, 7
    %v3889 = vsub.s32 %v3886, %v3888
    %v3890 = vrot.slane %v3876, %v3889
    %v3891 = vcombine.high %v3883, %v3883
    %v3892 = vcombine.high %v3890, %v3890
    %v3893 = vlaneseq
    %v3894 = vshrl.u32 %v3893, 7
    %v3895 = vsub.s32 0, %v3894
    %v3896 = vrot.slane %v3883, %v3895
    %v3897 = vlaneseq
    %v3898 = vshrl.u32 %v3897, 7
    %v3899 = vsub.s32 0, %v3898
    %v3900 = vrot.slane %v3890, %v3899
    %v3901 = vlaneseq
    %v3902 = vshrl.u32 %v3901, 7
    %v3903 = vsub.s32 0, %v3902
    %v3904 = vrot.slane %v3891, %v3903
    %v3905 = vlaneseq
    %v3906 = vshrl.u32 %v3905, 7
    %v3907 = vsub.s32 0, %v3906
    %v3908 = vrot.slane %v3892, %v3907
    %v3913 = vmul.f32 %v3792, %v3896
    %v3914 = vmul.f32 %v3793, %v3900
    %v3915 = vmul.f32 %v3792, %v3904
    %v3916 = vmul.f32 %v3793, %v3908
    %v3917 = vsel %vm836, %v3913, 0.0
    %3918 = vadd.xlane.f32.xlu0 %v3917
    %v3919 = vpop.xlane.xlu0 %3918
    %v3920 = vsel %vm836, %v3914, 0.0
    %3921 = vadd.xlane.f32.xlu0 %v3920
    %v3922 = vpop.xlane.xlu0 %3921
    %v3923 = vsel %vm836, %v3915, 0.0
    %3924 = vadd.xlane.f32.xlu0 %v3923
    %v3925 = vpop.xlane.xlu0 %3924
    %v3926 = vsel %vm836, %v3916, 0.0
    %3927 = vadd.xlane.f32.xlu0 %v3926
    %v3928 = vpop.xlane.xlu0 %3927
    %v3929 = vmul.f32 %v3867, %v3867
    %v3930 = vsel %vm1153, %v3929, 0.0
    %3931 = vadd.xlane.f32.xlu0 %v3930
    %v3932 = vpop.xlane.xlu0 %3931
    %v3933 = vmax.f32 %v3932, 1e-16
    %v3934 = vrsqrt.pop %v3933
    %v3935 = vmul.f32 %v3820, %v3934
    %v3937 = vlaneseq
    %v3938 = vshrl.u32 %v3937, 7
    %v3939 = vsub.s32 0, %v3938
    %v3940 = vrot.slane %v3935, %v3939
    %3942 = vbcast.lane.b32.xlu0 %v3940, 256
    %v3943 = vpop.permute.xlu0 %3942
    %v3944 = vlaneseq
    %v3945 = vshrl.u32 %v3944, 7
    %v3946 = vsub.s32 1, %v3945
    %v3947 = vrot.slane %v3935, %v3946
    %3949 = vbcast.lane.b32.xlu0 %v3947, 256
    %v3950 = vpop.permute.xlu0 %3949
    %v3951 = vlaneseq
    %v3952 = vshrl.u32 %v3951, 7
    %v3953 = vsub.s32 2, %v3952
    %v3954 = vrot.slane %v3935, %v3953
    %3956 = vbcast.lane.b32.xlu0 %v3954, 256
    %v3957 = vpop.permute.xlu0 %3956
    %v3958 = vlaneseq
    %v3959 = vshrl.u32 %v3958, 7
    %v3960 = vsub.s32 3, %v3959
    %v3961 = vrot.slane %v3935, %v3960
    %3963 = vbcast.lane.b32.xlu0 %v3961, 256
    %v3964 = vpop.permute.xlu0 %3963
    %v3969 = vmul.f32 %v3919, %v3943
    %v3970 = vmul.f32 %v3922, %v3950
    %v3971 = vmul.f32 %v3925, %v3957
    %v3972 = vmul.f32 %v3928, %v3964
    %3974 = vset.pattern.permute.xlu0 4
    %3975 = vperm.xlu0 %3974, %v3844
    %v3976 = vpop.permute.xlu0 %3975
    %3982 = vset.pattern.permute.xlu0 0
    %3983 = vperm.xlu0 %3982, %v3969
    %v3984 = vpop.permute.xlu0 %3983
    %3985 = vset.pattern.permute.xlu0 0
    %3986 = vperm.xlu0 %3985, %v3970
    %v3987 = vpop.permute.xlu0 %3986
    %3988 = vset.pattern.permute.xlu0 0
    %3989 = vperm.xlu0 %3988, %v3971
    %v3990 = vpop.permute.xlu0 %3989
    %3991 = vset.pattern.permute.xlu0 0
    %3992 = vperm.xlu0 %3991, %v3972
    %v3993 = vpop.permute.xlu0 %3992
    %v3994 = vlaneseq
    %v3995 = vshrl.u32 %v3994, 7
    %v3996 = vsub.s32 %v1032, %v3995
    %v3997 = vrot.slane %v3984, %v3996
    %v3998 = vlaneseq
    %v3999 = vshrl.u32 %v3998, 7
    %v4000 = vsub.s32 %v1032, %v3999
    %v4001 = vrot.slane %v3987, %v4000
    %v4002 = vlaneseq
    %v4003 = vshrl.u32 %v4002, 7
    %v4004 = vsub.s32 %v1032, %v4003
    %v4005 = vrot.slane %v3990, %v4004
    %v4006 = vlaneseq
    %v4007 = vshrl.u32 %v4006, 7
    %v4008 = vsub.s32 %v1032, %v4007
    %v4009 = vrot.slane %v3993, %v4008
    %v4010 = vsel %vm1037, %v4001, %v3997
    %v4011 = vsel %vm1235, %v4005, %v4010
    %v4012 = vsel %vm1039, %v4009, %v4011
    %v4014 = vmul.f32 %v3976, %v4012
    %v4015 = vsel %vm1240, %v4014, -inf
    %4016 = vmax.xlane.f32.xlu0 %v4015
    %v4017 = vpop.xlane.xlu0 %4016
    %v4018 = vsub.f32 %v4014, %v4017
    %v4019 = vmul.f32 %v4018, 1.442695
    %v4020 = vpow.pop %v4019
    %v4021 = vsel %vm1240, %v4020, 0.0
    %4022 = vadd.xlane.f32.xlu0 %v4021
    %v4023 = vpop.xlane.xlu0 %4022
    %v4024 = vrcp.pop %v4023
    %v4025 = vmul.f32 %v4020, %v4024
    %4027 = vset.pattern.permute.xlu0 5
    %4028 = vperm.xlu0 %4027, %v3850
    %v4029 = vpop.permute.xlu0 %4028
    %v4031 = vmul.f32 %v4029, %v4025
    %v4032 = vsub.f32 1.0, %v3850
    %4034 = vset.pattern.permute.xlu0 5
    %4035 = vperm.xlu0 %4034, %v4032
    %v4036 = vpop.permute.xlu0 %4035
    %v4038 = vmul.f32 %v4036, %v3396
    %v4039 = vadd.f32 %v4031, %v4038
    %4041 = vrot.lane.b32.xlu0 %v4039, 121
    %v4042 = vpop.permute.xlu0 %4041
    %4044 = vrot.lane.b32.xlu0 %v4039, 1
    %v4045 = vpop.permute.xlu0 %4044
    %v4047 = vsel %vm1273, %v4042, %v4045
    %4048 = vrot.lane.b32.xlu0 %v4039, 127
    %v4049 = vpop.permute.xlu0 %4048
    %4051 = vrot.lane.b32.xlu0 %v4039, 7
    %v4052 = vpop.permute.xlu0 %4051
    %v4054 = vsel %vm1281, %v4049, %v4052
    %4056 = vset.pattern.permute.xlu0 6
    %4057 = vperm.xlu0 %4056, %v3866
    %v4058 = vpop.permute.xlu0 %4057
    %v4060 = vmul.f32 %v4058, %v4047
    %4061 = vset.pattern.permute.xlu0 7
    %4062 = vperm.xlu0 %4061, %v3866
    %v4063 = vpop.permute.xlu0 %4062
    %v4065 = vmul.f32 %v4063, %v4039
    %v4066 = vadd.f32 %v4060, %v4065
    %4067 = vset.pattern.permute.xlu0 8
    %4068 = vperm.xlu0 %4067, %v3866
    %v4069 = vpop.permute.xlu0 %4068
    %v4071 = vmul.f32 %v4069, %v4054
    %v4072 = vadd.f32 %v4066, %v4071
    %v4073 = vmax.f32 %v4072, 1e-30
    %v4074 = vlog2.pop %v4073
    %v4075 = vmul.f32 %v4074, 0.6931472
    %4077 = vset.pattern.permute.xlu0 9
    %4078 = vperm.xlu0 %4077, %v3851
    %v4079 = vpop.permute.xlu0 %4078
    %v4081 = vmul.f32 %v4079, %v4075
    %v4082 = vmul.f32 %v4081, 1.442695
    %v4083 = vpow.pop %v4082
    %v4084 = vsel %vm1240, %v4083, 0.0
    %4085 = vadd.xlane.f32.xlu0 %v4084
    %v4086 = vpop.xlane.xlu0 %4085
    %v4087 = vadd.f32 %v4086, 1e-16
    %v4088 = vrcp.pop %v4087
    %v4089 = vmul.f32 %v4083, %v4088
    %v4090 = vlaneseq
    %v4091 = vshrl.u32 %v4090, 7
    %v4092 = vsub.s32 0, %v4091
    %v4093 = vrot.slane %v4089, %v4092
    %4095 = vbcast.lane.b32.xlu0 %v4093, 256
    %v4096 = vpop.permute.xlu0 %4095
    %v4097 = vlaneseq
    %v4098 = vshrl.u32 %v4097, 7
    %v4099 = vsub.s32 1, %v4098
    %v4100 = vrot.slane %v4089, %v4099
    %4102 = vbcast.lane.b32.xlu0 %v4100, 256
    %v4103 = vpop.permute.xlu0 %4102
    %v4104 = vmul.f32 %v4096, %v3536
    %v4105 = vmul.f32 %v4103, %v3537
    %v4106 = vsel %vm836, %v4104, 0.0
    %v4107 = vrot.slane %v4106, 4
    %v4108 = vadd.f32 %v4106, %v4107
    %v4109 = vrot.slane %v4108, 2
    %v4110 = vadd.f32 %v4108, %v4109
    %v4111 = vrot.slane %v4110, 1
    %v4112 = vadd.f32 %v4110, %v4111
    %v4113 = vsel %vm836, %v4105, 0.0
    %v4114 = vrot.slane %v4113, 4
    %v4115 = vadd.f32 %v4113, %v4114
    %v4116 = vrot.slane %v4115, 2
    %v4117 = vadd.f32 %v4115, %v4116
    %v4118 = vrot.slane %v4117, 1
    %v4119 = vadd.f32 %v4117, %v4118
    %v4120 = vxor.u32 %v3789, 2147483648
    %v4121 = vmul.f32 %v4120, 1.442695
    %v4122 = vpow.pop %v4121
    %v4123 = vadd.f32 %v4122, 1.0
    %v4124 = vrcp.pop %v4123
    %v4125 = vmul.f32 1.0, %v4124
    %v4126 = vlaneseq
    %v4127 = vshrl.u32 %v4126, 7
    %v4128 = vsub.s32 2, %v4127
    %v4129 = vrot.slane %v4089, %v4128
    %4131 = vbcast.lane.b32.xlu0 %v4129, 256
    %v4132 = vpop.permute.xlu0 %4131
    %v4133 = vlaneseq
    %v4134 = vshrl.u32 %v4133, 7
    %v4135 = vsub.s32 3, %v4134
    %v4136 = vrot.slane %v4089, %v4135
    %4138 = vbcast.lane.b32.xlu0 %v4136, 256
    %v4139 = vpop.permute.xlu0 %4138
    %v4142 = vunpack.c.l.s4 1966171168
    %v4143 = vunpack.c.0.s8 %v4142
    %v4144 = vlaneseq
    %v4145 = vshrl.u32 %v4144, 7
    %v4146 = vsub.s32 %v4143, %v4145
    %v4147 = vrot.slane %v4125, %v4146
    %v4148 = vcombine.high %v4147, %v4147
    %v4150 = vunpack.c.l.s4 1966171168
    %v4151 = vunpack.c.0.s8 %v4150
    %v4152 = vlaneseq
    %v4153 = vshrl.u32 %v4152, 7
    %v4154 = vsub.s32 %v4151, %v4153
    %v4155 = vrot.slane %v4147, %v4154
    %v4157 = vunpack.c.l.s4 1966171168
    %v4158 = vunpack.c.0.s8 %v4157
    %v4159 = vlaneseq
    %v4160 = vshrl.u32 %v4159, 7
    %v4161 = vsub.s32 %v4158, %v4160
    %v4162 = vrot.slane %v4148, %v4161
    %v4163 = vlaneseq
    %v4164 = vshrl.u32 %v4163, 7
    %v4165 = vsub.s32 0, %v4164
    %v4166 = vrot.slane %v4155, %v4165
    %v4167 = vlaneseq
    %v4168 = vshrl.u32 %v4167, 7
    %v4169 = vsub.s32 0, %v4168
    %v4170 = vrot.slane %v4162, %v4169
    %v4173 = vmul.f32 %v4132, %v4166
    %v4174 = vmul.f32 %v4139, %v4170
    %v4175 = vsub.f32 1.0, %v4173
    %v4176 = vsub.f32 1.0, %v4174
    %4179 = vrot.lane.b32.xlu0 %v4175, 108
    %v4180 = vpop.permute.xlu0 %4179
    %4181 = vrot.lane.b32.xlu0 %v4176, 108
    %v4182 = vpop.permute.xlu0 %4181
    %v4185 = vmul.f32 %v3536, %v4180
    %v4186 = vmul.f32 %v3537, %v4182
    %v4188 = vunpack.c.l.s4 1966171168
    %v4189 = vunpack.c.0.s8 %v4188
    %v4190 = vlaneseq
    %v4191 = vshrl.u32 %v4190, 7
    %v4192 = vsub.s32 %v4189, %v4191
    %v4193 = vrot.slane %v3789, %v4192
    %v4194 = vcombine.high %v4193, %v4193
    %v4196 = vunpack.c.l.s4 1966171168
    %v4197 = vunpack.c.0.s8 %v4196
    %v4198 = vlaneseq
    %v4199 = vshrl.u32 %v4198, 7
    %v4200 = vsub.s32 %v4197, %v4199
    %v4201 = vrot.slane %v4193, %v4200
    %v4203 = vunpack.c.l.s4 1966171168
    %v4204 = vunpack.c.0.s8 %v4203
    %v4205 = vlaneseq
    %v4206 = vshrl.u32 %v4205, 7
    %v4207 = vsub.s32 %v4204, %v4206
    %v4208 = vrot.slane %v4194, %v4207
    %v4209 = vlaneseq
    %v4210 = vshrl.u32 %v4209, 7
    %v4211 = vsub.s32 0, %v4210
    %v4212 = vrot.slane %v4201, %v4211
    %v4213 = vlaneseq
    %v4214 = vshrl.u32 %v4213, 7
    %v4215 = vsub.s32 0, %v4214
    %v4216 = vrot.slane %v4208, %v4215
    %v4219 = vmul.f32 %v4132, %v4212
    %v4220 = vmul.f32 %v4139, %v4216
    %4223 = vrot.lane.b32.xlu0 %v4219, 104
    %v4224 = vpop.permute.xlu0 %4223
    %4225 = vrot.lane.b32.xlu0 %v4220, 104
    %v4226 = vpop.permute.xlu0 %4225
    %v4229 = vadd.f32 %v4185, %v4224
    %v4230 = vadd.f32 %v4186, %v4226
    %v4234 = vsel %vm1037, %v4119, %v4112
    %4235 = vrot.lane.b32.xlu0 %v4234, 16
    %v4236 = vpop.permute.xlu0 %4235
    %v4238 = vsel %vm761, %v3719, %v4236
    %s4239 = scalar_lea.vmem [#allocation14], 8
    %4240 = vst.msk [vmem:[%s4239] sm:$0x3] %vm1467, %v4238
    %v4241 = vld [vmem:[%s595] sm:$0x3]
    %4242 = vmatprep.subr.mxu0 0.0
    %4243 = vmatpush1.msra.mxu0 0.0
    %4244 = vmatprep.subr.mxu0 0.0
    %4245 = vmatpush1.msra.mxu0 0.0
    %4246 = vmatprep.subr.mxu0 0.0
    %4247 = vmatpush1.msra.mxu0 0.0
    %4248 = vmatprep.subr.mxu0 0.0
    %4249 = vmatpush1.msra.mxu0 0.0
    %4250 = vmatprep.subr.mxu0 0.0
    %4251 = vmatpush1.msra.mxu0 0.0
    %4252 = vmatprep.subr.mxu0 0.0
    %4253 = vmatpush1.msra.mxu0 0.0
    %4254 = vmatprep.subr.mxu0 0.0
    %4255 = vmatpush1.msra.mxu0 0.0
    %4256 = vmatprep.subr.mxu0 0.0
    %4257 = vmatpush1.msra.mxu0 0.0
    %4258 = vmatprep.subr.mxu0 0.0
    %4259 = vmatpush1.msra.mxu0 0.0
    %4260 = vmatprep.subr.mxu0 0.0
    %4261 = vmatpush1.msra.mxu0 0.0
    %4262 = vmatprep.subr.mxu0 0.0
    %4263 = vmatpush1.msra.mxu0 0.0
    %4264 = vmatprep.subr.mxu0 0.0
    %4265 = vmatpush1.msra.mxu0 0.0
    %4266 = vmatprep.subr.mxu0 0.0
    %4267 = vmatpush1.msra.mxu0 0.0
    %4268 = vmatprep.subr.mxu0 0.0
    %4269 = vmatpush1.msra.mxu0 0.0
    %4270 = vmatprep.subr.mxu0 0.0
    %4271 = vmatpush1.msra.mxu0 %v124
    %4272 = vmatprep.subr.mxu0 0.0
    %4273 = vmatpush1.msra.mxu0 %v123
    %4274 = vmatprep.subr.mxu0 0.0
    %4275 = vmatpush2.msra.mxu0 0.0
    %4276 = vmatprep.subr.mxu0 0.0
    %4277 = vmatpush2.msra.mxu0 0.0
    %4278 = vmatprep.subr.mxu0 0.0
    %4279 = vmatpush2.msra.mxu0 0.0
    %4280 = vmatprep.subr.mxu0 0.0
    %4281 = vmatpush2.msra.mxu0 0.0
    %4282 = vmatprep.subr.mxu0 0.0
    %4283 = vmatpush2.msra.mxu0 0.0
    %4284 = vmatprep.subr.mxu0 0.0
    %4285 = vmatpush2.msra.mxu0 0.0
    %4286 = vmatprep.subr.mxu0 0.0
    %4287 = vmatpush2.msra.mxu0 0.0
    %4288 = vmatprep.subr.mxu0 0.0
    %4289 = vmatpush2.msra.mxu0 0.0
    %4290 = vmatprep.subr.mxu0 0.0
    %4291 = vmatpush2.msra.mxu0 0.0
    %4292 = vmatprep.subr.mxu0 0.0
    %4293 = vmatpush2.msra.mxu0 0.0
    %4294 = vmatprep.subr.mxu0 0.0
    %4295 = vmatpush2.msra.mxu0 0.0
    %4296 = vmatprep.subr.mxu0 0.0
    %4297 = vmatpush2.msra.mxu0 0.0
    %4298 = vmatprep.subr.mxu0 0.0
    %4299 = vmatpush2.msra.mxu0 0.0
    %4300 = vmatprep.subr.mxu0 0.0
    %4301 = vmatpush2.msra.mxu0 0.0
    %4302 = vmatprep.subr.mxu0 0.0
    %4303 = vmatpush2.msra.mxu0 0.0
    %4304 = vmatprep.subr.mxu0 0.0
    %4305 = vmatpush2.msra.mxu0 0.0
    %4306 = vmatprep.mubr.f32.mxu0 0.0
    %4307 = vmatmul.mubr.f32.gmra.mxu0 %v3720
    %v4308 = vpop.f32.mrf.mxu0
    %v4309 = vadd.f32 0.0, %v4308
    %v4310 = vpop.f32.mrf.mxu0
    %4311 = vdwg.mxu0
    %v4312 = vadd.f32 %v4241, %v4309
    %v4313 = vsel %vm836, %v4234, 0
    %4315 = vmatprep.subr.mxu0 0.0
    %4316 = vmatpush1.msra.mxu0 0.0
    %4317 = vmatprep.subr.mxu0 0.0
    %4318 = vmatpush1.msra.mxu0 0.0
    %4319 = vmatprep.subr.mxu0 0.0
    %4320 = vmatpush1.msra.mxu0 0.0
    %4321 = vmatprep.subr.mxu0 0.0
    %4322 = vmatpush1.msra.mxu0 0.0
    %4323 = vmatprep.subr.mxu0 0.0
    %4324 = vmatpush1.msra.mxu0 0.0
    %4325 = vmatprep.subr.mxu0 0.0
    %4326 = vmatpush1.msra.mxu0 0.0
    %4327 = vmatprep.subr.mxu0 0.0
    %4328 = vmatpush1.msra.mxu0 0.0
    %4329 = vmatprep.subr.mxu0 0.0
    %4330 = vmatpush1.msra.mxu0 0.0
    %4331 = vmatprep.subr.mxu0 0.0
    %4332 = vmatpush1.msra.mxu0 0.0
    %4333 = vmatprep.subr.mxu0 0.0
    %4334 = vmatpush1.msra.mxu0 0.0
    %4335 = vmatprep.subr.mxu0 0.0
    %4336 = vmatpush1.msra.mxu0 0.0
    %4337 = vmatprep.subr.mxu0 0.0
    %4338 = vmatpush1.msra.mxu0 0.0
    %4339 = vmatprep.subr.mxu0 0.0
    %4340 = vmatpush1.msra.mxu0 0.0
    %4341 = vmatprep.subr.mxu0 0.0
    %4342 = vmatpush1.msra.mxu0 0.0
    %4343 = vmatprep.subr.mxu0 0.0
    %4344 = vmatpush1.msra.mxu0 0.0
    %4345 = vmatprep.subr.mxu0 0.0
    %4346 = vmatpush1.msra.mxu0 %v841
    %4347 = vmatprep.subr.mxu0 0.0
    %4348 = vmatpush2.msra.mxu0 0.0
    %4349 = vmatprep.subr.mxu0 0.0
    %4350 = vmatpush2.msra.mxu0 0.0
    %4351 = vmatprep.subr.mxu0 0.0
    %4352 = vmatpush2.msra.mxu0 0.0
    %4353 = vmatprep.subr.mxu0 0.0
    %4354 = vmatpush2.msra.mxu0 0.0
    %4355 = vmatprep.subr.mxu0 0.0
    %4356 = vmatpush2.msra.mxu0 0.0
    %4357 = vmatprep.subr.mxu0 0.0
    %4358 = vmatpush2.msra.mxu0 0.0
    %4359 = vmatprep.subr.mxu0 0.0
    %4360 = vmatpush2.msra.mxu0 0.0
    %4361 = vmatprep.subr.mxu0 0.0
    %4362 = vmatpush2.msra.mxu0 0.0
    %4363 = vmatprep.subr.mxu0 0.0
    %4364 = vmatpush2.msra.mxu0 0.0
    %4365 = vmatprep.subr.mxu0 0.0
    %4366 = vmatpush2.msra.mxu0 0.0
    %4367 = vmatprep.subr.mxu0 0.0
    %4368 = vmatpush2.msra.mxu0 0.0
    %4369 = vmatprep.subr.mxu0 0.0
    %4370 = vmatpush2.msra.mxu0 0.0
    %4371 = vmatprep.subr.mxu0 0.0
    %4372 = vmatpush2.msra.mxu0 0.0
    %4373 = vmatprep.subr.mxu0 0.0
    %4374 = vmatpush2.msra.mxu0 0.0
    %4375 = vmatprep.subr.mxu0 0.0
    %4376 = vmatpush2.msra.mxu0 0.0
    %4377 = vmatprep.subr.mxu0 0.0
    %4378 = vmatpush2.msra.mxu0 0.0
    %4379 = vmatprep.mubr.f32.mxu0 0.0
    %4380 = vmatmul.mubr.f32.gmra.mxu0 %v4313
    %v4381 = vpop.f32.mrf.mxu0
    %v4382 = vadd.f32 0.0, %v4381
    %v4383 = vpop.f32.mrf.mxu0
    %4384 = vdwg.mxu0
    %v4385 = vadd.f32 %v4312, %v4382
    %v4386 = vxor.u32 %v4385, 2147483648
    %v4387 = vmul.f32 %v4386, 1.442695
    %v4388 = vpow.pop %v4387
    %v4389 = vadd.f32 %v4388, 1.0
    %v4390 = vrcp.pop %v4389
    %v4391 = vmul.f32 1.0, %v4390
    %v4392 = vtanh.pop %v4385
    %v4393 = vmul.f32 %v4391, %v3710
    %4395 = vrot.lane.b32.xlu0 %v4392, 96
    %v4396 = vpop.permute.xlu0 %4395
    %v4398 = vmul.f32 %v4391, %v4396
    %4400 = vrot.lane.b32.xlu0 %v4398, 16
    %v4401 = vpop.permute.xlu0 %4400
    %v4403 = vadd.f32 %v4393, %v4401
    %v4404 = vtanh.pop %v4403
    %4406 = vrot.lane.b32.xlu0 %v4404, 32
    %v4407 = vpop.permute.xlu0 %4406
    %v4409 = vmul.f32 %v4391, %v4407
    %4411 = vrot.lane.b32.xlu0 %v4409, 80
    %v4412 = vpop.permute.xlu0 %4411
    %v4413 = vsel %vm761, %v4412, 0
    %4415 = vmatprep.subr.mxu0 0.0
    %4416 = vmatpush1.msra.mxu0 0.0
    %4417 = vmatprep.subr.mxu0 0.0
    %4418 = vmatpush1.msra.mxu0 0.0
    %4419 = vmatprep.subr.mxu0 0.0
    %4420 = vmatpush1.msra.mxu0 0.0
    %4421 = vmatprep.subr.mxu0 0.0
    %4422 = vmatpush1.msra.mxu0 0.0
    %4423 = vmatprep.subr.mxu0 0.0
    %4424 = vmatpush1.msra.mxu0 0.0
    %4425 = vmatprep.subr.mxu0 0.0
    %4426 = vmatpush1.msra.mxu0 0.0
    %4427 = vmatprep.subr.mxu0 0.0
    %4428 = vmatpush1.msra.mxu0 0.0
    %4429 = vmatprep.subr.mxu0 0.0
    %4430 = vmatpush1.msra.mxu0 0.0
    %4431 = vmatprep.subr.mxu0 0.0
    %4432 = vmatpush1.msra.mxu0 0.0
    %4433 = vmatprep.subr.mxu0 0.0
    %4434 = vmatpush1.msra.mxu0 0.0
    %4435 = vmatprep.subr.mxu0 0.0
    %4436 = vmatpush1.msra.mxu0 0.0
    %4437 = vmatprep.subr.mxu0 0.0
    %4438 = vmatpush1.msra.mxu0 0.0
    %4439 = vmatprep.subr.mxu0 0.0
    %4440 = vmatpush1.msra.mxu0 0.0
    %4441 = vmatprep.subr.mxu0 0.0
    %4442 = vmatpush1.msra.mxu0 0.0
    %4443 = vmatprep.subr.mxu0 0.0
    %4444 = vmatpush1.msra.mxu0 %v127
    %4445 = vmatprep.subr.mxu0 0.0
    %4446 = vmatpush1.msra.mxu0 %v126
    %4447 = vmatprep.subr.mxu0 0.0
    %4448 = vmatpush2.msra.mxu0 0.0
    %4449 = vmatprep.subr.mxu0 0.0
    %4450 = vmatpush2.msra.mxu0 0.0
    %4451 = vmatprep.subr.mxu0 0.0
    %4452 = vmatpush2.msra.mxu0 0.0
    %4453 = vmatprep.subr.mxu0 0.0
    %4454 = vmatpush2.msra.mxu0 0.0
    %4455 = vmatprep.subr.mxu0 0.0
    %4456 = vmatpush2.msra.mxu0 0.0
    %4457 = vmatprep.subr.mxu0 0.0
    %4458 = vmatpush2.msra.mxu0 0.0
    %4459 = vmatprep.subr.mxu0 0.0
    %4460 = vmatpush2.msra.mxu0 0.0
    %4461 = vmatprep.subr.mxu0 0.0
    %4462 = vmatpush2.msra.mxu0 0.0
    %4463 = vmatprep.subr.mxu0 0.0
    %4464 = vmatpush2.msra.mxu0 0.0
    %4465 = vmatprep.subr.mxu0 0.0
    %4466 = vmatpush2.msra.mxu0 0.0
    %4467 = vmatprep.subr.mxu0 0.0
    %4468 = vmatpush2.msra.mxu0 0.0
    %4469 = vmatprep.subr.mxu0 0.0
    %4470 = vmatpush2.msra.mxu0 0.0
    %4471 = vmatprep.subr.mxu0 0.0
    %4472 = vmatpush2.msra.mxu0 0.0
    %4473 = vmatprep.subr.mxu0 0.0
    %4474 = vmatpush2.msra.mxu0 0.0
    %4475 = vmatprep.subr.mxu0 0.0
    %4476 = vmatpush2.msra.mxu0 0.0
    %4477 = vmatprep.subr.mxu0 0.0
    %4478 = vmatpush2.msra.mxu0 0.0
    %4479 = vmatprep.mubr.f32.mxu0 0.0
    %4480 = vmatmul.mubr.f32.gmra.mxu0 %v4413
    %v4481 = vpop.f32.mrf.mxu0
    %v4482 = vadd.f32 %v946, %v4481
    %v4483 = vpop.f32.mrf.mxu0
    %4484 = vdwg.mxu0
    %v4485 = vadd.f32 %v4229, 1e-16
    %v4486 = vadd.f32 %v4230, 1e-16
    %v4487 = vmul.f32 %v4485, %v4485
    %v4488 = vmul.f32 %v4486, %v4486
    %v4489 = vsel %vm836, %v4487, 0.0
    %4490 = vadd.xlane.f32.xlu0 %v4489
    %v4491 = vpop.xlane.xlu0 %4490
    %v4492 = vsel %vm836, %v4488, 0.0
    %4493 = vadd.xlane.f32.xlu0 %v4492
    %v4494 = vpop.xlane.xlu0 %4493
    %v4495 = vmax.f32 %v4491, 1e-16
    %v4496 = vmax.f32 %v4494, 1e-16
    %v4497 = vrsqrt.pop %v4495
    %v4498 = vrsqrt.pop %v4496
    %v4501 = vlaneseq
    %v4502 = vshrl.u32 %v4501, 7
    %v4503 = vsub.s32 %v1032, %v4502
    %v4504 = vrot.slane %v4497, %v4503
    %v4505 = vlaneseq
    %v4506 = vshrl.u32 %v4505, 7
    %v4507 = vsub.s32 %v1032, %v4506
    %v4508 = vrot.slane %v4498, %v4507
    %v4509 = vsel %vm1037, %v4508, %v4504
    %v4511 = vsel %vm1039, %v4508, %v4504
    %v4513 = vsel %vm1040, %v4509, %v4511
    %v4515 = vrot.slane %v4482, 6
    %4516 = vrot.lane.b32.xlu0 %v4515, 118
    %v4517 = vpop.permute.xlu0 %4516
    %v4519 = vsel %vm1040, %v4482, %v4517
    %v4520 = vmax.f32 %v4519, 0.0
    %vm4521 = vcmp.ne.f32.partialorder %v4519, %v4519
    %v4522 = vadd.f32 %v4519, 0.0
    %v4523 = vand.u32 2147483647, %v4519
    %v4524 = vsub.f32 0.0, %v4523
    %v4525 = vmul.f32 %v4524, 1.442695
    %v4526 = vpow.pop %v4525
    %v4527 = vadd.f32 %v4526, 1.0
    %v4528 = vlog2.pop %v4527
    %v4529 = vmul.f32 %v4528, 0.6931472
    %v4530 = vmul.f32 -0.5, %v4526
    %v4531 = vadd.f32 %v4530, 1.0
    %v4532 = vmul.f32 %v4531, %v4526
    %v4533 = vand.u32 2147483647, %v4526
    %vm4534 = vcmp.lt.f32.partialorder %v4533, 0.0004427343
    %v4535 = vsel %vm4534, %v4532, %v4529
    %v4536 = vadd.f32 %v4520, %v4535
    %v4537 = vsel %vm4521, %v4522, %v4536
    %v4538 = vxor.u32 %v4519, 2147483648
    %v4539 = vmul.f32 %v4538, 1.442695
    %v4540 = vpow.pop %v4539
    %v4541 = vadd.f32 %v4540, 1.0
    %v4542 = vrcp.pop %v4541
    %v4543 = vmul.f32 1.0, %v4542
    %v4544 = vadd.f32 %v4537, 1.0
    %v4545 = vsel %vm1073, %v4519, -inf
    %4546 = vmax.xlane.f32.xlu0 %v4545
    %v4547 = vpop.xlane.xlu0 %4546
    %v4548 = vsub.f32 %v4519, %v4547
    %v4549 = vmul.f32 %v4548, 1.442695
    %v4550 = vpow.pop %v4549
    %4552 = vrot.lane.b32.xlu0 %v4550, 122
    %v4553 = vpop.permute.xlu0 %4552
    %v4555 = vsel %vm1084, %v4553, 0.0
    %4556 = vadd.xlane.f32.xlu0 %v4555
    %v4557 = vpop.xlane.xlu0 %4556
    %v4558 = vrcp.pop %v4557
    %v4559 = vmul.f32 %v4550, %v4558
    %v4560 = vadd.f32 %v4519, 1e-16
    %v4563 = vunpack.c.l.s4 1966171168
    %v4564 = vunpack.c.0.s8 %v4563
    %v4565 = vlaneseq
    %v4566 = vshrl.u32 %v4565, 7
    %v4567 = vsub.s32 %v4564, %v4566
    %v4568 = vrot.slane %v4560, %v4567
    %v4569 = vcombine.high %v4568, %v4568
    %v4571 = vunpack.c.l.s4 1966171168
    %v4572 = vunpack.c.0.s8 %v4571
    %v4573 = vlaneseq
    %v4574 = vshrl.u32 %v4573, 7
    %v4575 = vsub.s32 %v4572, %v4574
    %v4576 = vrot.slane %v4568, %v4575
    %v4578 = vunpack.c.l.s4 1966171168
    %v4579 = vunpack.c.0.s8 %v4578
    %v4580 = vlaneseq
    %v4581 = vshrl.u32 %v4580, 7
    %v4582 = vsub.s32 %v4579, %v4581
    %v4583 = vrot.slane %v4569, %v4582
    %v4584 = vcombine.high %v4576, %v4576
    %v4585 = vcombine.high %v4583, %v4583
    %v4586 = vlaneseq
    %v4587 = vshrl.u32 %v4586, 7
    %v4588 = vsub.s32 0, %v4587
    %v4589 = vrot.slane %v4576, %v4588
    %v4590 = vlaneseq
    %v4591 = vshrl.u32 %v4590, 7
    %v4592 = vsub.s32 0, %v4591
    %v4593 = vrot.slane %v4583, %v4592
    %v4594 = vlaneseq
    %v4595 = vshrl.u32 %v4594, 7
    %v4596 = vsub.s32 0, %v4595
    %v4597 = vrot.slane %v4584, %v4596
    %v4598 = vlaneseq
    %v4599 = vshrl.u32 %v4598, 7
    %v4600 = vsub.s32 0, %v4599
    %v4601 = vrot.slane %v4585, %v4600
    %v4606 = vmul.f32 %v4485, %v4589
    %v4607 = vmul.f32 %v4486, %v4593
    %v4608 = vmul.f32 %v4485, %v4597
    %v4609 = vmul.f32 %v4486, %v4601
    %v4610 = vsel %vm836, %v4606, 0.0
    %4611 = vadd.xlane.f32.xlu0 %v4610
    %v4612 = vpop.xlane.xlu0 %4611
    %v4613 = vsel %vm836, %v4607, 0.0
    %4614 = vadd.xlane.f32.xlu0 %v4613
    %v4615 = vpop.xlane.xlu0 %4614
    %v4616 = vsel %vm836, %v4608, 0.0
    %4617 = vadd.xlane.f32.xlu0 %v4616
    %v4618 = vpop.xlane.xlu0 %4617
    %v4619 = vsel %vm836, %v4609, 0.0
    %4620 = vadd.xlane.f32.xlu0 %v4619
    %v4621 = vpop.xlane.xlu0 %4620
    %v4622 = vmul.f32 %v4560, %v4560
    %v4623 = vsel %vm1153, %v4622, 0.0
    %4624 = vadd.xlane.f32.xlu0 %v4623
    %v4625 = vpop.xlane.xlu0 %4624
    %v4626 = vmax.f32 %v4625, 1e-16
    %v4627 = vrsqrt.pop %v4626
    %v4628 = vmul.f32 %v4513, %v4627
    %v4630 = vlaneseq
    %v4631 = vshrl.u32 %v4630, 7
    %v4632 = vsub.s32 0, %v4631
    %v4633 = vrot.slane %v4628, %v4632
    %4635 = vbcast.lane.b32.xlu0 %v4633, 256
    %v4636 = vpop.permute.xlu0 %4635
    %v4637 = vlaneseq
    %v4638 = vshrl.u32 %v4637, 7
    %v4639 = vsub.s32 1, %v4638
    %v4640 = vrot.slane %v4628, %v4639
    %4642 = vbcast.lane.b32.xlu0 %v4640, 256
    %v4643 = vpop.permute.xlu0 %4642
    %v4644 = vlaneseq
    %v4645 = vshrl.u32 %v4644, 7
    %v4646 = vsub.s32 2, %v4645
    %v4647 = vrot.slane %v4628, %v4646
    %4649 = vbcast.lane.b32.xlu0 %v4647, 256
    %v4650 = vpop.permute.xlu0 %4649
    %v4651 = vlaneseq
    %v4652 = vshrl.u32 %v4651, 7
    %v4653 = vsub.s32 3, %v4652
    %v4654 = vrot.slane %v4628, %v4653
    %4656 = vbcast.lane.b32.xlu0 %v4654, 256
    %v4657 = vpop.permute.xlu0 %4656
    %v4662 = vmul.f32 %v4612, %v4636
    %v4663 = vmul.f32 %v4615, %v4643
    %v4664 = vmul.f32 %v4618, %v4650
    %v4665 = vmul.f32 %v4621, %v4657
    %4667 = vset.pattern.permute.xlu0 4
    %4668 = vperm.xlu0 %4667, %v4537
    %v4669 = vpop.permute.xlu0 %4668
    %4675 = vset.pattern.permute.xlu0 0
    %4676 = vperm.xlu0 %4675, %v4662
    %v4677 = vpop.permute.xlu0 %4676
    %4678 = vset.pattern.permute.xlu0 0
    %4679 = vperm.xlu0 %4678, %v4663
    %v4680 = vpop.permute.xlu0 %4679
    %4681 = vset.pattern.permute.xlu0 0
    %4682 = vperm.xlu0 %4681, %v4664
    %v4683 = vpop.permute.xlu0 %4682
    %4684 = vset.pattern.permute.xlu0 0
    %4685 = vperm.xlu0 %4684, %v4665
    %v4686 = vpop.permute.xlu0 %4685
    %v4687 = vlaneseq
    %v4688 = vshrl.u32 %v4687, 7
    %v4689 = vsub.s32 %v1032, %v4688
    %v4690 = vrot.slane %v4677, %v4689
    %v4691 = vlaneseq
    %v4692 = vshrl.u32 %v4691, 7
    %v4693 = vsub.s32 %v1032, %v4692
    %v4694 = vrot.slane %v4680, %v4693
    %v4695 = vlaneseq
    %v4696 = vshrl.u32 %v4695, 7
    %v4697 = vsub.s32 %v1032, %v4696
    %v4698 = vrot.slane %v4683, %v4697
    %v4699 = vlaneseq
    %v4700 = vshrl.u32 %v4699, 7
    %v4701 = vsub.s32 %v1032, %v4700
    %v4702 = vrot.slane %v4686, %v4701
    %v4703 = vsel %vm1037, %v4694, %v4690
    %v4704 = vsel %vm1235, %v4698, %v4703
    %v4705 = vsel %vm1039, %v4702, %v4704
    %v4707 = vmul.f32 %v4669, %v4705
    %v4708 = vsel %vm1240, %v4707, -inf
    %4709 = vmax.xlane.f32.xlu0 %v4708
    %v4710 = vpop.xlane.xlu0 %4709
    %v4711 = vsub.f32 %v4707, %v4710
    %v4712 = vmul.f32 %v4711, 1.442695
    %v4713 = vpow.pop %v4712
    %v4714 = vsel %vm1240, %v4713, 0.0
    %4715 = vadd.xlane.f32.xlu0 %v4714
    %v4716 = vpop.xlane.xlu0 %4715
    %v4717 = vrcp.pop %v4716
    %v4718 = vmul.f32 %v4713, %v4717
    %4720 = vset.pattern.permute.xlu0 5
    %4721 = vperm.xlu0 %4720, %v4543
    %v4722 = vpop.permute.xlu0 %4721
    %v4724 = vmul.f32 %v4722, %v4718
    %v4725 = vsub.f32 1.0, %v4543
    %4727 = vset.pattern.permute.xlu0 5
    %4728 = vperm.xlu0 %4727, %v4725
    %v4729 = vpop.permute.xlu0 %4728
    %v4731 = vmul.f32 %v4729, %v4089
    %v4732 = vadd.f32 %v4724, %v4731
    %4734 = vrot.lane.b32.xlu0 %v4732, 121
    %v4735 = vpop.permute.xlu0 %4734
    %4737 = vrot.lane.b32.xlu0 %v4732, 1
    %v4738 = vpop.permute.xlu0 %4737
    %v4740 = vsel %vm1273, %v4735, %v4738
    %4741 = vrot.lane.b32.xlu0 %v4732, 127
    %v4742 = vpop.permute.xlu0 %4741
    %4744 = vrot.lane.b32.xlu0 %v4732, 7
    %v4745 = vpop.permute.xlu0 %4744
    %v4747 = vsel %vm1281, %v4742, %v4745
    %4749 = vset.pattern.permute.xlu0 6
    %4750 = vperm.xlu0 %4749, %v4559
    %v4751 = vpop.permute.xlu0 %4750
    %v4753 = vmul.f32 %v4751, %v4740
    %4754 = vset.pattern.permute.xlu0 7
    %4755 = vperm.xlu0 %4754, %v4559
    %v4756 = vpop.permute.xlu0 %4755
    %v4758 = vmul.f32 %v4756, %v4732
    %v4759 = vadd.f32 %v4753, %v4758
    %4760 = vset.pattern.permute.xlu0 8
    %4761 = vperm.xlu0 %4760, %v4559
    %v4762 = vpop.permute.xlu0 %4761
    %v4764 = vmul.f32 %v4762, %v4747
    %v4765 = vadd.f32 %v4759, %v4764
    %v4766 = vmax.f32 %v4765, 1e-30
    %v4767 = vlog2.pop %v4766
    %v4768 = vmul.f32 %v4767, 0.6931472
    %4770 = vset.pattern.permute.xlu0 9
    %4771 = vperm.xlu0 %4770, %v4544
    %v4772 = vpop.permute.xlu0 %4771
    %v4774 = vmul.f32 %v4772, %v4768
    %v4775 = vmul.f32 %v4774, 1.442695
    %v4776 = vpow.pop %v4775
    %v4777 = vsel %vm1240, %v4776, 0.0
    %4778 = vadd.xlane.f32.xlu0 %v4777
    %v4779 = vpop.xlane.xlu0 %4778
    %v4780 = vadd.f32 %v4779, 1e-16
    %v4781 = vrcp.pop %v4780
    %v4782 = vmul.f32 %v4776, %v4781
    %v4783 = vlaneseq
    %v4784 = vshrl.u32 %v4783, 7
    %v4785 = vsub.s32 0, %v4784
    %v4786 = vrot.slane %v4782, %v4785
    %4788 = vbcast.lane.b32.xlu0 %v4786, 256
    %v4789 = vpop.permute.xlu0 %4788
    %v4790 = vlaneseq
    %v4791 = vshrl.u32 %v4790, 7
    %v4792 = vsub.s32 1, %v4791
    %v4793 = vrot.slane %v4782, %v4792
    %4795 = vbcast.lane.b32.xlu0 %v4793, 256
    %v4796 = vpop.permute.xlu0 %4795
    %v4797 = vmul.f32 %v4789, %v4229
    %v4798 = vmul.f32 %v4796, %v4230
    %v4799 = vsel %vm836, %v4797, 0.0
    %v4800 = vrot.slane %v4799, 4
    %v4801 = vadd.f32 %v4799, %v4800
    %v4802 = vrot.slane %v4801, 2
    %v4803 = vadd.f32 %v4801, %v4802
    %v4804 = vrot.slane %v4803, 1
    %v4805 = vadd.f32 %v4803, %v4804
    %v4806 = vsel %vm836, %v4798, 0.0
    %v4807 = vrot.slane %v4806, 4
    %v4808 = vadd.f32 %v4806, %v4807
    %v4809 = vrot.slane %v4808, 2
    %v4810 = vadd.f32 %v4808, %v4809
    %v4811 = vrot.slane %v4810, 1
    %v4812 = vadd.f32 %v4810, %v4811
    %v4813 = vxor.u32 %v4482, 2147483648
    %v4814 = vmul.f32 %v4813, 1.442695
    %v4815 = vpow.pop %v4814
    %v4816 = vadd.f32 %v4815, 1.0
    %v4817 = vrcp.pop %v4816
    %v4818 = vmul.f32 1.0, %v4817
    %v4819 = vlaneseq
    %v4820 = vshrl.u32 %v4819, 7
    %v4821 = vsub.s32 2, %v4820
    %v4822 = vrot.slane %v4782, %v4821
    %4824 = vbcast.lane.b32.xlu0 %v4822, 256
    %v4825 = vpop.permute.xlu0 %4824
    %v4826 = vlaneseq
    %v4827 = vshrl.u32 %v4826, 7
    %v4828 = vsub.s32 3, %v4827
    %v4829 = vrot.slane %v4782, %v4828
    %4831 = vbcast.lane.b32.xlu0 %v4829, 256
    %v4832 = vpop.permute.xlu0 %4831
    %v4835 = vunpack.c.l.s4 1966171168
    %v4836 = vunpack.c.0.s8 %v4835
    %v4837 = vlaneseq
    %v4838 = vshrl.u32 %v4837, 7
    %v4839 = vsub.s32 %v4836, %v4838
    %v4840 = vrot.slane %v4818, %v4839
    %v4841 = vcombine.high %v4840, %v4840
    %v4843 = vunpack.c.l.s4 1966171168
    %v4844 = vunpack.c.0.s8 %v4843
    %v4845 = vlaneseq
    %v4846 = vshrl.u32 %v4845, 7
    %v4847 = vsub.s32 %v4844, %v4846
    %v4848 = vrot.slane %v4840, %v4847
    %v4850 = vunpack.c.l.s4 1966171168
    %v4851 = vunpack.c.0.s8 %v4850
    %v4852 = vlaneseq
    %v4853 = vshrl.u32 %v4852, 7
    %v4854 = vsub.s32 %v4851, %v4853
    %v4855 = vrot.slane %v4841, %v4854
    %v4856 = vlaneseq
    %v4857 = vshrl.u32 %v4856, 7
    %v4858 = vsub.s32 0, %v4857
    %v4859 = vrot.slane %v4848, %v4858
    %v4860 = vlaneseq
    %v4861 = vshrl.u32 %v4860, 7
    %v4862 = vsub.s32 0, %v4861
    %v4863 = vrot.slane %v4855, %v4862
    %v4866 = vmul.f32 %v4825, %v4859
    %v4867 = vmul.f32 %v4832, %v4863
    %v4868 = vsub.f32 1.0, %v4866
    %v4869 = vsub.f32 1.0, %v4867
    %4872 = vrot.lane.b32.xlu0 %v4868, 108
    %v4873 = vpop.permute.xlu0 %4872
    %4874 = vrot.lane.b32.xlu0 %v4869, 108
    %v4875 = vpop.permute.xlu0 %4874
    %v4878 = vmul.f32 %v4229, %v4873
    %v4879 = vmul.f32 %v4230, %v4875
    %v4881 = vunpack.c.l.s4 1966171168
    %v4882 = vunpack.c.0.s8 %v4881
    %v4883 = vlaneseq
    %v4884 = vshrl.u32 %v4883, 7
    %v4885 = vsub.s32 %v4882, %v4884
    %v4886 = vrot.slane %v4482, %v4885
    %v4887 = vcombine.high %v4886, %v4886
    %v4889 = vunpack.c.l.s4 1966171168
    %v4890 = vunpack.c.0.s8 %v4889
    %v4891 = vlaneseq
    %v4892 = vshrl.u32 %v4891, 7
    %v4893 = vsub.s32 %v4890, %v4892
    %v4894 = vrot.slane %v4886, %v4893
    %v4896 = vunpack.c.l.s4 1966171168
    %v4897 = vunpack.c.0.s8 %v4896
    %v4898 = vlaneseq
    %v4899 = vshrl.u32 %v4898, 7
    %v4900 = vsub.s32 %v4897, %v4899
    %v4901 = vrot.slane %v4887, %v4900
    %v4902 = vlaneseq
    %v4903 = vshrl.u32 %v4902, 7
    %v4904 = vsub.s32 0, %v4903
    %v4905 = vrot.slane %v4894, %v4904
    %v4906 = vlaneseq
    %v4907 = vshrl.u32 %v4906, 7
    %v4908 = vsub.s32 0, %v4907
    %v4909 = vrot.slane %v4901, %v4908
    %v4912 = vmul.f32 %v4825, %v4905
    %v4913 = vmul.f32 %v4832, %v4909
    %4916 = vrot.lane.b32.xlu0 %v4912, 104
    %v4917 = vpop.permute.xlu0 %4916
    %4918 = vrot.lane.b32.xlu0 %v4913, 104
    %v4919 = vpop.permute.xlu0 %4918
    %v4922 = vadd.f32 %v4878, %v4917
    %v4923 = vadd.f32 %v4879, %v4919
    %v4927 = vsel %vm1037, %v4812, %v4805
    %4928 = vrot.lane.b32.xlu0 %v4927, 16
    %v4929 = vpop.permute.xlu0 %4928
    %v4931 = vsel %vm761, %v4412, %v4929
    %s4932 = scalar_lea.vmem [#allocation14], 10
    %4933 = vst.msk [vmem:[%s4932] sm:$0x3] %vm1467, %v4931
    %v4934 = vld [vmem:[%s672] sm:$0x3]
    %4935 = vmatprep.subr.mxu0 0.0
    %4936 = vmatpush1.msra.mxu0 0.0
    %4937 = vmatprep.subr.mxu0 0.0
    %4938 = vmatpush1.msra.mxu0 0.0
    %4939 = vmatprep.subr.mxu0 0.0
    %4940 = vmatpush1.msra.mxu0 0.0
    %4941 = vmatprep.subr.mxu0 0.0
    %4942 = vmatpush1.msra.mxu0 0.0
    %4943 = vmatprep.subr.mxu0 0.0
    %4944 = vmatpush1.msra.mxu0 0.0
    %4945 = vmatprep.subr.mxu0 0.0
    %4946 = vmatpush1.msra.mxu0 0.0
    %4947 = vmatprep.subr.mxu0 0.0
    %4948 = vmatpush1.msra.mxu0 0.0
    %4949 = vmatprep.subr.mxu0 0.0
    %4950 = vmatpush1.msra.mxu0 0.0
    %4951 = vmatprep.subr.mxu0 0.0
    %4952 = vmatpush1.msra.mxu0 0.0
    %4953 = vmatprep.subr.mxu0 0.0
    %4954 = vmatpush1.msra.mxu0 0.0
    %4955 = vmatprep.subr.mxu0 0.0
    %4956 = vmatpush1.msra.mxu0 0.0
    %4957 = vmatprep.subr.mxu0 0.0
    %4958 = vmatpush1.msra.mxu0 0.0
    %4959 = vmatprep.subr.mxu0 0.0
    %4960 = vmatpush1.msra.mxu0 0.0
    %4961 = vmatprep.subr.mxu0 0.0
    %4962 = vmatpush1.msra.mxu0 0.0
    %4963 = vmatprep.subr.mxu0 0.0
    %4964 = vmatpush1.msra.mxu0 %v124
    %4965 = vmatprep.subr.mxu0 0.0
    %4966 = vmatpush1.msra.mxu0 %v123
    %4967 = vmatprep.subr.mxu0 0.0
    %4968 = vmatpush2.msra.mxu0 0.0
    %4969 = vmatprep.subr.mxu0 0.0
    %4970 = vmatpush2.msra.mxu0 0.0
    %4971 = vmatprep.subr.mxu0 0.0
    %4972 = vmatpush2.msra.mxu0 0.0
    %4973 = vmatprep.subr.mxu0 0.0
    %4974 = vmatpush2.msra.mxu0 0.0
    %4975 = vmatprep.subr.mxu0 0.0
    %4976 = vmatpush2.msra.mxu0 0.0
    %4977 = vmatprep.subr.mxu0 0.0
    %4978 = vmatpush2.msra.mxu0 0.0
    %4979 = vmatprep.subr.mxu0 0.0
    %4980 = vmatpush2.msra.mxu0 0.0
    %4981 = vmatprep.subr.mxu0 0.0
    %4982 = vmatpush2.msra.mxu0 0.0
    %4983 = vmatprep.subr.mxu0 0.0
    %4984 = vmatpush2.msra.mxu0 0.0
    %4985 = vmatprep.subr.mxu0 0.0
    %4986 = vmatpush2.msra.mxu0 0.0
    %4987 = vmatprep.subr.mxu0 0.0
    %4988 = vmatpush2.msra.mxu0 0.0
    %4989 = vmatprep.subr.mxu0 0.0
    %4990 = vmatpush2.msra.mxu0 0.0
    %4991 = vmatprep.subr.mxu0 0.0
    %4992 = vmatpush2.msra.mxu0 0.0
    %4993 = vmatprep.subr.mxu0 0.0
    %4994 = vmatpush2.msra.mxu0 0.0
    %4995 = vmatprep.subr.mxu0 0.0
    %4996 = vmatpush2.msra.mxu0 0.0
    %4997 = vmatprep.subr.mxu0 0.0
    %4998 = vmatpush2.msra.mxu0 0.0
    %4999 = vmatprep.mubr.f32.mxu0 0.0
    %5000 = vmatmul.mubr.f32.gmra.mxu0 %v4413
    %v5001 = vpop.f32.mrf.mxu0
    %v5002 = vadd.f32 0.0, %v5001
    %v5003 = vpop.f32.mrf.mxu0
    %5004 = vdwg.mxu0
    %v5005 = vadd.f32 %v4934, %v5002
    %v5006 = vsel %vm836, %v4927, 0
    %5008 = vmatprep.subr.mxu0 0.0
    %5009 = vmatpush1.msra.mxu0 0.0
    %5010 = vmatprep.subr.mxu0 0.0
    %5011 = vmatpush1.msra.mxu0 0.0
    %5012 = vmatprep.subr.mxu0 0.0
    %5013 = vmatpush1.msra.mxu0 0.0
    %5014 = vmatprep.subr.mxu0 0.0
    %5015 = vmatpush1.msra.mxu0 0.0
    %5016 = vmatprep.subr.mxu0 0.0
    %5017 = vmatpush1.msra.mxu0 0.0
    %5018 = vmatprep.subr.mxu0 0.0
    %5019 = vmatpush1.msra.mxu0 0.0
    %5020 = vmatprep.subr.mxu0 0.0
    %5021 = vmatpush1.msra.mxu0 0.0
    %5022 = vmatprep.subr.mxu0 0.0
    %5023 = vmatpush1.msra.mxu0 0.0
    %5024 = vmatprep.subr.mxu0 0.0
    %5025 = vmatpush1.msra.mxu0 0.0
    %5026 = vmatprep.subr.mxu0 0.0
    %5027 = vmatpush1.msra.mxu0 0.0
    %5028 = vmatprep.subr.mxu0 0.0
    %5029 = vmatpush1.msra.mxu0 0.0
    %5030 = vmatprep.subr.mxu0 0.0
    %5031 = vmatpush1.msra.mxu0 0.0
    %5032 = vmatprep.subr.mxu0 0.0
    %5033 = vmatpush1.msra.mxu0 0.0
    %5034 = vmatprep.subr.mxu0 0.0
    %5035 = vmatpush1.msra.mxu0 0.0
    %5036 = vmatprep.subr.mxu0 0.0
    %5037 = vmatpush1.msra.mxu0 0.0
    %5038 = vmatprep.subr.mxu0 0.0
    %5039 = vmatpush1.msra.mxu0 %v841
    %5040 = vmatprep.subr.mxu0 0.0
    %5041 = vmatpush2.msra.mxu0 0.0
    %5042 = vmatprep.subr.mxu0 0.0
    %5043 = vmatpush2.msra.mxu0 0.0
    %5044 = vmatprep.subr.mxu0 0.0
    %5045 = vmatpush2.msra.mxu0 0.0
    %5046 = vmatprep.subr.mxu0 0.0
    %5047 = vmatpush2.msra.mxu0 0.0
    %5048 = vmatprep.subr.mxu0 0.0
    %5049 = vmatpush2.msra.mxu0 0.0
    %5050 = vmatprep.subr.mxu0 0.0
    %5051 = vmatpush2.msra.mxu0 0.0
    %5052 = vmatprep.subr.mxu0 0.0
    %5053 = vmatpush2.msra.mxu0 0.0
    %5054 = vmatprep.subr.mxu0 0.0
    %5055 = vmatpush2.msra.mxu0 0.0
    %5056 = vmatprep.subr.mxu0 0.0
    %5057 = vmatpush2.msra.mxu0 0.0
    %5058 = vmatprep.subr.mxu0 0.0
    %5059 = vmatpush2.msra.mxu0 0.0
    %5060 = vmatprep.subr.mxu0 0.0
    %5061 = vmatpush2.msra.mxu0 0.0
    %5062 = vmatprep.subr.mxu0 0.0
    %5063 = vmatpush2.msra.mxu0 0.0
    %5064 = vmatprep.subr.mxu0 0.0
    %5065 = vmatpush2.msra.mxu0 0.0
    %5066 = vmatprep.subr.mxu0 0.0
    %5067 = vmatpush2.msra.mxu0 0.0
    %5068 = vmatprep.subr.mxu0 0.0
    %5069 = vmatpush2.msra.mxu0 0.0
    %5070 = vmatprep.subr.mxu0 0.0
    %5071 = vmatpush2.msra.mxu0 0.0
    %5072 = vmatprep.mubr.f32.mxu0 0.0
    %5073 = vmatmul.mubr.f32.gmra.mxu0 %v5006
    %v5074 = vpop.f32.mrf.mxu0
    %v5075 = vadd.f32 0.0, %v5074
    %v5076 = vpop.f32.mrf.mxu0
    %5077 = vdwg.mxu0
    %v5078 = vadd.f32 %v5005, %v5075
    %v5079 = vxor.u32 %v5078, 2147483648
    %v5080 = vmul.f32 %v5079, 1.442695
    %v5081 = vpow.pop %v5080
    %v5082 = vadd.f32 %v5081, 1.0
    %v5083 = vrcp.pop %v5082
    %v5084 = vmul.f32 1.0, %v5083
    %v5085 = vtanh.pop %v5078
    %v5086 = vmul.f32 %v5084, %v4403
    %5088 = vrot.lane.b32.xlu0 %v5085, 96
    %v5089 = vpop.permute.xlu0 %5088
    %v5091 = vmul.f32 %v5084, %v5089
    %5093 = vrot.lane.b32.xlu0 %v5091, 16
    %v5094 = vpop.permute.xlu0 %5093
    %v5096 = vadd.f32 %v5086, %v5094
    %v5097 = vtanh.pop %v5096
    %5099 = vrot.lane.b32.xlu0 %v5097, 32
    %v5100 = vpop.permute.xlu0 %5099
    %v5102 = vmul.f32 %v5084, %v5100
    %5104 = vrot.lane.b32.xlu0 %v5102, 80
    %v5105 = vpop.permute.xlu0 %5104
    %v5106 = vsel %vm761, %v5105, 0
    %5108 = vmatprep.subr.mxu0 0.0
    %5109 = vmatpush1.msra.mxu0 0.0
    %5110 = vmatprep.subr.mxu0 0.0
    %5111 = vmatpush1.msra.mxu0 0.0
    %5112 = vmatprep.subr.mxu0 0.0
    %5113 = vmatpush1.msra.mxu0 0.0
    %5114 = vmatprep.subr.mxu0 0.0
    %5115 = vmatpush1.msra.mxu0 0.0
    %5116 = vmatprep.subr.mxu0 0.0
    %5117 = vmatpush1.msra.mxu0 0.0
    %5118 = vmatprep.subr.mxu0 0.0
    %5119 = vmatpush1.msra.mxu0 0.0
    %5120 = vmatprep.subr.mxu0 0.0
    %5121 = vmatpush1.msra.mxu0 0.0
    %5122 = vmatprep.subr.mxu0 0.0
    %5123 = vmatpush1.msra.mxu0 0.0
    %5124 = vmatprep.subr.mxu0 0.0
    %5125 = vmatpush1.msra.mxu0 0.0
    %5126 = vmatprep.subr.mxu0 0.0
    %5127 = vmatpush1.msra.mxu0 0.0
    %5128 = vmatprep.subr.mxu0 0.0
    %5129 = vmatpush1.msra.mxu0 0.0
    %5130 = vmatprep.subr.mxu0 0.0
    %5131 = vmatpush1.msra.mxu0 0.0
    %5132 = vmatprep.subr.mxu0 0.0
    %5133 = vmatpush1.msra.mxu0 0.0
    %5134 = vmatprep.subr.mxu0 0.0
    %5135 = vmatpush1.msra.mxu0 0.0
    %5136 = vmatprep.subr.mxu0 0.0
    %5137 = vmatpush1.msra.mxu0 %v127
    %5138 = vmatprep.subr.mxu0 0.0
    %5139 = vmatpush1.msra.mxu0 %v126
    %5140 = vmatprep.subr.mxu0 0.0
    %5141 = vmatpush2.msra.mxu0 0.0
    %5142 = vmatprep.subr.mxu0 0.0
    %5143 = vmatpush2.msra.mxu0 0.0
    %5144 = vmatprep.subr.mxu0 0.0
    %5145 = vmatpush2.msra.mxu0 0.0
    %5146 = vmatprep.subr.mxu0 0.0
    %5147 = vmatpush2.msra.mxu0 0.0
    %5148 = vmatprep.subr.mxu0 0.0
    %5149 = vmatpush2.msra.mxu0 0.0
    %5150 = vmatprep.subr.mxu0 0.0
    %5151 = vmatpush2.msra.mxu0 0.0
    %5152 = vmatprep.subr.mxu0 0.0
    %5153 = vmatpush2.msra.mxu0 0.0
    %5154 = vmatprep.subr.mxu0 0.0
    %5155 = vmatpush2.msra.mxu0 0.0
    %5156 = vmatprep.subr.mxu0 0.0
    %5157 = vmatpush2.msra.mxu0 0.0
    %5158 = vmatprep.subr.mxu0 0.0
    %5159 = vmatpush2.msra.mxu0 0.0
    %5160 = vmatprep.subr.mxu0 0.0
    %5161 = vmatpush2.msra.mxu0 0.0
    %5162 = vmatprep.subr.mxu0 0.0
    %5163 = vmatpush2.msra.mxu0 0.0
    %5164 = vmatprep.subr.mxu0 0.0
    %5165 = vmatpush2.msra.mxu0 0.0
    %5166 = vmatprep.subr.mxu0 0.0
    %5167 = vmatpush2.msra.mxu0 0.0
    %5168 = vmatprep.subr.mxu0 0.0
    %5169 = vmatpush2.msra.mxu0 0.0
    %5170 = vmatprep.subr.mxu0 0.0
    %5171 = vmatpush2.msra.mxu0 0.0
    %5172 = vmatprep.mubr.f32.mxu0 0.0
    %5173 = vmatmul.mubr.f32.gmra.mxu0 %v5106
    %v5174 = vpop.f32.mrf.mxu0
    %v5175 = vadd.f32 %v946, %v5174
    %v5176 = vpop.f32.mrf.mxu0
    %5177 = vdwg.mxu0
    %v5178 = vadd.f32 %v4922, 1e-16
    %v5179 = vadd.f32 %v4923, 1e-16
    %v5180 = vmul.f32 %v5178, %v5178
    %v5181 = vmul.f32 %v5179, %v5179
    %v5182 = vsel %vm836, %v5180, 0.0
    %5183 = vadd.xlane.f32.xlu0 %v5182
    %v5184 = vpop.xlane.xlu0 %5183
    %v5185 = vsel %vm836, %v5181, 0.0
    %5186 = vadd.xlane.f32.xlu0 %v5185
    %v5187 = vpop.xlane.xlu0 %5186
    %v5188 = vmax.f32 %v5184, 1e-16
    %v5189 = vmax.f32 %v5187, 1e-16
    %v5190 = vrsqrt.pop %v5188
    %v5191 = vrsqrt.pop %v5189
    %v5194 = vlaneseq
    %v5195 = vshrl.u32 %v5194, 7
    %v5196 = vsub.s32 %v1032, %v5195
    %v5197 = vrot.slane %v5190, %v5196
    %v5198 = vlaneseq
    %v5199 = vshrl.u32 %v5198, 7
    %v5200 = vsub.s32 %v1032, %v5199
    %v5201 = vrot.slane %v5191, %v5200
    %v5202 = vsel %vm1037, %v5201, %v5197
    %v5204 = vsel %vm1039, %v5201, %v5197
    %v5206 = vsel %vm1040, %v5202, %v5204
    %v5208 = vrot.slane %v5175, 6
    %5209 = vrot.lane.b32.xlu0 %v5208, 118
    %v5210 = vpop.permute.xlu0 %5209
    %v5212 = vsel %vm1040, %v5175, %v5210
    %v5213 = vmax.f32 %v5212, 0.0
    %vm5214 = vcmp.ne.f32.partialorder %v5212, %v5212
    %v5215 = vadd.f32 %v5212, 0.0
    %v5216 = vand.u32 2147483647, %v5212
    %v5217 = vsub.f32 0.0, %v5216
    %v5218 = vmul.f32 %v5217, 1.442695
    %v5219 = vpow.pop %v5218
    %v5220 = vadd.f32 %v5219, 1.0
    %v5221 = vlog2.pop %v5220
    %v5222 = vmul.f32 %v5221, 0.6931472
    %v5223 = vmul.f32 -0.5, %v5219
    %v5224 = vadd.f32 %v5223, 1.0
    %v5225 = vmul.f32 %v5224, %v5219
    %v5226 = vand.u32 2147483647, %v5219
    %vm5227 = vcmp.lt.f32.partialorder %v5226, 0.0004427343
    %v5228 = vsel %vm5227, %v5225, %v5222
    %v5229 = vadd.f32 %v5213, %v5228
    %v5230 = vsel %vm5214, %v5215, %v5229
    %v5231 = vxor.u32 %v5212, 2147483648
    %v5232 = vmul.f32 %v5231, 1.442695
    %v5233 = vpow.pop %v5232
    %v5234 = vadd.f32 %v5233, 1.0
    %v5235 = vrcp.pop %v5234
    %v5236 = vmul.f32 1.0, %v5235
    %v5237 = vadd.f32 %v5230, 1.0
    %v5238 = vsel %vm1073, %v5212, -inf
    %5239 = vmax.xlane.f32.xlu0 %v5238
    %v5240 = vpop.xlane.xlu0 %5239
    %v5241 = vsub.f32 %v5212, %v5240
    %v5242 = vmul.f32 %v5241, 1.442695
    %v5243 = vpow.pop %v5242
    %5245 = vrot.lane.b32.xlu0 %v5243, 122
    %v5246 = vpop.permute.xlu0 %5245
    %v5248 = vsel %vm1084, %v5246, 0.0
    %5249 = vadd.xlane.f32.xlu0 %v5248
    %v5250 = vpop.xlane.xlu0 %5249
    %v5251 = vrcp.pop %v5250
    %v5252 = vmul.f32 %v5243, %v5251
    %v5253 = vadd.f32 %v5212, 1e-16
    %v5256 = vunpack.c.l.s4 1966171168
    %v5257 = vunpack.c.0.s8 %v5256
    %v5258 = vlaneseq
    %v5259 = vshrl.u32 %v5258, 7
    %v5260 = vsub.s32 %v5257, %v5259
    %v5261 = vrot.slane %v5253, %v5260
    %v5262 = vcombine.high %v5261, %v5261
    %v5264 = vunpack.c.l.s4 1966171168
    %v5265 = vunpack.c.0.s8 %v5264
    %v5266 = vlaneseq
    %v5267 = vshrl.u32 %v5266, 7
    %v5268 = vsub.s32 %v5265, %v5267
    %v5269 = vrot.slane %v5261, %v5268
    %v5271 = vunpack.c.l.s4 1966171168
    %v5272 = vunpack.c.0.s8 %v5271
    %v5273 = vlaneseq
    %v5274 = vshrl.u32 %v5273, 7
    %v5275 = vsub.s32 %v5272, %v5274
    %v5276 = vrot.slane %v5262, %v5275
    %v5277 = vcombine.high %v5269, %v5269
    %v5278 = vcombine.high %v5276, %v5276
    %v5279 = vlaneseq
    %v5280 = vshrl.u32 %v5279, 7
    %v5281 = vsub.s32 0, %v5280
    %v5282 = vrot.slane %v5269, %v5281
    %v5283 = vlaneseq
    %v5284 = vshrl.u32 %v5283, 7
    %v5285 = vsub.s32 0, %v5284
    %v5286 = vrot.slane %v5276, %v5285
    %v5287 = vlaneseq
    %v5288 = vshrl.u32 %v5287, 7
    %v5289 = vsub.s32 0, %v5288
    %v5290 = vrot.slane %v5277, %v5289
    %v5291 = vlaneseq
    %v5292 = vshrl.u32 %v5291, 7
    %v5293 = vsub.s32 0, %v5292
    %v5294 = vrot.slane %v5278, %v5293
    %v5299 = vmul.f32 %v5178, %v5282
    %v5300 = vmul.f32 %v5179, %v5286
    %v5301 = vmul.f32 %v5178, %v5290
    %v5302 = vmul.f32 %v5179, %v5294
    %v5303 = vsel %vm836, %v5299, 0.0
    %5304 = vadd.xlane.f32.xlu0 %v5303
    %v5305 = vpop.xlane.xlu0 %5304
    %v5306 = vsel %vm836, %v5300, 0.0
    %5307 = vadd.xlane.f32.xlu0 %v5306
    %v5308 = vpop.xlane.xlu0 %5307
    %v5309 = vsel %vm836, %v5301, 0.0
    %5310 = vadd.xlane.f32.xlu0 %v5309
    %v5311 = vpop.xlane.xlu0 %5310
    %v5312 = vsel %vm836, %v5302, 0.0
    %5313 = vadd.xlane.f32.xlu0 %v5312
    %v5314 = vpop.xlane.xlu0 %5313
    %v5315 = vmul.f32 %v5253, %v5253
    %v5316 = vsel %vm1153, %v5315, 0.0
    %5317 = vadd.xlane.f32.xlu0 %v5316
    %v5318 = vpop.xlane.xlu0 %5317
    %v5319 = vmax.f32 %v5318, 1e-16
    %v5320 = vrsqrt.pop %v5319
    %v5321 = vmul.f32 %v5206, %v5320
    %v5323 = vlaneseq
    %v5324 = vshrl.u32 %v5323, 7
    %v5325 = vsub.s32 0, %v5324
    %v5326 = vrot.slane %v5321, %v5325
    %5328 = vbcast.lane.b32.xlu0 %v5326, 256
    %v5329 = vpop.permute.xlu0 %5328
    %v5330 = vlaneseq
    %v5331 = vshrl.u32 %v5330, 7
    %v5332 = vsub.s32 1, %v5331
    %v5333 = vrot.slane %v5321, %v5332
    %5335 = vbcast.lane.b32.xlu0 %v5333, 256
    %v5336 = vpop.permute.xlu0 %5335
    %v5337 = vlaneseq
    %v5338 = vshrl.u32 %v5337, 7
    %v5339 = vsub.s32 2, %v5338
    %v5340 = vrot.slane %v5321, %v5339
    %5342 = vbcast.lane.b32.xlu0 %v5340, 256
    %v5343 = vpop.permute.xlu0 %5342
    %v5344 = vlaneseq
    %v5345 = vshrl.u32 %v5344, 7
    %v5346 = vsub.s32 3, %v5345
    %v5347 = vrot.slane %v5321, %v5346
    %5349 = vbcast.lane.b32.xlu0 %v5347, 256
    %v5350 = vpop.permute.xlu0 %5349
    %v5355 = vmul.f32 %v5305, %v5329
    %v5356 = vmul.f32 %v5308, %v5336
    %v5357 = vmul.f32 %v5311, %v5343
    %v5358 = vmul.f32 %v5314, %v5350
    %5360 = vset.pattern.permute.xlu0 4
    %5361 = vperm.xlu0 %5360, %v5230
    %v5362 = vpop.permute.xlu0 %5361
    %5368 = vset.pattern.permute.xlu0 0
    %5369 = vperm.xlu0 %5368, %v5355
    %v5370 = vpop.permute.xlu0 %5369
    %5371 = vset.pattern.permute.xlu0 0
    %5372 = vperm.xlu0 %5371, %v5356
    %v5373 = vpop.permute.xlu0 %5372
    %5374 = vset.pattern.permute.xlu0 0
    %5375 = vperm.xlu0 %5374, %v5357
    %v5376 = vpop.permute.xlu0 %5375
    %5377 = vset.pattern.permute.xlu0 0
    %5378 = vperm.xlu0 %5377, %v5358
    %v5379 = vpop.permute.xlu0 %5378
    %v5380 = vlaneseq
    %v5381 = vshrl.u32 %v5380, 7
    %v5382 = vsub.s32 %v1032, %v5381
    %v5383 = vrot.slane %v5370, %v5382
    %v5384 = vlaneseq
    %v5385 = vshrl.u32 %v5384, 7
    %v5386 = vsub.s32 %v1032, %v5385
    %v5387 = vrot.slane %v5373, %v5386
    %v5388 = vlaneseq
    %v5389 = vshrl.u32 %v5388, 7
    %v5390 = vsub.s32 %v1032, %v5389
    %v5391 = vrot.slane %v5376, %v5390
    %v5392 = vlaneseq
    %v5393 = vshrl.u32 %v5392, 7
    %v5394 = vsub.s32 %v1032, %v5393
    %v5395 = vrot.slane %v5379, %v5394
    %v5396 = vsel %vm1037, %v5387, %v5383
    %v5397 = vsel %vm1235, %v5391, %v5396
    %v5398 = vsel %vm1039, %v5395, %v5397
    %v5400 = vmul.f32 %v5362, %v5398
    %v5401 = vsel %vm1240, %v5400, -inf
    %5402 = vmax.xlane.f32.xlu0 %v5401
    %v5403 = vpop.xlane.xlu0 %5402
    %v5404 = vsub.f32 %v5400, %v5403
    %v5405 = vmul.f32 %v5404, 1.442695
    %v5406 = vpow.pop %v5405
    %v5407 = vsel %vm1240, %v5406, 0.0
    %5408 = vadd.xlane.f32.xlu0 %v5407
    %v5409 = vpop.xlane.xlu0 %5408
    %v5410 = vrcp.pop %v5409
    %v5411 = vmul.f32 %v5406, %v5410
    %5413 = vset.pattern.permute.xlu0 5
    %5414 = vperm.xlu0 %5413, %v5236
    %v5415 = vpop.permute.xlu0 %5414
    %v5417 = vmul.f32 %v5415, %v5411
    %v5418 = vsub.f32 1.0, %v5236
    %5420 = vset.pattern.permute.xlu0 5
    %5421 = vperm.xlu0 %5420, %v5418
    %v5422 = vpop.permute.xlu0 %5421
    %v5424 = vmul.f32 %v5422, %v4782
    %v5425 = vadd.f32 %v5417, %v5424
    %5427 = vrot.lane.b32.xlu0 %v5425, 121
    %v5428 = vpop.permute.xlu0 %5427
    %5430 = vrot.lane.b32.xlu0 %v5425, 1
    %v5431 = vpop.permute.xlu0 %5430
    %v5433 = vsel %vm1273, %v5428, %v5431
    %5434 = vrot.lane.b32.xlu0 %v5425, 127
    %v5435 = vpop.permute.xlu0 %5434
    %5437 = vrot.lane.b32.xlu0 %v5425, 7
    %v5438 = vpop.permute.xlu0 %5437
    %v5440 = vsel %vm1281, %v5435, %v5438
    %5442 = vset.pattern.permute.xlu0 6
    %5443 = vperm.xlu0 %5442, %v5252
    %v5444 = vpop.permute.xlu0 %5443
    %v5446 = vmul.f32 %v5444, %v5433
    %5447 = vset.pattern.permute.xlu0 7
    %5448 = vperm.xlu0 %5447, %v5252
    %v5449 = vpop.permute.xlu0 %5448
    %v5451 = vmul.f32 %v5449, %v5425
    %v5452 = vadd.f32 %v5446, %v5451
    %5453 = vset.pattern.permute.xlu0 8
    %5454 = vperm.xlu0 %5453, %v5252
    %v5455 = vpop.permute.xlu0 %5454
    %v5457 = vmul.f32 %v5455, %v5440
    %v5458 = vadd.f32 %v5452, %v5457
    %v5459 = vmax.f32 %v5458, 1e-30
    %v5460 = vlog2.pop %v5459
    %v5461 = vmul.f32 %v5460, 0.6931472
    %5463 = vset.pattern.permute.xlu0 9
    %5464 = vperm.xlu0 %5463, %v5237
    %v5465 = vpop.permute.xlu0 %5464
    %v5467 = vmul.f32 %v5465, %v5461
    %v5468 = vmul.f32 %v5467, 1.442695
    %v5469 = vpow.pop %v5468
    %v5470 = vsel %vm1240, %v5469, 0.0
    %5471 = vadd.xlane.f32.xlu0 %v5470
    %v5472 = vpop.xlane.xlu0 %5471
    %v5473 = vadd.f32 %v5472, 1e-16
    %v5474 = vrcp.pop %v5473
    %v5475 = vmul.f32 %v5469, %v5474
    %v5476 = vlaneseq
    %v5477 = vshrl.u32 %v5476, 7
    %v5478 = vsub.s32 0, %v5477
    %v5479 = vrot.slane %v5475, %v5478
    %5481 = vbcast.lane.b32.xlu0 %v5479, 256
    %v5482 = vpop.permute.xlu0 %5481
    %v5483 = vlaneseq
    %v5484 = vshrl.u32 %v5483, 7
    %v5485 = vsub.s32 1, %v5484
    %v5486 = vrot.slane %v5475, %v5485
    %5488 = vbcast.lane.b32.xlu0 %v5486, 256
    %v5489 = vpop.permute.xlu0 %5488
    %v5490 = vmul.f32 %v5482, %v4922
    %v5491 = vmul.f32 %v5489, %v4923
    %v5492 = vsel %vm836, %v5490, 0.0
    %v5493 = vrot.slane %v5492, 4
    %v5494 = vadd.f32 %v5492, %v5493
    %v5495 = vrot.slane %v5494, 2
    %v5496 = vadd.f32 %v5494, %v5495
    %v5497 = vrot.slane %v5496, 1
    %v5498 = vadd.f32 %v5496, %v5497
    %v5499 = vsel %vm836, %v5491, 0.0
    %v5500 = vrot.slane %v5499, 4
    %v5501 = vadd.f32 %v5499, %v5500
    %v5502 = vrot.slane %v5501, 2
    %v5503 = vadd.f32 %v5501, %v5502
    %v5504 = vrot.slane %v5503, 1
    %v5505 = vadd.f32 %v5503, %v5504
    %v5506 = vxor.u32 %v5175, 2147483648
    %v5507 = vmul.f32 %v5506, 1.442695
    %v5508 = vpow.pop %v5507
    %v5509 = vadd.f32 %v5508, 1.0
    %v5510 = vrcp.pop %v5509
    %v5511 = vmul.f32 1.0, %v5510
    %v5512 = vlaneseq
    %v5513 = vshrl.u32 %v5512, 7
    %v5514 = vsub.s32 2, %v5513
    %v5515 = vrot.slane %v5475, %v5514
    %5517 = vbcast.lane.b32.xlu0 %v5515, 256
    %v5518 = vpop.permute.xlu0 %5517
    %v5519 = vlaneseq
    %v5520 = vshrl.u32 %v5519, 7
    %v5521 = vsub.s32 3, %v5520
    %v5522 = vrot.slane %v5475, %v5521
    %5524 = vbcast.lane.b32.xlu0 %v5522, 256
    %v5525 = vpop.permute.xlu0 %5524
    %v5528 = vunpack.c.l.s4 1966171168
    %v5529 = vunpack.c.0.s8 %v5528
    %v5530 = vlaneseq
    %v5531 = vshrl.u32 %v5530, 7
    %v5532 = vsub.s32 %v5529, %v5531
    %v5533 = vrot.slane %v5511, %v5532
    %v5534 = vcombine.high %v5533, %v5533
    %v5536 = vunpack.c.l.s4 1966171168
    %v5537 = vunpack.c.0.s8 %v5536
    %v5538 = vlaneseq
    %v5539 = vshrl.u32 %v5538, 7
    %v5540 = vsub.s32 %v5537, %v5539
    %v5541 = vrot.slane %v5533, %v5540
    %v5543 = vunpack.c.l.s4 1966171168
    %v5544 = vunpack.c.0.s8 %v5543
    %v5545 = vlaneseq
    %v5546 = vshrl.u32 %v5545, 7
    %v5547 = vsub.s32 %v5544, %v5546
    %v5548 = vrot.slane %v5534, %v5547
    %v5549 = vlaneseq
    %v5550 = vshrl.u32 %v5549, 7
    %v5551 = vsub.s32 0, %v5550
    %v5552 = vrot.slane %v5541, %v5551
    %v5553 = vlaneseq
    %v5554 = vshrl.u32 %v5553, 7
    %v5555 = vsub.s32 0, %v5554
    %v5556 = vrot.slane %v5548, %v5555
    %v5559 = vmul.f32 %v5518, %v5552
    %v5560 = vmul.f32 %v5525, %v5556
    %v5561 = vsub.f32 1.0, %v5559
    %v5562 = vsub.f32 1.0, %v5560
    %5565 = vrot.lane.b32.xlu0 %v5561, 108
    %v5566 = vpop.permute.xlu0 %5565
    %5567 = vrot.lane.b32.xlu0 %v5562, 108
    %v5568 = vpop.permute.xlu0 %5567
    %v5571 = vmul.f32 %v4922, %v5566
    %v5572 = vmul.f32 %v4923, %v5568
    %v5574 = vunpack.c.l.s4 1966171168
    %v5575 = vunpack.c.0.s8 %v5574
    %v5576 = vlaneseq
    %v5577 = vshrl.u32 %v5576, 7
    %v5578 = vsub.s32 %v5575, %v5577
    %v5579 = vrot.slane %v5175, %v5578
    %v5580 = vcombine.high %v5579, %v5579
    %v5582 = vunpack.c.l.s4 1966171168
    %v5583 = vunpack.c.0.s8 %v5582
    %v5584 = vlaneseq
    %v5585 = vshrl.u32 %v5584, 7
    %v5586 = vsub.s32 %v5583, %v5585
    %v5587 = vrot.slane %v5579, %v5586
    %v5589 = vunpack.c.l.s4 1966171168
    %v5590 = vunpack.c.0.s8 %v5589
    %v5591 = vlaneseq
    %v5592 = vshrl.u32 %v5591, 7
    %v5593 = vsub.s32 %v5590, %v5592
    %v5594 = vrot.slane %v5580, %v5593
    %v5595 = vlaneseq
    %v5596 = vshrl.u32 %v5595, 7
    %v5597 = vsub.s32 0, %v5596
    %v5598 = vrot.slane %v5587, %v5597
    %v5599 = vlaneseq
    %v5600 = vshrl.u32 %v5599, 7
    %v5601 = vsub.s32 0, %v5600
    %v5602 = vrot.slane %v5594, %v5601
    %v5605 = vmul.f32 %v5518, %v5598
    %v5606 = vmul.f32 %v5525, %v5602
    %5609 = vrot.lane.b32.xlu0 %v5605, 104
    %v5610 = vpop.permute.xlu0 %5609
    %5611 = vrot.lane.b32.xlu0 %v5606, 104
    %v5612 = vpop.permute.xlu0 %5611
    %v5615 = vadd.f32 %v5571, %v5610
    %v5616 = vadd.f32 %v5572, %v5612
    %v5620 = vsel %vm1037, %v5505, %v5498
    %5621 = vrot.lane.b32.xlu0 %v5620, 16
    %v5622 = vpop.permute.xlu0 %5621
    %v5624 = vsel %vm761, %v5105, %v5622
    %s5625 = scalar_lea.vmem [#allocation14], 12
    %5626 = vst.msk [vmem:[%s5625] sm:$0x3] %vm1467, %v5624
    %v5627 = vld [vmem:[%s749] sm:$0x3]
    %5628 = vmatprep.subr.mxu0 0.0
    %5629 = vmatpush1.msra.mxu0 0.0
    %5630 = vmatprep.subr.mxu0 0.0
    %5631 = vmatpush1.msra.mxu0 0.0
    %5632 = vmatprep.subr.mxu0 0.0
    %5633 = vmatpush1.msra.mxu0 0.0
    %5634 = vmatprep.subr.mxu0 0.0
    %5635 = vmatpush1.msra.mxu0 0.0
    %5636 = vmatprep.subr.mxu0 0.0
    %5637 = vmatpush1.msra.mxu0 0.0
    %5638 = vmatprep.subr.mxu0 0.0
    %5639 = vmatpush1.msra.mxu0 0.0
    %5640 = vmatprep.subr.mxu0 0.0
    %5641 = vmatpush1.msra.mxu0 0.0
    %5642 = vmatprep.subr.mxu0 0.0
    %5643 = vmatpush1.msra.mxu0 0.0
    %5644 = vmatprep.subr.mxu0 0.0
    %5645 = vmatpush1.msra.mxu0 0.0
    %5646 = vmatprep.subr.mxu0 0.0
    %5647 = vmatpush1.msra.mxu0 0.0
    %5648 = vmatprep.subr.mxu0 0.0
    %5649 = vmatpush1.msra.mxu0 0.0
    %5650 = vmatprep.subr.mxu0 0.0
    %5651 = vmatpush1.msra.mxu0 0.0
    %5652 = vmatprep.subr.mxu0 0.0
    %5653 = vmatpush1.msra.mxu0 0.0
    %5654 = vmatprep.subr.mxu0 0.0
    %5655 = vmatpush1.msra.mxu0 0.0
    %5656 = vmatprep.subr.mxu0 0.0
    %5657 = vmatpush1.msra.mxu0 %v124
    %5658 = vmatprep.subr.mxu0 0.0
    %5659 = vmatpush1.msra.mxu0 %v123
    %5660 = vmatprep.subr.mxu0 0.0
    %5661 = vmatpush2.msra.mxu0 0.0
    %5662 = vmatprep.subr.mxu0 0.0
    %5663 = vmatpush2.msra.mxu0 0.0
    %5664 = vmatprep.subr.mxu0 0.0
    %5665 = vmatpush2.msra.mxu0 0.0
    %5666 = vmatprep.subr.mxu0 0.0
    %5667 = vmatpush2.msra.mxu0 0.0
    %5668 = vmatprep.subr.mxu0 0.0
    %5669 = vmatpush2.msra.mxu0 0.0
    %5670 = vmatprep.subr.mxu0 0.0
    %5671 = vmatpush2.msra.mxu0 0.0
    %5672 = vmatprep.subr.mxu0 0.0
    %5673 = vmatpush2.msra.mxu0 0.0
    %5674 = vmatprep.subr.mxu0 0.0
    %5675 = vmatpush2.msra.mxu0 0.0
    %5676 = vmatprep.subr.mxu0 0.0
    %5677 = vmatpush2.msra.mxu0 0.0
    %5678 = vmatprep.subr.mxu0 0.0
    %5679 = vmatpush2.msra.mxu0 0.0
    %5680 = vmatprep.subr.mxu0 0.0
    %5681 = vmatpush2.msra.mxu0 0.0
    %5682 = vmatprep.subr.mxu0 0.0
    %5683 = vmatpush2.msra.mxu0 0.0
    %5684 = vmatprep.subr.mxu0 0.0
    %5685 = vmatpush2.msra.mxu0 0.0
    %5686 = vmatprep.subr.mxu0 0.0
    %5687 = vmatpush2.msra.mxu0 0.0
    %5688 = vmatprep.subr.mxu0 0.0
    %5689 = vmatpush2.msra.mxu0 0.0
    %5690 = vmatprep.subr.mxu0 0.0
    %5691 = vmatpush2.msra.mxu0 0.0
    %5692 = vmatprep.mubr.f32.mxu0 0.0
    %5693 = vmatmul.mubr.f32.gmra.mxu0 %v5106
    %v5694 = vpop.f32.mrf.mxu0
    %v5695 = vadd.f32 0.0, %v5694
    %v5696 = vpop.f32.mrf.mxu0
    %5697 = vdwg.mxu0
    %v5698 = vadd.f32 %v5627, %v5695
    %v5699 = vsel %vm836, %v5620, 0
    %5701 = vmatprep.subr.mxu0 0.0
    %5702 = vmatpush1.msra.mxu0 0.0
    %5703 = vmatprep.subr.mxu0 0.0
    %5704 = vmatpush1.msra.mxu0 0.0
    %5705 = vmatprep.subr.mxu0 0.0
    %5706 = vmatpush1.msra.mxu0 0.0
    %5707 = vmatprep.subr.mxu0 0.0
    %5708 = vmatpush1.msra.mxu0 0.0
    %5709 = vmatprep.subr.mxu0 0.0
    %5710 = vmatpush1.msra.mxu0 0.0
    %5711 = vmatprep.subr.mxu0 0.0
    %5712 = vmatpush1.msra.mxu0 0.0
    %5713 = vmatprep.subr.mxu0 0.0
    %5714 = vmatpush1.msra.mxu0 0.0
    %5715 = vmatprep.subr.mxu0 0.0
    %5716 = vmatpush1.msra.mxu0 0.0
    %5717 = vmatprep.subr.mxu0 0.0
    %5718 = vmatpush1.msra.mxu0 0.0
    %5719 = vmatprep.subr.mxu0 0.0
    %5720 = vmatpush1.msra.mxu0 0.0
    %5721 = vmatprep.subr.mxu0 0.0
    %5722 = vmatpush1.msra.mxu0 0.0
    %5723 = vmatprep.subr.mxu0 0.0
    %5724 = vmatpush1.msra.mxu0 0.0
    %5725 = vmatprep.subr.mxu0 0.0
    %5726 = vmatpush1.msra.mxu0 0.0
    %5727 = vmatprep.subr.mxu0 0.0
    %5728 = vmatpush1.msra.mxu0 0.0
    %5729 = vmatprep.subr.mxu0 0.0
    %5730 = vmatpush1.msra.mxu0 0.0
    %5731 = vmatprep.subr.mxu0 0.0
    %5732 = vmatpush1.msra.mxu0 %v841
    %5733 = vmatprep.subr.mxu0 0.0
    %5734 = vmatpush2.msra.mxu0 0.0
    %5735 = vmatprep.subr.mxu0 0.0
    %5736 = vmatpush2.msra.mxu0 0.0
    %5737 = vmatprep.subr.mxu0 0.0
    %5738 = vmatpush2.msra.mxu0 0.0
    %5739 = vmatprep.subr.mxu0 0.0
    %5740 = vmatpush2.msra.mxu0 0.0
    %5741 = vmatprep.subr.mxu0 0.0
    %5742 = vmatpush2.msra.mxu0 0.0
    %5743 = vmatprep.subr.mxu0 0.0
    %5744 = vmatpush2.msra.mxu0 0.0
    %5745 = vmatprep.subr.mxu0 0.0
    %5746 = vmatpush2.msra.mxu0 0.0
    %5747 = vmatprep.subr.mxu0 0.0
    %5748 = vmatpush2.msra.mxu0 0.0
    %5749 = vmatprep.subr.mxu0 0.0
    %5750 = vmatpush2.msra.mxu0 0.0
    %5751 = vmatprep.subr.mxu0 0.0
    %5752 = vmatpush2.msra.mxu0 0.0
    %5753 = vmatprep.subr.mxu0 0.0
    %5754 = vmatpush2.msra.mxu0 0.0
    %5755 = vmatprep.subr.mxu0 0.0
    %5756 = vmatpush2.msra.mxu0 0.0
    %5757 = vmatprep.subr.mxu0 0.0
    %5758 = vmatpush2.msra.mxu0 0.0
    %5759 = vmatprep.subr.mxu0 0.0
    %5760 = vmatpush2.msra.mxu0 0.0
    %5761 = vmatprep.subr.mxu0 0.0
    %5762 = vmatpush2.msra.mxu0 0.0
    %5763 = vmatprep.subr.mxu0 0.0
    %5764 = vmatpush2.msra.mxu0 0.0
    %5765 = vmatprep.mubr.f32.mxu0 0.0
    %5766 = vmatmul.mubr.f32.gmra.mxu0 %v5699
    %v5767 = vpop.f32.mrf.mxu0
    %v5768 = vadd.f32 0.0, %v5767
    %v5769 = vpop.f32.mrf.mxu0
    %5770 = vdwg.mxu0
    %v5771 = vadd.f32 %v5698, %v5768
    %v5772 = vxor.u32 %v5771, 2147483648
    %v5773 = vmul.f32 %v5772, 1.442695
    %v5774 = vpow.pop %v5773
    %v5775 = vadd.f32 %v5774, 1.0
    %v5776 = vrcp.pop %v5775
    %v5777 = vmul.f32 1.0, %v5776
    %v5778 = vtanh.pop %v5771
    %v5779 = vmul.f32 %v5777, %v5096
    %5781 = vrot.lane.b32.xlu0 %v5778, 96
    %v5782 = vpop.permute.xlu0 %5781
    %v5784 = vmul.f32 %v5777, %v5782
    %5786 = vrot.lane.b32.xlu0 %v5784, 16
    %v5787 = vpop.permute.xlu0 %5786
    %v5789 = vadd.f32 %v5779, %v5787
    %v5790 = vtanh.pop %v5789
    %5792 = vrot.lane.b32.xlu0 %v5790, 32
    %v5793 = vpop.permute.xlu0 %5792
    %v5795 = vmul.f32 %v5777, %v5793
    %5797 = vrot.lane.b32.xlu0 %v5795, 80
    %v5798 = vpop.permute.xlu0 %5797
    %v5799 = vsel %vm761, %v5798, 0
    %5801 = vmatprep.subr.mxu0 0.0
    %5802 = vmatpush1.msra.mxu0 0.0
    %5803 = vmatprep.subr.mxu0 0.0
    %5804 = vmatpush1.msra.mxu0 0.0
    %5805 = vmatprep.subr.mxu0 0.0
    %5806 = vmatpush1.msra.mxu0 0.0
    %5807 = vmatprep.subr.mxu0 0.0
    %5808 = vmatpush1.msra.mxu0 0.0
    %5809 = vmatprep.subr.mxu0 0.0
    %5810 = vmatpush1.msra.mxu0 0.0
    %5811 = vmatprep.subr.mxu0 0.0
    %5812 = vmatpush1.msra.mxu0 0.0
    %5813 = vmatprep.subr.mxu0 0.0
    %5814 = vmatpush1.msra.mxu0 0.0
    %5815 = vmatprep.subr.mxu0 0.0
    %5816 = vmatpush1.msra.mxu0 0.0
    %5817 = vmatprep.subr.mxu0 0.0
    %5818 = vmatpush1.msra.mxu0 0.0
    %5819 = vmatprep.subr.mxu0 0.0
    %5820 = vmatpush1.msra.mxu0 0.0
    %5821 = vmatprep.subr.mxu0 0.0
    %5822 = vmatpush1.msra.mxu0 0.0
    %5823 = vmatprep.subr.mxu0 0.0
    %5824 = vmatpush1.msra.mxu0 0.0
    %5825 = vmatprep.subr.mxu0 0.0
    %5826 = vmatpush1.msra.mxu0 0.0
    %5827 = vmatprep.subr.mxu0 0.0
    %5828 = vmatpush1.msra.mxu0 0.0
    %5829 = vmatprep.subr.mxu0 0.0
    %5830 = vmatpush1.msra.mxu0 %v127
    %5831 = vmatprep.subr.mxu0 0.0
    %5832 = vmatpush1.msra.mxu0 %v126
    %5833 = vmatprep.subr.mxu0 0.0
    %5834 = vmatpush2.msra.mxu0 0.0
    %5835 = vmatprep.subr.mxu0 0.0
    %5836 = vmatpush2.msra.mxu0 0.0
    %5837 = vmatprep.subr.mxu0 0.0
    %5838 = vmatpush2.msra.mxu0 0.0
    %5839 = vmatprep.subr.mxu0 0.0
    %5840 = vmatpush2.msra.mxu0 0.0
    %5841 = vmatprep.subr.mxu0 0.0
    %5842 = vmatpush2.msra.mxu0 0.0
    %5843 = vmatprep.subr.mxu0 0.0
    %5844 = vmatpush2.msra.mxu0 0.0
    %5845 = vmatprep.subr.mxu0 0.0
    %5846 = vmatpush2.msra.mxu0 0.0
    %5847 = vmatprep.subr.mxu0 0.0
    %5848 = vmatpush2.msra.mxu0 0.0
    %5849 = vmatprep.subr.mxu0 0.0
    %5850 = vmatpush2.msra.mxu0 0.0
    %5851 = vmatprep.subr.mxu0 0.0
    %5852 = vmatpush2.msra.mxu0 0.0
    %5853 = vmatprep.subr.mxu0 0.0
    %5854 = vmatpush2.msra.mxu0 0.0
    %5855 = vmatprep.subr.mxu0 0.0
    %5856 = vmatpush2.msra.mxu0 0.0
    %5857 = vmatprep.subr.mxu0 0.0
    %5858 = vmatpush2.msra.mxu0 0.0
    %5859 = vmatprep.subr.mxu0 0.0
    %5860 = vmatpush2.msra.mxu0 0.0
    %5861 = vmatprep.subr.mxu0 0.0
    %5862 = vmatpush2.msra.mxu0 0.0
    %5863 = vmatprep.subr.mxu0 0.0
    %5864 = vmatpush2.msra.mxu0 0.0
    %5865 = vmatprep.mubr.f32.mxu0 0.0
    %5866 = vmatmul.mubr.f32.gmra.mxu0 %v5799
    %v5867 = vpop.f32.mrf.mxu0
    %v5868 = vadd.f32 %v946, %v5867
    %v5869 = vpop.f32.mrf.mxu0
    %5870 = vdwg.mxu0
    %v5871 = vadd.f32 %v5615, 1e-16
    %v5872 = vadd.f32 %v5616, 1e-16
    %v5873 = vmul.f32 %v5871, %v5871
    %v5874 = vmul.f32 %v5872, %v5872
    %v5875 = vsel %vm836, %v5873, 0.0
    %5876 = vadd.xlane.f32.xlu0 %v5875
    %v5877 = vpop.xlane.xlu0 %5876
    %v5878 = vsel %vm836, %v5874, 0.0
    %5879 = vadd.xlane.f32.xlu0 %v5878
    %v5880 = vpop.xlane.xlu0 %5879
    %v5881 = vmax.f32 %v5877, 1e-16
    %v5882 = vmax.f32 %v5880, 1e-16
    %v5883 = vrsqrt.pop %v5881
    %v5884 = vrsqrt.pop %v5882
    %v5887 = vlaneseq
    %v5888 = vshrl.u32 %v5887, 7
    %v5889 = vsub.s32 %v1032, %v5888
    %v5890 = vrot.slane %v5883, %v5889
    %v5891 = vlaneseq
    %v5892 = vshrl.u32 %v5891, 7
    %v5893 = vsub.s32 %v1032, %v5892
    %v5894 = vrot.slane %v5884, %v5893
    %v5895 = vsel %vm1037, %v5894, %v5890
    %v5897 = vsel %vm1039, %v5894, %v5890
    %v5899 = vsel %vm1040, %v5895, %v5897
    %v5901 = vrot.slane %v5868, 6
    %5902 = vrot.lane.b32.xlu0 %v5901, 118
    %v5903 = vpop.permute.xlu0 %5902
    %v5905 = vsel %vm1040, %v5868, %v5903
    %v5906 = vmax.f32 %v5905, 0.0
    %vm5907 = vcmp.ne.f32.partialorder %v5905, %v5905
    %v5908 = vadd.f32 %v5905, 0.0
    %v5909 = vand.u32 2147483647, %v5905
    %v5910 = vsub.f32 0.0, %v5909
    %v5911 = vmul.f32 %v5910, 1.442695
    %v5912 = vpow.pop %v5911
    %v5913 = vadd.f32 %v5912, 1.0
    %v5914 = vlog2.pop %v5913
    %v5915 = vmul.f32 %v5914, 0.6931472
    %v5916 = vmul.f32 -0.5, %v5912
    %v5917 = vadd.f32 %v5916, 1.0
    %v5918 = vmul.f32 %v5917, %v5912
    %v5919 = vand.u32 2147483647, %v5912
    %vm5920 = vcmp.lt.f32.partialorder %v5919, 0.0004427343
    %v5921 = vsel %vm5920, %v5918, %v5915
    %v5922 = vadd.f32 %v5906, %v5921
    %v5923 = vsel %vm5907, %v5908, %v5922
    %v5924 = vxor.u32 %v5905, 2147483648
    %v5925 = vmul.f32 %v5924, 1.442695
    %v5926 = vpow.pop %v5925
    %v5927 = vadd.f32 %v5926, 1.0
    %v5928 = vrcp.pop %v5927
    %v5929 = vmul.f32 1.0, %v5928
    %v5930 = vadd.f32 %v5923, 1.0
    %v5931 = vsel %vm1073, %v5905, -inf
    %5932 = vmax.xlane.f32.xlu0 %v5931
    %v5933 = vpop.xlane.xlu0 %5932
    %v5934 = vsub.f32 %v5905, %v5933
    %v5935 = vmul.f32 %v5934, 1.442695
    %v5936 = vpow.pop %v5935
    %5938 = vrot.lane.b32.xlu0 %v5936, 122
    %v5939 = vpop.permute.xlu0 %5938
    %v5941 = vsel %vm1084, %v5939, 0.0
    %5942 = vadd.xlane.f32.xlu0 %v5941
    %v5943 = vpop.xlane.xlu0 %5942
    %v5944 = vrcp.pop %v5943
    %v5945 = vmul.f32 %v5936, %v5944
    %v5946 = vadd.f32 %v5905, 1e-16
    %v5949 = vunpack.c.l.s4 1966171168
    %v5950 = vunpack.c.0.s8 %v5949
    %v5951 = vlaneseq
    %v5952 = vshrl.u32 %v5951, 7
    %v5953 = vsub.s32 %v5950, %v5952
    %v5954 = vrot.slane %v5946, %v5953
    %v5955 = vcombine.high %v5954, %v5954
    %v5957 = vunpack.c.l.s4 1966171168
    %v5958 = vunpack.c.0.s8 %v5957
    %v5959 = vlaneseq
    %v5960 = vshrl.u32 %v5959, 7
    %v5961 = vsub.s32 %v5958, %v5960
    %v5962 = vrot.slane %v5954, %v5961
    %v5964 = vunpack.c.l.s4 1966171168
    %v5965 = vunpack.c.0.s8 %v5964
    %v5966 = vlaneseq
    %v5967 = vshrl.u32 %v5966, 7
    %v5968 = vsub.s32 %v5965, %v5967
    %v5969 = vrot.slane %v5955, %v5968
    %v5970 = vcombine.high %v5962, %v5962
    %v5971 = vcombine.high %v5969, %v5969
    %v5972 = vlaneseq
    %v5973 = vshrl.u32 %v5972, 7
    %v5974 = vsub.s32 0, %v5973
    %v5975 = vrot.slane %v5962, %v5974
    %v5976 = vlaneseq
    %v5977 = vshrl.u32 %v5976, 7
    %v5978 = vsub.s32 0, %v5977
    %v5979 = vrot.slane %v5969, %v5978
    %v5980 = vlaneseq
    %v5981 = vshrl.u32 %v5980, 7
    %v5982 = vsub.s32 0, %v5981
    %v5983 = vrot.slane %v5970, %v5982
    %v5984 = vlaneseq
    %v5985 = vshrl.u32 %v5984, 7
    %v5986 = vsub.s32 0, %v5985
    %v5987 = vrot.slane %v5971, %v5986
    %v5992 = vmul.f32 %v5871, %v5975
    %v5993 = vmul.f32 %v5872, %v5979
    %v5994 = vmul.f32 %v5871, %v5983
    %v5995 = vmul.f32 %v5872, %v5987
    %v5996 = vsel %vm836, %v5992, 0.0
    %5997 = vadd.xlane.f32.xlu0 %v5996
    %v5998 = vpop.xlane.xlu0 %5997
    %v5999 = vsel %vm836, %v5993, 0.0
    %6000 = vadd.xlane.f32.xlu0 %v5999
    %v6001 = vpop.xlane.xlu0 %6000
    %v6002 = vsel %vm836, %v5994, 0.0
    %6003 = vadd.xlane.f32.xlu0 %v6002
    %v6004 = vpop.xlane.xlu0 %6003
    %v6005 = vsel %vm836, %v5995, 0.0
    %6006 = vadd.xlane.f32.xlu0 %v6005
    %v6007 = vpop.xlane.xlu0 %6006
    %v6008 = vmul.f32 %v5946, %v5946
    %v6009 = vsel %vm1153, %v6008, 0.0
    %6010 = vadd.xlane.f32.xlu0 %v6009
    %v6011 = vpop.xlane.xlu0 %6010
    %v6012 = vmax.f32 %v6011, 1e-16
    %v6013 = vrsqrt.pop %v6012
    %v6014 = vmul.f32 %v5899, %v6013
    %v6016 = vlaneseq
    %v6017 = vshrl.u32 %v6016, 7
    %v6018 = vsub.s32 0, %v6017
    %v6019 = vrot.slane %v6014, %v6018
    %6021 = vbcast.lane.b32.xlu0 %v6019, 256
    %v6022 = vpop.permute.xlu0 %6021
    %v6023 = vlaneseq
    %v6024 = vshrl.u32 %v6023, 7
    %v6025 = vsub.s32 1, %v6024
    %v6026 = vrot.slane %v6014, %v6025
    %6028 = vbcast.lane.b32.xlu0 %v6026, 256
    %v6029 = vpop.permute.xlu0 %6028
    %v6030 = vlaneseq
    %v6031 = vshrl.u32 %v6030, 7
    %v6032 = vsub.s32 2, %v6031
    %v6033 = vrot.slane %v6014, %v6032
    %6035 = vbcast.lane.b32.xlu0 %v6033, 256
    %v6036 = vpop.permute.xlu0 %6035
    %v6037 = vlaneseq
    %v6038 = vshrl.u32 %v6037, 7
    %v6039 = vsub.s32 3, %v6038
    %v6040 = vrot.slane %v6014, %v6039
    %6042 = vbcast.lane.b32.xlu0 %v6040, 256
    %v6043 = vpop.permute.xlu0 %6042
    %v6048 = vmul.f32 %v5998, %v6022
    %v6049 = vmul.f32 %v6001, %v6029
    %v6050 = vmul.f32 %v6004, %v6036
    %v6051 = vmul.f32 %v6007, %v6043
    %6053 = vset.pattern.permute.xlu0 4
    %6054 = vperm.xlu0 %6053, %v5923
    %v6055 = vpop.permute.xlu0 %6054
    %6061 = vset.pattern.permute.xlu0 0
    %6062 = vperm.xlu0 %6061, %v6048
    %v6063 = vpop.permute.xlu0 %6062
    %6064 = vset.pattern.permute.xlu0 0
    %6065 = vperm.xlu0 %6064, %v6049
    %v6066 = vpop.permute.xlu0 %6065
    %6067 = vset.pattern.permute.xlu0 0
    %6068 = vperm.xlu0 %6067, %v6050
    %v6069 = vpop.permute.xlu0 %6068
    %6070 = vset.pattern.permute.xlu0 0
    %6071 = vperm.xlu0 %6070, %v6051
    %v6072 = vpop.permute.xlu0 %6071
    %v6073 = vlaneseq
    %v6074 = vshrl.u32 %v6073, 7
    %v6075 = vsub.s32 %v1032, %v6074
    %v6076 = vrot.slane %v6063, %v6075
    %v6077 = vlaneseq
    %v6078 = vshrl.u32 %v6077, 7
    %v6079 = vsub.s32 %v1032, %v6078
    %v6080 = vrot.slane %v6066, %v6079
    %v6081 = vlaneseq
    %v6082 = vshrl.u32 %v6081, 7
    %v6083 = vsub.s32 %v1032, %v6082
    %v6084 = vrot.slane %v6069, %v6083
    %v6085 = vlaneseq
    %v6086 = vshrl.u32 %v6085, 7
    %v6087 = vsub.s32 %v1032, %v6086
    %v6088 = vrot.slane %v6072, %v6087
    %v6089 = vsel %vm1037, %v6080, %v6076
    %v6090 = vsel %vm1235, %v6084, %v6089
    %v6091 = vsel %vm1039, %v6088, %v6090
    %v6093 = vmul.f32 %v6055, %v6091
    %v6094 = vsel %vm1240, %v6093, -inf
    %6095 = vmax.xlane.f32.xlu0 %v6094
    %v6096 = vpop.xlane.xlu0 %6095
    %v6097 = vsub.f32 %v6093, %v6096
    %v6098 = vmul.f32 %v6097, 1.442695
    %v6099 = vpow.pop %v6098
    %v6100 = vsel %vm1240, %v6099, 0.0
    %6101 = vadd.xlane.f32.xlu0 %v6100
    %v6102 = vpop.xlane.xlu0 %6101
    %v6103 = vrcp.pop %v6102
    %v6104 = vmul.f32 %v6099, %v6103
    %6106 = vset.pattern.permute.xlu0 5
    %6107 = vperm.xlu0 %6106, %v5929
    %v6108 = vpop.permute.xlu0 %6107
    %v6110 = vmul.f32 %v6108, %v6104
    %v6111 = vsub.f32 1.0, %v5929
    %6113 = vset.pattern.permute.xlu0 5
    %6114 = vperm.xlu0 %6113, %v6111
    %v6115 = vpop.permute.xlu0 %6114
    %v6117 = vmul.f32 %v6115, %v5475
    %v6118 = vadd.f32 %v6110, %v6117
    %6120 = vrot.lane.b32.xlu0 %v6118, 121
    %v6121 = vpop.permute.xlu0 %6120
    %6123 = vrot.lane.b32.xlu0 %v6118, 1
    %v6124 = vpop.permute.xlu0 %6123
    %v6126 = vsel %vm1273, %v6121, %v6124
    %6127 = vrot.lane.b32.xlu0 %v6118, 127
    %v6128 = vpop.permute.xlu0 %6127
    %6130 = vrot.lane.b32.xlu0 %v6118, 7
    %v6131 = vpop.permute.xlu0 %6130
    %v6133 = vsel %vm1281, %v6128, %v6131
    %6135 = vset.pattern.permute.xlu0 6
    %6136 = vperm.xlu0 %6135, %v5945
    %v6137 = vpop.permute.xlu0 %6136
    %v6139 = vmul.f32 %v6137, %v6126
    %6140 = vset.pattern.permute.xlu0 7
    %6141 = vperm.xlu0 %6140, %v5945
    %v6142 = vpop.permute.xlu0 %6141
    %v6144 = vmul.f32 %v6142, %v6118
    %v6145 = vadd.f32 %v6139, %v6144
    %6146 = vset.pattern.permute.xlu0 8
    %6147 = vperm.xlu0 %6146, %v5945
    %v6148 = vpop.permute.xlu0 %6147
    %v6150 = vmul.f32 %v6148, %v6133
    %v6151 = vadd.f32 %v6145, %v6150
    %v6152 = vmax.f32 %v6151, 1e-30
    %v6153 = vlog2.pop %v6152
    %v6154 = vmul.f32 %v6153, 0.6931472
    %6156 = vset.pattern.permute.xlu0 9
    %6157 = vperm.xlu0 %6156, %v5930
    %v6158 = vpop.permute.xlu0 %6157
    %v6160 = vmul.f32 %v6158, %v6154
    %v6161 = vmul.f32 %v6160, 1.442695
    %v6162 = vpow.pop %v6161
    %v6163 = vsel %vm1240, %v6162, 0.0
    %6164 = vadd.xlane.f32.xlu0 %v6163
    %v6165 = vpop.xlane.xlu0 %6164
    %v6166 = vadd.f32 %v6165, 1e-16
    %v6167 = vrcp.pop %v6166
    %v6168 = vmul.f32 %v6162, %v6167
    %v6169 = vlaneseq
    %v6170 = vshrl.u32 %v6169, 7
    %v6171 = vsub.s32 0, %v6170
    %v6172 = vrot.slane %v6168, %v6171
    %6174 = vbcast.lane.b32.xlu0 %v6172, 256
    %v6175 = vpop.permute.xlu0 %6174
    %v6176 = vlaneseq
    %v6177 = vshrl.u32 %v6176, 7
    %v6178 = vsub.s32 1, %v6177
    %v6179 = vrot.slane %v6168, %v6178
    %6181 = vbcast.lane.b32.xlu0 %v6179, 256
    %v6182 = vpop.permute.xlu0 %6181
    %v6183 = vmul.f32 %v6175, %v5615
    %v6184 = vmul.f32 %v6182, %v5616
    %v6185 = vsel %vm836, %v6183, 0.0
    %v6186 = vrot.slane %v6185, 4
    %v6187 = vadd.f32 %v6185, %v6186
    %v6188 = vrot.slane %v6187, 2
    %v6189 = vadd.f32 %v6187, %v6188
    %v6190 = vrot.slane %v6189, 1
    %v6191 = vadd.f32 %v6189, %v6190
    %v6192 = vsel %vm836, %v6184, 0.0
    %v6193 = vrot.slane %v6192, 4
    %v6194 = vadd.f32 %v6192, %v6193
    %v6195 = vrot.slane %v6194, 2
    %v6196 = vadd.f32 %v6194, %v6195
    %v6197 = vrot.slane %v6196, 1
    %v6198 = vadd.f32 %v6196, %v6197
    %v6199 = vxor.u32 %v5868, 2147483648
    %v6200 = vmul.f32 %v6199, 1.442695
    %v6201 = vpow.pop %v6200
    %v6202 = vadd.f32 %v6201, 1.0
    %v6203 = vrcp.pop %v6202
    %v6204 = vmul.f32 1.0, %v6203
    %v6205 = vlaneseq
    %v6206 = vshrl.u32 %v6205, 7
    %v6207 = vsub.s32 2, %v6206
    %v6208 = vrot.slane %v6168, %v6207
    %6210 = vbcast.lane.b32.xlu0 %v6208, 256
    %v6211 = vpop.permute.xlu0 %6210
    %v6212 = vlaneseq
    %v6213 = vshrl.u32 %v6212, 7
    %v6214 = vsub.s32 3, %v6213
    %v6215 = vrot.slane %v6168, %v6214
    %6217 = vbcast.lane.b32.xlu0 %v6215, 256
    %v6218 = vpop.permute.xlu0 %6217
    %v6221 = vunpack.c.l.s4 1966171168
    %v6222 = vunpack.c.0.s8 %v6221
    %v6223 = vlaneseq
    %v6224 = vshrl.u32 %v6223, 7
    %v6225 = vsub.s32 %v6222, %v6224
    %v6226 = vrot.slane %v6204, %v6225
    %v6227 = vcombine.high %v6226, %v6226
    %v6229 = vunpack.c.l.s4 1966171168
    %v6230 = vunpack.c.0.s8 %v6229
    %v6231 = vlaneseq
    %v6232 = vshrl.u32 %v6231, 7
    %v6233 = vsub.s32 %v6230, %v6232
    %v6234 = vrot.slane %v6226, %v6233
    %v6236 = vunpack.c.l.s4 1966171168
    %v6237 = vunpack.c.0.s8 %v6236
    %v6238 = vlaneseq
    %v6239 = vshrl.u32 %v6238, 7
    %v6240 = vsub.s32 %v6237, %v6239
    %v6241 = vrot.slane %v6227, %v6240
    %v6242 = vlaneseq
    %v6243 = vshrl.u32 %v6242, 7
    %v6244 = vsub.s32 0, %v6243
    %v6245 = vrot.slane %v6234, %v6244
    %v6246 = vlaneseq
    %v6247 = vshrl.u32 %v6246, 7
    %v6248 = vsub.s32 0, %v6247
    %v6249 = vrot.slane %v6241, %v6248
    %v6252 = vmul.f32 %v6211, %v6245
    %v6253 = vmul.f32 %v6218, %v6249
    %v6254 = vsub.f32 1.0, %v6252
    %v6255 = vsub.f32 1.0, %v6253
    %6258 = vrot.lane.b32.xlu0 %v6254, 108
    %v6259 = vpop.permute.xlu0 %6258
    %6260 = vrot.lane.b32.xlu0 %v6255, 108
    %v6261 = vpop.permute.xlu0 %6260
    %v6264 = vmul.f32 %v5615, %v6259
    %v6265 = vmul.f32 %v5616, %v6261
    %v6267 = vunpack.c.l.s4 1966171168
    %v6268 = vunpack.c.0.s8 %v6267
    %v6269 = vlaneseq
    %v6270 = vshrl.u32 %v6269, 7
    %v6271 = vsub.s32 %v6268, %v6270
    %v6272 = vrot.slane %v5868, %v6271
    %v6273 = vcombine.high %v6272, %v6272
    %v6275 = vunpack.c.l.s4 1966171168
    %v6276 = vunpack.c.0.s8 %v6275
    %v6277 = vlaneseq
    %v6278 = vshrl.u32 %v6277, 7
    %v6279 = vsub.s32 %v6276, %v6278
    %v6280 = vrot.slane %v6272, %v6279
    %v6282 = vunpack.c.l.s4 1966171168
    %v6283 = vunpack.c.0.s8 %v6282
    %v6284 = vlaneseq
    %v6285 = vshrl.u32 %v6284, 7
    %v6286 = vsub.s32 %v6283, %v6285
    %v6287 = vrot.slane %v6273, %v6286
    %v6288 = vlaneseq
    %v6289 = vshrl.u32 %v6288, 7
    %v6290 = vsub.s32 0, %v6289
    %v6291 = vrot.slane %v6280, %v6290
    %v6292 = vlaneseq
    %v6293 = vshrl.u32 %v6292, 7
    %v6294 = vsub.s32 0, %v6293
    %v6295 = vrot.slane %v6287, %v6294
    %v6298 = vmul.f32 %v6211, %v6291
    %v6299 = vmul.f32 %v6218, %v6295
    %6302 = vrot.lane.b32.xlu0 %v6298, 104
    %v6303 = vpop.permute.xlu0 %6302
    %6304 = vrot.lane.b32.xlu0 %v6299, 104
    %v6305 = vpop.permute.xlu0 %6304
    %v6308 = vadd.f32 %v6264, %v6303
    %v6309 = vadd.f32 %v6265, %v6305
    %v6313 = vsel %vm1037, %v6198, %v6191
    %6314 = vrot.lane.b32.xlu0 %v6313, 16
    %v6315 = vpop.permute.xlu0 %6314
    %v6317 = vsel %vm761, %v5798, %v6315
    %s6318 = scalar_lea.vmem [#allocation14], 14
    %6319 = vst.msk [vmem:[%s6318] sm:$0x3] %vm1467, %v6317
    %vm6320 = vcmask 123904
    %6321 = vst.msk [vmem:[#allocation15] sm:$0x3] %vm6320, %v5798
    %6323 = vrot.lane.b32.xlu0 %v5789, 112
    %v6324 = vpop.permute.xlu0 %6323
    %6326 = vst.msk [vmem:[#allocation17] sm:$0x3] %vm6320, %v6324
    %6327 = vst.msk [vmem:[%s14] sm:$0xff] %vm836, %v6308
    %6328 = vst.msk [vmem:[%s14 + $0x8] sm:$0xff] %vm836, %v6309
    %vm6330 = vcmask 25600
    %6331 = vst.msk [vmem:[#allocation18] sm:$0x3] %vm6330, %v6313
    %vm6332 = vcmask 58368
    %6333 = vst.msk [vmem:[#allocation20] sm:$0x3] %vm6332, %v6168
    %s6334 = scalar_lea.vmem [#allocation20], 2
    %vm6335 = vcmask 60418
    %6336 = vst.msk [vmem:[%s6334 - $0x2] sm:$0xc] %vm6335, %v6168
    // Predicated region
    $region70: #{tpu_custom_call.1} parent=1 // pred_check
      _
    $region71: #{tpu_custom_call.1} parent=1 // pred_check_branch
      %6338 = sbr.rel (0) target = $region73
    $region72: #{tpu_custom_call.1} parent=1 // pred_region
      %s6340 = ssub.s32 256, 256
      %6341 = vsyncadd [#allocation5], %s6340
      %s6342 = sshll.u32 [#allocation14], 4
      %s6343 = int_to_ptr.vmem [resolvable:$true] %s6342
      %6348 = dma.vmem_to_hbm [thread:$0]  %s6343, 256, %s11, [#allocation5], 32, 32, 2
    $region73: #{tpu_custom_call.1} parent=1 // pred_fallthru
      _
    // Predicated region
    $region74: #{tpu_custom_call.1} parent=1 // pred_check
      _
    $region75: #{tpu_custom_call.1} parent=1 // pred_check_branch
      %6350 = sbr.rel (0) target = $region77
    $region76: #{tpu_custom_call.1} parent=1 // pred_region
      %s6352 = ssub.s32 32, 32
      %6353 = vsyncadd [#allocation16], %s6352
      %s6355 = sshll.u32 [#allocation15], 4
      %s6356 = int_to_ptr.vmem [resolvable:$true] %s6355
      %6358 = dma.vmem_to_hbm [thread:$0]  %s6356, 32, %s12, [#allocation16]
    $region77: #{tpu_custom_call.1} parent=1 // pred_fallthru
      _
    // Predicated region
    $region78: #{tpu_custom_call.1} parent=1 // pred_check
      _
    $region79: #{tpu_custom_call.1} parent=1 // pred_check_branch
      %6360 = sbr.rel (0) target = $region81
    $region80: #{tpu_custom_call.1} parent=1 // pred_region
      %s6362 = ssub.s32 32, 32
      %6363 = vsyncadd [#allocation16], %s6362
      %s6365 = sshll.u32 [#allocation17], 4
      %s6366 = int_to_ptr.vmem [resolvable:$true] %s6365
      %6368 = dma.vmem_to_hbm [thread:$0]  %s6366, 32, %s13, [#allocation16]
    $region81: #{tpu_custom_call.1} parent=1 // pred_fallthru
      _
    // Predicated region
    $region82: #{tpu_custom_call.1} parent=1 // pred_check
      _
    $region83: #{tpu_custom_call.1} parent=1 // pred_check_branch
      %6370 = sbr.rel (0) target = $region85
    $region84: #{tpu_custom_call.1} parent=1 // pred_region
      _
    $region85: #{tpu_custom_call.1} parent=1 // pred_fallthru
      _
    // Predicated region
    $region86: #{tpu_custom_call.1} parent=1 // pred_check
      _
    $region87: #{tpu_custom_call.1} parent=1 // pred_check_branch
      %6372 = sbr.rel (0) target = $region89
    $region88: #{tpu_custom_call.1} parent=1 // pred_region
      %s6374 = ssub.s32 32, 32
      %6375 = vsyncadd [#allocation19], %s6374
      %s6377 = sshll.u32 [#allocation18], 4
      %s6378 = int_to_ptr.vmem [resolvable:$true] %s6377
      %6380 = dma.vmem_to_hbm [thread:$0]  %s6378, 32, %s15, [#allocation19]
    $region89: #{tpu_custom_call.1} parent=1 // pred_fallthru
      _
    // Predicated region
    $region90: #{tpu_custom_call.1} parent=1 // pred_check
      _
    $region91: #{tpu_custom_call.1} parent=1 // pred_check_branch
      %6382 = sbr.rel (0) target = $region93
    $region92: #{tpu_custom_call.1} parent=1 // pred_region
      %s6384 = ssub.s32 64, 64
      %6385 = vsyncadd [#allocation19], %s6384
      %s6386 = sshll.u32 [#allocation20], 4
      %s6387 = int_to_ptr.vmem [resolvable:$true] %s6386
      %6392 = dma.vmem_to_hbm [thread:$0]  %s6387, 64, %s16, [#allocation19], 32, 32, 2
    $region93: #{tpu_custom_call.1} parent=1 // pred_fallthru
      _
    // Predicated region
    $region94: #{tpu_custom_call.1} parent=1 // pred_check
      _
    $region95: #{tpu_custom_call.1} parent=1 // pred_check_branch
      %6394 = sbr.rel (0) target = $region97
    $region96: #{tpu_custom_call.1} parent=1 // pred_region
      %6395 = dma.done [#allocation5], 256
    $region97: #{tpu_custom_call.1} parent=1 // pred_fallthru
      _
    // Predicated region
    $region98: #{tpu_custom_call.1} parent=1 // pred_check
      _
    $region99: #{tpu_custom_call.1} parent=1 // pred_check_branch
      %6397 = sbr.rel (0) target = $region101
    $region100: #{tpu_custom_call.1} parent=1 // pred_region
      %6398 = dma.done [#allocation16], 32
    $region101: #{tpu_custom_call.1} parent=1 // pred_fallthru
      _
    // Predicated region
    $region102: #{tpu_custom_call.1} parent=1 // pred_check
      _
    $region103: #{tpu_custom_call.1} parent=1 // pred_check_branch
      %6400 = sbr.rel (0) target = $region105
    $region104: #{tpu_custom_call.1} parent=1 // pred_region
      %6401 = dma.done [#allocation16], 32
    $region105: #{tpu_custom_call.1} parent=1 // pred_fallthru
      _
    // Predicated region
    $region106: #{tpu_custom_call.1} parent=1 // pred_check
      _
    $region107: #{tpu_custom_call.1} parent=1 // pred_check_branch
      %6403 = sbr.rel (0) target = $region109
    $region108: #{tpu_custom_call.1} parent=1 // pred_region
      _
    $region109: #{tpu_custom_call.1} parent=1 // pred_fallthru
      _
    // Predicated region
    $region110: #{tpu_custom_call.1} parent=1 // pred_check
      _
    $region111: #{tpu_custom_call.1} parent=1 // pred_check_branch
      %6405 = sbr.rel (0) target = $region113
    $region112: #{tpu_custom_call.1} parent=1 // pred_region
      %6406 = dma.done [#allocation19], 32
    $region113: #{tpu_custom_call.1} parent=1 // pred_fallthru
      _
    // Predicated region
    $region114: #{tpu_custom_call.1} parent=1 // pred_check
      _
    $region115: #{tpu_custom_call.1} parent=1 // pred_check_branch
      %6408 = sbr.rel (0) target = $region117
    $region116: #{tpu_custom_call.1} parent=1 // pred_region
      %6409 = dma.done [#allocation19], 64
    $region117: #{tpu_custom_call.1} parent=1 // pred_fallthru
      _
    %6410 = vsyncpa [#allocation4], 1
    %6411 = vsyncpa [#allocation7], 1
    %6412 = vsyncpa [#allocation10], 1
    %6413 = vsyncpa [#allocation13], 1
    %6414 = vsyncpa [#allocation5], 1
    %6415 = vsyncpa [#allocation16], 1
    %6416 = vsyncpa [#allocation19], 1

</llo_original>
